<compile_context>
chip_gen: v6e
topology: v6e:2x2x1
jax: 0.10.0
libtpu: 0.0.40
codegen_flags: <defaults>
</compile_context>

<pallas_src>
import functools

import jax
import jax.numpy as jnp
from jax.experimental import pallas as pl
from jax.experimental.pallas import tpu as pltpu

T = 120                      # hard-coded 120x120 mixer dims in the module
LN_EPS = 1e-5                # nn.LayerNorm default


def _vmem_limit_bytes():
    """~3/4 of physical VMEM, clamped to [32, 96] MiB (v7x->48, v5e/v6e->96)."""
    cap = 64 * 1024 * 1024
    try:
        cap = int(getattr(pltpu.get_tpu_info(), "vmem_capacity_bytes", cap))
    except Exception:
        pass
    return int(max(32 * 1024 * 1024, min(96 * 1024 * 1024, cap * 3 // 4)))


# ----------------------------- kernel ----------------------------------------

def _mixer_layer_kernel(x_ref, wf_ref, bf_ref, g1_ref, beta1_ref,
                        wh_ref, bh_ref, gh_ref, beth_ref, o_ref,
                        *, use_relu, num_hidden):
    """K-tiled folded GEMM -> act+LN -> layer_N x [Linear->act->LN], fused."""
    k = pl.program_id(1)

    @pl.when(k == 0)
    def _():
        o_ref[...] = jnp.zeros_like(o_ref)

    # Accumulate directly into the resident f32 output block (its block index
    # is constant along the k axis, so it lives in VMEM across k steps).
    o_ref[...] += jnp.dot(x_ref[...].astype(jnp.bfloat16), wf_ref[...],
                          preferred_element_type=jnp.float32)

    @pl.when(k == pl.num_programs(1) - 1)
    def _():
        def act(v):
            return jnp.maximum(v, 0.0) if use_relu else jnp.tanh(v)

        def layer_norm(v, g, b):
            mu = jnp.mean(v, axis=-1, keepdims=True)
            d = v - mu
            var = jnp.mean(d * d, axis=-1, keepdims=True)   # centered variance
            return d * jax.lax.rsqrt(var + LN_EPS) * g + b

        # fc1 (mixer already folded into wf/bf): bias + act + LayerNorm.
        # NOTE: on a partial last B-tile the padding rows compute garbage that
        # is discarded on store; all ops here are row-wise, so valid rows are
        # unaffected.  Do not "fix" this with extra masking.
        h = layer_norm(act(o_ref[...] + bf_ref[...]), g1_ref[...], beta1_ref[...])

        def body(l, hv):
            z = jnp.dot(hv.astype(wh_ref.dtype), wh_ref[l],
                        preferred_element_type=jnp.float32) + bh_ref[l]
            return layer_norm(act(z), gh_ref[l], beth_ref[l])

        if num_hidden > 0:
            h = jax.lax.fori_loop(0, num_hidden, body, h, unroll=True)
        o_ref[...] = h.astype(o_ref.dtype)


# ----------------------------- tiling helpers ---------------------------------

def _round_up(n, m):
    return ((n + m - 1) // m) * m


def _pick_tile_b(B, K, itemsize):
    if B <= 8:
        return B                                          # full-B block
    cap_mem = max(8, (8 * 1024 * 1024) // max(1, K * itemsize))  # <=8MiB/buffer
    half = _round_up((B + 1) // 2, 8)                     # >=2 blocks (v7x TCs)
    tb = min(B, 512, cap_mem, half)
    return max(8, (tb // 8) * 8)


def _pick_tile_k(K, target=7680):
    """Largest multiple-of-128 divisor of K <= target, else full-K block."""
    if K <= target:
        return K
    best = 0
    for m in range(128, target + 1, 128):
        if K % m == 0:
            best = m
    return best if best else K


# ----------------------------- wrapper ----------------------------------------

def mixer_layer_forward(x, batch, params, *, use_relu=True):
    """Replicates MixerLayer.forward(x, batch) in eval mode (no dropout)."""
    B = batch
    wf = params["w_fold"]
    K, H = wf.shape
    x2 = x.reshape(B, K)
    assert x2.shape[1] == K, "input_dim must be a multiple of 120*120"

    whs = params["whs"]
    L_pad = whs.shape[0]
    num_hidden = params["layer_N"]

    tb = _pick_tile_b(B, K, x2.dtype.itemsize)
    tk = _pick_tile_k(K)
    assert K % tk == 0
    grid = (pl.cdiv(B, tb), K // tk)

    kern = functools.partial(_mixer_layer_kernel, use_relu=use_relu,
                             num_hidden=num_hidden)
    return pl.pallas_call(
        kern,
        out_shape=jax.ShapeDtypeStruct((B, H), jnp.float32),
        grid=grid,
        in_specs=[
            pl.BlockSpec((tb, tk), lambda i, k: (i, k)),          # x
            pl.BlockSpec((tk, H), lambda i, k: (k, 0)),           # folded weight
            pl.BlockSpec((1, H), lambda i, k: (0, 0)),            # folded bias
            pl.BlockSpec((1, H), lambda i, k: (0, 0)),            # LN1 gamma
            pl.BlockSpec((1, H), lambda i, k: (0, 0)),            # LN1 beta
            pl.BlockSpec((L_pad, H, H), lambda i, k: (0, 0, 0)),  # hidden W
            pl.BlockSpec((L_pad, 1, H), lambda i, k: (0, 0, 0)),  # hidden b
            pl.BlockSpec((L_pad, 1, H), lambda i, k: (0, 0, 0)),  # hidden LN g
            pl.BlockSpec((L_pad, 1, H), lambda i, k: (0, 0, 0)),  # hidden LN b
        ],
        out_specs=pl.BlockSpec((tb, H), lambda i, k: (i, 0)),
        compiler_params=pltpu.CompilerParams(
            dimension_semantics=("parallel", "arbitrary"),
            vmem_limit_bytes=_vmem_limit_bytes(),
        ),
    )(x2, wf, params["b_fold"], params["g1k"], params["beta1k"],
      whs, params["bhs"], params["ghs"], params["beths"])


# ----------------------------- params (deterministic) -------------------------

def _xavier_uniform(key, fan_in, fan_out, gain):
    bound = gain * (6.0 / (fan_in + fan_out)) ** 0.5
    # stored pre-transposed: (in_features, out_features)
    return jax.random.uniform(key, (fan_in, fan_out), jnp.float32, -bound, bound)


def make_params(key, channels, hidden_size, layer_N, gain):
    K = channels * T * T
    H = hidden_size
    ks = jax.random.split(key, 4)
    wt = _xavier_uniform(ks[0], T, T, gain)       # token_mlp   (W^T layout)
    wc = _xavier_uniform(ks[1], T, T, gain)       # channel_mlp
    w1 = _xavier_uniform(ks[2], K, H, gain)       # fc1
    wh = _xavier_uniform(ks[3], H, H, gain)       # fc_h (cloned layer_N times)
    bt = jnp.zeros((T,), jnp.float32)
    bc = jnp.zeros((T,), jnp.float32)
    b1 = jnp.zeros((H,), jnp.float32)
    bh = jnp.zeros((H,), jnp.float32)
    g = jnp.ones((H,), jnp.float32)
    be = jnp.zeros((H,), jnp.float32)

    # Fold token_mlp -> channel_mlp -> fc1 into one affine map (f32, one-time).
    wtc = wt @ wc                                  # (120, 120)
    btc = bt @ wc + bc                             # (120,)
    w1_3d = w1.reshape(channels * T, T, H)
    w_fold = jnp.einsum("io,roh->rih", wtc, w1_3d).reshape(K, H)
    b_fold = b1 + btc @ jnp.sum(w1_3d, axis=0)

    L_pad = max(layer_N, 1)                        # keep shapes valid if L==0
    return {
        # kernel-side (folded / packed)
        "w_fold": w_fold.astype(jnp.bfloat16),
        "b_fold": b_fold.reshape(1, H),
        "g1k": g.reshape(1, H),
        "beta1k": be.reshape(1, H),
        # fc2 = get_clones(fc_h, layer_N): deep copies -> identical init.
        "whs": jnp.tile(wh[None], (L_pad, 1, 1)).astype(jnp.bfloat16),
        "bhs": jnp.tile(bh.reshape(1, 1, H), (L_pad, 1, 1)),
        "ghs": jnp.tile(g.reshape(1, 1, H), (L_pad, 1, 1)),
        "beths": jnp.tile(be.reshape(1, 1, H), (L_pad, 1, 1)),
        "layer_N": layer_N,
        # original f32 weights for the pure-JAX reference
        "wt": wt, "bt": bt, "wc": wc, "bc": bc,
        "w1": w1, "b1": b1, "g1": g, "beta1": be,
        "wh": wh, "bh": bh, "gh": g, "beth": be,
    }


# ----------------------------- pure-JAX reference -----------------------------

def reference_forward(x, batch, p, *, layer_N, use_relu):
    """Literal translation of the PyTorch graph with the unfolded f32 weights."""
    act = (lambda v: jnp.maximum(v, 0.0)) if use_relu else jnp.tanh

    def layer_norm(v, g, b):
        mu = jnp.mean(v, axis=-1, keepdims=True)
        var = jnp.mean((v - mu) ** 2, axis=-1, keepdims=True)
        return (v - mu) * jax.lax.rsqrt(var + LN_EPS) * g + b

    x4 = x.reshape(batch, -1, T, T)
    y = jnp.einsum("bchw,wo->bcho", x4, p["wt"]) + p["bt"]
    y = jnp.transpose(y, (0, 2, 1, 3))
    z = jnp.einsum("bhcw,wo->bhco", y, p["wc"]) + p["bc"]
    z = jnp.transpose(z, (0, 2, 1, 3)).reshape(batch, -1)

    h = layer_norm(act(z @ p["w1"] + p["b1"]), p["g1"], p["beta1"])
    for _ in range(layer_N):
        h = layer_norm(act(h @ p["wh"] + p["bh"]), p["gh"], p["beth"])
    return h


# ----------------------------- main -------------------------------------------

if __name__ == "__main__":
    batch = 2
    channels = 1                      # x.view(batch, -1, 120, 120) -> C = 1
    hidden_size = 128
    layer_N = 2
    use_relu = True                   # use_ReLU=True
    gain = 2.0 ** 0.5                 # nn.init.calculate_gain('relu')
    input_dim = channels * T * T      # 14400 (120x120 hard-coded by the module)

    key = jax.random.PRNGKey(0)
    kx, kp = jax.random.split(key)
    x = jax.random.normal(kx, (batch, input_dim), jnp.float32)
    params = make_params(kp, channels, hidden_size, layer_N, gain)

    out = mixer_layer_forward(x, batch, params, use_relu=use_relu)
    out = jax.block_until_ready(out)

    assert out.shape == (batch, hidden_size)
    assert bool(jnp.all(jnp.isfinite(out)))

    ref = reference_forward(x, batch, params, layer_N=layer_N, use_relu=use_relu)
    err = float(jnp.max(jnp.abs(out - ref)))
    assert err < 0.2, f"max abs error vs reference too large: {err}"
    print("KERNEL_OK")
</pallas_src>

<mosaic_0001>
module attributes {stable_mosaic.version = 11 : i64} {
  func.func @_mixer_layer_kernel(%arg0: i32, %arg1: i32, %arg2: memref<2x14400xf32, #tpu.memory_space<vmem>>, %arg3: memref<14400x128xbf16, #tpu.memory_space<vmem>>, %arg4: memref<1x128xf32, #tpu.memory_space<vmem>>, %arg5: memref<1x128xf32, #tpu.memory_space<vmem>>, %arg6: memref<1x128xf32, #tpu.memory_space<vmem>>, %arg7: memref<2x128x128xbf16, #tpu.memory_space<vmem>>, %arg8: memref<2x1x128xf32, #tpu.memory_space<vmem>>, %arg9: memref<2x1x128xf32, #tpu.memory_space<vmem>>, %arg10: memref<2x1x128xf32, #tpu.memory_space<vmem>>, %arg11: memref<2x128xf32, #tpu.memory_space<vmem>>) attributes {dimension_semantics = [#tpu.dimension_semantics<parallel>, #tpu.dimension_semantics<arbitrary>], iteration_bounds = array<i64: 1, 1>, scalar_prefetch = 0 : i64, scratch_operands = 0 : i64, tpu.core_type = #tpu.core_type<tc>, window_params = [{transform_indices = @transform_0, window_bounds = array<i64: 2, 14400>}, {transform_indices = @transform_1, window_bounds = array<i64: 14400, 128>}, {pipeline_mode = #tpu.pipeline_mode<synchronous>, transform_indices = @transform_2, window_bounds = array<i64: 1, 128>}, {pipeline_mode = #tpu.pipeline_mode<synchronous>, transform_indices = @transform_3, window_bounds = array<i64: 1, 128>}, {pipeline_mode = #tpu.pipeline_mode<synchronous>, transform_indices = @transform_4, window_bounds = array<i64: 1, 128>}, {pipeline_mode = #tpu.pipeline_mode<synchronous>, transform_indices = @transform_5, window_bounds = array<i64: 2, 128, 128>}, {pipeline_mode = #tpu.pipeline_mode<synchronous>, transform_indices = @transform_6, window_bounds = array<i64: 2, 1, 128>}, {pipeline_mode = #tpu.pipeline_mode<synchronous>, transform_indices = @transform_7, window_bounds = array<i64: 2, 1, 128>}, {pipeline_mode = #tpu.pipeline_mode<synchronous>, transform_indices = @transform_8, window_bounds = array<i64: 2, 1, 128>}, {transform_indices = @transform_9, window_bounds = array<i64: 2, 128>}]} {
    %c0_i32 = arith.constant 0 : i32
    %0 = arith.cmpi eq, %arg1, %c0_i32 : i32
    %1 = arith.extui %0 : i1 to i32
    %c0_i32_0 = arith.constant 0 : i32
    %2 = arith.cmpi ne, %1, %c0_i32_0 : i32
    scf.if %2 {
      %cst_10 = arith.constant 0.000000e+00 : f32
      %13 = vector.broadcast %cst_10 : f32 to vector<2x128xf32>
      %c0_11 = arith.constant 0 : index
      %c0_12 = arith.constant 0 : index
      %14 = vector.load %arg11[%c0_11, %c0_12] : memref<2x128xf32, #tpu.memory_space<vmem>>, vector<2x128xf32>
      tpu.vector_store %arg11[%c0_11, %c0_12], %13 {strides = array<i32>} : memref<2x128xf32, #tpu.memory_space<vmem>>, vector<2x128xf32>,
    } else {
    }
    %c0 = arith.constant 0 : index
    %c0_1 = arith.constant 0 : index
    %3 = vector.load %arg11[%c0, %c0_1] : memref<2x128xf32, #tpu.memory_space<vmem>>, vector<2x128xf32>
    %c0_2 = arith.constant 0 : index
    %c0_3 = arith.constant 0 : index
    %4 = vector.load %arg2[%c0_2, %c0_3] : memref<2x14400xf32, #tpu.memory_space<vmem>>, vector<2x14400xf32>
    %5 = arith.truncf %4 : vector<2x14400xf32> to vector<2x14400xbf16>
    %c0_4 = arith.constant 0 : index
    %c0_5 = arith.constant 0 : index
    %6 = vector.load %arg3[%c0_4, %c0_5] : memref<14400x128xbf16, #tpu.memory_space<vmem>>, vector<14400x128xbf16>
    %cst = arith.constant dense<0.000000e+00> : vector<2x128xf32>
    %7 = tpu.matmul %5, %6, %cst {dimension_numbers = #tpu.dot_dimension_numbers<[1], [0], [0], [1], [0, 0, 1, 1], [], []>} : vector<2x14400xbf16>, vector<14400x128xbf16>, vector<2x128xf32> -> vector<2x128xf32>
    %8 = arith.addf %3, %7 : vector<2x128xf32>
    %c0_6 = arith.constant 0 : index
    %c0_7 = arith.constant 0 : index
    %9 = vector.load %arg11[%c0_6, %c0_7] : memref<2x128xf32, #tpu.memory_space<vmem>>, vector<2x128xf32>
    tpu.vector_store %arg11[%c0_6, %c0_7], %8 {strides = array<i32>} : memref<2x128xf32, #tpu.memory_space<vmem>>, vector<2x128xf32>,
    %c0_i32_8 = arith.constant 0 : i32
    %10 = arith.cmpi eq, %arg1, %c0_i32_8 : i32
    %11 = arith.extui %10 : i1 to i32
    %c0_i32_9 = arith.constant 0 : i32
    %12 = arith.cmpi ne, %11, %c0_i32_9 : i32
    scf.if %12 {
      %c0_10 = arith.constant 0 : index
      %c0_11 = arith.constant 0 : index
      %13 = vector.load %arg11[%c0_10, %c0_11] : memref<2x128xf32, #tpu.memory_space<vmem>>, vector<2x128xf32>
      %c0_12 = arith.constant 0 : index
      %c0_13 = arith.constant 0 : index
      %14 = vector.load %arg4[%c0_12, %c0_13] : memref<1x128xf32, #tpu.memory_space<vmem>>, vector<1x128xf32>
      %15 = vector.broadcast %14 : vector<1x128xf32> to vector<2x128xf32>
      %16 = arith.addf %13, %15 : vector<2x128xf32>
      %cst_14 = arith.constant 0.000000e+00 : f32
      %17 = vector.broadcast %cst_14 : f32 to vector<2x128xf32>
      %18 = arith.maximumf %16, %17 : vector<2x128xf32>
      %c0_15 = arith.constant 0 : index
      %c0_16 = arith.constant 0 : index
      %19 = vector.load %arg5[%c0_15, %c0_16] : memref<1x128xf32, #tpu.memory_space<vmem>>, vector<1x128xf32>
      %c0_17 = arith.constant 0 : index
      %c0_18 = arith.constant 0 : index
      %20 = vector.load %arg6[%c0_17, %c0_18] : memref<1x128xf32, #tpu.memory_space<vmem>>, vector<1x128xf32>
      %cst_19 = arith.constant dense<0.000000e+00> : vector<2xf32>
      %21 = vector.multi_reduction <add>, %18, %cst_19 [1] : vector<2x128xf32> to vector<2xf32>
      %22 = vector.shape_cast %21 : vector<2xf32> to vector<2x1xf32>
      %cst_20 = arith.constant 1.280000e+02 : f32
      %23 = vector.broadcast %cst_20 : f32 to vector<2x1xf32>
      %24 = arith.divf %22, %23 : vector<2x1xf32>
      %25 = vector.broadcast %24 : vector<2x1xf32> to vector<2x128xf32>
      %26 = arith.subf %18, %25 : vector<2x128xf32>
      %27 = arith.mulf %26, %26 : vector<2x128xf32>
      %cst_21 = arith.constant dense<0.000000e+00> : vector<2xf32>
      %28 = vector.multi_reduction <add>, %27, %cst_21 [1] : vector<2x128xf32> to vector<2xf32>
      %29 = vector.shape_cast %28 : vector<2xf32> to vector<2x1xf32>
      %cst_22 = arith.constant 1.280000e+02 : f32
      %30 = vector.broadcast %cst_22 : f32 to vector<2x1xf32>
      %31 = arith.divf %29, %30 : vector<2x1xf32>
      %cst_23 = arith.constant 9.99999974E-6 : f32
      %32 = vector.broadcast %cst_23 : f32 to vector<2x1xf32>
      %33 = arith.addf %31, %32 : vector<2x1xf32>
      %34 = math.rsqrt %33 : vector<2x1xf32>
      %35 = vector.broadcast %34 : vector<2x1xf32> to vector<2x128xf32>
      %36 = arith.mulf %26, %35 : vector<2x128xf32>
      %37 = vector.broadcast %19 : vector<1x128xf32> to vector<2x128xf32>
      %38 = arith.mulf %36, %37 : vector<2x128xf32>
      %39 = vector.broadcast %20 : vector<1x128xf32> to vector<2x128xf32>
      %40 = arith.addf %38, %39 : vector<2x128xf32>
      %c0_i32_24 = arith.constant 0 : i32
      %41 = arith.truncf %40 : vector<2x128xf32> to vector<2x128xbf16>
      %42 = arith.index_cast %c0_i32_24 : i32 to index
      %c0_25 = arith.constant 0 : index
      %c0_26 = arith.constant 0 : index
      %43 = vector.load %arg7[%42, %c0_25, %c0_26] : memref<2x128x128xbf16, #tpu.memory_space<vmem>>, vector<1x128x128xbf16>
      %44 = vector.shape_cast %43 : vector<1x128x128xbf16> to vector<128x128xbf16>
      %cst_27 = arith.constant dense<0.000000e+00> : vector<2x128xf32>
      %45 = tpu.matmul %41, %44, %cst_27 {dimension_numbers = #tpu.dot_dimension_numbers<[1], [0], [0], [1], [0, 0, 1, 1], [], []>} : vector<2x128xbf16>, vector<128x128xbf16>, vector<2x128xf32> -> vector<2x128xf32>
      %46 = arith.index_cast %c0_i32_24 : i32 to index
      %c0_28 = arith.constant 0 : index
      %c0_29 = arith.constant 0 : index
      %47 = vector.load %arg8[%46, %c0_28, %c0_29] : memref<2x1x128xf32, #tpu.memory_space<vmem>>, vector<1x1x128xf32>
      %48 = vector.shape_cast %47 : vector<1x1x128xf32> to vector<1x128xf32>
      %49 = vector.broadcast %48 : vector<1x128xf32> to vector<2x128xf32>
      %50 = arith.addf %45, %49 : vector<2x128xf32>
      %cst_30 = arith.constant 0.000000e+00 : f32
      %51 = vector.broadcast %cst_30 : f32 to vector<2x128xf32>
      %52 = arith.maximumf %50, %51 : vector<2x128xf32>
      %53 = arith.index_cast %c0_i32_24 : i32 to index
      %c0_31 = arith.constant 0 : index
      %c0_32 = arith.constant 0 : index
      %54 = vector.load %arg9[%53, %c0_31, %c0_32] : memref<2x1x128xf32, #tpu.memory_space<vmem>>, vector<1x1x128xf32>
      %55 = vector.shape_cast %54 : vector<1x1x128xf32> to vector<1x128xf32>
      %56 = arith.index_cast %c0_i32_24 : i32 to index
      %c0_33 = arith.constant 0 : index
      %c0_34 = arith.constant 0 : index
      %57 = vector.load %arg10[%56, %c0_33, %c0_34] : memref<2x1x128xf32, #tpu.memory_space<vmem>>, vector<1x1x128xf32>
      %58 = vector.shape_cast %57 : vector<1x1x128xf32> to vector<1x128xf32>
      %cst_35 = arith.constant dense<0.000000e+00> : vector<2xf32>
      %59 = vector.multi_reduction <add>, %52, %cst_35 [1] : vector<2x128xf32> to vector<2xf32>
      %60 = vector.shape_cast %59 : vector<2xf32> to vector<2x1xf32>
      %cst_36 = arith.constant 1.280000e+02 : f32
      %61 = vector.broadcast %cst_36 : f32 to vector<2x1xf32>
      %62 = arith.divf %60, %61 : vector<2x1xf32>
      %63 = vector.broadcast %62 : vector<2x1xf32> to vector<2x128xf32>
      %64 = arith.subf %52, %63 : vector<2x128xf32>
      %65 = arith.mulf %64, %64 : vector<2x128xf32>
      %cst_37 = arith.constant dense<0.000000e+00> : vector<2xf32>
      %66 = vector.multi_reduction <add>, %65, %cst_37 [1] : vector<2x128xf32> to vector<2xf32>
      %67 = vector.shape_cast %66 : vector<2xf32> to vector<2x1xf32>
      %cst_38 = arith.constant 1.280000e+02 : f32
      %68 = vector.broadcast %cst_38 : f32 to vector<2x1xf32>
      %69 = arith.divf %67, %68 : vector<2x1xf32>
      %cst_39 = arith.constant 9.99999974E-6 : f32
      %70 = vector.broadcast %cst_39 : f32 to vector<2x1xf32>
      %71 = arith.addf %69, %70 : vector<2x1xf32>
      %72 = math.rsqrt %71 : vector<2x1xf32>
      %73 = vector.broadcast %72 : vector<2x1xf32> to vector<2x128xf32>
      %74 = arith.mulf %64, %73 : vector<2x128xf32>
      %75 = vector.broadcast %55 : vector<1x128xf32> to vector<2x128xf32>
      %76 = arith.mulf %74, %75 : vector<2x128xf32>
      %77 = vector.broadcast %58 : vector<1x128xf32> to vector<2x128xf32>
      %78 = arith.addf %76, %77 : vector<2x128xf32>
      %c1_i32 = arith.constant 1 : i32
      %79 = arith.truncf %78 : vector<2x128xf32> to vector<2x128xbf16>
      %80 = arith.index_cast %c1_i32 : i32 to index
      %c0_40 = arith.constant 0 : index
      %c0_41 = arith.constant 0 : index
      %81 = vector.load %arg7[%80, %c0_40, %c0_41] : memref<2x128x128xbf16, #tpu.memory_space<vmem>>, vector<1x128x128xbf16>
      %82 = vector.shape_cast %81 : vector<1x128x128xbf16> to vector<128x128xbf16>
      %cst_42 = arith.constant dense<0.000000e+00> : vector<2x128xf32>
      %83 = tpu.matmul %79, %82, %cst_42 {dimension_numbers = #tpu.dot_dimension_numbers<[1], [0], [0], [1], [0, 0, 1, 1], [], []>} : vector<2x128xbf16>, vector<128x128xbf16>, vector<2x128xf32> -> vector<2x128xf32>
      %84 = arith.index_cast %c1_i32 : i32 to index
      %c0_43 = arith.constant 0 : index
      %c0_44 = arith.constant 0 : index
      %85 = vector.load %arg8[%84, %c0_43, %c0_44] : memref<2x1x128xf32, #tpu.memory_space<vmem>>, vector<1x1x128xf32>
      %86 = vector.shape_cast %85 : vector<1x1x128xf32> to vector<1x128xf32>
      %87 = vector.broadcast %86 : vector<1x128xf32> to vector<2x128xf32>
      %88 = arith.addf %83, %87 : vector<2x128xf32>
      %cst_45 = arith.constant 0.000000e+00 : f32
      %89 = vector.broadcast %cst_45 : f32 to vector<2x128xf32>
      %90 = arith.maximumf %88, %89 : vector<2x128xf32>
      %91 = arith.index_cast %c1_i32 : i32 to index
      %c0_46 = arith.constant 0 : index
      %c0_47 = arith.constant 0 : index
      %92 = vector.load %arg9[%91, %c0_46, %c0_47] : memref<2x1x128xf32, #tpu.memory_space<vmem>>, vector<1x1x128xf32>
      %93 = vector.shape_cast %92 : vector<1x1x128xf32> to vector<1x128xf32>
      %94 = arith.index_cast %c1_i32 : i32 to index
      %c0_48 = arith.constant 0 : index
      %c0_49 = arith.constant 0 : index
      %95 = vector.load %arg10[%94, %c0_48, %c0_49] : memref<2x1x128xf32, #tpu.memory_space<vmem>>, vector<1x1x128xf32>
      %96 = vector.shape_cast %95 : vector<1x1x128xf32> to vector<1x128xf32>
      %cst_50 = arith.constant dense<0.000000e+00> : vector<2xf32>
      %97 = vector.multi_reduction <add>, %90, %cst_50 [1] : vector<2x128xf32> to vector<2xf32>
      %98 = vector.shape_cast %97 : vector<2xf32> to vector<2x1xf32>
      %cst_51 = arith.constant 1.280000e+02 : f32
      %99 = vector.broadcast %cst_51 : f32 to vector<2x1xf32>
      %100 = arith.divf %98, %99 : vector<2x1xf32>
      %101 = vector.broadcast %100 : vector<2x1xf32> to vector<2x128xf32>
      %102 = arith.subf %90, %101 : vector<2x128xf32>
      %103 = arith.mulf %102, %102 : vector<2x128xf32>
      %cst_52 = arith.constant dense<0.000000e+00> : vector<2xf32>
      %104 = vector.multi_reduction <add>, %103, %cst_52 [1] : vector<2x128xf32> to vector<2xf32>
      %105 = vector.shape_cast %104 : vector<2xf32> to vector<2x1xf32>
      %cst_53 = arith.constant 1.280000e+02 : f32
      %106 = vector.broadcast %cst_53 : f32 to vector<2x1xf32>
      %107 = arith.divf %105, %106 : vector<2x1xf32>
      %cst_54 = arith.constant 9.99999974E-6 : f32
      %108 = vector.broadcast %cst_54 : f32 to vector<2x1xf32>
      %109 = arith.addf %107, %108 : vector<2x1xf32>
      %110 = math.rsqrt %109 : vector<2x1xf32>
      %111 = vector.broadcast %110 : vector<2x1xf32> to vector<2x128xf32>
      %112 = arith.mulf %102, %111 : vector<2x128xf32>
      %113 = vector.broadcast %93 : vector<1x128xf32> to vector<2x128xf32>
      %114 = arith.mulf %112, %113 : vector<2x128xf32>
      %115 = vector.broadcast %96 : vector<1x128xf32> to vector<2x128xf32>
      %116 = arith.addf %114, %115 : vector<2x128xf32>
      %c2_i32 = arith.constant 2 : i32
      %c0_55 = arith.constant 0 : index
      %c0_56 = arith.constant 0 : index
      %117 = vector.load %arg11[%c0_55, %c0_56] : memref<2x128xf32, #tpu.memory_space<vmem>>, vector<2x128xf32>
      tpu.vector_store %arg11[%c0_55, %c0_56], %116 {strides = array<i32>} : memref<2x128xf32, #tpu.memory_space<vmem>>, vector<2x128xf32>,
    } else {
    }
    return
  }
  func.func @transform_0(%arg0: i32, %arg1: i32) -> (i32, i32) {
    %c0_i32 = arith.constant 0 : i32
    return %arg0, %arg1 : i32, i32
  }
  func.func @transform_1(%arg0: i32, %arg1: i32) -> (i32, i32) {
    %c0_i32 = arith.constant 0 : i32
    %c0_i32_0 = arith.constant 0 : i32
    return %arg1, %c0_i32 : i32, i32
  }
  func.func @transform_2(%arg0: i32, %arg1: i32) -> (i32, i32) {
    %c0_i32 = arith.constant 0 : i32
    %c0_i32_0 = arith.constant 0 : i32
    %c0_i32_1 = arith.constant 0 : i32
    return %c0_i32, %c0_i32_0 : i32, i32
  }
  func.func @transform_3(%arg0: i32, %arg1: i32) -> (i32, i32) {
    %c0_i32 = arith.constant 0 : i32
    %c0_i32_0 = arith.constant 0 : i32
    %c0_i32_1 = arith.constant 0 : i32
    return %c0_i32, %c0_i32_0 : i32, i32
  }
  func.func @transform_4(%arg0: i32, %arg1: i32) -> (i32, i32) {
    %c0_i32 = arith.constant 0 : i32
    %c0_i32_0 = arith.constant 0 : i32
    %c0_i32_1 = arith.constant 0 : i32
    return %c0_i32, %c0_i32_0 : i32, i32
  }
  func.func @transform_5(%arg0: i32, %arg1: i32) -> (i32, i32, i32) {
    %c0_i32 = arith.constant 0 : i32
    %c0_i32_0 = arith.constant 0 : i32
    %c0_i32_1 = arith.constant 0 : i32
    %c0_i32_2 = arith.constant 0 : i32
    return %c0_i32, %c0_i32_0, %c0_i32_1 : i32, i32, i32
  }
  func.func @transform_6(%arg0: i32, %arg1: i32) -> (i32, i32, i32) {
    %c0_i32 = arith.constant 0 : i32
    %c0_i32_0 = arith.constant 0 : i32
    %c0_i32_1 = arith.constant 0 : i32
    %c0_i32_2 = arith.constant 0 : i32
    return %c0_i32, %c0_i32_0, %c0_i32_1 : i32, i32, i32
  }
  func.func @transform_7(%arg0: i32, %arg1: i32) -> (i32, i32, i32) {
    %c0_i32 = arith.constant 0 : i32
    %c0_i32_0 = arith.constant 0 : i32
    %c0_i32_1 = arith.constant 0 : i32
    %c0_i32_2 = arith.constant 0 : i32
    return %c0_i32, %c0_i32_0, %c0_i32_1 : i32, i32, i32
  }
  func.func @transform_8(%arg0: i32, %arg1: i32) -> (i32, i32, i32) {
    %c0_i32 = arith.constant 0 : i32
    %c0_i32_0 = arith.constant 0 : i32
    %c0_i32_1 = arith.constant 0 : i32
    %c0_i32_2 = arith.constant 0 : i32
    return %c0_i32, %c0_i32_0, %c0_i32_1 : i32, i32, i32
  }
  func.func @transform_9(%arg0: i32, %arg1: i32) -> (i32, i32) {
    %c0_i32 = arith.constant 0 : i32
    %c0_i32_0 = arith.constant 0 : i32
    return %arg0, %c0_i32 : i32, i32
  }
}

</mosaic_0001>

<llo_original>
// kernel: tpu_custom_call.1
$region0: #{tpu_custom_call.1}
  #allocation0 [shape = 'u32[]', space=smem, size = 0x4, offset = 0x4, fixed_abs, tag = 'smem constant byte address 0x4 - core index']
  #allocation1 [shape = 'u32[144,128]{1,0:T(1,128)}', space=vmem, size = 0x12000, scoped, tag = 'internal scratch']
  %s0 = inlined_call_operand.hbm [shape: f32[2,14400], index: 0, kind: input, shape index: {}]
  %s1 = inlined_call_operand.hbm [shape: bf16[14400,128], index: 1, kind: input, shape index: {}]
  %s2 = inlined_call_operand.hbm [shape: f32[1,128], index: 2, kind: input, shape index: {}]
  %s3 = inlined_call_operand.hbm [shape: f32[1,128], index: 3, kind: input, shape index: {}]
  %s4 = inlined_call_operand.hbm [shape: f32[1,128], index: 4, kind: input, shape index: {}]
  %s5 = inlined_call_operand.hbm [shape: bf16[2,128,128], index: 5, kind: input, shape index: {}]
  %s6 = inlined_call_operand.hbm [shape: f32[2,1,128], index: 6, kind: input, shape index: {}]
  %s7 = inlined_call_operand.hbm [shape: f32[2,1,128], index: 7, kind: input, shape index: {}]
  %s8 = inlined_call_operand.hbm [shape: f32[2,1,128], index: 8, kind: input, shape index: {}]
  %s9 = inlined_call_operand.hbm [shape: f32[2,128], index: 9, kind: output, shape index: {}]
  %s10 = sld [smem:[#allocation0]]
  $region90: #{tpu_custom_call.1} parent=0
    _
  %s12 = ssub.s32 1, %s10
  %s13 = scalar_select 0, %s12, %s10
  $region1: #{tpu_custom_call.1} parent=0
    #allocation2 [shape = 'u8[115712]{0}', space=vmem, size = 0x1c400, scoped, tag = 'input window, operand 0, single buffered']
    #allocation3 [shape = 's32[1]{0}', space=sflag, size = 0x4, scoped, tag = 'scoped memory for tpu_custom_call.1']
    #allocation4 [shape = 's32[1]{0}', space=sflag, size = 0x4, scoped, tag = 'scoped memory for tpu_custom_call.1']
    #allocation5 [shape = 'u8[3686400]{0}', space=vmem, size = 0x384000, scoped, tag = 'input window, operand 1, single buffered']
    #allocation6 [shape = 's32[1]{0}', space=sflag, size = 0x4, scoped, tag = 'scoped memory for tpu_custom_call.1']
    #allocation7 [shape = 'u8[512]{0}', space=vmem, size = 0x400, scoped, tag = 'input window, operand 2, single buffered']
    #allocation8 [shape = 'u8[512]{0}', space=vmem, size = 0x400, scoped, tag = 'input window, operand 3, single buffered']
    #allocation9 [shape = 's32[1]{0}', space=sflag, size = 0x4, scoped, tag = 'scoped memory for tpu_custom_call.1']
    #allocation10 [shape = 'u8[512]{0}', space=vmem, size = 0x400, scoped, tag = 'input window, operand 4, single buffered']
    #allocation11 [shape = 'u8[65536]{0}', space=vmem, size = 0x10000, scoped, tag = 'input window, operand 5, single buffered']
    #allocation12 [shape = 's32[1]{0}', space=sflag, size = 0x4, scoped, tag = 'scoped memory for tpu_custom_call.1']
    #allocation13 [shape = 'u8[1024]{0}', space=vmem, size = 0x400, scoped, tag = 'input window, operand 6, single buffered']
    #allocation14 [shape = 'u8[1024]{0}', space=vmem, size = 0x400, scoped, tag = 'input window, operand 7, single buffered']
    #allocation15 [shape = 's32[1]{0}', space=sflag, size = 0x4, scoped, tag = 'scoped memory for tpu_custom_call.1']
    #allocation16 [shape = 'u8[1024]{0}', space=vmem, size = 0x400, scoped, tag = 'input window, operand 8, single buffered']
    #allocation17 [shape = 'u8[1024]{0}', space=vmem, size = 0x400, scoped, tag = 'output window, operand 0, single buffered']
    %14 = vsyncpa [#allocation3], 0
    %15 = vsyncpa [#allocation6], 0
    %16 = vsyncpa [#allocation9], 0
    %17 = vsyncpa [#allocation12], 0
    %18 = vsyncpa [#allocation15], 0
    %19 = vsyncpa [#allocation4], 0
    // Predicated region
    $region2: #{tpu_custom_call.1} parent=1 // pred_check
      _
    $region3: #{tpu_custom_call.1} parent=1 // pred_check_branch
      %21 = sbr.rel (0) target = $region5
    $region4: #{tpu_custom_call.1} parent=1 // pred_region
      %s23 = ssub.s32 3616, 3616
      %24 = vsyncadd [#allocation3], %s23
      %s26 = sshll.u32 [#allocation2], 4
      %s27 = int_to_ptr.vmem [resolvable:$true] %s26
      %29 = dma.hbm_to_vmem [thread:$0]  %s0, 3616, %s27, [#allocation3]
    $region5: #{tpu_custom_call.1} parent=1 // pred_fallthru
      _
    // Predicated region
    $region6: #{tpu_custom_call.1} parent=1 // pred_check
      _
    $region7: #{tpu_custom_call.1} parent=1 // pred_check_branch
      %31 = sbr.rel (0) target = $region9
    $region8: #{tpu_custom_call.1} parent=1 // pred_region
      %s33 = ssub.s32 115200, 115200
      %34 = vsyncadd [#allocation6], %s33
      %s35 = sshll.u32 [#allocation5], 4
      %s36 = int_to_ptr.vmem [resolvable:$true] %s35
      %41 = dma.hbm_to_vmem [thread:$0]  %s1, 115200, %s36, [#allocation6], 64, 64, 4
    $region9: #{tpu_custom_call.1} parent=1 // pred_fallthru
      _
    // Predicated region
    $region10: #{tpu_custom_call.1} parent=1 // pred_check
      _
    $region11: #{tpu_custom_call.1} parent=1 // pred_check_branch
      %43 = sbr.rel (0) target = $region13
    $region12: #{tpu_custom_call.1} parent=1 // pred_region
      %s45 = ssub.s32 16, 16
      %46 = vsyncadd [#allocation6], %s45
      %s48 = sshll.u32 [#allocation7], 4
      %s49 = int_to_ptr.vmem [resolvable:$true] %s48
      %51 = dma.hbm_to_vmem [thread:$0]  %s2, 16, %s49, [#allocation6]
    $region13: #{tpu_custom_call.1} parent=1 // pred_fallthru
      _
    // Predicated region
    $region14: #{tpu_custom_call.1} parent=1 // pred_check
      _
    $region15: #{tpu_custom_call.1} parent=1 // pred_check_branch
      %53 = sbr.rel (0) target = $region17
    $region16: #{tpu_custom_call.1} parent=1 // pred_region
      %s55 = ssub.s32 16, 16
      %56 = vsyncadd [#allocation9], %s55
      %s58 = sshll.u32 [#allocation8], 4
      %s59 = int_to_ptr.vmem [resolvable:$true] %s58
      %61 = dma.hbm_to_vmem [thread:$0]  %s3, 16, %s59, [#allocation9]
    $region17: #{tpu_custom_call.1} parent=1 // pred_fallthru
      _
    // Predicated region
    $region18: #{tpu_custom_call.1} parent=1 // pred_check
      _
    $region19: #{tpu_custom_call.1} parent=1 // pred_check_branch
      %63 = sbr.rel (0) target = $region21
    $region20: #{tpu_custom_call.1} parent=1 // pred_region
      %s65 = ssub.s32 16, 16
      %66 = vsyncadd [#allocation9], %s65
      %s68 = sshll.u32 [#allocation10], 4
      %s69 = int_to_ptr.vmem [resolvable:$true] %s68
      %71 = dma.hbm_to_vmem [thread:$0]  %s4, 16, %s69, [#allocation9]
    $region21: #{tpu_custom_call.1} parent=1 // pred_fallthru
      _
    // Predicated region
    $region22: #{tpu_custom_call.1} parent=1 // pred_check
      _
    $region23: #{tpu_custom_call.1} parent=1 // pred_check_branch
      %73 = sbr.rel (0) target = $region25
    $region24: #{tpu_custom_call.1} parent=1 // pred_region
      %s75 = ssub.s32 2048, 2048
      %76 = vsyncadd [#allocation12], %s75
      %s77 = sshll.u32 [#allocation11], 4
      %s78 = int_to_ptr.vmem [resolvable:$true] %s77
      %83 = dma.hbm_to_vmem [thread:$0]  %s5, 2048, %s78, [#allocation12], 64, 64, 4
    $region25: #{tpu_custom_call.1} parent=1 // pred_fallthru
      _
    // Predicated region
    $region26: #{tpu_custom_call.1} parent=1 // pred_check
      _
    $region27: #{tpu_custom_call.1} parent=1 // pred_check_branch
      %85 = sbr.rel (0) target = $region29
    $region28: #{tpu_custom_call.1} parent=1 // pred_region
      %s87 = ssub.s32 32, 32
      %88 = vsyncadd [#allocation12], %s87
      %s89 = sshll.u32 [#allocation13], 4
      %s90 = int_to_ptr.vmem [resolvable:$true] %s89
      %95 = dma.hbm_to_vmem [thread:$0]  %s6, 32, %s90, [#allocation12], 16, 16, 1
    $region29: #{tpu_custom_call.1} parent=1 // pred_fallthru
      _
    // Predicated region
    $region30: #{tpu_custom_call.1} parent=1 // pred_check
      _
    $region31: #{tpu_custom_call.1} parent=1 // pred_check_branch
      %97 = sbr.rel (0) target = $region33
    $region32: #{tpu_custom_call.1} parent=1 // pred_region
      %s99 = ssub.s32 32, 32
      %100 = vsyncadd [#allocation15], %s99
      %s101 = sshll.u32 [#allocation14], 4
      %s102 = int_to_ptr.vmem [resolvable:$true] %s101
      %107 = dma.hbm_to_vmem [thread:$0]  %s7, 32, %s102, [#allocation15], 16, 16, 1
    $region33: #{tpu_custom_call.1} parent=1 // pred_fallthru
      _
    // Predicated region
    $region34: #{tpu_custom_call.1} parent=1 // pred_check
      _
    $region35: #{tpu_custom_call.1} parent=1 // pred_check_branch
      %109 = sbr.rel (0) target = $region37
    $region36: #{tpu_custom_call.1} parent=1 // pred_region
      %s111 = ssub.s32 32, 32
      %112 = vsyncadd [#allocation15], %s111
      %s113 = sshll.u32 [#allocation16], 4
      %s114 = int_to_ptr.vmem [resolvable:$true] %s113
      %119 = dma.hbm_to_vmem [thread:$0]  %s8, 32, %s114, [#allocation15], 16, 16, 1
    $region37: #{tpu_custom_call.1} parent=1 // pred_fallthru
      _
    // Predicated region
    $region38: #{tpu_custom_call.1} parent=1 // pred_check
      _
    $region39: #{tpu_custom_call.1} parent=1 // pred_check_branch
      %121 = sbr.rel (0) target = $region41
    $region40: #{tpu_custom_call.1} parent=1 // pred_region
      %122 = dma.done [#allocation3], 3616
    $region41: #{tpu_custom_call.1} parent=1 // pred_fallthru
      _
    // Predicated region
    $region42: #{tpu_custom_call.1} parent=1 // pred_check
      _
    $region43: #{tpu_custom_call.1} parent=1 // pred_check_branch
      %124 = sbr.rel (0) target = $region45
    $region44: #{tpu_custom_call.1} parent=1 // pred_region
      %125 = dma.done [#allocation6], 115200
    $region45: #{tpu_custom_call.1} parent=1 // pred_fallthru
      _
    // Predicated region
    $region46: #{tpu_custom_call.1} parent=1 // pred_check
      _
    $region47: #{tpu_custom_call.1} parent=1 // pred_check_branch
      %127 = sbr.rel (0) target = $region49
    $region48: #{tpu_custom_call.1} parent=1 // pred_region
      %128 = dma.done [#allocation6], 16
    $region49: #{tpu_custom_call.1} parent=1 // pred_fallthru
      _
    // Predicated region
    $region50: #{tpu_custom_call.1} parent=1 // pred_check
      _
    $region51: #{tpu_custom_call.1} parent=1 // pred_check_branch
      %130 = sbr.rel (0) target = $region53
    $region52: #{tpu_custom_call.1} parent=1 // pred_region
      %131 = dma.done [#allocation9], 16
    $region53: #{tpu_custom_call.1} parent=1 // pred_fallthru
      _
    // Predicated region
    $region54: #{tpu_custom_call.1} parent=1 // pred_check
      _
    $region55: #{tpu_custom_call.1} parent=1 // pred_check_branch
      %133 = sbr.rel (0) target = $region57
    $region56: #{tpu_custom_call.1} parent=1 // pred_region
      %134 = dma.done [#allocation9], 16
    $region57: #{tpu_custom_call.1} parent=1 // pred_fallthru
      _
    // Predicated region
    $region58: #{tpu_custom_call.1} parent=1 // pred_check
      _
    $region59: #{tpu_custom_call.1} parent=1 // pred_check_branch
      %136 = sbr.rel (0) target = $region61
    $region60: #{tpu_custom_call.1} parent=1 // pred_region
      %137 = dma.done [#allocation12], 2048
    $region61: #{tpu_custom_call.1} parent=1 // pred_fallthru
      _
    // Predicated region
    $region62: #{tpu_custom_call.1} parent=1 // pred_check
      _
    $region63: #{tpu_custom_call.1} parent=1 // pred_check_branch
      %139 = sbr.rel (0) target = $region65
    $region64: #{tpu_custom_call.1} parent=1 // pred_region
      %140 = dma.done [#allocation12], 32
    $region65: #{tpu_custom_call.1} parent=1 // pred_fallthru
      _
    // Predicated region
    $region66: #{tpu_custom_call.1} parent=1 // pred_check
      _
    $region67: #{tpu_custom_call.1} parent=1 // pred_check_branch
      %142 = sbr.rel (0) target = $region69
    $region68: #{tpu_custom_call.1} parent=1 // pred_region
      %143 = dma.done [#allocation15], 32
    $region69: #{tpu_custom_call.1} parent=1 // pred_fallthru
      _
    // Predicated region
    $region70: #{tpu_custom_call.1} parent=1 // pred_check
      _
    $region71: #{tpu_custom_call.1} parent=1 // pred_check_branch
      %145 = sbr.rel (0) target = $region73
    $region72: #{tpu_custom_call.1} parent=1 // pred_region
      %146 = dma.done [#allocation15], 32
    $region73: #{tpu_custom_call.1} parent=1 // pred_fallthru
      _
    %p148 = scmp.eq.s32.totalorder 0, 0
    // Predicated region
    $region74: #{tpu_custom_call.1} parent=1 // pred_check
      %p149 = pneg %p148
    $region75: #{tpu_custom_call.1} parent=1 // pred_check_branch
      %151 = sbr.rel (%p149) target = $region77
    $region76: #{tpu_custom_call.1} parent=1 // pred_region
      %152 = vst [vmem:[#allocation17] sm:$0x3] 0.0
    $region77: #{tpu_custom_call.1} parent=1 // pred_fallthru
      _
    %v153 = vld [vmem:[#allocation17] sm:$0x3]
    %v154 = vld [vmem:[#allocation2] sm:$0xff]
    %v155 = vld [vmem:[#allocation2 + $0x8] sm:$0xff]
    %v156 = vld [vmem:[#allocation2 + $0x10] sm:$0xff]
    %v157 = vld [vmem:[#allocation2 + $0x18] sm:$0xff]
    %v158 = vld [vmem:[#allocation2 + $0x20] sm:$0xff]
    %v159 = vld [vmem:[#allocation2 + $0x28] sm:$0xff]
    %v160 = vld [vmem:[#allocation2 + $0x30] sm:$0xff]
    %v161 = vld [vmem:[#allocation2 + $0x38] sm:$0xff]
    %v162 = vld [vmem:[#allocation2 + $0x40] sm:$0xff]
    %v163 = vld [vmem:[#allocation2 + $0x48] sm:$0xff]
    %v164 = vld [vmem:[#allocation2 + $0x50] sm:$0xff]
    %v165 = vld [vmem:[#allocation2 + $0x58] sm:$0xff]
    %v166 = vld [vmem:[#allocation2 + $0x60] sm:$0xff]
    %v167 = vld [vmem:[#allocation2 + $0x68] sm:$0xff]
    %v168 = vld [vmem:[#allocation2 + $0x70] sm:$0xff]
    %v169 = vld [vmem:[#allocation2 + $0x78] sm:$0xff]
    %v170 = vld [vmem:[#allocation2 + $0x80] sm:$0xff]
    %v171 = vld [vmem:[#allocation2 + $0x88] sm:$0xff]
    %v172 = vld [vmem:[#allocation2 + $0x90] sm:$0xff]
    %v173 = vld [vmem:[#allocation2 + $0x98] sm:$0xff]
    %v174 = vld [vmem:[#allocation2 + $0xa0] sm:$0xff]
    %v175 = vld [vmem:[#allocation2 + $0xa8] sm:$0xff]
    %v176 = vld [vmem:[#allocation2 + $0xb0] sm:$0xff]
    %v177 = vld [vmem:[#allocation2 + $0xb8] sm:$0xff]
    %v178 = vld [vmem:[#allocation2 + $0xc0] sm:$0xff]
    %v179 = vld [vmem:[#allocation2 + $0xc8] sm:$0xff]
    %v180 = vld [vmem:[#allocation2 + $0xd0] sm:$0xff]
    %v181 = vld [vmem:[#allocation2 + $0xd8] sm:$0xff]
    %v182 = vld [vmem:[#allocation2 + $0xe0] sm:$0x3]
    %v212 = vcombine.high %v154, %v154
    %v214 = vunpack.c.l.s4 1983009808
    %v215 = vunpack.c.0.s8 %v214
    %v216 = vlaneseq
    %v217 = vshrl.u32 %v216, 7
    %v218 = vsub.s32 %v215, %v217
    %v219 = vrot.slane %v154, %v218
    %v221 = vunpack.c.l.s4 1983009808
    %v222 = vunpack.c.0.s8 %v221
    %v223 = vlaneseq
    %v224 = vshrl.u32 %v223, 7
    %v225 = vsub.s32 %v222, %v224
    %v226 = vrot.slane %v212, %v225
    %v227 = vcombine.high %v219, %v219
    %v228 = vcombine.high %v226, %v226
    %v229 = vcombine.high %v155, %v155
    %v231 = vunpack.c.l.s4 1983009808
    %v232 = vunpack.c.0.s8 %v231
    %v233 = vlaneseq
    %v234 = vshrl.u32 %v233, 7
    %v235 = vsub.s32 %v232, %v234
    %v236 = vrot.slane %v155, %v235
    %v238 = vunpack.c.l.s4 1983009808
    %v239 = vunpack.c.0.s8 %v238
    %v240 = vlaneseq
    %v241 = vshrl.u32 %v240, 7
    %v242 = vsub.s32 %v239, %v241
    %v243 = vrot.slane %v229, %v242
    %v244 = vcombine.high %v236, %v236
    %v245 = vcombine.high %v243, %v243
    %v246 = vcombine.high %v156, %v156
    %v248 = vunpack.c.l.s4 1983009808
    %v249 = vunpack.c.0.s8 %v248
    %v250 = vlaneseq
    %v251 = vshrl.u32 %v250, 7
    %v252 = vsub.s32 %v249, %v251
    %v253 = vrot.slane %v156, %v252
    %v255 = vunpack.c.l.s4 1983009808
    %v256 = vunpack.c.0.s8 %v255
    %v257 = vlaneseq
    %v258 = vshrl.u32 %v257, 7
    %v259 = vsub.s32 %v256, %v258
    %v260 = vrot.slane %v246, %v259
    %v261 = vcombine.high %v253, %v253
    %v262 = vcombine.high %v260, %v260
    %v263 = vcombine.high %v157, %v157
    %v265 = vunpack.c.l.s4 1983009808
    %v266 = vunpack.c.0.s8 %v265
    %v267 = vlaneseq
    %v268 = vshrl.u32 %v267, 7
    %v269 = vsub.s32 %v266, %v268
    %v270 = vrot.slane %v157, %v269
    %v272 = vunpack.c.l.s4 1983009808
    %v273 = vunpack.c.0.s8 %v272
    %v274 = vlaneseq
    %v275 = vshrl.u32 %v274, 7
    %v276 = vsub.s32 %v273, %v275
    %v277 = vrot.slane %v263, %v276
    %v278 = vcombine.high %v270, %v270
    %v279 = vcombine.high %v277, %v277
    %v280 = vcombine.high %v158, %v158
    %v282 = vunpack.c.l.s4 1983009808
    %v283 = vunpack.c.0.s8 %v282
    %v284 = vlaneseq
    %v285 = vshrl.u32 %v284, 7
    %v286 = vsub.s32 %v283, %v285
    %v287 = vrot.slane %v158, %v286
    %v289 = vunpack.c.l.s4 1983009808
    %v290 = vunpack.c.0.s8 %v289
    %v291 = vlaneseq
    %v292 = vshrl.u32 %v291, 7
    %v293 = vsub.s32 %v290, %v292
    %v294 = vrot.slane %v280, %v293
    %v295 = vcombine.high %v287, %v287
    %v296 = vcombine.high %v294, %v294
    %v297 = vcombine.high %v159, %v159
    %v299 = vunpack.c.l.s4 1983009808
    %v300 = vunpack.c.0.s8 %v299
    %v301 = vlaneseq
    %v302 = vshrl.u32 %v301, 7
    %v303 = vsub.s32 %v300, %v302
    %v304 = vrot.slane %v159, %v303
    %v306 = vunpack.c.l.s4 1983009808
    %v307 = vunpack.c.0.s8 %v306
    %v308 = vlaneseq
    %v309 = vshrl.u32 %v308, 7
    %v310 = vsub.s32 %v307, %v309
    %v311 = vrot.slane %v297, %v310
    %v312 = vcombine.high %v304, %v304
    %v313 = vcombine.high %v311, %v311
    %v314 = vcombine.high %v160, %v160
    %v316 = vunpack.c.l.s4 1983009808
    %v317 = vunpack.c.0.s8 %v316
    %v318 = vlaneseq
    %v319 = vshrl.u32 %v318, 7
    %v320 = vsub.s32 %v317, %v319
    %v321 = vrot.slane %v160, %v320
    %v323 = vunpack.c.l.s4 1983009808
    %v324 = vunpack.c.0.s8 %v323
    %v325 = vlaneseq
    %v326 = vshrl.u32 %v325, 7
    %v327 = vsub.s32 %v324, %v326
    %v328 = vrot.slane %v314, %v327
    %v329 = vcombine.high %v321, %v321
    %v330 = vcombine.high %v328, %v328
    %v331 = vcombine.high %v161, %v161
    %v333 = vunpack.c.l.s4 1983009808
    %v334 = vunpack.c.0.s8 %v333
    %v335 = vlaneseq
    %v336 = vshrl.u32 %v335, 7
    %v337 = vsub.s32 %v334, %v336
    %v338 = vrot.slane %v161, %v337
    %v340 = vunpack.c.l.s4 1983009808
    %v341 = vunpack.c.0.s8 %v340
    %v342 = vlaneseq
    %v343 = vshrl.u32 %v342, 7
    %v344 = vsub.s32 %v341, %v343
    %v345 = vrot.slane %v331, %v344
    %v346 = vcombine.high %v338, %v338
    %v347 = vcombine.high %v345, %v345
    %v348 = vcombine.high %v162, %v162
    %v350 = vunpack.c.l.s4 1983009808
    %v351 = vunpack.c.0.s8 %v350
    %v352 = vlaneseq
    %v353 = vshrl.u32 %v352, 7
    %v354 = vsub.s32 %v351, %v353
    %v355 = vrot.slane %v162, %v354
    %v357 = vunpack.c.l.s4 1983009808
    %v358 = vunpack.c.0.s8 %v357
    %v359 = vlaneseq
    %v360 = vshrl.u32 %v359, 7
    %v361 = vsub.s32 %v358, %v360
    %v362 = vrot.slane %v348, %v361
    %v363 = vcombine.high %v355, %v355
    %v364 = vcombine.high %v362, %v362
    %v365 = vcombine.high %v163, %v163
    %v367 = vunpack.c.l.s4 1983009808
    %v368 = vunpack.c.0.s8 %v367
    %v369 = vlaneseq
    %v370 = vshrl.u32 %v369, 7
    %v371 = vsub.s32 %v368, %v370
    %v372 = vrot.slane %v163, %v371
    %v374 = vunpack.c.l.s4 1983009808
    %v375 = vunpack.c.0.s8 %v374
    %v376 = vlaneseq
    %v377 = vshrl.u32 %v376, 7
    %v378 = vsub.s32 %v375, %v377
    %v379 = vrot.slane %v365, %v378
    %v380 = vcombine.high %v372, %v372
    %v381 = vcombine.high %v379, %v379
    %v382 = vcombine.high %v164, %v164
    %v384 = vunpack.c.l.s4 1983009808
    %v385 = vunpack.c.0.s8 %v384
    %v386 = vlaneseq
    %v387 = vshrl.u32 %v386, 7
    %v388 = vsub.s32 %v385, %v387
    %v389 = vrot.slane %v164, %v388
    %v391 = vunpack.c.l.s4 1983009808
    %v392 = vunpack.c.0.s8 %v391
    %v393 = vlaneseq
    %v394 = vshrl.u32 %v393, 7
    %v395 = vsub.s32 %v392, %v394
    %v396 = vrot.slane %v382, %v395
    %v397 = vcombine.high %v389, %v389
    %v398 = vcombine.high %v396, %v396
    %v399 = vcombine.high %v165, %v165
    %v401 = vunpack.c.l.s4 1983009808
    %v402 = vunpack.c.0.s8 %v401
    %v403 = vlaneseq
    %v404 = vshrl.u32 %v403, 7
    %v405 = vsub.s32 %v402, %v404
    %v406 = vrot.slane %v165, %v405
    %v408 = vunpack.c.l.s4 1983009808
    %v409 = vunpack.c.0.s8 %v408
    %v410 = vlaneseq
    %v411 = vshrl.u32 %v410, 7
    %v412 = vsub.s32 %v409, %v411
    %v413 = vrot.slane %v399, %v412
    %v414 = vcombine.high %v406, %v406
    %v415 = vcombine.high %v413, %v413
    %v416 = vcombine.high %v166, %v166
    %v418 = vunpack.c.l.s4 1983009808
    %v419 = vunpack.c.0.s8 %v418
    %v420 = vlaneseq
    %v421 = vshrl.u32 %v420, 7
    %v422 = vsub.s32 %v419, %v421
    %v423 = vrot.slane %v166, %v422
    %v425 = vunpack.c.l.s4 1983009808
    %v426 = vunpack.c.0.s8 %v425
    %v427 = vlaneseq
    %v428 = vshrl.u32 %v427, 7
    %v429 = vsub.s32 %v426, %v428
    %v430 = vrot.slane %v416, %v429
    %v431 = vcombine.high %v423, %v423
    %v432 = vcombine.high %v430, %v430
    %v433 = vcombine.high %v167, %v167
    %v435 = vunpack.c.l.s4 1983009808
    %v436 = vunpack.c.0.s8 %v435
    %v437 = vlaneseq
    %v438 = vshrl.u32 %v437, 7
    %v439 = vsub.s32 %v436, %v438
    %v440 = vrot.slane %v167, %v439
    %v442 = vunpack.c.l.s4 1983009808
    %v443 = vunpack.c.0.s8 %v442
    %v444 = vlaneseq
    %v445 = vshrl.u32 %v444, 7
    %v446 = vsub.s32 %v443, %v445
    %v447 = vrot.slane %v433, %v446
    %v448 = vcombine.high %v440, %v440
    %v449 = vcombine.high %v447, %v447
    %v450 = vcombine.high %v168, %v168
    %v452 = vunpack.c.l.s4 1983009808
    %v453 = vunpack.c.0.s8 %v452
    %v454 = vlaneseq
    %v455 = vshrl.u32 %v454, 7
    %v456 = vsub.s32 %v453, %v455
    %v457 = vrot.slane %v168, %v456
    %v459 = vunpack.c.l.s4 1983009808
    %v460 = vunpack.c.0.s8 %v459
    %v461 = vlaneseq
    %v462 = vshrl.u32 %v461, 7
    %v463 = vsub.s32 %v460, %v462
    %v464 = vrot.slane %v450, %v463
    %v465 = vcombine.high %v457, %v457
    %v466 = vcombine.high %v464, %v464
    %v467 = vcombine.high %v169, %v169
    %v469 = vunpack.c.l.s4 1983009808
    %v470 = vunpack.c.0.s8 %v469
    %v471 = vlaneseq
    %v472 = vshrl.u32 %v471, 7
    %v473 = vsub.s32 %v470, %v472
    %v474 = vrot.slane %v169, %v473
    %v476 = vunpack.c.l.s4 1983009808
    %v477 = vunpack.c.0.s8 %v476
    %v478 = vlaneseq
    %v479 = vshrl.u32 %v478, 7
    %v480 = vsub.s32 %v477, %v479
    %v481 = vrot.slane %v467, %v480
    %v482 = vcombine.high %v474, %v474
    %v483 = vcombine.high %v481, %v481
    %v484 = vcombine.high %v170, %v170
    %v486 = vunpack.c.l.s4 1983009808
    %v487 = vunpack.c.0.s8 %v486
    %v488 = vlaneseq
    %v489 = vshrl.u32 %v488, 7
    %v490 = vsub.s32 %v487, %v489
    %v491 = vrot.slane %v170, %v490
    %v493 = vunpack.c.l.s4 1983009808
    %v494 = vunpack.c.0.s8 %v493
    %v495 = vlaneseq
    %v496 = vshrl.u32 %v495, 7
    %v497 = vsub.s32 %v494, %v496
    %v498 = vrot.slane %v484, %v497
    %v499 = vcombine.high %v491, %v491
    %v500 = vcombine.high %v498, %v498
    %v501 = vcombine.high %v171, %v171
    %v503 = vunpack.c.l.s4 1983009808
    %v504 = vunpack.c.0.s8 %v503
    %v505 = vlaneseq
    %v506 = vshrl.u32 %v505, 7
    %v507 = vsub.s32 %v504, %v506
    %v508 = vrot.slane %v171, %v507
    %v510 = vunpack.c.l.s4 1983009808
    %v511 = vunpack.c.0.s8 %v510
    %v512 = vlaneseq
    %v513 = vshrl.u32 %v512, 7
    %v514 = vsub.s32 %v511, %v513
    %v515 = vrot.slane %v501, %v514
    %v516 = vcombine.high %v508, %v508
    %v517 = vcombine.high %v515, %v515
    %v518 = vcombine.high %v172, %v172
    %v520 = vunpack.c.l.s4 1983009808
    %v521 = vunpack.c.0.s8 %v520
    %v522 = vlaneseq
    %v523 = vshrl.u32 %v522, 7
    %v524 = vsub.s32 %v521, %v523
    %v525 = vrot.slane %v172, %v524
    %v527 = vunpack.c.l.s4 1983009808
    %v528 = vunpack.c.0.s8 %v527
    %v529 = vlaneseq
    %v530 = vshrl.u32 %v529, 7
    %v531 = vsub.s32 %v528, %v530
    %v532 = vrot.slane %v518, %v531
    %v533 = vcombine.high %v525, %v525
    %v534 = vcombine.high %v532, %v532
    %v535 = vcombine.high %v173, %v173
    %v537 = vunpack.c.l.s4 1983009808
    %v538 = vunpack.c.0.s8 %v537
    %v539 = vlaneseq
    %v540 = vshrl.u32 %v539, 7
    %v541 = vsub.s32 %v538, %v540
    %v542 = vrot.slane %v173, %v541
    %v544 = vunpack.c.l.s4 1983009808
    %v545 = vunpack.c.0.s8 %v544
    %v546 = vlaneseq
    %v547 = vshrl.u32 %v546, 7
    %v548 = vsub.s32 %v545, %v547
    %v549 = vrot.slane %v535, %v548
    %v550 = vcombine.high %v542, %v542
    %v551 = vcombine.high %v549, %v549
    %v552 = vcombine.high %v174, %v174
    %v554 = vunpack.c.l.s4 1983009808
    %v555 = vunpack.c.0.s8 %v554
    %v556 = vlaneseq
    %v557 = vshrl.u32 %v556, 7
    %v558 = vsub.s32 %v555, %v557
    %v559 = vrot.slane %v174, %v558
    %v561 = vunpack.c.l.s4 1983009808
    %v562 = vunpack.c.0.s8 %v561
    %v563 = vlaneseq
    %v564 = vshrl.u32 %v563, 7
    %v565 = vsub.s32 %v562, %v564
    %v566 = vrot.slane %v552, %v565
    %v567 = vcombine.high %v559, %v559
    %v568 = vcombine.high %v566, %v566
    %v569 = vcombine.high %v175, %v175
    %v571 = vunpack.c.l.s4 1983009808
    %v572 = vunpack.c.0.s8 %v571
    %v573 = vlaneseq
    %v574 = vshrl.u32 %v573, 7
    %v575 = vsub.s32 %v572, %v574
    %v576 = vrot.slane %v175, %v575
    %v578 = vunpack.c.l.s4 1983009808
    %v579 = vunpack.c.0.s8 %v578
    %v580 = vlaneseq
    %v581 = vshrl.u32 %v580, 7
    %v582 = vsub.s32 %v579, %v581
    %v583 = vrot.slane %v569, %v582
    %v584 = vcombine.high %v576, %v576
    %v585 = vcombine.high %v583, %v583
    %v586 = vcombine.high %v176, %v176
    %v588 = vunpack.c.l.s4 1983009808
    %v589 = vunpack.c.0.s8 %v588
    %v590 = vlaneseq
    %v591 = vshrl.u32 %v590, 7
    %v592 = vsub.s32 %v589, %v591
    %v593 = vrot.slane %v176, %v592
    %v595 = vunpack.c.l.s4 1983009808
    %v596 = vunpack.c.0.s8 %v595
    %v597 = vlaneseq
    %v598 = vshrl.u32 %v597, 7
    %v599 = vsub.s32 %v596, %v598
    %v600 = vrot.slane %v586, %v599
    %v601 = vcombine.high %v593, %v593
    %v602 = vcombine.high %v600, %v600
    %v603 = vcombine.high %v177, %v177
    %v605 = vunpack.c.l.s4 1983009808
    %v606 = vunpack.c.0.s8 %v605
    %v607 = vlaneseq
    %v608 = vshrl.u32 %v607, 7
    %v609 = vsub.s32 %v606, %v608
    %v610 = vrot.slane %v177, %v609
    %v612 = vunpack.c.l.s4 1983009808
    %v613 = vunpack.c.0.s8 %v612
    %v614 = vlaneseq
    %v615 = vshrl.u32 %v614, 7
    %v616 = vsub.s32 %v613, %v615
    %v617 = vrot.slane %v603, %v616
    %v618 = vcombine.high %v610, %v610
    %v619 = vcombine.high %v617, %v617
    %v620 = vcombine.high %v178, %v178
    %v622 = vunpack.c.l.s4 1983009808
    %v623 = vunpack.c.0.s8 %v622
    %v624 = vlaneseq
    %v625 = vshrl.u32 %v624, 7
    %v626 = vsub.s32 %v623, %v625
    %v627 = vrot.slane %v178, %v626
    %v629 = vunpack.c.l.s4 1983009808
    %v630 = vunpack.c.0.s8 %v629
    %v631 = vlaneseq
    %v632 = vshrl.u32 %v631, 7
    %v633 = vsub.s32 %v630, %v632
    %v634 = vrot.slane %v620, %v633
    %v635 = vcombine.high %v627, %v627
    %v636 = vcombine.high %v634, %v634
    %v637 = vcombine.high %v179, %v179
    %v639 = vunpack.c.l.s4 1983009808
    %v640 = vunpack.c.0.s8 %v639
    %v641 = vlaneseq
    %v642 = vshrl.u32 %v641, 7
    %v643 = vsub.s32 %v640, %v642
    %v644 = vrot.slane %v179, %v643
    %v646 = vunpack.c.l.s4 1983009808
    %v647 = vunpack.c.0.s8 %v646
    %v648 = vlaneseq
    %v649 = vshrl.u32 %v648, 7
    %v650 = vsub.s32 %v647, %v649
    %v651 = vrot.slane %v637, %v650
    %v652 = vcombine.high %v644, %v644
    %v653 = vcombine.high %v651, %v651
    %v654 = vcombine.high %v180, %v180
    %v656 = vunpack.c.l.s4 1983009808
    %v657 = vunpack.c.0.s8 %v656
    %v658 = vlaneseq
    %v659 = vshrl.u32 %v658, 7
    %v660 = vsub.s32 %v657, %v659
    %v661 = vrot.slane %v180, %v660
    %v663 = vunpack.c.l.s4 1983009808
    %v664 = vunpack.c.0.s8 %v663
    %v665 = vlaneseq
    %v666 = vshrl.u32 %v665, 7
    %v667 = vsub.s32 %v664, %v666
    %v668 = vrot.slane %v654, %v667
    %v669 = vcombine.high %v661, %v661
    %v670 = vcombine.high %v668, %v668
    %v671 = vcombine.high %v181, %v181
    %v673 = vunpack.c.l.s4 1983009808
    %v674 = vunpack.c.0.s8 %v673
    %v675 = vlaneseq
    %v676 = vshrl.u32 %v675, 7
    %v677 = vsub.s32 %v674, %v676
    %v678 = vrot.slane %v181, %v677
    %v680 = vunpack.c.l.s4 1983009808
    %v681 = vunpack.c.0.s8 %v680
    %v682 = vlaneseq
    %v683 = vshrl.u32 %v682, 7
    %v684 = vsub.s32 %v681, %v683
    %v685 = vrot.slane %v671, %v684
    %v686 = vcombine.high %v678, %v678
    %v687 = vcombine.high %v685, %v685
    %v689 = vunpack.c.l.s4 1983009808
    %v690 = vunpack.c.0.s8 %v689
    %v691 = vlaneseq
    %v692 = vshrl.u32 %v691, 7
    %v693 = vsub.s32 %v690, %v692
    %v694 = vrot.slane %v182, %v693
    %v808 = vpack.c.bf16 %v219, %v219
    %v809 = vpack.c.bf16 %v227, %v227
    %v810 = vpack.c.bf16 %v226, %v226
    %v811 = vpack.c.bf16 %v228, %v228
    %v812 = vpack.c.bf16 %v236, %v236
    %v813 = vpack.c.bf16 %v244, %v244
    %v814 = vpack.c.bf16 %v243, %v243
    %v815 = vpack.c.bf16 %v245, %v245
    %v816 = vpack.c.bf16 %v253, %v253
    %v817 = vpack.c.bf16 %v261, %v261
    %v818 = vpack.c.bf16 %v260, %v260
    %v819 = vpack.c.bf16 %v262, %v262
    %v820 = vpack.c.bf16 %v270, %v270
    %v821 = vpack.c.bf16 %v278, %v278
    %v822 = vpack.c.bf16 %v277, %v277
    %v823 = vpack.c.bf16 %v279, %v279
    %v824 = vpack.c.bf16 %v287, %v287
    %v825 = vpack.c.bf16 %v295, %v295
    %v826 = vpack.c.bf16 %v294, %v294
    %v827 = vpack.c.bf16 %v296, %v296
    %v828 = vpack.c.bf16 %v304, %v304
    %v829 = vpack.c.bf16 %v312, %v312
    %v830 = vpack.c.bf16 %v311, %v311
    %v831 = vpack.c.bf16 %v313, %v313
    %v832 = vpack.c.bf16 %v321, %v321
    %v833 = vpack.c.bf16 %v329, %v329
    %v834 = vpack.c.bf16 %v328, %v328
    %v835 = vpack.c.bf16 %v330, %v330
    %v836 = vpack.c.bf16 %v338, %v338
    %v837 = vpack.c.bf16 %v346, %v346
    %v838 = vpack.c.bf16 %v345, %v345
    %v839 = vpack.c.bf16 %v347, %v347
    %v840 = vpack.c.bf16 %v355, %v355
    %v841 = vpack.c.bf16 %v363, %v363
    %v842 = vpack.c.bf16 %v362, %v362
    %v843 = vpack.c.bf16 %v364, %v364
    %v844 = vpack.c.bf16 %v372, %v372
    %v845 = vpack.c.bf16 %v380, %v380
    %v846 = vpack.c.bf16 %v379, %v379
    %v847 = vpack.c.bf16 %v381, %v381
    %v848 = vpack.c.bf16 %v389, %v389
    %v849 = vpack.c.bf16 %v397, %v397
    %v850 = vpack.c.bf16 %v396, %v396
    %v851 = vpack.c.bf16 %v398, %v398
    %v852 = vpack.c.bf16 %v406, %v406
    %v853 = vpack.c.bf16 %v414, %v414
    %v854 = vpack.c.bf16 %v413, %v413
    %v855 = vpack.c.bf16 %v415, %v415
    %v856 = vpack.c.bf16 %v423, %v423
    %v857 = vpack.c.bf16 %v431, %v431
    %v858 = vpack.c.bf16 %v430, %v430
    %v859 = vpack.c.bf16 %v432, %v432
    %v860 = vpack.c.bf16 %v440, %v440
    %v861 = vpack.c.bf16 %v448, %v448
    %v862 = vpack.c.bf16 %v447, %v447
    %v863 = vpack.c.bf16 %v449, %v449
    %v864 = vpack.c.bf16 %v457, %v457
    %v865 = vpack.c.bf16 %v465, %v465
    %v866 = vpack.c.bf16 %v464, %v464
    %v867 = vpack.c.bf16 %v466, %v466
    %v868 = vpack.c.bf16 %v474, %v474
    %v869 = vpack.c.bf16 %v482, %v482
    %v870 = vpack.c.bf16 %v481, %v481
    %v871 = vpack.c.bf16 %v483, %v483
    %v872 = vpack.c.bf16 %v491, %v491
    %v873 = vpack.c.bf16 %v499, %v499
    %v874 = vpack.c.bf16 %v498, %v498
    %v875 = vpack.c.bf16 %v500, %v500
    %v876 = vpack.c.bf16 %v508, %v508
    %v877 = vpack.c.bf16 %v516, %v516
    %v878 = vpack.c.bf16 %v515, %v515
    %v879 = vpack.c.bf16 %v517, %v517
    %v880 = vpack.c.bf16 %v525, %v525
    %v881 = vpack.c.bf16 %v533, %v533
    %v882 = vpack.c.bf16 %v532, %v532
    %v883 = vpack.c.bf16 %v534, %v534
    %v884 = vpack.c.bf16 %v542, %v542
    %v885 = vpack.c.bf16 %v550, %v550
    %v886 = vpack.c.bf16 %v549, %v549
    %v887 = vpack.c.bf16 %v551, %v551
    %v888 = vpack.c.bf16 %v559, %v559
    %v889 = vpack.c.bf16 %v567, %v567
    %v890 = vpack.c.bf16 %v566, %v566
    %v891 = vpack.c.bf16 %v568, %v568
    %v892 = vpack.c.bf16 %v576, %v576
    %v893 = vpack.c.bf16 %v584, %v584
    %v894 = vpack.c.bf16 %v583, %v583
    %v895 = vpack.c.bf16 %v585, %v585
    %v896 = vpack.c.bf16 %v593, %v593
    %v897 = vpack.c.bf16 %v601, %v601
    %v898 = vpack.c.bf16 %v600, %v600
    %v899 = vpack.c.bf16 %v602, %v602
    %v900 = vpack.c.bf16 %v610, %v610
    %v901 = vpack.c.bf16 %v618, %v618
    %v902 = vpack.c.bf16 %v617, %v617
    %v903 = vpack.c.bf16 %v619, %v619
    %v904 = vpack.c.bf16 %v627, %v627
    %v905 = vpack.c.bf16 %v635, %v635
    %v906 = vpack.c.bf16 %v634, %v634
    %v907 = vpack.c.bf16 %v636, %v636
    %v908 = vpack.c.bf16 %v644, %v644
    %v909 = vpack.c.bf16 %v652, %v652
    %v910 = vpack.c.bf16 %v651, %v651
    %v911 = vpack.c.bf16 %v653, %v653
    %v912 = vpack.c.bf16 %v661, %v661
    %v913 = vpack.c.bf16 %v669, %v669
    %v914 = vpack.c.bf16 %v668, %v668
    %v915 = vpack.c.bf16 %v670, %v670
    %v916 = vpack.c.bf16 %v678, %v678
    %v917 = vpack.c.bf16 %v686, %v686
    %v918 = vpack.c.bf16 %v685, %v685
    %v919 = vpack.c.bf16 %v687, %v687
    %v920 = vpack.c.bf16 %v694, %v694
    %v921 = vld [vmem:[#allocation5] sm:$0xf]
    %v922 = vld [vmem:[#allocation5 + $0x4] sm:$0xf]
    %v923 = vld [vmem:[#allocation5 + $0x8] sm:$0xf]
    %v924 = vld [vmem:[#allocation5 + $0xc] sm:$0xf]
    %v925 = vld [vmem:[#allocation5 + $0x10] sm:$0xf]
    %v926 = vld [vmem:[#allocation5 + $0x14] sm:$0xf]
    %v927 = vld [vmem:[#allocation5 + $0x18] sm:$0xf]
    %v928 = vld [vmem:[#allocation5 + $0x1c] sm:$0xf]
    %v929 = vld [vmem:[#allocation5 + $0x20] sm:$0xf]
    %v930 = vld [vmem:[#allocation5 + $0x24] sm:$0xf]
    %v931 = vld [vmem:[#allocation5 + $0x28] sm:$0xf]
    %v932 = vld [vmem:[#allocation5 + $0x2c] sm:$0xf]
    %v933 = vld [vmem:[#allocation5 + $0x30] sm:$0xf]
    %v934 = vld [vmem:[#allocation5 + $0x34] sm:$0xf]
    %v935 = vld [vmem:[#allocation5 + $0x38] sm:$0xf]
    %v936 = vld [vmem:[#allocation5 + $0x3c] sm:$0xf]
    %v937 = vld [vmem:[#allocation5 + $0x40] sm:$0xf]
    %v938 = vld [vmem:[#allocation5 + $0x44] sm:$0xf]
    %v939 = vld [vmem:[#allocation5 + $0x48] sm:$0xf]
    %v940 = vld [vmem:[#allocation5 + $0x4c] sm:$0xf]
    %v941 = vld [vmem:[#allocation5 + $0x50] sm:$0xf]
    %v942 = vld [vmem:[#allocation5 + $0x54] sm:$0xf]
    %v943 = vld [vmem:[#allocation5 + $0x58] sm:$0xf]
    %v944 = vld [vmem:[#allocation5 + $0x5c] sm:$0xf]
    %v945 = vld [vmem:[#allocation5 + $0x60] sm:$0xf]
    %v946 = vld [vmem:[#allocation5 + $0x64] sm:$0xf]
    %v947 = vld [vmem:[#allocation5 + $0x68] sm:$0xf]
    %v948 = vld [vmem:[#allocation5 + $0x6c] sm:$0xf]
    %v949 = vld [vmem:[#allocation5 + $0x70] sm:$0xf]
    %v950 = vld [vmem:[#allocation5 + $0x74] sm:$0xf]
    %v951 = vld [vmem:[#allocation5 + $0x78] sm:$0xf]
    %v952 = vld [vmem:[#allocation5 + $0x7c] sm:$0xf]
    %v953 = vld [vmem:[#allocation5 + $0x80] sm:$0xf]
    %v954 = vld [vmem:[#allocation5 + $0x84] sm:$0xf]
    %v955 = vld [vmem:[#allocation5 + $0x88] sm:$0xf]
    %v956 = vld [vmem:[#allocation5 + $0x8c] sm:$0xf]
    %v957 = vld [vmem:[#allocation5 + $0x90] sm:$0xf]
    %v958 = vld [vmem:[#allocation5 + $0x94] sm:$0xf]
    %v959 = vld [vmem:[#allocation5 + $0x98] sm:$0xf]
    %v960 = vld [vmem:[#allocation5 + $0x9c] sm:$0xf]
    %v961 = vld [vmem:[#allocation5 + $0xa0] sm:$0xf]
    %v962 = vld [vmem:[#allocation5 + $0xa4] sm:$0xf]
    %v963 = vld [vmem:[#allocation5 + $0xa8] sm:$0xf]
    %v964 = vld [vmem:[#allocation5 + $0xac] sm:$0xf]
    %v965 = vld [vmem:[#allocation5 + $0xb0] sm:$0xf]
    %v966 = vld [vmem:[#allocation5 + $0xb4] sm:$0xf]
    %v967 = vld [vmem:[#allocation5 + $0xb8] sm:$0xf]
    %v968 = vld [vmem:[#allocation5 + $0xbc] sm:$0xf]
    %v969 = vld [vmem:[#allocation5 + $0xc0] sm:$0xf]
    %v970 = vld [vmem:[#allocation5 + $0xc4] sm:$0xf]
    %v971 = vld [vmem:[#allocation5 + $0xc8] sm:$0xf]
    %v972 = vld [vmem:[#allocation5 + $0xcc] sm:$0xf]
    %v973 = vld [vmem:[#allocation5 + $0xd0] sm:$0xf]
    %v974 = vld [vmem:[#allocation5 + $0xd4] sm:$0xf]
    %v975 = vld [vmem:[#allocation5 + $0xd8] sm:$0xf]
    %v976 = vld [vmem:[#allocation5 + $0xdc] sm:$0xf]
    %v977 = vld [vmem:[#allocation5 + $0xe0] sm:$0xf]
    %v978 = vld [vmem:[#allocation5 + $0xe4] sm:$0xf]
    %v979 = vld [vmem:[#allocation5 + $0xe8] sm:$0xf]
    %v980 = vld [vmem:[#allocation5 + $0xec] sm:$0xf]
    %v981 = vld [vmem:[#allocation5 + $0xf0] sm:$0xf]
    %v982 = vld [vmem:[#allocation5 + $0xf4] sm:$0xf]
    %v983 = vld [vmem:[#allocation5 + $0xf8] sm:$0xf]
    %v984 = vld [vmem:[#allocation5 + $0xfc] sm:$0xf]
    %v985 = vld [vmem:[#allocation5 + $0x100] sm:$0xf]
    %v986 = vld [vmem:[#allocation5 + $0x104] sm:$0xf]
    %v987 = vld [vmem:[#allocation5 + $0x108] sm:$0xf]
    %v988 = vld [vmem:[#allocation5 + $0x10c] sm:$0xf]
    %v989 = vld [vmem:[#allocation5 + $0x110] sm:$0xf]
    %v990 = vld [vmem:[#allocation5 + $0x114] sm:$0xf]
    %v991 = vld [vmem:[#allocation5 + $0x118] sm:$0xf]
    %v992 = vld [vmem:[#allocation5 + $0x11c] sm:$0xf]
    %v993 = vld [vmem:[#allocation5 + $0x120] sm:$0xf]
    %v994 = vld [vmem:[#allocation5 + $0x124] sm:$0xf]
    %v995 = vld [vmem:[#allocation5 + $0x128] sm:$0xf]
    %v996 = vld [vmem:[#allocation5 + $0x12c] sm:$0xf]
    %v997 = vld [vmem:[#allocation5 + $0x130] sm:$0xf]
    %v998 = vld [vmem:[#allocation5 + $0x134] sm:$0xf]
    %v999 = vld [vmem:[#allocation5 + $0x138] sm:$0xf]
    %v1000 = vld [vmem:[#allocation5 + $0x13c] sm:$0xf]
    %v1001 = vld [vmem:[#allocation5 + $0x140] sm:$0xf]
    %v1002 = vld [vmem:[#allocation5 + $0x144] sm:$0xf]
    %v1003 = vld [vmem:[#allocation5 + $0x148] sm:$0xf]
    %v1004 = vld [vmem:[#allocation5 + $0x14c] sm:$0xf]
    %v1005 = vld [vmem:[#allocation5 + $0x150] sm:$0xf]
    %v1006 = vld [vmem:[#allocation5 + $0x154] sm:$0xf]
    %v1007 = vld [vmem:[#allocation5 + $0x158] sm:$0xf]
    %v1008 = vld [vmem:[#allocation5 + $0x15c] sm:$0xf]
    %v1009 = vld [vmem:[#allocation5 + $0x160] sm:$0xf]
    %v1010 = vld [vmem:[#allocation5 + $0x164] sm:$0xf]
    %v1011 = vld [vmem:[#allocation5 + $0x168] sm:$0xf]
    %v1012 = vld [vmem:[#allocation5 + $0x16c] sm:$0xf]
    %v1013 = vld [vmem:[#allocation5 + $0x170] sm:$0xf]
    %v1014 = vld [vmem:[#allocation5 + $0x174] sm:$0xf]
    %v1015 = vld [vmem:[#allocation5 + $0x178] sm:$0xf]
    %v1016 = vld [vmem:[#allocation5 + $0x17c] sm:$0xf]
    %v1017 = vld [vmem:[#allocation5 + $0x180] sm:$0xf]
    %v1018 = vld [vmem:[#allocation5 + $0x184] sm:$0xf]
    %v1019 = vld [vmem:[#allocation5 + $0x188] sm:$0xf]
    %v1020 = vld [vmem:[#allocation5 + $0x18c] sm:$0xf]
    %v1021 = vld [vmem:[#allocation5 + $0x190] sm:$0xf]
    %v1022 = vld [vmem:[#allocation5 + $0x194] sm:$0xf]
    %v1023 = vld [vmem:[#allocation5 + $0x198] sm:$0xf]
    %v1024 = vld [vmem:[#allocation5 + $0x19c] sm:$0xf]
    %v1025 = vld [vmem:[#allocation5 + $0x1a0] sm:$0xf]
    %v1026 = vld [vmem:[#allocation5 + $0x1a4] sm:$0xf]
    %v1027 = vld [vmem:[#allocation5 + $0x1a8] sm:$0xf]
    %v1028 = vld [vmem:[#allocation5 + $0x1ac] sm:$0xf]
    %v1029 = vld [vmem:[#allocation5 + $0x1b0] sm:$0xf]
    %v1030 = vld [vmem:[#allocation5 + $0x1b4] sm:$0xf]
    %v1031 = vld [vmem:[#allocation5 + $0x1b8] sm:$0xf]
    %v1032 = vld [vmem:[#allocation5 + $0x1bc] sm:$0xf]
    %v1033 = vld [vmem:[#allocation5 + $0x1c0] sm:$0xf]
    %v1034 = vld [vmem:[#allocation5 + $0x1c4] sm:$0xf]
    %v1035 = vld [vmem:[#allocation5 + $0x1c8] sm:$0xf]
    %v1036 = vld [vmem:[#allocation5 + $0x1cc] sm:$0xf]
    %v1037 = vld [vmem:[#allocation5 + $0x1d0] sm:$0xf]
    %v1038 = vld [vmem:[#allocation5 + $0x1d4] sm:$0xf]
    %v1039 = vld [vmem:[#allocation5 + $0x1d8] sm:$0xf]
    %v1040 = vld [vmem:[#allocation5 + $0x1dc] sm:$0xf]
    %v1041 = vld [vmem:[#allocation5 + $0x1e0] sm:$0xf]
    %v1042 = vld [vmem:[#allocation5 + $0x1e4] sm:$0xf]
    %v1043 = vld [vmem:[#allocation5 + $0x1e8] sm:$0xf]
    %v1044 = vld [vmem:[#allocation5 + $0x1ec] sm:$0xf]
    %v1045 = vld [vmem:[#allocation5 + $0x1f0] sm:$0xf]
    %v1046 = vld [vmem:[#allocation5 + $0x1f4] sm:$0xf]
    %v1047 = vld [vmem:[#allocation5 + $0x1f8] sm:$0xf]
    %v1048 = vld [vmem:[#allocation5 + $0x1fc] sm:$0xf]
    %v1049 = vld [vmem:[#allocation5 + $0x200] sm:$0xf]
    %v1050 = vld [vmem:[#allocation5 + $0x204] sm:$0xf]
    %v1051 = vld [vmem:[#allocation5 + $0x208] sm:$0xf]
    %v1052 = vld [vmem:[#allocation5 + $0x20c] sm:$0xf]
    %v1053 = vld [vmem:[#allocation5 + $0x210] sm:$0xf]
    %v1054 = vld [vmem:[#allocation5 + $0x214] sm:$0xf]
    %v1055 = vld [vmem:[#allocation5 + $0x218] sm:$0xf]
    %v1056 = vld [vmem:[#allocation5 + $0x21c] sm:$0xf]
    %v1057 = vld [vmem:[#allocation5 + $0x220] sm:$0xf]
    %v1058 = vld [vmem:[#allocation5 + $0x224] sm:$0xf]
    %v1059 = vld [vmem:[#allocation5 + $0x228] sm:$0xf]
    %v1060 = vld [vmem:[#allocation5 + $0x22c] sm:$0xf]
    %v1061 = vld [vmem:[#allocation5 + $0x230] sm:$0xf]
    %v1062 = vld [vmem:[#allocation5 + $0x234] sm:$0xf]
    %v1063 = vld [vmem:[#allocation5 + $0x238] sm:$0xf]
    %v1064 = vld [vmem:[#allocation5 + $0x23c] sm:$0xf]
    %v1065 = vld [vmem:[#allocation5 + $0x240] sm:$0xf]
    %v1066 = vld [vmem:[#allocation5 + $0x244] sm:$0xf]
    %v1067 = vld [vmem:[#allocation5 + $0x248] sm:$0xf]
    %v1068 = vld [vmem:[#allocation5 + $0x24c] sm:$0xf]
    %v1069 = vld [vmem:[#allocation5 + $0x250] sm:$0xf]
    %v1070 = vld [vmem:[#allocation5 + $0x254] sm:$0xf]
    %v1071 = vld [vmem:[#allocation5 + $0x258] sm:$0xf]
    %v1072 = vld [vmem:[#allocation5 + $0x25c] sm:$0xf]
    %v1073 = vld [vmem:[#allocation5 + $0x260] sm:$0xf]
    %v1074 = vld [vmem:[#allocation5 + $0x264] sm:$0xf]
    %v1075 = vld [vmem:[#allocation5 + $0x268] sm:$0xf]
    %v1076 = vld [vmem:[#allocation5 + $0x26c] sm:$0xf]
    %v1077 = vld [vmem:[#allocation5 + $0x270] sm:$0xf]
    %v1078 = vld [vmem:[#allocation5 + $0x274] sm:$0xf]
    %v1079 = vld [vmem:[#allocation5 + $0x278] sm:$0xf]
    %v1080 = vld [vmem:[#allocation5 + $0x27c] sm:$0xf]
    %v1081 = vld [vmem:[#allocation5 + $0x280] sm:$0xf]
    %v1082 = vld [vmem:[#allocation5 + $0x284] sm:$0xf]
    %v1083 = vld [vmem:[#allocation5 + $0x288] sm:$0xf]
    %v1084 = vld [vmem:[#allocation5 + $0x28c] sm:$0xf]
    %v1085 = vld [vmem:[#allocation5 + $0x290] sm:$0xf]
    %v1086 = vld [vmem:[#allocation5 + $0x294] sm:$0xf]
    %v1087 = vld [vmem:[#allocation5 + $0x298] sm:$0xf]
    %v1088 = vld [vmem:[#allocation5 + $0x29c] sm:$0xf]
    %v1089 = vld [vmem:[#allocation5 + $0x2a0] sm:$0xf]
    %v1090 = vld [vmem:[#allocation5 + $0x2a4] sm:$0xf]
    %v1091 = vld [vmem:[#allocation5 + $0x2a8] sm:$0xf]
    %v1092 = vld [vmem:[#allocation5 + $0x2ac] sm:$0xf]
    %v1093 = vld [vmem:[#allocation5 + $0x2b0] sm:$0xf]
    %v1094 = vld [vmem:[#allocation5 + $0x2b4] sm:$0xf]
    %v1095 = vld [vmem:[#allocation5 + $0x2b8] sm:$0xf]
    %v1096 = vld [vmem:[#allocation5 + $0x2bc] sm:$0xf]
    %v1097 = vld [vmem:[#allocation5 + $0x2c0] sm:$0xf]
    %v1098 = vld [vmem:[#allocation5 + $0x2c4] sm:$0xf]
    %v1099 = vld [vmem:[#allocation5 + $0x2c8] sm:$0xf]
    %v1100 = vld [vmem:[#allocation5 + $0x2cc] sm:$0xf]
    %v1101 = vld [vmem:[#allocation5 + $0x2d0] sm:$0xf]
    %v1102 = vld [vmem:[#allocation5 + $0x2d4] sm:$0xf]
    %v1103 = vld [vmem:[#allocation5 + $0x2d8] sm:$0xf]
    %v1104 = vld [vmem:[#allocation5 + $0x2dc] sm:$0xf]
    %v1105 = vld [vmem:[#allocation5 + $0x2e0] sm:$0xf]
    %v1106 = vld [vmem:[#allocation5 + $0x2e4] sm:$0xf]
    %v1107 = vld [vmem:[#allocation5 + $0x2e8] sm:$0xf]
    %v1108 = vld [vmem:[#allocation5 + $0x2ec] sm:$0xf]
    %v1109 = vld [vmem:[#allocation5 + $0x2f0] sm:$0xf]
    %v1110 = vld [vmem:[#allocation5 + $0x2f4] sm:$0xf]
    %v1111 = vld [vmem:[#allocation5 + $0x2f8] sm:$0xf]
    %v1112 = vld [vmem:[#allocation5 + $0x2fc] sm:$0xf]
    %v1113 = vld [vmem:[#allocation5 + $0x300] sm:$0xf]
    %v1114 = vld [vmem:[#allocation5 + $0x304] sm:$0xf]
    %v1115 = vld [vmem:[#allocation5 + $0x308] sm:$0xf]
    %v1116 = vld [vmem:[#allocation5 + $0x30c] sm:$0xf]
    %v1117 = vld [vmem:[#allocation5 + $0x310] sm:$0xf]
    %v1118 = vld [vmem:[#allocation5 + $0x314] sm:$0xf]
    %v1119 = vld [vmem:[#allocation5 + $0x318] sm:$0xf]
    %v1120 = vld [vmem:[#allocation5 + $0x31c] sm:$0xf]
    %v1121 = vld [vmem:[#allocation5 + $0x320] sm:$0xf]
    %v1122 = vld [vmem:[#allocation5 + $0x324] sm:$0xf]
    %v1123 = vld [vmem:[#allocation5 + $0x328] sm:$0xf]
    %v1124 = vld [vmem:[#allocation5 + $0x32c] sm:$0xf]
    %v1125 = vld [vmem:[#allocation5 + $0x330] sm:$0xf]
    %v1126 = vld [vmem:[#allocation5 + $0x334] sm:$0xf]
    %v1127 = vld [vmem:[#allocation5 + $0x338] sm:$0xf]
    %v1128 = vld [vmem:[#allocation5 + $0x33c] sm:$0xf]
    %v1129 = vld [vmem:[#allocation5 + $0x340] sm:$0xf]
    %v1130 = vld [vmem:[#allocation5 + $0x344] sm:$0xf]
    %v1131 = vld [vmem:[#allocation5 + $0x348] sm:$0xf]
    %v1132 = vld [vmem:[#allocation5 + $0x34c] sm:$0xf]
    %v1133 = vld [vmem:[#allocation5 + $0x350] sm:$0xf]
    %v1134 = vld [vmem:[#allocation5 + $0x354] sm:$0xf]
    %v1135 = vld [vmem:[#allocation5 + $0x358] sm:$0xf]
    %v1136 = vld [vmem:[#allocation5 + $0x35c] sm:$0xf]
    %v1137 = vld [vmem:[#allocation5 + $0x360] sm:$0xf]
    %v1138 = vld [vmem:[#allocation5 + $0x364] sm:$0xf]
    %v1139 = vld [vmem:[#allocation5 + $0x368] sm:$0xf]
    %v1140 = vld [vmem:[#allocation5 + $0x36c] sm:$0xf]
    %v1141 = vld [vmem:[#allocation5 + $0x370] sm:$0xf]
    %v1142 = vld [vmem:[#allocation5 + $0x374] sm:$0xf]
    %v1143 = vld [vmem:[#allocation5 + $0x378] sm:$0xf]
    %v1144 = vld [vmem:[#allocation5 + $0x37c] sm:$0xf]
    %v1145 = vld [vmem:[#allocation5 + $0x380] sm:$0xf]
    %v1146 = vld [vmem:[#allocation5 + $0x384] sm:$0xf]
    %v1147 = vld [vmem:[#allocation5 + $0x388] sm:$0xf]
    %v1148 = vld [vmem:[#allocation5 + $0x38c] sm:$0xf]
    %v1149 = vld [vmem:[#allocation5 + $0x390] sm:$0xf]
    %v1150 = vld [vmem:[#allocation5 + $0x394] sm:$0xf]
    %v1151 = vld [vmem:[#allocation5 + $0x398] sm:$0xf]
    %v1152 = vld [vmem:[#allocation5 + $0x39c] sm:$0xf]
    %v1153 = vld [vmem:[#allocation5 + $0x3a0] sm:$0xf]
    %v1154 = vld [vmem:[#allocation5 + $0x3a4] sm:$0xf]
    %v1155 = vld [vmem:[#allocation5 + $0x3a8] sm:$0xf]
    %v1156 = vld [vmem:[#allocation5 + $0x3ac] sm:$0xf]
    %v1157 = vld [vmem:[#allocation5 + $0x3b0] sm:$0xf]
    %v1158 = vld [vmem:[#allocation5 + $0x3b4] sm:$0xf]
    %v1159 = vld [vmem:[#allocation5 + $0x3b8] sm:$0xf]
    %v1160 = vld [vmem:[#allocation5 + $0x3bc] sm:$0xf]
    %v1161 = vld [vmem:[#allocation5 + $0x3c0] sm:$0xf]
    %v1162 = vld [vmem:[#allocation5 + $0x3c4] sm:$0xf]
    %v1163 = vld [vmem:[#allocation5 + $0x3c8] sm:$0xf]
    %v1164 = vld [vmem:[#allocation5 + $0x3cc] sm:$0xf]
    %v1165 = vld [vmem:[#allocation5 + $0x3d0] sm:$0xf]
    %v1166 = vld [vmem:[#allocation5 + $0x3d4] sm:$0xf]
    %v1167 = vld [vmem:[#allocation5 + $0x3d8] sm:$0xf]
    %v1168 = vld [vmem:[#allocation5 + $0x3dc] sm:$0xf]
    %v1169 = vld [vmem:[#allocation5 + $0x3e0] sm:$0xf]
    %v1170 = vld [vmem:[#allocation5 + $0x3e4] sm:$0xf]
    %v1171 = vld [vmem:[#allocation5 + $0x3e8] sm:$0xf]
    %v1172 = vld [vmem:[#allocation5 + $0x3ec] sm:$0xf]
    %v1173 = vld [vmem:[#allocation5 + $0x3f0] sm:$0xf]
    %v1174 = vld [vmem:[#allocation5 + $0x3f4] sm:$0xf]
    %v1175 = vld [vmem:[#allocation5 + $0x3f8] sm:$0xf]
    %v1176 = vld [vmem:[#allocation5 + $0x3fc] sm:$0xf]
    %v1177 = vld [vmem:[#allocation5 + $0x400] sm:$0xf]
    %v1178 = vld [vmem:[#allocation5 + $0x404] sm:$0xf]
    %v1179 = vld [vmem:[#allocation5 + $0x408] sm:$0xf]
    %v1180 = vld [vmem:[#allocation5 + $0x40c] sm:$0xf]
    %v1181 = vld [vmem:[#allocation5 + $0x410] sm:$0xf]
    %v1182 = vld [vmem:[#allocation5 + $0x414] sm:$0xf]
    %v1183 = vld [vmem:[#allocation5 + $0x418] sm:$0xf]
    %v1184 = vld [vmem:[#allocation5 + $0x41c] sm:$0xf]
    %v1185 = vld [vmem:[#allocation5 + $0x420] sm:$0xf]
    %v1186 = vld [vmem:[#allocation5 + $0x424] sm:$0xf]
    %v1187 = vld [vmem:[#allocation5 + $0x428] sm:$0xf]
    %v1188 = vld [vmem:[#allocation5 + $0x42c] sm:$0xf]
    %v1189 = vld [vmem:[#allocation5 + $0x430] sm:$0xf]
    %v1190 = vld [vmem:[#allocation5 + $0x434] sm:$0xf]
    %v1191 = vld [vmem:[#allocation5 + $0x438] sm:$0xf]
    %v1192 = vld [vmem:[#allocation5 + $0x43c] sm:$0xf]
    %v1193 = vld [vmem:[#allocation5 + $0x440] sm:$0xf]
    %v1194 = vld [vmem:[#allocation5 + $0x444] sm:$0xf]
    %v1195 = vld [vmem:[#allocation5 + $0x448] sm:$0xf]
    %v1196 = vld [vmem:[#allocation5 + $0x44c] sm:$0xf]
    %v1197 = vld [vmem:[#allocation5 + $0x450] sm:$0xf]
    %v1198 = vld [vmem:[#allocation5 + $0x454] sm:$0xf]
    %v1199 = vld [vmem:[#allocation5 + $0x458] sm:$0xf]
    %v1200 = vld [vmem:[#allocation5 + $0x45c] sm:$0xf]
    %v1201 = vld [vmem:[#allocation5 + $0x460] sm:$0xf]
    %v1202 = vld [vmem:[#allocation5 + $0x464] sm:$0xf]
    %v1203 = vld [vmem:[#allocation5 + $0x468] sm:$0xf]
    %v1204 = vld [vmem:[#allocation5 + $0x46c] sm:$0xf]
    %v1205 = vld [vmem:[#allocation5 + $0x470] sm:$0xf]
    %v1206 = vld [vmem:[#allocation5 + $0x474] sm:$0xf]
    %v1207 = vld [vmem:[#allocation5 + $0x478] sm:$0xf]
    %v1208 = vld [vmem:[#allocation5 + $0x47c] sm:$0xf]
    %v1209 = vld [vmem:[#allocation5 + $0x480] sm:$0xf]
    %v1210 = vld [vmem:[#allocation5 + $0x484] sm:$0xf]
    %v1211 = vld [vmem:[#allocation5 + $0x488] sm:$0xf]
    %v1212 = vld [vmem:[#allocation5 + $0x48c] sm:$0xf]
    %v1213 = vld [vmem:[#allocation5 + $0x490] sm:$0xf]
    %v1214 = vld [vmem:[#allocation5 + $0x494] sm:$0xf]
    %v1215 = vld [vmem:[#allocation5 + $0x498] sm:$0xf]
    %v1216 = vld [vmem:[#allocation5 + $0x49c] sm:$0xf]
    %v1217 = vld [vmem:[#allocation5 + $0x4a0] sm:$0xf]
    %v1218 = vld [vmem:[#allocation5 + $0x4a4] sm:$0xf]
    %v1219 = vld [vmem:[#allocation5 + $0x4a8] sm:$0xf]
    %v1220 = vld [vmem:[#allocation5 + $0x4ac] sm:$0xf]
    %v1221 = vld [vmem:[#allocation5 + $0x4b0] sm:$0xf]
    %v1222 = vld [vmem:[#allocation5 + $0x4b4] sm:$0xf]
    %v1223 = vld [vmem:[#allocation5 + $0x4b8] sm:$0xf]
    %v1224 = vld [vmem:[#allocation5 + $0x4bc] sm:$0xf]
    %v1225 = vld [vmem:[#allocation5 + $0x4c0] sm:$0xf]
    %v1226 = vld [vmem:[#allocation5 + $0x4c4] sm:$0xf]
    %v1227 = vld [vmem:[#allocation5 + $0x4c8] sm:$0xf]
    %v1228 = vld [vmem:[#allocation5 + $0x4cc] sm:$0xf]
    %v1229 = vld [vmem:[#allocation5 + $0x4d0] sm:$0xf]
    %v1230 = vld [vmem:[#allocation5 + $0x4d4] sm:$0xf]
    %v1231 = vld [vmem:[#allocation5 + $0x4d8] sm:$0xf]
    %v1232 = vld [vmem:[#allocation5 + $0x4dc] sm:$0xf]
    %v1233 = vld [vmem:[#allocation5 + $0x4e0] sm:$0xf]
    %v1234 = vld [vmem:[#allocation5 + $0x4e4] sm:$0xf]
    %v1235 = vld [vmem:[#allocation5 + $0x4e8] sm:$0xf]
    %v1236 = vld [vmem:[#allocation5 + $0x4ec] sm:$0xf]
    %v1237 = vld [vmem:[#allocation5 + $0x4f0] sm:$0xf]
    %v1238 = vld [vmem:[#allocation5 + $0x4f4] sm:$0xf]
    %v1239 = vld [vmem:[#allocation5 + $0x4f8] sm:$0xf]
    %v1240 = vld [vmem:[#allocation5 + $0x4fc] sm:$0xf]
    %v1241 = vld [vmem:[#allocation5 + $0x500] sm:$0xf]
    %v1242 = vld [vmem:[#allocation5 + $0x504] sm:$0xf]
    %v1243 = vld [vmem:[#allocation5 + $0x508] sm:$0xf]
    %v1244 = vld [vmem:[#allocation5 + $0x50c] sm:$0xf]
    %v1245 = vld [vmem:[#allocation5 + $0x510] sm:$0xf]
    %v1246 = vld [vmem:[#allocation5 + $0x514] sm:$0xf]
    %v1247 = vld [vmem:[#allocation5 + $0x518] sm:$0xf]
    %v1248 = vld [vmem:[#allocation5 + $0x51c] sm:$0xf]
    %v1249 = vld [vmem:[#allocation5 + $0x520] sm:$0xf]
    %v1250 = vld [vmem:[#allocation5 + $0x524] sm:$0xf]
    %v1251 = vld [vmem:[#allocation5 + $0x528] sm:$0xf]
    %v1252 = vld [vmem:[#allocation5 + $0x52c] sm:$0xf]
    %v1253 = vld [vmem:[#allocation5 + $0x530] sm:$0xf]
    %v1254 = vld [vmem:[#allocation5 + $0x534] sm:$0xf]
    %v1255 = vld [vmem:[#allocation5 + $0x538] sm:$0xf]
    %v1256 = vld [vmem:[#allocation5 + $0x53c] sm:$0xf]
    %v1257 = vld [vmem:[#allocation5 + $0x540] sm:$0xf]
    %v1258 = vld [vmem:[#allocation5 + $0x544] sm:$0xf]
    %v1259 = vld [vmem:[#allocation5 + $0x548] sm:$0xf]
    %v1260 = vld [vmem:[#allocation5 + $0x54c] sm:$0xf]
    %v1261 = vld [vmem:[#allocation5 + $0x550] sm:$0xf]
    %v1262 = vld [vmem:[#allocation5 + $0x554] sm:$0xf]
    %v1263 = vld [vmem:[#allocation5 + $0x558] sm:$0xf]
    %v1264 = vld [vmem:[#allocation5 + $0x55c] sm:$0xf]
    %v1265 = vld [vmem:[#allocation5 + $0x560] sm:$0xf]
    %v1266 = vld [vmem:[#allocation5 + $0x564] sm:$0xf]
    %v1267 = vld [vmem:[#allocation5 + $0x568] sm:$0xf]
    %v1268 = vld [vmem:[#allocation5 + $0x56c] sm:$0xf]
    %v1269 = vld [vmem:[#allocation5 + $0x570] sm:$0xf]
    %v1270 = vld [vmem:[#allocation5 + $0x574] sm:$0xf]
    %v1271 = vld [vmem:[#allocation5 + $0x578] sm:$0xf]
    %v1272 = vld [vmem:[#allocation5 + $0x57c] sm:$0xf]
    %v1273 = vld [vmem:[#allocation5 + $0x580] sm:$0xf]
    %v1274 = vld [vmem:[#allocation5 + $0x584] sm:$0xf]
    %v1275 = vld [vmem:[#allocation5 + $0x588] sm:$0xf]
    %v1276 = vld [vmem:[#allocation5 + $0x58c] sm:$0xf]
    %v1277 = vld [vmem:[#allocation5 + $0x590] sm:$0xf]
    %v1278 = vld [vmem:[#allocation5 + $0x594] sm:$0xf]
    %v1279 = vld [vmem:[#allocation5 + $0x598] sm:$0xf]
    %v1280 = vld [vmem:[#allocation5 + $0x59c] sm:$0xf]
    %v1281 = vld [vmem:[#allocation5 + $0x5a0] sm:$0xf]
    %v1282 = vld [vmem:[#allocation5 + $0x5a4] sm:$0xf]
    %v1283 = vld [vmem:[#allocation5 + $0x5a8] sm:$0xf]
    %v1284 = vld [vmem:[#allocation5 + $0x5ac] sm:$0xf]
    %v1285 = vld [vmem:[#allocation5 + $0x5b0] sm:$0xf]
    %v1286 = vld [vmem:[#allocation5 + $0x5b4] sm:$0xf]
    %v1287 = vld [vmem:[#allocation5 + $0x5b8] sm:$0xf]
    %v1288 = vld [vmem:[#allocation5 + $0x5bc] sm:$0xf]
    %v1289 = vld [vmem:[#allocation5 + $0x5c0] sm:$0xf]
    %v1290 = vld [vmem:[#allocation5 + $0x5c4] sm:$0xf]
    %v1291 = vld [vmem:[#allocation5 + $0x5c8] sm:$0xf]
    %v1292 = vld [vmem:[#allocation5 + $0x5cc] sm:$0xf]
    %v1293 = vld [vmem:[#allocation5 + $0x5d0] sm:$0xf]
    %v1294 = vld [vmem:[#allocation5 + $0x5d4] sm:$0xf]
    %v1295 = vld [vmem:[#allocation5 + $0x5d8] sm:$0xf]
    %v1296 = vld [vmem:[#allocation5 + $0x5dc] sm:$0xf]
    %v1297 = vld [vmem:[#allocation5 + $0x5e0] sm:$0xf]
    %v1298 = vld [vmem:[#allocation5 + $0x5e4] sm:$0xf]
    %v1299 = vld [vmem:[#allocation5 + $0x5e8] sm:$0xf]
    %v1300 = vld [vmem:[#allocation5 + $0x5ec] sm:$0xf]
    %v1301 = vld [vmem:[#allocation5 + $0x5f0] sm:$0xf]
    %v1302 = vld [vmem:[#allocation5 + $0x5f4] sm:$0xf]
    %v1303 = vld [vmem:[#allocation5 + $0x5f8] sm:$0xf]
    %v1304 = vld [vmem:[#allocation5 + $0x5fc] sm:$0xf]
    %v1305 = vld [vmem:[#allocation5 + $0x600] sm:$0xf]
    %v1306 = vld [vmem:[#allocation5 + $0x604] sm:$0xf]
    %v1307 = vld [vmem:[#allocation5 + $0x608] sm:$0xf]
    %v1308 = vld [vmem:[#allocation5 + $0x60c] sm:$0xf]
    %v1309 = vld [vmem:[#allocation5 + $0x610] sm:$0xf]
    %v1310 = vld [vmem:[#allocation5 + $0x614] sm:$0xf]
    %v1311 = vld [vmem:[#allocation5 + $0x618] sm:$0xf]
    %v1312 = vld [vmem:[#allocation5 + $0x61c] sm:$0xf]
    %v1313 = vld [vmem:[#allocation5 + $0x620] sm:$0xf]
    %v1314 = vld [vmem:[#allocation5 + $0x624] sm:$0xf]
    %v1315 = vld [vmem:[#allocation5 + $0x628] sm:$0xf]
    %v1316 = vld [vmem:[#allocation5 + $0x62c] sm:$0xf]
    %v1317 = vld [vmem:[#allocation5 + $0x630] sm:$0xf]
    %v1318 = vld [vmem:[#allocation5 + $0x634] sm:$0xf]
    %v1319 = vld [vmem:[#allocation5 + $0x638] sm:$0xf]
    %v1320 = vld [vmem:[#allocation5 + $0x63c] sm:$0xf]
    %v1321 = vld [vmem:[#allocation5 + $0x640] sm:$0xf]
    %v1322 = vld [vmem:[#allocation5 + $0x644] sm:$0xf]
    %v1323 = vld [vmem:[#allocation5 + $0x648] sm:$0xf]
    %v1324 = vld [vmem:[#allocation5 + $0x64c] sm:$0xf]
    %v1325 = vld [vmem:[#allocation5 + $0x650] sm:$0xf]
    %v1326 = vld [vmem:[#allocation5 + $0x654] sm:$0xf]
    %v1327 = vld [vmem:[#allocation5 + $0x658] sm:$0xf]
    %v1328 = vld [vmem:[#allocation5 + $0x65c] sm:$0xf]
    %v1329 = vld [vmem:[#allocation5 + $0x660] sm:$0xf]
    %v1330 = vld [vmem:[#allocation5 + $0x664] sm:$0xf]
    %v1331 = vld [vmem:[#allocation5 + $0x668] sm:$0xf]
    %v1332 = vld [vmem:[#allocation5 + $0x66c] sm:$0xf]
    %v1333 = vld [vmem:[#allocation5 + $0x670] sm:$0xf]
    %v1334 = vld [vmem:[#allocation5 + $0x674] sm:$0xf]
    %v1335 = vld [vmem:[#allocation5 + $0x678] sm:$0xf]
    %v1336 = vld [vmem:[#allocation5 + $0x67c] sm:$0xf]
    %v1337 = vld [vmem:[#allocation5 + $0x680] sm:$0xf]
    %v1338 = vld [vmem:[#allocation5 + $0x684] sm:$0xf]
    %v1339 = vld [vmem:[#allocation5 + $0x688] sm:$0xf]
    %v1340 = vld [vmem:[#allocation5 + $0x68c] sm:$0xf]
    %v1341 = vld [vmem:[#allocation5 + $0x690] sm:$0xf]
    %v1342 = vld [vmem:[#allocation5 + $0x694] sm:$0xf]
    %v1343 = vld [vmem:[#allocation5 + $0x698] sm:$0xf]
    %v1344 = vld [vmem:[#allocation5 + $0x69c] sm:$0xf]
    %v1345 = vld [vmem:[#allocation5 + $0x6a0] sm:$0xf]
    %v1346 = vld [vmem:[#allocation5 + $0x6a4] sm:$0xf]
    %v1347 = vld [vmem:[#allocation5 + $0x6a8] sm:$0xf]
    %v1348 = vld [vmem:[#allocation5 + $0x6ac] sm:$0xf]
    %v1349 = vld [vmem:[#allocation5 + $0x6b0] sm:$0xf]
    %v1350 = vld [vmem:[#allocation5 + $0x6b4] sm:$0xf]
    %v1351 = vld [vmem:[#allocation5 + $0x6b8] sm:$0xf]
    %v1352 = vld [vmem:[#allocation5 + $0x6bc] sm:$0xf]
    %v1353 = vld [vmem:[#allocation5 + $0x6c0] sm:$0xf]
    %v1354 = vld [vmem:[#allocation5 + $0x6c4] sm:$0xf]
    %v1355 = vld [vmem:[#allocation5 + $0x6c8] sm:$0xf]
    %v1356 = vld [vmem:[#allocation5 + $0x6cc] sm:$0xf]
    %v1357 = vld [vmem:[#allocation5 + $0x6d0] sm:$0xf]
    %v1358 = vld [vmem:[#allocation5 + $0x6d4] sm:$0xf]
    %v1359 = vld [vmem:[#allocation5 + $0x6d8] sm:$0xf]
    %v1360 = vld [vmem:[#allocation5 + $0x6dc] sm:$0xf]
    %v1361 = vld [vmem:[#allocation5 + $0x6e0] sm:$0xf]
    %v1362 = vld [vmem:[#allocation5 + $0x6e4] sm:$0xf]
    %v1363 = vld [vmem:[#allocation5 + $0x6e8] sm:$0xf]
    %v1364 = vld [vmem:[#allocation5 + $0x6ec] sm:$0xf]
    %v1365 = vld [vmem:[#allocation5 + $0x6f0] sm:$0xf]
    %v1366 = vld [vmem:[#allocation5 + $0x6f4] sm:$0xf]
    %v1367 = vld [vmem:[#allocation5 + $0x6f8] sm:$0xf]
    %v1368 = vld [vmem:[#allocation5 + $0x6fc] sm:$0xf]
    %v1369 = vld [vmem:[#allocation5 + $0x700] sm:$0xf]
    %v1370 = vld [vmem:[#allocation5 + $0x704] sm:$0xf]
    %v1371 = vld [vmem:[#allocation5 + $0x708] sm:$0xf]
    %v1372 = vld [vmem:[#allocation5 + $0x70c] sm:$0xf]
    %v1373 = vld [vmem:[#allocation5 + $0x710] sm:$0xf]
    %v1374 = vld [vmem:[#allocation5 + $0x714] sm:$0xf]
    %v1375 = vld [vmem:[#allocation5 + $0x718] sm:$0xf]
    %v1376 = vld [vmem:[#allocation5 + $0x71c] sm:$0xf]
    %v1377 = vld [vmem:[#allocation5 + $0x720] sm:$0xf]
    %v1378 = vld [vmem:[#allocation5 + $0x724] sm:$0xf]
    %v1379 = vld [vmem:[#allocation5 + $0x728] sm:$0xf]
    %v1380 = vld [vmem:[#allocation5 + $0x72c] sm:$0xf]
    %v1381 = vld [vmem:[#allocation5 + $0x730] sm:$0xf]
    %v1382 = vld [vmem:[#allocation5 + $0x734] sm:$0xf]
    %v1383 = vld [vmem:[#allocation5 + $0x738] sm:$0xf]
    %v1384 = vld [vmem:[#allocation5 + $0x73c] sm:$0xf]
    %v1385 = vld [vmem:[#allocation5 + $0x740] sm:$0xf]
    %v1386 = vld [vmem:[#allocation5 + $0x744] sm:$0xf]
    %v1387 = vld [vmem:[#allocation5 + $0x748] sm:$0xf]
    %v1388 = vld [vmem:[#allocation5 + $0x74c] sm:$0xf]
    %v1389 = vld [vmem:[#allocation5 + $0x750] sm:$0xf]
    %v1390 = vld [vmem:[#allocation5 + $0x754] sm:$0xf]
    %v1391 = vld [vmem:[#allocation5 + $0x758] sm:$0xf]
    %v1392 = vld [vmem:[#allocation5 + $0x75c] sm:$0xf]
    %v1393 = vld [vmem:[#allocation5 + $0x760] sm:$0xf]
    %v1394 = vld [vmem:[#allocation5 + $0x764] sm:$0xf]
    %v1395 = vld [vmem:[#allocation5 + $0x768] sm:$0xf]
    %v1396 = vld [vmem:[#allocation5 + $0x76c] sm:$0xf]
    %v1397 = vld [vmem:[#allocation5 + $0x770] sm:$0xf]
    %v1398 = vld [vmem:[#allocation5 + $0x774] sm:$0xf]
    %v1399 = vld [vmem:[#allocation5 + $0x778] sm:$0xf]
    %v1400 = vld [vmem:[#allocation5 + $0x77c] sm:$0xf]
    %v1401 = vld [vmem:[#allocation5 + $0x780] sm:$0xf]
    %v1402 = vld [vmem:[#allocation5 + $0x784] sm:$0xf]
    %v1403 = vld [vmem:[#allocation5 + $0x788] sm:$0xf]
    %v1404 = vld [vmem:[#allocation5 + $0x78c] sm:$0xf]
    %v1405 = vld [vmem:[#allocation5 + $0x790] sm:$0xf]
    %v1406 = vld [vmem:[#allocation5 + $0x794] sm:$0xf]
    %v1407 = vld [vmem:[#allocation5 + $0x798] sm:$0xf]
    %v1408 = vld [vmem:[#allocation5 + $0x79c] sm:$0xf]
    %v1409 = vld [vmem:[#allocation5 + $0x7a0] sm:$0xf]
    %v1410 = vld [vmem:[#allocation5 + $0x7a4] sm:$0xf]
    %v1411 = vld [vmem:[#allocation5 + $0x7a8] sm:$0xf]
    %v1412 = vld [vmem:[#allocation5 + $0x7ac] sm:$0xf]
    %v1413 = vld [vmem:[#allocation5 + $0x7b0] sm:$0xf]
    %v1414 = vld [vmem:[#allocation5 + $0x7b4] sm:$0xf]
    %v1415 = vld [vmem:[#allocation5 + $0x7b8] sm:$0xf]
    %v1416 = vld [vmem:[#allocation5 + $0x7bc] sm:$0xf]
    %v1417 = vld [vmem:[#allocation5 + $0x7c0] sm:$0xf]
    %v1418 = vld [vmem:[#allocation5 + $0x7c4] sm:$0xf]
    %v1419 = vld [vmem:[#allocation5 + $0x7c8] sm:$0xf]
    %v1420 = vld [vmem:[#allocation5 + $0x7cc] sm:$0xf]
    %v1421 = vld [vmem:[#allocation5 + $0x7d0] sm:$0xf]
    %v1422 = vld [vmem:[#allocation5 + $0x7d4] sm:$0xf]
    %v1423 = vld [vmem:[#allocation5 + $0x7d8] sm:$0xf]
    %v1424 = vld [vmem:[#allocation5 + $0x7dc] sm:$0xf]
    %v1425 = vld [vmem:[#allocation5 + $0x7e0] sm:$0xf]
    %v1426 = vld [vmem:[#allocation5 + $0x7e4] sm:$0xf]
    %v1427 = vld [vmem:[#allocation5 + $0x7e8] sm:$0xf]
    %v1428 = vld [vmem:[#allocation5 + $0x7ec] sm:$0xf]
    %v1429 = vld [vmem:[#allocation5 + $0x7f0] sm:$0xf]
    %v1430 = vld [vmem:[#allocation5 + $0x7f4] sm:$0xf]
    %v1431 = vld [vmem:[#allocation5 + $0x7f8] sm:$0xf]
    %v1432 = vld [vmem:[#allocation5 + $0x7fc] sm:$0xf]
    %v1433 = vld [vmem:[#allocation5 + $0x800] sm:$0xf]
    %v1434 = vld [vmem:[#allocation5 + $0x804] sm:$0xf]
    %v1435 = vld [vmem:[#allocation5 + $0x808] sm:$0xf]
    %v1436 = vld [vmem:[#allocation5 + $0x80c] sm:$0xf]
    %v1437 = vld [vmem:[#allocation5 + $0x810] sm:$0xf]
    %v1438 = vld [vmem:[#allocation5 + $0x814] sm:$0xf]
    %v1439 = vld [vmem:[#allocation5 + $0x818] sm:$0xf]
    %v1440 = vld [vmem:[#allocation5 + $0x81c] sm:$0xf]
    %v1441 = vld [vmem:[#allocation5 + $0x820] sm:$0xf]
    %v1442 = vld [vmem:[#allocation5 + $0x824] sm:$0xf]
    %v1443 = vld [vmem:[#allocation5 + $0x828] sm:$0xf]
    %v1444 = vld [vmem:[#allocation5 + $0x82c] sm:$0xf]
    %v1445 = vld [vmem:[#allocation5 + $0x830] sm:$0xf]
    %v1446 = vld [vmem:[#allocation5 + $0x834] sm:$0xf]
    %v1447 = vld [vmem:[#allocation5 + $0x838] sm:$0xf]
    %v1448 = vld [vmem:[#allocation5 + $0x83c] sm:$0xf]
    %v1449 = vld [vmem:[#allocation5 + $0x840] sm:$0xf]
    %v1450 = vld [vmem:[#allocation5 + $0x844] sm:$0xf]
    %v1451 = vld [vmem:[#allocation5 + $0x848] sm:$0xf]
    %v1452 = vld [vmem:[#allocation5 + $0x84c] sm:$0xf]
    %v1453 = vld [vmem:[#allocation5 + $0x850] sm:$0xf]
    %v1454 = vld [vmem:[#allocation5 + $0x854] sm:$0xf]
    %v1455 = vld [vmem:[#allocation5 + $0x858] sm:$0xf]
    %v1456 = vld [vmem:[#allocation5 + $0x85c] sm:$0xf]
    %v1457 = vld [vmem:[#allocation5 + $0x860] sm:$0xf]
    %v1458 = vld [vmem:[#allocation5 + $0x864] sm:$0xf]
    %v1459 = vld [vmem:[#allocation5 + $0x868] sm:$0xf]
    %v1460 = vld [vmem:[#allocation5 + $0x86c] sm:$0xf]
    %v1461 = vld [vmem:[#allocation5 + $0x870] sm:$0xf]
    %v1462 = vld [vmem:[#allocation5 + $0x874] sm:$0xf]
    %v1463 = vld [vmem:[#allocation5 + $0x878] sm:$0xf]
    %v1464 = vld [vmem:[#allocation5 + $0x87c] sm:$0xf]
    %v1465 = vld [vmem:[#allocation5 + $0x880] sm:$0xf]
    %v1466 = vld [vmem:[#allocation5 + $0x884] sm:$0xf]
    %v1467 = vld [vmem:[#allocation5 + $0x888] sm:$0xf]
    %v1468 = vld [vmem:[#allocation5 + $0x88c] sm:$0xf]
    %v1469 = vld [vmem:[#allocation5 + $0x890] sm:$0xf]
    %v1470 = vld [vmem:[#allocation5 + $0x894] sm:$0xf]
    %v1471 = vld [vmem:[#allocation5 + $0x898] sm:$0xf]
    %v1472 = vld [vmem:[#allocation5 + $0x89c] sm:$0xf]
    %v1473 = vld [vmem:[#allocation5 + $0x8a0] sm:$0xf]
    %v1474 = vld [vmem:[#allocation5 + $0x8a4] sm:$0xf]
    %v1475 = vld [vmem:[#allocation5 + $0x8a8] sm:$0xf]
    %v1476 = vld [vmem:[#allocation5 + $0x8ac] sm:$0xf]
    %v1477 = vld [vmem:[#allocation5 + $0x8b0] sm:$0xf]
    %v1478 = vld [vmem:[#allocation5 + $0x8b4] sm:$0xf]
    %v1479 = vld [vmem:[#allocation5 + $0x8b8] sm:$0xf]
    %v1480 = vld [vmem:[#allocation5 + $0x8bc] sm:$0xf]
    %v1481 = vld [vmem:[#allocation5 + $0x8c0] sm:$0xf]
    %v1482 = vld [vmem:[#allocation5 + $0x8c4] sm:$0xf]
    %v1483 = vld [vmem:[#allocation5 + $0x8c8] sm:$0xf]
    %v1484 = vld [vmem:[#allocation5 + $0x8cc] sm:$0xf]
    %v1485 = vld [vmem:[#allocation5 + $0x8d0] sm:$0xf]
    %v1486 = vld [vmem:[#allocation5 + $0x8d4] sm:$0xf]
    %v1487 = vld [vmem:[#allocation5 + $0x8d8] sm:$0xf]
    %v1488 = vld [vmem:[#allocation5 + $0x8dc] sm:$0xf]
    %v1489 = vld [vmem:[#allocation5 + $0x8e0] sm:$0xf]
    %v1490 = vld [vmem:[#allocation5 + $0x8e4] sm:$0xf]
    %v1491 = vld [vmem:[#allocation5 + $0x8e8] sm:$0xf]
    %v1492 = vld [vmem:[#allocation5 + $0x8ec] sm:$0xf]
    %v1493 = vld [vmem:[#allocation5 + $0x8f0] sm:$0xf]
    %v1494 = vld [vmem:[#allocation5 + $0x8f4] sm:$0xf]
    %v1495 = vld [vmem:[#allocation5 + $0x8f8] sm:$0xf]
    %v1496 = vld [vmem:[#allocation5 + $0x8fc] sm:$0xf]
    %v1497 = vld [vmem:[#allocation5 + $0x900] sm:$0xf]
    %v1498 = vld [vmem:[#allocation5 + $0x904] sm:$0xf]
    %v1499 = vld [vmem:[#allocation5 + $0x908] sm:$0xf]
    %v1500 = vld [vmem:[#allocation5 + $0x90c] sm:$0xf]
    %v1501 = vld [vmem:[#allocation5 + $0x910] sm:$0xf]
    %v1502 = vld [vmem:[#allocation5 + $0x914] sm:$0xf]
    %v1503 = vld [vmem:[#allocation5 + $0x918] sm:$0xf]
    %v1504 = vld [vmem:[#allocation5 + $0x91c] sm:$0xf]
    %v1505 = vld [vmem:[#allocation5 + $0x920] sm:$0xf]
    %v1506 = vld [vmem:[#allocation5 + $0x924] sm:$0xf]
    %v1507 = vld [vmem:[#allocation5 + $0x928] sm:$0xf]
    %v1508 = vld [vmem:[#allocation5 + $0x92c] sm:$0xf]
    %v1509 = vld [vmem:[#allocation5 + $0x930] sm:$0xf]
    %v1510 = vld [vmem:[#allocation5 + $0x934] sm:$0xf]
    %v1511 = vld [vmem:[#allocation5 + $0x938] sm:$0xf]
    %v1512 = vld [vmem:[#allocation5 + $0x93c] sm:$0xf]
    %v1513 = vld [vmem:[#allocation5 + $0x940] sm:$0xf]
    %v1514 = vld [vmem:[#allocation5 + $0x944] sm:$0xf]
    %v1515 = vld [vmem:[#allocation5 + $0x948] sm:$0xf]
    %v1516 = vld [vmem:[#allocation5 + $0x94c] sm:$0xf]
    %v1517 = vld [vmem:[#allocation5 + $0x950] sm:$0xf]
    %v1518 = vld [vmem:[#allocation5 + $0x954] sm:$0xf]
    %v1519 = vld [vmem:[#allocation5 + $0x958] sm:$0xf]
    %v1520 = vld [vmem:[#allocation5 + $0x95c] sm:$0xf]
    %v1521 = vld [vmem:[#allocation5 + $0x960] sm:$0xf]
    %v1522 = vld [vmem:[#allocation5 + $0x964] sm:$0xf]
    %v1523 = vld [vmem:[#allocation5 + $0x968] sm:$0xf]
    %v1524 = vld [vmem:[#allocation5 + $0x96c] sm:$0xf]
    %v1525 = vld [vmem:[#allocation5 + $0x970] sm:$0xf]
    %v1526 = vld [vmem:[#allocation5 + $0x974] sm:$0xf]
    %v1527 = vld [vmem:[#allocation5 + $0x978] sm:$0xf]
    %v1528 = vld [vmem:[#allocation5 + $0x97c] sm:$0xf]
    %v1529 = vld [vmem:[#allocation5 + $0x980] sm:$0xf]
    %v1530 = vld [vmem:[#allocation5 + $0x984] sm:$0xf]
    %v1531 = vld [vmem:[#allocation5 + $0x988] sm:$0xf]
    %v1532 = vld [vmem:[#allocation5 + $0x98c] sm:$0xf]
    %v1533 = vld [vmem:[#allocation5 + $0x990] sm:$0xf]
    %v1534 = vld [vmem:[#allocation5 + $0x994] sm:$0xf]
    %v1535 = vld [vmem:[#allocation5 + $0x998] sm:$0xf]
    %v1536 = vld [vmem:[#allocation5 + $0x99c] sm:$0xf]
    %v1537 = vld [vmem:[#allocation5 + $0x9a0] sm:$0xf]
    %v1538 = vld [vmem:[#allocation5 + $0x9a4] sm:$0xf]
    %v1539 = vld [vmem:[#allocation5 + $0x9a8] sm:$0xf]
    %v1540 = vld [vmem:[#allocation5 + $0x9ac] sm:$0xf]
    %v1541 = vld [vmem:[#allocation5 + $0x9b0] sm:$0xf]
    %v1542 = vld [vmem:[#allocation5 + $0x9b4] sm:$0xf]
    %v1543 = vld [vmem:[#allocation5 + $0x9b8] sm:$0xf]
    %v1544 = vld [vmem:[#allocation5 + $0x9bc] sm:$0xf]
    %v1545 = vld [vmem:[#allocation5 + $0x9c0] sm:$0xf]
    %v1546 = vld [vmem:[#allocation5 + $0x9c4] sm:$0xf]
    %v1547 = vld [vmem:[#allocation5 + $0x9c8] sm:$0xf]
    %v1548 = vld [vmem:[#allocation5 + $0x9cc] sm:$0xf]
    %v1549 = vld [vmem:[#allocation5 + $0x9d0] sm:$0xf]
    %v1550 = vld [vmem:[#allocation5 + $0x9d4] sm:$0xf]
    %v1551 = vld [vmem:[#allocation5 + $0x9d8] sm:$0xf]
    %v1552 = vld [vmem:[#allocation5 + $0x9dc] sm:$0xf]
    %v1553 = vld [vmem:[#allocation5 + $0x9e0] sm:$0xf]
    %v1554 = vld [vmem:[#allocation5 + $0x9e4] sm:$0xf]
    %v1555 = vld [vmem:[#allocation5 + $0x9e8] sm:$0xf]
    %v1556 = vld [vmem:[#allocation5 + $0x9ec] sm:$0xf]
    %v1557 = vld [vmem:[#allocation5 + $0x9f0] sm:$0xf]
    %v1558 = vld [vmem:[#allocation5 + $0x9f4] sm:$0xf]
    %v1559 = vld [vmem:[#allocation5 + $0x9f8] sm:$0xf]
    %v1560 = vld [vmem:[#allocation5 + $0x9fc] sm:$0xf]
    %v1561 = vld [vmem:[#allocation5 + $0xa00] sm:$0xf]
    %v1562 = vld [vmem:[#allocation5 + $0xa04] sm:$0xf]
    %v1563 = vld [vmem:[#allocation5 + $0xa08] sm:$0xf]
    %v1564 = vld [vmem:[#allocation5 + $0xa0c] sm:$0xf]
    %v1565 = vld [vmem:[#allocation5 + $0xa10] sm:$0xf]
    %v1566 = vld [vmem:[#allocation5 + $0xa14] sm:$0xf]
    %v1567 = vld [vmem:[#allocation5 + $0xa18] sm:$0xf]
    %v1568 = vld [vmem:[#allocation5 + $0xa1c] sm:$0xf]
    %v1569 = vld [vmem:[#allocation5 + $0xa20] sm:$0xf]
    %v1570 = vld [vmem:[#allocation5 + $0xa24] sm:$0xf]
    %v1571 = vld [vmem:[#allocation5 + $0xa28] sm:$0xf]
    %v1572 = vld [vmem:[#allocation5 + $0xa2c] sm:$0xf]
    %v1573 = vld [vmem:[#allocation5 + $0xa30] sm:$0xf]
    %v1574 = vld [vmem:[#allocation5 + $0xa34] sm:$0xf]
    %v1575 = vld [vmem:[#allocation5 + $0xa38] sm:$0xf]
    %v1576 = vld [vmem:[#allocation5 + $0xa3c] sm:$0xf]
    %v1577 = vld [vmem:[#allocation5 + $0xa40] sm:$0xf]
    %v1578 = vld [vmem:[#allocation5 + $0xa44] sm:$0xf]
    %v1579 = vld [vmem:[#allocation5 + $0xa48] sm:$0xf]
    %v1580 = vld [vmem:[#allocation5 + $0xa4c] sm:$0xf]
    %v1581 = vld [vmem:[#allocation5 + $0xa50] sm:$0xf]
    %v1582 = vld [vmem:[#allocation5 + $0xa54] sm:$0xf]
    %v1583 = vld [vmem:[#allocation5 + $0xa58] sm:$0xf]
    %v1584 = vld [vmem:[#allocation5 + $0xa5c] sm:$0xf]
    %v1585 = vld [vmem:[#allocation5 + $0xa60] sm:$0xf]
    %v1586 = vld [vmem:[#allocation5 + $0xa64] sm:$0xf]
    %v1587 = vld [vmem:[#allocation5 + $0xa68] sm:$0xf]
    %v1588 = vld [vmem:[#allocation5 + $0xa6c] sm:$0xf]
    %v1589 = vld [vmem:[#allocation5 + $0xa70] sm:$0xf]
    %v1590 = vld [vmem:[#allocation5 + $0xa74] sm:$0xf]
    %v1591 = vld [vmem:[#allocation5 + $0xa78] sm:$0xf]
    %v1592 = vld [vmem:[#allocation5 + $0xa7c] sm:$0xf]
    %v1593 = vld [vmem:[#allocation5 + $0xa80] sm:$0xf]
    %v1594 = vld [vmem:[#allocation5 + $0xa84] sm:$0xf]
    %v1595 = vld [vmem:[#allocation5 + $0xa88] sm:$0xf]
    %v1596 = vld [vmem:[#allocation5 + $0xa8c] sm:$0xf]
    %v1597 = vld [vmem:[#allocation5 + $0xa90] sm:$0xf]
    %v1598 = vld [vmem:[#allocation5 + $0xa94] sm:$0xf]
    %v1599 = vld [vmem:[#allocation5 + $0xa98] sm:$0xf]
    %v1600 = vld [vmem:[#allocation5 + $0xa9c] sm:$0xf]
    %v1601 = vld [vmem:[#allocation5 + $0xaa0] sm:$0xf]
    %v1602 = vld [vmem:[#allocation5 + $0xaa4] sm:$0xf]
    %v1603 = vld [vmem:[#allocation5 + $0xaa8] sm:$0xf]
    %v1604 = vld [vmem:[#allocation5 + $0xaac] sm:$0xf]
    %v1605 = vld [vmem:[#allocation5 + $0xab0] sm:$0xf]
    %v1606 = vld [vmem:[#allocation5 + $0xab4] sm:$0xf]
    %v1607 = vld [vmem:[#allocation5 + $0xab8] sm:$0xf]
    %v1608 = vld [vmem:[#allocation5 + $0xabc] sm:$0xf]
    %v1609 = vld [vmem:[#allocation5 + $0xac0] sm:$0xf]
    %v1610 = vld [vmem:[#allocation5 + $0xac4] sm:$0xf]
    %v1611 = vld [vmem:[#allocation5 + $0xac8] sm:$0xf]
    %v1612 = vld [vmem:[#allocation5 + $0xacc] sm:$0xf]
    %v1613 = vld [vmem:[#allocation5 + $0xad0] sm:$0xf]
    %v1614 = vld [vmem:[#allocation5 + $0xad4] sm:$0xf]
    %v1615 = vld [vmem:[#allocation5 + $0xad8] sm:$0xf]
    %v1616 = vld [vmem:[#allocation5 + $0xadc] sm:$0xf]
    %v1617 = vld [vmem:[#allocation5 + $0xae0] sm:$0xf]
    %v1618 = vld [vmem:[#allocation5 + $0xae4] sm:$0xf]
    %v1619 = vld [vmem:[#allocation5 + $0xae8] sm:$0xf]
    %v1620 = vld [vmem:[#allocation5 + $0xaec] sm:$0xf]
    %v1621 = vld [vmem:[#allocation5 + $0xaf0] sm:$0xf]
    %v1622 = vld [vmem:[#allocation5 + $0xaf4] sm:$0xf]
    %v1623 = vld [vmem:[#allocation5 + $0xaf8] sm:$0xf]
    %v1624 = vld [vmem:[#allocation5 + $0xafc] sm:$0xf]
    %v1625 = vld [vmem:[#allocation5 + $0xb00] sm:$0xf]
    %v1626 = vld [vmem:[#allocation5 + $0xb04] sm:$0xf]
    %v1627 = vld [vmem:[#allocation5 + $0xb08] sm:$0xf]
    %v1628 = vld [vmem:[#allocation5 + $0xb0c] sm:$0xf]
    %v1629 = vld [vmem:[#allocation5 + $0xb10] sm:$0xf]
    %v1630 = vld [vmem:[#allocation5 + $0xb14] sm:$0xf]
    %v1631 = vld [vmem:[#allocation5 + $0xb18] sm:$0xf]
    %v1632 = vld [vmem:[#allocation5 + $0xb1c] sm:$0xf]
    %v1633 = vld [vmem:[#allocation5 + $0xb20] sm:$0xf]
    %v1634 = vld [vmem:[#allocation5 + $0xb24] sm:$0xf]
    %v1635 = vld [vmem:[#allocation5 + $0xb28] sm:$0xf]
    %v1636 = vld [vmem:[#allocation5 + $0xb2c] sm:$0xf]
    %v1637 = vld [vmem:[#allocation5 + $0xb30] sm:$0xf]
    %v1638 = vld [vmem:[#allocation5 + $0xb34] sm:$0xf]
    %v1639 = vld [vmem:[#allocation5 + $0xb38] sm:$0xf]
    %v1640 = vld [vmem:[#allocation5 + $0xb3c] sm:$0xf]
    %v1641 = vld [vmem:[#allocation5 + $0xb40] sm:$0xf]
    %v1642 = vld [vmem:[#allocation5 + $0xb44] sm:$0xf]
    %v1643 = vld [vmem:[#allocation5 + $0xb48] sm:$0xf]
    %v1644 = vld [vmem:[#allocation5 + $0xb4c] sm:$0xf]
    %v1645 = vld [vmem:[#allocation5 + $0xb50] sm:$0xf]
    %v1646 = vld [vmem:[#allocation5 + $0xb54] sm:$0xf]
    %v1647 = vld [vmem:[#allocation5 + $0xb58] sm:$0xf]
    %v1648 = vld [vmem:[#allocation5 + $0xb5c] sm:$0xf]
    %v1649 = vld [vmem:[#allocation5 + $0xb60] sm:$0xf]
    %v1650 = vld [vmem:[#allocation5 + $0xb64] sm:$0xf]
    %v1651 = vld [vmem:[#allocation5 + $0xb68] sm:$0xf]
    %v1652 = vld [vmem:[#allocation5 + $0xb6c] sm:$0xf]
    %v1653 = vld [vmem:[#allocation5 + $0xb70] sm:$0xf]
    %v1654 = vld [vmem:[#allocation5 + $0xb74] sm:$0xf]
    %v1655 = vld [vmem:[#allocation5 + $0xb78] sm:$0xf]
    %v1656 = vld [vmem:[#allocation5 + $0xb7c] sm:$0xf]
    %v1657 = vld [vmem:[#allocation5 + $0xb80] sm:$0xf]
    %v1658 = vld [vmem:[#allocation5 + $0xb84] sm:$0xf]
    %v1659 = vld [vmem:[#allocation5 + $0xb88] sm:$0xf]
    %v1660 = vld [vmem:[#allocation5 + $0xb8c] sm:$0xf]
    %v1661 = vld [vmem:[#allocation5 + $0xb90] sm:$0xf]
    %v1662 = vld [vmem:[#allocation5 + $0xb94] sm:$0xf]
    %v1663 = vld [vmem:[#allocation5 + $0xb98] sm:$0xf]
    %v1664 = vld [vmem:[#allocation5 + $0xb9c] sm:$0xf]
    %v1665 = vld [vmem:[#allocation5 + $0xba0] sm:$0xf]
    %v1666 = vld [vmem:[#allocation5 + $0xba4] sm:$0xf]
    %v1667 = vld [vmem:[#allocation5 + $0xba8] sm:$0xf]
    %v1668 = vld [vmem:[#allocation5 + $0xbac] sm:$0xf]
    %v1669 = vld [vmem:[#allocation5 + $0xbb0] sm:$0xf]
    %v1670 = vld [vmem:[#allocation5 + $0xbb4] sm:$0xf]
    %v1671 = vld [vmem:[#allocation5 + $0xbb8] sm:$0xf]
    %v1672 = vld [vmem:[#allocation5 + $0xbbc] sm:$0xf]
    %v1673 = vld [vmem:[#allocation5 + $0xbc0] sm:$0xf]
    %v1674 = vld [vmem:[#allocation5 + $0xbc4] sm:$0xf]
    %v1675 = vld [vmem:[#allocation5 + $0xbc8] sm:$0xf]
    %v1676 = vld [vmem:[#allocation5 + $0xbcc] sm:$0xf]
    %v1677 = vld [vmem:[#allocation5 + $0xbd0] sm:$0xf]
    %v1678 = vld [vmem:[#allocation5 + $0xbd4] sm:$0xf]
    %v1679 = vld [vmem:[#allocation5 + $0xbd8] sm:$0xf]
    %v1680 = vld [vmem:[#allocation5 + $0xbdc] sm:$0xf]
    %v1681 = vld [vmem:[#allocation5 + $0xbe0] sm:$0xf]
    %v1682 = vld [vmem:[#allocation5 + $0xbe4] sm:$0xf]
    %v1683 = vld [vmem:[#allocation5 + $0xbe8] sm:$0xf]
    %v1684 = vld [vmem:[#allocation5 + $0xbec] sm:$0xf]
    %v1685 = vld [vmem:[#allocation5 + $0xbf0] sm:$0xf]
    %v1686 = vld [vmem:[#allocation5 + $0xbf4] sm:$0xf]
    %v1687 = vld [vmem:[#allocation5 + $0xbf8] sm:$0xf]
    %v1688 = vld [vmem:[#allocation5 + $0xbfc] sm:$0xf]
    %v1689 = vld [vmem:[#allocation5 + $0xc00] sm:$0xf]
    %v1690 = vld [vmem:[#allocation5 + $0xc04] sm:$0xf]
    %v1691 = vld [vmem:[#allocation5 + $0xc08] sm:$0xf]
    %v1692 = vld [vmem:[#allocation5 + $0xc0c] sm:$0xf]
    %v1693 = vld [vmem:[#allocation5 + $0xc10] sm:$0xf]
    %v1694 = vld [vmem:[#allocation5 + $0xc14] sm:$0xf]
    %v1695 = vld [vmem:[#allocation5 + $0xc18] sm:$0xf]
    %v1696 = vld [vmem:[#allocation5 + $0xc1c] sm:$0xf]
    %v1697 = vld [vmem:[#allocation5 + $0xc20] sm:$0xf]
    %v1698 = vld [vmem:[#allocation5 + $0xc24] sm:$0xf]
    %v1699 = vld [vmem:[#allocation5 + $0xc28] sm:$0xf]
    %v1700 = vld [vmem:[#allocation5 + $0xc2c] sm:$0xf]
    %v1701 = vld [vmem:[#allocation5 + $0xc30] sm:$0xf]
    %v1702 = vld [vmem:[#allocation5 + $0xc34] sm:$0xf]
    %v1703 = vld [vmem:[#allocation5 + $0xc38] sm:$0xf]
    %v1704 = vld [vmem:[#allocation5 + $0xc3c] sm:$0xf]
    %v1705 = vld [vmem:[#allocation5 + $0xc40] sm:$0xf]
    %v1706 = vld [vmem:[#allocation5 + $0xc44] sm:$0xf]
    %v1707 = vld [vmem:[#allocation5 + $0xc48] sm:$0xf]
    %v1708 = vld [vmem:[#allocation5 + $0xc4c] sm:$0xf]
    %v1709 = vld [vmem:[#allocation5 + $0xc50] sm:$0xf]
    %v1710 = vld [vmem:[#allocation5 + $0xc54] sm:$0xf]
    %v1711 = vld [vmem:[#allocation5 + $0xc58] sm:$0xf]
    %v1712 = vld [vmem:[#allocation5 + $0xc5c] sm:$0xf]
    %v1713 = vld [vmem:[#allocation5 + $0xc60] sm:$0xf]
    %v1714 = vld [vmem:[#allocation5 + $0xc64] sm:$0xf]
    %v1715 = vld [vmem:[#allocation5 + $0xc68] sm:$0xf]
    %v1716 = vld [vmem:[#allocation5 + $0xc6c] sm:$0xf]
    %v1717 = vld [vmem:[#allocation5 + $0xc70] sm:$0xf]
    %v1718 = vld [vmem:[#allocation5 + $0xc74] sm:$0xf]
    %v1719 = vld [vmem:[#allocation5 + $0xc78] sm:$0xf]
    %v1720 = vld [vmem:[#allocation5 + $0xc7c] sm:$0xf]
    %v1721 = vld [vmem:[#allocation5 + $0xc80] sm:$0xf]
    %v1722 = vld [vmem:[#allocation5 + $0xc84] sm:$0xf]
    %v1723 = vld [vmem:[#allocation5 + $0xc88] sm:$0xf]
    %v1724 = vld [vmem:[#allocation5 + $0xc8c] sm:$0xf]
    %v1725 = vld [vmem:[#allocation5 + $0xc90] sm:$0xf]
    %v1726 = vld [vmem:[#allocation5 + $0xc94] sm:$0xf]
    %v1727 = vld [vmem:[#allocation5 + $0xc98] sm:$0xf]
    %v1728 = vld [vmem:[#allocation5 + $0xc9c] sm:$0xf]
    %v1729 = vld [vmem:[#allocation5 + $0xca0] sm:$0xf]
    %v1730 = vld [vmem:[#allocation5 + $0xca4] sm:$0xf]
    %v1731 = vld [vmem:[#allocation5 + $0xca8] sm:$0xf]
    %v1732 = vld [vmem:[#allocation5 + $0xcac] sm:$0xf]
    %v1733 = vld [vmem:[#allocation5 + $0xcb0] sm:$0xf]
    %v1734 = vld [vmem:[#allocation5 + $0xcb4] sm:$0xf]
    %v1735 = vld [vmem:[#allocation5 + $0xcb8] sm:$0xf]
    %v1736 = vld [vmem:[#allocation5 + $0xcbc] sm:$0xf]
    %v1737 = vld [vmem:[#allocation5 + $0xcc0] sm:$0xf]
    %v1738 = vld [vmem:[#allocation5 + $0xcc4] sm:$0xf]
    %v1739 = vld [vmem:[#allocation5 + $0xcc8] sm:$0xf]
    %v1740 = vld [vmem:[#allocation5 + $0xccc] sm:$0xf]
    %v1741 = vld [vmem:[#allocation5 + $0xcd0] sm:$0xf]
    %v1742 = vld [vmem:[#allocation5 + $0xcd4] sm:$0xf]
    %v1743 = vld [vmem:[#allocation5 + $0xcd8] sm:$0xf]
    %v1744 = vld [vmem:[#allocation5 + $0xcdc] sm:$0xf]
    %v1745 = vld [vmem:[#allocation5 + $0xce0] sm:$0xf]
    %v1746 = vld [vmem:[#allocation5 + $0xce4] sm:$0xf]
    %v1747 = vld [vmem:[#allocation5 + $0xce8] sm:$0xf]
    %v1748 = vld [vmem:[#allocation5 + $0xcec] sm:$0xf]
    %v1749 = vld [vmem:[#allocation5 + $0xcf0] sm:$0xf]
    %v1750 = vld [vmem:[#allocation5 + $0xcf4] sm:$0xf]
    %v1751 = vld [vmem:[#allocation5 + $0xcf8] sm:$0xf]
    %v1752 = vld [vmem:[#allocation5 + $0xcfc] sm:$0xf]
    %v1753 = vld [vmem:[#allocation5 + $0xd00] sm:$0xf]
    %v1754 = vld [vmem:[#allocation5 + $0xd04] sm:$0xf]
    %v1755 = vld [vmem:[#allocation5 + $0xd08] sm:$0xf]
    %v1756 = vld [vmem:[#allocation5 + $0xd0c] sm:$0xf]
    %v1757 = vld [vmem:[#allocation5 + $0xd10] sm:$0xf]
    %v1758 = vld [vmem:[#allocation5 + $0xd14] sm:$0xf]
    %v1759 = vld [vmem:[#allocation5 + $0xd18] sm:$0xf]
    %v1760 = vld [vmem:[#allocation5 + $0xd1c] sm:$0xf]
    %v1761 = vld [vmem:[#allocation5 + $0xd20] sm:$0xf]
    %v1762 = vld [vmem:[#allocation5 + $0xd24] sm:$0xf]
    %v1763 = vld [vmem:[#allocation5 + $0xd28] sm:$0xf]
    %v1764 = vld [vmem:[#allocation5 + $0xd2c] sm:$0xf]
    %v1765 = vld [vmem:[#allocation5 + $0xd30] sm:$0xf]
    %v1766 = vld [vmem:[#allocation5 + $0xd34] sm:$0xf]
    %v1767 = vld [vmem:[#allocation5 + $0xd38] sm:$0xf]
    %v1768 = vld [vmem:[#allocation5 + $0xd3c] sm:$0xf]
    %v1769 = vld [vmem:[#allocation5 + $0xd40] sm:$0xf]
    %v1770 = vld [vmem:[#allocation5 + $0xd44] sm:$0xf]
    %v1771 = vld [vmem:[#allocation5 + $0xd48] sm:$0xf]
    %v1772 = vld [vmem:[#allocation5 + $0xd4c] sm:$0xf]
    %v1773 = vld [vmem:[#allocation5 + $0xd50] sm:$0xf]
    %v1774 = vld [vmem:[#allocation5 + $0xd54] sm:$0xf]
    %v1775 = vld [vmem:[#allocation5 + $0xd58] sm:$0xf]
    %v1776 = vld [vmem:[#allocation5 + $0xd5c] sm:$0xf]
    %v1777 = vld [vmem:[#allocation5 + $0xd60] sm:$0xf]
    %v1778 = vld [vmem:[#allocation5 + $0xd64] sm:$0xf]
    %v1779 = vld [vmem:[#allocation5 + $0xd68] sm:$0xf]
    %v1780 = vld [vmem:[#allocation5 + $0xd6c] sm:$0xf]
    %v1781 = vld [vmem:[#allocation5 + $0xd70] sm:$0xf]
    %v1782 = vld [vmem:[#allocation5 + $0xd74] sm:$0xf]
    %v1783 = vld [vmem:[#allocation5 + $0xd78] sm:$0xf]
    %v1784 = vld [vmem:[#allocation5 + $0xd7c] sm:$0xf]
    %v1785 = vld [vmem:[#allocation5 + $0xd80] sm:$0xf]
    %v1786 = vld [vmem:[#allocation5 + $0xd84] sm:$0xf]
    %v1787 = vld [vmem:[#allocation5 + $0xd88] sm:$0xf]
    %v1788 = vld [vmem:[#allocation5 + $0xd8c] sm:$0xf]
    %v1789 = vld [vmem:[#allocation5 + $0xd90] sm:$0xf]
    %v1790 = vld [vmem:[#allocation5 + $0xd94] sm:$0xf]
    %v1791 = vld [vmem:[#allocation5 + $0xd98] sm:$0xf]
    %v1792 = vld [vmem:[#allocation5 + $0xd9c] sm:$0xf]
    %v1793 = vld [vmem:[#allocation5 + $0xda0] sm:$0xf]
    %v1794 = vld [vmem:[#allocation5 + $0xda4] sm:$0xf]
    %v1795 = vld [vmem:[#allocation5 + $0xda8] sm:$0xf]
    %v1796 = vld [vmem:[#allocation5 + $0xdac] sm:$0xf]
    %v1797 = vld [vmem:[#allocation5 + $0xdb0] sm:$0xf]
    %v1798 = vld [vmem:[#allocation5 + $0xdb4] sm:$0xf]
    %v1799 = vld [vmem:[#allocation5 + $0xdb8] sm:$0xf]
    %v1800 = vld [vmem:[#allocation5 + $0xdbc] sm:$0xf]
    %v1801 = vld [vmem:[#allocation5 + $0xdc0] sm:$0xf]
    %v1802 = vld [vmem:[#allocation5 + $0xdc4] sm:$0xf]
    %v1803 = vld [vmem:[#allocation5 + $0xdc8] sm:$0xf]
    %v1804 = vld [vmem:[#allocation5 + $0xdcc] sm:$0xf]
    %v1805 = vld [vmem:[#allocation5 + $0xdd0] sm:$0xf]
    %v1806 = vld [vmem:[#allocation5 + $0xdd4] sm:$0xf]
    %v1807 = vld [vmem:[#allocation5 + $0xdd8] sm:$0xf]
    %v1808 = vld [vmem:[#allocation5 + $0xddc] sm:$0xf]
    %v1809 = vld [vmem:[#allocation5 + $0xde0] sm:$0xf]
    %v1810 = vld [vmem:[#allocation5 + $0xde4] sm:$0xf]
    %v1811 = vld [vmem:[#allocation5 + $0xde8] sm:$0xf]
    %v1812 = vld [vmem:[#allocation5 + $0xdec] sm:$0xf]
    %v1813 = vld [vmem:[#allocation5 + $0xdf0] sm:$0xf]
    %v1814 = vld [vmem:[#allocation5 + $0xdf4] sm:$0xf]
    %v1815 = vld [vmem:[#allocation5 + $0xdf8] sm:$0xf]
    %v1816 = vld [vmem:[#allocation5 + $0xdfc] sm:$0xf]
    %v1817 = vld [vmem:[#allocation5 + $0xe00] sm:$0xf]
    %v1818 = vld [vmem:[#allocation5 + $0xe04] sm:$0xf]
    %v1819 = vld [vmem:[#allocation5 + $0xe08] sm:$0xf]
    %v1820 = vld [vmem:[#allocation5 + $0xe0c] sm:$0xf]
    %v1821 = vld [vmem:[#allocation5 + $0xe10] sm:$0xf]
    %v1822 = vld [vmem:[#allocation5 + $0xe14] sm:$0xf]
    %v1823 = vld [vmem:[#allocation5 + $0xe18] sm:$0xf]
    %v1824 = vld [vmem:[#allocation5 + $0xe1c] sm:$0xf]
    %v1825 = vld [vmem:[#allocation5 + $0xe20] sm:$0xf]
    %v1826 = vld [vmem:[#allocation5 + $0xe24] sm:$0xf]
    %v1827 = vld [vmem:[#allocation5 + $0xe28] sm:$0xf]
    %v1828 = vld [vmem:[#allocation5 + $0xe2c] sm:$0xf]
    %v1829 = vld [vmem:[#allocation5 + $0xe30] sm:$0xf]
    %v1830 = vld [vmem:[#allocation5 + $0xe34] sm:$0xf]
    %v1831 = vld [vmem:[#allocation5 + $0xe38] sm:$0xf]
    %v1832 = vld [vmem:[#allocation5 + $0xe3c] sm:$0xf]
    %v1833 = vld [vmem:[#allocation5 + $0xe40] sm:$0xf]
    %v1834 = vld [vmem:[#allocation5 + $0xe44] sm:$0xf]
    %v1835 = vld [vmem:[#allocation5 + $0xe48] sm:$0xf]
    %v1836 = vld [vmem:[#allocation5 + $0xe4c] sm:$0xf]
    %v1837 = vld [vmem:[#allocation5 + $0xe50] sm:$0xf]
    %v1838 = vld [vmem:[#allocation5 + $0xe54] sm:$0xf]
    %v1839 = vld [vmem:[#allocation5 + $0xe58] sm:$0xf]
    %v1840 = vld [vmem:[#allocation5 + $0xe5c] sm:$0xf]
    %v1841 = vld [vmem:[#allocation5 + $0xe60] sm:$0xf]
    %v1842 = vld [vmem:[#allocation5 + $0xe64] sm:$0xf]
    %v1843 = vld [vmem:[#allocation5 + $0xe68] sm:$0xf]
    %v1844 = vld [vmem:[#allocation5 + $0xe6c] sm:$0xf]
    %v1845 = vld [vmem:[#allocation5 + $0xe70] sm:$0xf]
    %v1846 = vld [vmem:[#allocation5 + $0xe74] sm:$0xf]
    %v1847 = vld [vmem:[#allocation5 + $0xe78] sm:$0xf]
    %v1848 = vld [vmem:[#allocation5 + $0xe7c] sm:$0xf]
    %v1849 = vld [vmem:[#allocation5 + $0xe80] sm:$0xf]
    %v1850 = vld [vmem:[#allocation5 + $0xe84] sm:$0xf]
    %v1851 = vld [vmem:[#allocation5 + $0xe88] sm:$0xf]
    %v1852 = vld [vmem:[#allocation5 + $0xe8c] sm:$0xf]
    %v1853 = vld [vmem:[#allocation5 + $0xe90] sm:$0xf]
    %v1854 = vld [vmem:[#allocation5 + $0xe94] sm:$0xf]
    %v1855 = vld [vmem:[#allocation5 + $0xe98] sm:$0xf]
    %v1856 = vld [vmem:[#allocation5 + $0xe9c] sm:$0xf]
    %v1857 = vld [vmem:[#allocation5 + $0xea0] sm:$0xf]
    %v1858 = vld [vmem:[#allocation5 + $0xea4] sm:$0xf]
    %v1859 = vld [vmem:[#allocation5 + $0xea8] sm:$0xf]
    %v1860 = vld [vmem:[#allocation5 + $0xeac] sm:$0xf]
    %v1861 = vld [vmem:[#allocation5 + $0xeb0] sm:$0xf]
    %v1862 = vld [vmem:[#allocation5 + $0xeb4] sm:$0xf]
    %v1863 = vld [vmem:[#allocation5 + $0xeb8] sm:$0xf]
    %v1864 = vld [vmem:[#allocation5 + $0xebc] sm:$0xf]
    %v1865 = vld [vmem:[#allocation5 + $0xec0] sm:$0xf]
    %v1866 = vld [vmem:[#allocation5 + $0xec4] sm:$0xf]
    %v1867 = vld [vmem:[#allocation5 + $0xec8] sm:$0xf]
    %v1868 = vld [vmem:[#allocation5 + $0xecc] sm:$0xf]
    %v1869 = vld [vmem:[#allocation5 + $0xed0] sm:$0xf]
    %v1870 = vld [vmem:[#allocation5 + $0xed4] sm:$0xf]
    %v1871 = vld [vmem:[#allocation5 + $0xed8] sm:$0xf]
    %v1872 = vld [vmem:[#allocation5 + $0xedc] sm:$0xf]
    %v1873 = vld [vmem:[#allocation5 + $0xee0] sm:$0xf]
    %v1874 = vld [vmem:[#allocation5 + $0xee4] sm:$0xf]
    %v1875 = vld [vmem:[#allocation5 + $0xee8] sm:$0xf]
    %v1876 = vld [vmem:[#allocation5 + $0xeec] sm:$0xf]
    %v1877 = vld [vmem:[#allocation5 + $0xef0] sm:$0xf]
    %v1878 = vld [vmem:[#allocation5 + $0xef4] sm:$0xf]
    %v1879 = vld [vmem:[#allocation5 + $0xef8] sm:$0xf]
    %v1880 = vld [vmem:[#allocation5 + $0xefc] sm:$0xf]
    %v1881 = vld [vmem:[#allocation5 + $0xf00] sm:$0xf]
    %v1882 = vld [vmem:[#allocation5 + $0xf04] sm:$0xf]
    %v1883 = vld [vmem:[#allocation5 + $0xf08] sm:$0xf]
    %v1884 = vld [vmem:[#allocation5 + $0xf0c] sm:$0xf]
    %v1885 = vld [vmem:[#allocation5 + $0xf10] sm:$0xf]
    %v1886 = vld [vmem:[#allocation5 + $0xf14] sm:$0xf]
    %v1887 = vld [vmem:[#allocation5 + $0xf18] sm:$0xf]
    %v1888 = vld [vmem:[#allocation5 + $0xf1c] sm:$0xf]
    %v1889 = vld [vmem:[#allocation5 + $0xf20] sm:$0xf]
    %v1890 = vld [vmem:[#allocation5 + $0xf24] sm:$0xf]
    %v1891 = vld [vmem:[#allocation5 + $0xf28] sm:$0xf]
    %v1892 = vld [vmem:[#allocation5 + $0xf2c] sm:$0xf]
    %v1893 = vld [vmem:[#allocation5 + $0xf30] sm:$0xf]
    %v1894 = vld [vmem:[#allocation5 + $0xf34] sm:$0xf]
    %v1895 = vld [vmem:[#allocation5 + $0xf38] sm:$0xf]
    %v1896 = vld [vmem:[#allocation5 + $0xf3c] sm:$0xf]
    %v1897 = vld [vmem:[#allocation5 + $0xf40] sm:$0xf]
    %v1898 = vld [vmem:[#allocation5 + $0xf44] sm:$0xf]
    %v1899 = vld [vmem:[#allocation5 + $0xf48] sm:$0xf]
    %v1900 = vld [vmem:[#allocation5 + $0xf4c] sm:$0xf]
    %v1901 = vld [vmem:[#allocation5 + $0xf50] sm:$0xf]
    %v1902 = vld [vmem:[#allocation5 + $0xf54] sm:$0xf]
    %v1903 = vld [vmem:[#allocation5 + $0xf58] sm:$0xf]
    %v1904 = vld [vmem:[#allocation5 + $0xf5c] sm:$0xf]
    %v1905 = vld [vmem:[#allocation5 + $0xf60] sm:$0xf]
    %v1906 = vld [vmem:[#allocation5 + $0xf64] sm:$0xf]
    %v1907 = vld [vmem:[#allocation5 + $0xf68] sm:$0xf]
    %v1908 = vld [vmem:[#allocation5 + $0xf6c] sm:$0xf]
    %v1909 = vld [vmem:[#allocation5 + $0xf70] sm:$0xf]
    %v1910 = vld [vmem:[#allocation5 + $0xf74] sm:$0xf]
    %v1911 = vld [vmem:[#allocation5 + $0xf78] sm:$0xf]
    %v1912 = vld [vmem:[#allocation5 + $0xf7c] sm:$0xf]
    %v1913 = vld [vmem:[#allocation5 + $0xf80] sm:$0xf]
    %v1914 = vld [vmem:[#allocation5 + $0xf84] sm:$0xf]
    %v1915 = vld [vmem:[#allocation5 + $0xf88] sm:$0xf]
    %v1916 = vld [vmem:[#allocation5 + $0xf8c] sm:$0xf]
    %v1917 = vld [vmem:[#allocation5 + $0xf90] sm:$0xf]
    %v1918 = vld [vmem:[#allocation5 + $0xf94] sm:$0xf]
    %v1919 = vld [vmem:[#allocation5 + $0xf98] sm:$0xf]
    %v1920 = vld [vmem:[#allocation5 + $0xf9c] sm:$0xf]
    %v1921 = vld [vmem:[#allocation5 + $0xfa0] sm:$0xf]
    %v1922 = vld [vmem:[#allocation5 + $0xfa4] sm:$0xf]
    %v1923 = vld [vmem:[#allocation5 + $0xfa8] sm:$0xf]
    %v1924 = vld [vmem:[#allocation5 + $0xfac] sm:$0xf]
    %v1925 = vld [vmem:[#allocation5 + $0xfb0] sm:$0xf]
    %v1926 = vld [vmem:[#allocation5 + $0xfb4] sm:$0xf]
    %v1927 = vld [vmem:[#allocation5 + $0xfb8] sm:$0xf]
    %v1928 = vld [vmem:[#allocation5 + $0xfbc] sm:$0xf]
    %v1929 = vld [vmem:[#allocation5 + $0xfc0] sm:$0xf]
    %v1930 = vld [vmem:[#allocation5 + $0xfc4] sm:$0xf]
    %v1931 = vld [vmem:[#allocation5 + $0xfc8] sm:$0xf]
    %v1932 = vld [vmem:[#allocation5 + $0xfcc] sm:$0xf]
    %v1933 = vld [vmem:[#allocation5 + $0xfd0] sm:$0xf]
    %v1934 = vld [vmem:[#allocation5 + $0xfd4] sm:$0xf]
    %v1935 = vld [vmem:[#allocation5 + $0xfd8] sm:$0xf]
    %v1936 = vld [vmem:[#allocation5 + $0xfdc] sm:$0xf]
    %v1937 = vld [vmem:[#allocation5 + $0xfe0] sm:$0xf]
    %v1938 = vld [vmem:[#allocation5 + $0xfe4] sm:$0xf]
    %v1939 = vld [vmem:[#allocation5 + $0xfe8] sm:$0xf]
    %v1940 = vld [vmem:[#allocation5 + $0xfec] sm:$0xf]
    %v1941 = vld [vmem:[#allocation5 + $0xff0] sm:$0xf]
    %v1942 = vld [vmem:[#allocation5 + $0xff4] sm:$0xf]
    %v1943 = vld [vmem:[#allocation5 + $0xff8] sm:$0xf]
    %v1944 = vld [vmem:[#allocation5 + $0xffc] sm:$0xf]
    %v1945 = vld [vmem:[#allocation5 + $0x1000] sm:$0xf]
    %v1946 = vld [vmem:[#allocation5 + $0x1004] sm:$0xf]
    %v1947 = vld [vmem:[#allocation5 + $0x1008] sm:$0xf]
    %v1948 = vld [vmem:[#allocation5 + $0x100c] sm:$0xf]
    %v1949 = vld [vmem:[#allocation5 + $0x1010] sm:$0xf]
    %v1950 = vld [vmem:[#allocation5 + $0x1014] sm:$0xf]
    %v1951 = vld [vmem:[#allocation5 + $0x1018] sm:$0xf]
    %v1952 = vld [vmem:[#allocation5 + $0x101c] sm:$0xf]
    %v1953 = vld [vmem:[#allocation5 + $0x1020] sm:$0xf]
    %v1954 = vld [vmem:[#allocation5 + $0x1024] sm:$0xf]
    %v1955 = vld [vmem:[#allocation5 + $0x1028] sm:$0xf]
    %v1956 = vld [vmem:[#allocation5 + $0x102c] sm:$0xf]
    %v1957 = vld [vmem:[#allocation5 + $0x1030] sm:$0xf]
    %v1958 = vld [vmem:[#allocation5 + $0x1034] sm:$0xf]
    %v1959 = vld [vmem:[#allocation5 + $0x1038] sm:$0xf]
    %v1960 = vld [vmem:[#allocation5 + $0x103c] sm:$0xf]
    %v1961 = vld [vmem:[#allocation5 + $0x1040] sm:$0xf]
    %v1962 = vld [vmem:[#allocation5 + $0x1044] sm:$0xf]
    %v1963 = vld [vmem:[#allocation5 + $0x1048] sm:$0xf]
    %v1964 = vld [vmem:[#allocation5 + $0x104c] sm:$0xf]
    %v1965 = vld [vmem:[#allocation5 + $0x1050] sm:$0xf]
    %v1966 = vld [vmem:[#allocation5 + $0x1054] sm:$0xf]
    %v1967 = vld [vmem:[#allocation5 + $0x1058] sm:$0xf]
    %v1968 = vld [vmem:[#allocation5 + $0x105c] sm:$0xf]
    %v1969 = vld [vmem:[#allocation5 + $0x1060] sm:$0xf]
    %v1970 = vld [vmem:[#allocation5 + $0x1064] sm:$0xf]
    %v1971 = vld [vmem:[#allocation5 + $0x1068] sm:$0xf]
    %v1972 = vld [vmem:[#allocation5 + $0x106c] sm:$0xf]
    %v1973 = vld [vmem:[#allocation5 + $0x1070] sm:$0xf]
    %v1974 = vld [vmem:[#allocation5 + $0x1074] sm:$0xf]
    %v1975 = vld [vmem:[#allocation5 + $0x1078] sm:$0xf]
    %v1976 = vld [vmem:[#allocation5 + $0x107c] sm:$0xf]
    %v1977 = vld [vmem:[#allocation5 + $0x1080] sm:$0xf]
    %v1978 = vld [vmem:[#allocation5 + $0x1084] sm:$0xf]
    %v1979 = vld [vmem:[#allocation5 + $0x1088] sm:$0xf]
    %v1980 = vld [vmem:[#allocation5 + $0x108c] sm:$0xf]
    %v1981 = vld [vmem:[#allocation5 + $0x1090] sm:$0xf]
    %v1982 = vld [vmem:[#allocation5 + $0x1094] sm:$0xf]
    %v1983 = vld [vmem:[#allocation5 + $0x1098] sm:$0xf]
    %v1984 = vld [vmem:[#allocation5 + $0x109c] sm:$0xf]
    %v1985 = vld [vmem:[#allocation5 + $0x10a0] sm:$0xf]
    %v1986 = vld [vmem:[#allocation5 + $0x10a4] sm:$0xf]
    %v1987 = vld [vmem:[#allocation5 + $0x10a8] sm:$0xf]
    %v1988 = vld [vmem:[#allocation5 + $0x10ac] sm:$0xf]
    %v1989 = vld [vmem:[#allocation5 + $0x10b0] sm:$0xf]
    %v1990 = vld [vmem:[#allocation5 + $0x10b4] sm:$0xf]
    %v1991 = vld [vmem:[#allocation5 + $0x10b8] sm:$0xf]
    %v1992 = vld [vmem:[#allocation5 + $0x10bc] sm:$0xf]
    %v1993 = vld [vmem:[#allocation5 + $0x10c0] sm:$0xf]
    %v1994 = vld [vmem:[#allocation5 + $0x10c4] sm:$0xf]
    %v1995 = vld [vmem:[#allocation5 + $0x10c8] sm:$0xf]
    %v1996 = vld [vmem:[#allocation5 + $0x10cc] sm:$0xf]
    %v1997 = vld [vmem:[#allocation5 + $0x10d0] sm:$0xf]
    %v1998 = vld [vmem:[#allocation5 + $0x10d4] sm:$0xf]
    %v1999 = vld [vmem:[#allocation5 + $0x10d8] sm:$0xf]
    %v2000 = vld [vmem:[#allocation5 + $0x10dc] sm:$0xf]
    %v2001 = vld [vmem:[#allocation5 + $0x10e0] sm:$0xf]
    %v2002 = vld [vmem:[#allocation5 + $0x10e4] sm:$0xf]
    %v2003 = vld [vmem:[#allocation5 + $0x10e8] sm:$0xf]
    %v2004 = vld [vmem:[#allocation5 + $0x10ec] sm:$0xf]
    %v2005 = vld [vmem:[#allocation5 + $0x10f0] sm:$0xf]
    %v2006 = vld [vmem:[#allocation5 + $0x10f4] sm:$0xf]
    %v2007 = vld [vmem:[#allocation5 + $0x10f8] sm:$0xf]
    %v2008 = vld [vmem:[#allocation5 + $0x10fc] sm:$0xf]
    %v2009 = vld [vmem:[#allocation5 + $0x1100] sm:$0xf]
    %v2010 = vld [vmem:[#allocation5 + $0x1104] sm:$0xf]
    %v2011 = vld [vmem:[#allocation5 + $0x1108] sm:$0xf]
    %v2012 = vld [vmem:[#allocation5 + $0x110c] sm:$0xf]
    %v2013 = vld [vmem:[#allocation5 + $0x1110] sm:$0xf]
    %v2014 = vld [vmem:[#allocation5 + $0x1114] sm:$0xf]
    %v2015 = vld [vmem:[#allocation5 + $0x1118] sm:$0xf]
    %v2016 = vld [vmem:[#allocation5 + $0x111c] sm:$0xf]
    %v2017 = vld [vmem:[#allocation5 + $0x1120] sm:$0xf]
    %v2018 = vld [vmem:[#allocation5 + $0x1124] sm:$0xf]
    %v2019 = vld [vmem:[#allocation5 + $0x1128] sm:$0xf]
    %v2020 = vld [vmem:[#allocation5 + $0x112c] sm:$0xf]
    %v2021 = vld [vmem:[#allocation5 + $0x1130] sm:$0xf]
    %v2022 = vld [vmem:[#allocation5 + $0x1134] sm:$0xf]
    %v2023 = vld [vmem:[#allocation5 + $0x1138] sm:$0xf]
    %v2024 = vld [vmem:[#allocation5 + $0x113c] sm:$0xf]
    %v2025 = vld [vmem:[#allocation5 + $0x1140] sm:$0xf]
    %v2026 = vld [vmem:[#allocation5 + $0x1144] sm:$0xf]
    %v2027 = vld [vmem:[#allocation5 + $0x1148] sm:$0xf]
    %v2028 = vld [vmem:[#allocation5 + $0x114c] sm:$0xf]
    %v2029 = vld [vmem:[#allocation5 + $0x1150] sm:$0xf]
    %v2030 = vld [vmem:[#allocation5 + $0x1154] sm:$0xf]
    %v2031 = vld [vmem:[#allocation5 + $0x1158] sm:$0xf]
    %v2032 = vld [vmem:[#allocation5 + $0x115c] sm:$0xf]
    %v2033 = vld [vmem:[#allocation5 + $0x1160] sm:$0xf]
    %v2034 = vld [vmem:[#allocation5 + $0x1164] sm:$0xf]
    %v2035 = vld [vmem:[#allocation5 + $0x1168] sm:$0xf]
    %v2036 = vld [vmem:[#allocation5 + $0x116c] sm:$0xf]
    %v2037 = vld [vmem:[#allocation5 + $0x1170] sm:$0xf]
    %v2038 = vld [vmem:[#allocation5 + $0x1174] sm:$0xf]
    %v2039 = vld [vmem:[#allocation5 + $0x1178] sm:$0xf]
    %v2040 = vld [vmem:[#allocation5 + $0x117c] sm:$0xf]
    %v2041 = vld [vmem:[#allocation5 + $0x1180] sm:$0xf]
    %v2042 = vld [vmem:[#allocation5 + $0x1184] sm:$0xf]
    %v2043 = vld [vmem:[#allocation5 + $0x1188] sm:$0xf]
    %v2044 = vld [vmem:[#allocation5 + $0x118c] sm:$0xf]
    %v2045 = vld [vmem:[#allocation5 + $0x1190] sm:$0xf]
    %v2046 = vld [vmem:[#allocation5 + $0x1194] sm:$0xf]
    %v2047 = vld [vmem:[#allocation5 + $0x1198] sm:$0xf]
    %v2048 = vld [vmem:[#allocation5 + $0x119c] sm:$0xf]
    %v2049 = vld [vmem:[#allocation5 + $0x11a0] sm:$0xf]
    %v2050 = vld [vmem:[#allocation5 + $0x11a4] sm:$0xf]
    %v2051 = vld [vmem:[#allocation5 + $0x11a8] sm:$0xf]
    %v2052 = vld [vmem:[#allocation5 + $0x11ac] sm:$0xf]
    %v2053 = vld [vmem:[#allocation5 + $0x11b0] sm:$0xf]
    %v2054 = vld [vmem:[#allocation5 + $0x11b4] sm:$0xf]
    %v2055 = vld [vmem:[#allocation5 + $0x11b8] sm:$0xf]
    %v2056 = vld [vmem:[#allocation5 + $0x11bc] sm:$0xf]
    %v2057 = vld [vmem:[#allocation5 + $0x11c0] sm:$0xf]
    %v2058 = vld [vmem:[#allocation5 + $0x11c4] sm:$0xf]
    %v2059 = vld [vmem:[#allocation5 + $0x11c8] sm:$0xf]
    %v2060 = vld [vmem:[#allocation5 + $0x11cc] sm:$0xf]
    %v2061 = vld [vmem:[#allocation5 + $0x11d0] sm:$0xf]
    %v2062 = vld [vmem:[#allocation5 + $0x11d4] sm:$0xf]
    %v2063 = vld [vmem:[#allocation5 + $0x11d8] sm:$0xf]
    %v2064 = vld [vmem:[#allocation5 + $0x11dc] sm:$0xf]
    %v2065 = vld [vmem:[#allocation5 + $0x11e0] sm:$0xf]
    %v2066 = vld [vmem:[#allocation5 + $0x11e4] sm:$0xf]
    %v2067 = vld [vmem:[#allocation5 + $0x11e8] sm:$0xf]
    %v2068 = vld [vmem:[#allocation5 + $0x11ec] sm:$0xf]
    %v2069 = vld [vmem:[#allocation5 + $0x11f0] sm:$0xf]
    %v2070 = vld [vmem:[#allocation5 + $0x11f4] sm:$0xf]
    %v2071 = vld [vmem:[#allocation5 + $0x11f8] sm:$0xf]
    %v2072 = vld [vmem:[#allocation5 + $0x11fc] sm:$0xf]
    %v2073 = vld [vmem:[#allocation5 + $0x1200] sm:$0xf]
    %v2074 = vld [vmem:[#allocation5 + $0x1204] sm:$0xf]
    %v2075 = vld [vmem:[#allocation5 + $0x1208] sm:$0xf]
    %v2076 = vld [vmem:[#allocation5 + $0x120c] sm:$0xf]
    %v2077 = vld [vmem:[#allocation5 + $0x1210] sm:$0xf]
    %v2078 = vld [vmem:[#allocation5 + $0x1214] sm:$0xf]
    %v2079 = vld [vmem:[#allocation5 + $0x1218] sm:$0xf]
    %v2080 = vld [vmem:[#allocation5 + $0x121c] sm:$0xf]
    %v2081 = vld [vmem:[#allocation5 + $0x1220] sm:$0xf]
    %v2082 = vld [vmem:[#allocation5 + $0x1224] sm:$0xf]
    %v2083 = vld [vmem:[#allocation5 + $0x1228] sm:$0xf]
    %v2084 = vld [vmem:[#allocation5 + $0x122c] sm:$0xf]
    %v2085 = vld [vmem:[#allocation5 + $0x1230] sm:$0xf]
    %v2086 = vld [vmem:[#allocation5 + $0x1234] sm:$0xf]
    %v2087 = vld [vmem:[#allocation5 + $0x1238] sm:$0xf]
    %v2088 = vld [vmem:[#allocation5 + $0x123c] sm:$0xf]
    %v2089 = vld [vmem:[#allocation5 + $0x1240] sm:$0xf]
    %v2090 = vld [vmem:[#allocation5 + $0x1244] sm:$0xf]
    %v2091 = vld [vmem:[#allocation5 + $0x1248] sm:$0xf]
    %v2092 = vld [vmem:[#allocation5 + $0x124c] sm:$0xf]
    %v2093 = vld [vmem:[#allocation5 + $0x1250] sm:$0xf]
    %v2094 = vld [vmem:[#allocation5 + $0x1254] sm:$0xf]
    %v2095 = vld [vmem:[#allocation5 + $0x1258] sm:$0xf]
    %v2096 = vld [vmem:[#allocation5 + $0x125c] sm:$0xf]
    %v2097 = vld [vmem:[#allocation5 + $0x1260] sm:$0xf]
    %v2098 = vld [vmem:[#allocation5 + $0x1264] sm:$0xf]
    %v2099 = vld [vmem:[#allocation5 + $0x1268] sm:$0xf]
    %v2100 = vld [vmem:[#allocation5 + $0x126c] sm:$0xf]
    %v2101 = vld [vmem:[#allocation5 + $0x1270] sm:$0xf]
    %v2102 = vld [vmem:[#allocation5 + $0x1274] sm:$0xf]
    %v2103 = vld [vmem:[#allocation5 + $0x1278] sm:$0xf]
    %v2104 = vld [vmem:[#allocation5 + $0x127c] sm:$0xf]
    %v2105 = vld [vmem:[#allocation5 + $0x1280] sm:$0xf]
    %v2106 = vld [vmem:[#allocation5 + $0x1284] sm:$0xf]
    %v2107 = vld [vmem:[#allocation5 + $0x1288] sm:$0xf]
    %v2108 = vld [vmem:[#allocation5 + $0x128c] sm:$0xf]
    %v2109 = vld [vmem:[#allocation5 + $0x1290] sm:$0xf]
    %v2110 = vld [vmem:[#allocation5 + $0x1294] sm:$0xf]
    %v2111 = vld [vmem:[#allocation5 + $0x1298] sm:$0xf]
    %v2112 = vld [vmem:[#allocation5 + $0x129c] sm:$0xf]
    %v2113 = vld [vmem:[#allocation5 + $0x12a0] sm:$0xf]
    %v2114 = vld [vmem:[#allocation5 + $0x12a4] sm:$0xf]
    %v2115 = vld [vmem:[#allocation5 + $0x12a8] sm:$0xf]
    %v2116 = vld [vmem:[#allocation5 + $0x12ac] sm:$0xf]
    %v2117 = vld [vmem:[#allocation5 + $0x12b0] sm:$0xf]
    %v2118 = vld [vmem:[#allocation5 + $0x12b4] sm:$0xf]
    %v2119 = vld [vmem:[#allocation5 + $0x12b8] sm:$0xf]
    %v2120 = vld [vmem:[#allocation5 + $0x12bc] sm:$0xf]
    %v2121 = vld [vmem:[#allocation5 + $0x12c0] sm:$0xf]
    %v2122 = vld [vmem:[#allocation5 + $0x12c4] sm:$0xf]
    %v2123 = vld [vmem:[#allocation5 + $0x12c8] sm:$0xf]
    %v2124 = vld [vmem:[#allocation5 + $0x12cc] sm:$0xf]
    %v2125 = vld [vmem:[#allocation5 + $0x12d0] sm:$0xf]
    %v2126 = vld [vmem:[#allocation5 + $0x12d4] sm:$0xf]
    %v2127 = vld [vmem:[#allocation5 + $0x12d8] sm:$0xf]
    %v2128 = vld [vmem:[#allocation5 + $0x12dc] sm:$0xf]
    %v2129 = vld [vmem:[#allocation5 + $0x12e0] sm:$0xf]
    %v2130 = vld [vmem:[#allocation5 + $0x12e4] sm:$0xf]
    %v2131 = vld [vmem:[#allocation5 + $0x12e8] sm:$0xf]
    %v2132 = vld [vmem:[#allocation5 + $0x12ec] sm:$0xf]
    %v2133 = vld [vmem:[#allocation5 + $0x12f0] sm:$0xf]
    %v2134 = vld [vmem:[#allocation5 + $0x12f4] sm:$0xf]
    %v2135 = vld [vmem:[#allocation5 + $0x12f8] sm:$0xf]
    %v2136 = vld [vmem:[#allocation5 + $0x12fc] sm:$0xf]
    %v2137 = vld [vmem:[#allocation5 + $0x1300] sm:$0xf]
    %v2138 = vld [vmem:[#allocation5 + $0x1304] sm:$0xf]
    %v2139 = vld [vmem:[#allocation5 + $0x1308] sm:$0xf]
    %v2140 = vld [vmem:[#allocation5 + $0x130c] sm:$0xf]
    %v2141 = vld [vmem:[#allocation5 + $0x1310] sm:$0xf]
    %v2142 = vld [vmem:[#allocation5 + $0x1314] sm:$0xf]
    %v2143 = vld [vmem:[#allocation5 + $0x1318] sm:$0xf]
    %v2144 = vld [vmem:[#allocation5 + $0x131c] sm:$0xf]
    %v2145 = vld [vmem:[#allocation5 + $0x1320] sm:$0xf]
    %v2146 = vld [vmem:[#allocation5 + $0x1324] sm:$0xf]
    %v2147 = vld [vmem:[#allocation5 + $0x1328] sm:$0xf]
    %v2148 = vld [vmem:[#allocation5 + $0x132c] sm:$0xf]
    %v2149 = vld [vmem:[#allocation5 + $0x1330] sm:$0xf]
    %v2150 = vld [vmem:[#allocation5 + $0x1334] sm:$0xf]
    %v2151 = vld [vmem:[#allocation5 + $0x1338] sm:$0xf]
    %v2152 = vld [vmem:[#allocation5 + $0x133c] sm:$0xf]
    %v2153 = vld [vmem:[#allocation5 + $0x1340] sm:$0xf]
    %v2154 = vld [vmem:[#allocation5 + $0x1344] sm:$0xf]
    %v2155 = vld [vmem:[#allocation5 + $0x1348] sm:$0xf]
    %v2156 = vld [vmem:[#allocation5 + $0x134c] sm:$0xf]
    %v2157 = vld [vmem:[#allocation5 + $0x1350] sm:$0xf]
    %v2158 = vld [vmem:[#allocation5 + $0x1354] sm:$0xf]
    %v2159 = vld [vmem:[#allocation5 + $0x1358] sm:$0xf]
    %v2160 = vld [vmem:[#allocation5 + $0x135c] sm:$0xf]
    %v2161 = vld [vmem:[#allocation5 + $0x1360] sm:$0xf]
    %v2162 = vld [vmem:[#allocation5 + $0x1364] sm:$0xf]
    %v2163 = vld [vmem:[#allocation5 + $0x1368] sm:$0xf]
    %v2164 = vld [vmem:[#allocation5 + $0x136c] sm:$0xf]
    %v2165 = vld [vmem:[#allocation5 + $0x1370] sm:$0xf]
    %v2166 = vld [vmem:[#allocation5 + $0x1374] sm:$0xf]
    %v2167 = vld [vmem:[#allocation5 + $0x1378] sm:$0xf]
    %v2168 = vld [vmem:[#allocation5 + $0x137c] sm:$0xf]
    %v2169 = vld [vmem:[#allocation5 + $0x1380] sm:$0xf]
    %v2170 = vld [vmem:[#allocation5 + $0x1384] sm:$0xf]
    %v2171 = vld [vmem:[#allocation5 + $0x1388] sm:$0xf]
    %v2172 = vld [vmem:[#allocation5 + $0x138c] sm:$0xf]
    %v2173 = vld [vmem:[#allocation5 + $0x1390] sm:$0xf]
    %v2174 = vld [vmem:[#allocation5 + $0x1394] sm:$0xf]
    %v2175 = vld [vmem:[#allocation5 + $0x1398] sm:$0xf]
    %v2176 = vld [vmem:[#allocation5 + $0x139c] sm:$0xf]
    %v2177 = vld [vmem:[#allocation5 + $0x13a0] sm:$0xf]
    %v2178 = vld [vmem:[#allocation5 + $0x13a4] sm:$0xf]
    %v2179 = vld [vmem:[#allocation5 + $0x13a8] sm:$0xf]
    %v2180 = vld [vmem:[#allocation5 + $0x13ac] sm:$0xf]
    %v2181 = vld [vmem:[#allocation5 + $0x13b0] sm:$0xf]
    %v2182 = vld [vmem:[#allocation5 + $0x13b4] sm:$0xf]
    %v2183 = vld [vmem:[#allocation5 + $0x13b8] sm:$0xf]
    %v2184 = vld [vmem:[#allocation5 + $0x13bc] sm:$0xf]
    %v2185 = vld [vmem:[#allocation5 + $0x13c0] sm:$0xf]
    %v2186 = vld [vmem:[#allocation5 + $0x13c4] sm:$0xf]
    %v2187 = vld [vmem:[#allocation5 + $0x13c8] sm:$0xf]
    %v2188 = vld [vmem:[#allocation5 + $0x13cc] sm:$0xf]
    %v2189 = vld [vmem:[#allocation5 + $0x13d0] sm:$0xf]
    %v2190 = vld [vmem:[#allocation5 + $0x13d4] sm:$0xf]
    %v2191 = vld [vmem:[#allocation5 + $0x13d8] sm:$0xf]
    %v2192 = vld [vmem:[#allocation5 + $0x13dc] sm:$0xf]
    %v2193 = vld [vmem:[#allocation5 + $0x13e0] sm:$0xf]
    %v2194 = vld [vmem:[#allocation5 + $0x13e4] sm:$0xf]
    %v2195 = vld [vmem:[#allocation5 + $0x13e8] sm:$0xf]
    %v2196 = vld [vmem:[#allocation5 + $0x13ec] sm:$0xf]
    %v2197 = vld [vmem:[#allocation5 + $0x13f0] sm:$0xf]
    %v2198 = vld [vmem:[#allocation5 + $0x13f4] sm:$0xf]
    %v2199 = vld [vmem:[#allocation5 + $0x13f8] sm:$0xf]
    %v2200 = vld [vmem:[#allocation5 + $0x13fc] sm:$0xf]
    %v2201 = vld [vmem:[#allocation5 + $0x1400] sm:$0xf]
    %v2202 = vld [vmem:[#allocation5 + $0x1404] sm:$0xf]
    %v2203 = vld [vmem:[#allocation5 + $0x1408] sm:$0xf]
    %v2204 = vld [vmem:[#allocation5 + $0x140c] sm:$0xf]
    %v2205 = vld [vmem:[#allocation5 + $0x1410] sm:$0xf]
    %v2206 = vld [vmem:[#allocation5 + $0x1414] sm:$0xf]
    %v2207 = vld [vmem:[#allocation5 + $0x1418] sm:$0xf]
    %v2208 = vld [vmem:[#allocation5 + $0x141c] sm:$0xf]
    %v2209 = vld [vmem:[#allocation5 + $0x1420] sm:$0xf]
    %v2210 = vld [vmem:[#allocation5 + $0x1424] sm:$0xf]
    %v2211 = vld [vmem:[#allocation5 + $0x1428] sm:$0xf]
    %v2212 = vld [vmem:[#allocation5 + $0x142c] sm:$0xf]
    %v2213 = vld [vmem:[#allocation5 + $0x1430] sm:$0xf]
    %v2214 = vld [vmem:[#allocation5 + $0x1434] sm:$0xf]
    %v2215 = vld [vmem:[#allocation5 + $0x1438] sm:$0xf]
    %v2216 = vld [vmem:[#allocation5 + $0x143c] sm:$0xf]
    %v2217 = vld [vmem:[#allocation5 + $0x1440] sm:$0xf]
    %v2218 = vld [vmem:[#allocation5 + $0x1444] sm:$0xf]
    %v2219 = vld [vmem:[#allocation5 + $0x1448] sm:$0xf]
    %v2220 = vld [vmem:[#allocation5 + $0x144c] sm:$0xf]
    %v2221 = vld [vmem:[#allocation5 + $0x1450] sm:$0xf]
    %v2222 = vld [vmem:[#allocation5 + $0x1454] sm:$0xf]
    %v2223 = vld [vmem:[#allocation5 + $0x1458] sm:$0xf]
    %v2224 = vld [vmem:[#allocation5 + $0x145c] sm:$0xf]
    %v2225 = vld [vmem:[#allocation5 + $0x1460] sm:$0xf]
    %v2226 = vld [vmem:[#allocation5 + $0x1464] sm:$0xf]
    %v2227 = vld [vmem:[#allocation5 + $0x1468] sm:$0xf]
    %v2228 = vld [vmem:[#allocation5 + $0x146c] sm:$0xf]
    %v2229 = vld [vmem:[#allocation5 + $0x1470] sm:$0xf]
    %v2230 = vld [vmem:[#allocation5 + $0x1474] sm:$0xf]
    %v2231 = vld [vmem:[#allocation5 + $0x1478] sm:$0xf]
    %v2232 = vld [vmem:[#allocation5 + $0x147c] sm:$0xf]
    %v2233 = vld [vmem:[#allocation5 + $0x1480] sm:$0xf]
    %v2234 = vld [vmem:[#allocation5 + $0x1484] sm:$0xf]
    %v2235 = vld [vmem:[#allocation5 + $0x1488] sm:$0xf]
    %v2236 = vld [vmem:[#allocation5 + $0x148c] sm:$0xf]
    %v2237 = vld [vmem:[#allocation5 + $0x1490] sm:$0xf]
    %v2238 = vld [vmem:[#allocation5 + $0x1494] sm:$0xf]
    %v2239 = vld [vmem:[#allocation5 + $0x1498] sm:$0xf]
    %v2240 = vld [vmem:[#allocation5 + $0x149c] sm:$0xf]
    %v2241 = vld [vmem:[#allocation5 + $0x14a0] sm:$0xf]
    %v2242 = vld [vmem:[#allocation5 + $0x14a4] sm:$0xf]
    %v2243 = vld [vmem:[#allocation5 + $0x14a8] sm:$0xf]
    %v2244 = vld [vmem:[#allocation5 + $0x14ac] sm:$0xf]
    %v2245 = vld [vmem:[#allocation5 + $0x14b0] sm:$0xf]
    %v2246 = vld [vmem:[#allocation5 + $0x14b4] sm:$0xf]
    %v2247 = vld [vmem:[#allocation5 + $0x14b8] sm:$0xf]
    %v2248 = vld [vmem:[#allocation5 + $0x14bc] sm:$0xf]
    %v2249 = vld [vmem:[#allocation5 + $0x14c0] sm:$0xf]
    %v2250 = vld [vmem:[#allocation5 + $0x14c4] sm:$0xf]
    %v2251 = vld [vmem:[#allocation5 + $0x14c8] sm:$0xf]
    %v2252 = vld [vmem:[#allocation5 + $0x14cc] sm:$0xf]
    %v2253 = vld [vmem:[#allocation5 + $0x14d0] sm:$0xf]
    %v2254 = vld [vmem:[#allocation5 + $0x14d4] sm:$0xf]
    %v2255 = vld [vmem:[#allocation5 + $0x14d8] sm:$0xf]
    %v2256 = vld [vmem:[#allocation5 + $0x14dc] sm:$0xf]
    %v2257 = vld [vmem:[#allocation5 + $0x14e0] sm:$0xf]
    %v2258 = vld [vmem:[#allocation5 + $0x14e4] sm:$0xf]
    %v2259 = vld [vmem:[#allocation5 + $0x14e8] sm:$0xf]
    %v2260 = vld [vmem:[#allocation5 + $0x14ec] sm:$0xf]
    %v2261 = vld [vmem:[#allocation5 + $0x14f0] sm:$0xf]
    %v2262 = vld [vmem:[#allocation5 + $0x14f4] sm:$0xf]
    %v2263 = vld [vmem:[#allocation5 + $0x14f8] sm:$0xf]
    %v2264 = vld [vmem:[#allocation5 + $0x14fc] sm:$0xf]
    %v2265 = vld [vmem:[#allocation5 + $0x1500] sm:$0xf]
    %v2266 = vld [vmem:[#allocation5 + $0x1504] sm:$0xf]
    %v2267 = vld [vmem:[#allocation5 + $0x1508] sm:$0xf]
    %v2268 = vld [vmem:[#allocation5 + $0x150c] sm:$0xf]
    %v2269 = vld [vmem:[#allocation5 + $0x1510] sm:$0xf]
    %v2270 = vld [vmem:[#allocation5 + $0x1514] sm:$0xf]
    %v2271 = vld [vmem:[#allocation5 + $0x1518] sm:$0xf]
    %v2272 = vld [vmem:[#allocation5 + $0x151c] sm:$0xf]
    %v2273 = vld [vmem:[#allocation5 + $0x1520] sm:$0xf]
    %v2274 = vld [vmem:[#allocation5 + $0x1524] sm:$0xf]
    %v2275 = vld [vmem:[#allocation5 + $0x1528] sm:$0xf]
    %v2276 = vld [vmem:[#allocation5 + $0x152c] sm:$0xf]
    %v2277 = vld [vmem:[#allocation5 + $0x1530] sm:$0xf]
    %v2278 = vld [vmem:[#allocation5 + $0x1534] sm:$0xf]
    %v2279 = vld [vmem:[#allocation5 + $0x1538] sm:$0xf]
    %v2280 = vld [vmem:[#allocation5 + $0x153c] sm:$0xf]
    %v2281 = vld [vmem:[#allocation5 + $0x1540] sm:$0xf]
    %v2282 = vld [vmem:[#allocation5 + $0x1544] sm:$0xf]
    %v2283 = vld [vmem:[#allocation5 + $0x1548] sm:$0xf]
    %v2284 = vld [vmem:[#allocation5 + $0x154c] sm:$0xf]
    %v2285 = vld [vmem:[#allocation5 + $0x1550] sm:$0xf]
    %v2286 = vld [vmem:[#allocation5 + $0x1554] sm:$0xf]
    %v2287 = vld [vmem:[#allocation5 + $0x1558] sm:$0xf]
    %v2288 = vld [vmem:[#allocation5 + $0x155c] sm:$0xf]
    %v2289 = vld [vmem:[#allocation5 + $0x1560] sm:$0xf]
    %v2290 = vld [vmem:[#allocation5 + $0x1564] sm:$0xf]
    %v2291 = vld [vmem:[#allocation5 + $0x1568] sm:$0xf]
    %v2292 = vld [vmem:[#allocation5 + $0x156c] sm:$0xf]
    %v2293 = vld [vmem:[#allocation5 + $0x1570] sm:$0xf]
    %v2294 = vld [vmem:[#allocation5 + $0x1574] sm:$0xf]
    %v2295 = vld [vmem:[#allocation5 + $0x1578] sm:$0xf]
    %v2296 = vld [vmem:[#allocation5 + $0x157c] sm:$0xf]
    %v2297 = vld [vmem:[#allocation5 + $0x1580] sm:$0xf]
    %v2298 = vld [vmem:[#allocation5 + $0x1584] sm:$0xf]
    %v2299 = vld [vmem:[#allocation5 + $0x1588] sm:$0xf]
    %v2300 = vld [vmem:[#allocation5 + $0x158c] sm:$0xf]
    %v2301 = vld [vmem:[#allocation5 + $0x1590] sm:$0xf]
    %v2302 = vld [vmem:[#allocation5 + $0x1594] sm:$0xf]
    %v2303 = vld [vmem:[#allocation5 + $0x1598] sm:$0xf]
    %v2304 = vld [vmem:[#allocation5 + $0x159c] sm:$0xf]
    %v2305 = vld [vmem:[#allocation5 + $0x15a0] sm:$0xf]
    %v2306 = vld [vmem:[#allocation5 + $0x15a4] sm:$0xf]
    %v2307 = vld [vmem:[#allocation5 + $0x15a8] sm:$0xf]
    %v2308 = vld [vmem:[#allocation5 + $0x15ac] sm:$0xf]
    %v2309 = vld [vmem:[#allocation5 + $0x15b0] sm:$0xf]
    %v2310 = vld [vmem:[#allocation5 + $0x15b4] sm:$0xf]
    %v2311 = vld [vmem:[#allocation5 + $0x15b8] sm:$0xf]
    %v2312 = vld [vmem:[#allocation5 + $0x15bc] sm:$0xf]
    %v2313 = vld [vmem:[#allocation5 + $0x15c0] sm:$0xf]
    %v2314 = vld [vmem:[#allocation5 + $0x15c4] sm:$0xf]
    %v2315 = vld [vmem:[#allocation5 + $0x15c8] sm:$0xf]
    %v2316 = vld [vmem:[#allocation5 + $0x15cc] sm:$0xf]
    %v2317 = vld [vmem:[#allocation5 + $0x15d0] sm:$0xf]
    %v2318 = vld [vmem:[#allocation5 + $0x15d4] sm:$0xf]
    %v2319 = vld [vmem:[#allocation5 + $0x15d8] sm:$0xf]
    %v2320 = vld [vmem:[#allocation5 + $0x15dc] sm:$0xf]
    %v2321 = vld [vmem:[#allocation5 + $0x15e0] sm:$0xf]
    %v2322 = vld [vmem:[#allocation5 + $0x15e4] sm:$0xf]
    %v2323 = vld [vmem:[#allocation5 + $0x15e8] sm:$0xf]
    %v2324 = vld [vmem:[#allocation5 + $0x15ec] sm:$0xf]
    %v2325 = vld [vmem:[#allocation5 + $0x15f0] sm:$0xf]
    %v2326 = vld [vmem:[#allocation5 + $0x15f4] sm:$0xf]
    %v2327 = vld [vmem:[#allocation5 + $0x15f8] sm:$0xf]
    %v2328 = vld [vmem:[#allocation5 + $0x15fc] sm:$0xf]
    %v2329 = vld [vmem:[#allocation5 + $0x1600] sm:$0xf]
    %v2330 = vld [vmem:[#allocation5 + $0x1604] sm:$0xf]
    %v2331 = vld [vmem:[#allocation5 + $0x1608] sm:$0xf]
    %v2332 = vld [vmem:[#allocation5 + $0x160c] sm:$0xf]
    %v2333 = vld [vmem:[#allocation5 + $0x1610] sm:$0xf]
    %v2334 = vld [vmem:[#allocation5 + $0x1614] sm:$0xf]
    %v2335 = vld [vmem:[#allocation5 + $0x1618] sm:$0xf]
    %v2336 = vld [vmem:[#allocation5 + $0x161c] sm:$0xf]
    %v2337 = vld [vmem:[#allocation5 + $0x1620] sm:$0xf]
    %v2338 = vld [vmem:[#allocation5 + $0x1624] sm:$0xf]
    %v2339 = vld [vmem:[#allocation5 + $0x1628] sm:$0xf]
    %v2340 = vld [vmem:[#allocation5 + $0x162c] sm:$0xf]
    %v2341 = vld [vmem:[#allocation5 + $0x1630] sm:$0xf]
    %v2342 = vld [vmem:[#allocation5 + $0x1634] sm:$0xf]
    %v2343 = vld [vmem:[#allocation5 + $0x1638] sm:$0xf]
    %v2344 = vld [vmem:[#allocation5 + $0x163c] sm:$0xf]
    %v2345 = vld [vmem:[#allocation5 + $0x1640] sm:$0xf]
    %v2346 = vld [vmem:[#allocation5 + $0x1644] sm:$0xf]
    %v2347 = vld [vmem:[#allocation5 + $0x1648] sm:$0xf]
    %v2348 = vld [vmem:[#allocation5 + $0x164c] sm:$0xf]
    %v2349 = vld [vmem:[#allocation5 + $0x1650] sm:$0xf]
    %v2350 = vld [vmem:[#allocation5 + $0x1654] sm:$0xf]
    %v2351 = vld [vmem:[#allocation5 + $0x1658] sm:$0xf]
    %v2352 = vld [vmem:[#allocation5 + $0x165c] sm:$0xf]
    %v2353 = vld [vmem:[#allocation5 + $0x1660] sm:$0xf]
    %v2354 = vld [vmem:[#allocation5 + $0x1664] sm:$0xf]
    %v2355 = vld [vmem:[#allocation5 + $0x1668] sm:$0xf]
    %v2356 = vld [vmem:[#allocation5 + $0x166c] sm:$0xf]
    %v2357 = vld [vmem:[#allocation5 + $0x1670] sm:$0xf]
    %v2358 = vld [vmem:[#allocation5 + $0x1674] sm:$0xf]
    %v2359 = vld [vmem:[#allocation5 + $0x1678] sm:$0xf]
    %v2360 = vld [vmem:[#allocation5 + $0x167c] sm:$0xf]
    %v2361 = vld [vmem:[#allocation5 + $0x1680] sm:$0xf]
    %v2362 = vld [vmem:[#allocation5 + $0x1684] sm:$0xf]
    %v2363 = vld [vmem:[#allocation5 + $0x1688] sm:$0xf]
    %v2364 = vld [vmem:[#allocation5 + $0x168c] sm:$0xf]
    %v2365 = vld [vmem:[#allocation5 + $0x1690] sm:$0xf]
    %v2366 = vld [vmem:[#allocation5 + $0x1694] sm:$0xf]
    %v2367 = vld [vmem:[#allocation5 + $0x1698] sm:$0xf]
    %v2368 = vld [vmem:[#allocation5 + $0x169c] sm:$0xf]
    %v2369 = vld [vmem:[#allocation5 + $0x16a0] sm:$0xf]
    %v2370 = vld [vmem:[#allocation5 + $0x16a4] sm:$0xf]
    %v2371 = vld [vmem:[#allocation5 + $0x16a8] sm:$0xf]
    %v2372 = vld [vmem:[#allocation5 + $0x16ac] sm:$0xf]
    %v2373 = vld [vmem:[#allocation5 + $0x16b0] sm:$0xf]
    %v2374 = vld [vmem:[#allocation5 + $0x16b4] sm:$0xf]
    %v2375 = vld [vmem:[#allocation5 + $0x16b8] sm:$0xf]
    %v2376 = vld [vmem:[#allocation5 + $0x16bc] sm:$0xf]
    %v2377 = vld [vmem:[#allocation5 + $0x16c0] sm:$0xf]
    %v2378 = vld [vmem:[#allocation5 + $0x16c4] sm:$0xf]
    %v2379 = vld [vmem:[#allocation5 + $0x16c8] sm:$0xf]
    %v2380 = vld [vmem:[#allocation5 + $0x16cc] sm:$0xf]
    %v2381 = vld [vmem:[#allocation5 + $0x16d0] sm:$0xf]
    %v2382 = vld [vmem:[#allocation5 + $0x16d4] sm:$0xf]
    %v2383 = vld [vmem:[#allocation5 + $0x16d8] sm:$0xf]
    %v2384 = vld [vmem:[#allocation5 + $0x16dc] sm:$0xf]
    %v2385 = vld [vmem:[#allocation5 + $0x16e0] sm:$0xf]
    %v2386 = vld [vmem:[#allocation5 + $0x16e4] sm:$0xf]
    %v2387 = vld [vmem:[#allocation5 + $0x16e8] sm:$0xf]
    %v2388 = vld [vmem:[#allocation5 + $0x16ec] sm:$0xf]
    %v2389 = vld [vmem:[#allocation5 + $0x16f0] sm:$0xf]
    %v2390 = vld [vmem:[#allocation5 + $0x16f4] sm:$0xf]
    %v2391 = vld [vmem:[#allocation5 + $0x16f8] sm:$0xf]
    %v2392 = vld [vmem:[#allocation5 + $0x16fc] sm:$0xf]
    %v2393 = vld [vmem:[#allocation5 + $0x1700] sm:$0xf]
    %v2394 = vld [vmem:[#allocation5 + $0x1704] sm:$0xf]
    %v2395 = vld [vmem:[#allocation5 + $0x1708] sm:$0xf]
    %v2396 = vld [vmem:[#allocation5 + $0x170c] sm:$0xf]
    %v2397 = vld [vmem:[#allocation5 + $0x1710] sm:$0xf]
    %v2398 = vld [vmem:[#allocation5 + $0x1714] sm:$0xf]
    %v2399 = vld [vmem:[#allocation5 + $0x1718] sm:$0xf]
    %v2400 = vld [vmem:[#allocation5 + $0x171c] sm:$0xf]
    %v2401 = vld [vmem:[#allocation5 + $0x1720] sm:$0xf]
    %v2402 = vld [vmem:[#allocation5 + $0x1724] sm:$0xf]
    %v2403 = vld [vmem:[#allocation5 + $0x1728] sm:$0xf]
    %v2404 = vld [vmem:[#allocation5 + $0x172c] sm:$0xf]
    %v2405 = vld [vmem:[#allocation5 + $0x1730] sm:$0xf]
    %v2406 = vld [vmem:[#allocation5 + $0x1734] sm:$0xf]
    %v2407 = vld [vmem:[#allocation5 + $0x1738] sm:$0xf]
    %v2408 = vld [vmem:[#allocation5 + $0x173c] sm:$0xf]
    %v2409 = vld [vmem:[#allocation5 + $0x1740] sm:$0xf]
    %v2410 = vld [vmem:[#allocation5 + $0x1744] sm:$0xf]
    %v2411 = vld [vmem:[#allocation5 + $0x1748] sm:$0xf]
    %v2412 = vld [vmem:[#allocation5 + $0x174c] sm:$0xf]
    %v2413 = vld [vmem:[#allocation5 + $0x1750] sm:$0xf]
    %v2414 = vld [vmem:[#allocation5 + $0x1754] sm:$0xf]
    %v2415 = vld [vmem:[#allocation5 + $0x1758] sm:$0xf]
    %v2416 = vld [vmem:[#allocation5 + $0x175c] sm:$0xf]
    %v2417 = vld [vmem:[#allocation5 + $0x1760] sm:$0xf]
    %v2418 = vld [vmem:[#allocation5 + $0x1764] sm:$0xf]
    %v2419 = vld [vmem:[#allocation5 + $0x1768] sm:$0xf]
    %v2420 = vld [vmem:[#allocation5 + $0x176c] sm:$0xf]
    %v2421 = vld [vmem:[#allocation5 + $0x1770] sm:$0xf]
    %v2422 = vld [vmem:[#allocation5 + $0x1774] sm:$0xf]
    %v2423 = vld [vmem:[#allocation5 + $0x1778] sm:$0xf]
    %v2424 = vld [vmem:[#allocation5 + $0x177c] sm:$0xf]
    %v2425 = vld [vmem:[#allocation5 + $0x1780] sm:$0xf]
    %v2426 = vld [vmem:[#allocation5 + $0x1784] sm:$0xf]
    %v2427 = vld [vmem:[#allocation5 + $0x1788] sm:$0xf]
    %v2428 = vld [vmem:[#allocation5 + $0x178c] sm:$0xf]
    %v2429 = vld [vmem:[#allocation5 + $0x1790] sm:$0xf]
    %v2430 = vld [vmem:[#allocation5 + $0x1794] sm:$0xf]
    %v2431 = vld [vmem:[#allocation5 + $0x1798] sm:$0xf]
    %v2432 = vld [vmem:[#allocation5 + $0x179c] sm:$0xf]
    %v2433 = vld [vmem:[#allocation5 + $0x17a0] sm:$0xf]
    %v2434 = vld [vmem:[#allocation5 + $0x17a4] sm:$0xf]
    %v2435 = vld [vmem:[#allocation5 + $0x17a8] sm:$0xf]
    %v2436 = vld [vmem:[#allocation5 + $0x17ac] sm:$0xf]
    %v2437 = vld [vmem:[#allocation5 + $0x17b0] sm:$0xf]
    %v2438 = vld [vmem:[#allocation5 + $0x17b4] sm:$0xf]
    %v2439 = vld [vmem:[#allocation5 + $0x17b8] sm:$0xf]
    %v2440 = vld [vmem:[#allocation5 + $0x17bc] sm:$0xf]
    %v2441 = vld [vmem:[#allocation5 + $0x17c0] sm:$0xf]
    %v2442 = vld [vmem:[#allocation5 + $0x17c4] sm:$0xf]
    %v2443 = vld [vmem:[#allocation5 + $0x17c8] sm:$0xf]
    %v2444 = vld [vmem:[#allocation5 + $0x17cc] sm:$0xf]
    %v2445 = vld [vmem:[#allocation5 + $0x17d0] sm:$0xf]
    %v2446 = vld [vmem:[#allocation5 + $0x17d4] sm:$0xf]
    %v2447 = vld [vmem:[#allocation5 + $0x17d8] sm:$0xf]
    %v2448 = vld [vmem:[#allocation5 + $0x17dc] sm:$0xf]
    %v2449 = vld [vmem:[#allocation5 + $0x17e0] sm:$0xf]
    %v2450 = vld [vmem:[#allocation5 + $0x17e4] sm:$0xf]
    %v2451 = vld [vmem:[#allocation5 + $0x17e8] sm:$0xf]
    %v2452 = vld [vmem:[#allocation5 + $0x17ec] sm:$0xf]
    %v2453 = vld [vmem:[#allocation5 + $0x17f0] sm:$0xf]
    %v2454 = vld [vmem:[#allocation5 + $0x17f4] sm:$0xf]
    %v2455 = vld [vmem:[#allocation5 + $0x17f8] sm:$0xf]
    %v2456 = vld [vmem:[#allocation5 + $0x17fc] sm:$0xf]
    %v2457 = vld [vmem:[#allocation5 + $0x1800] sm:$0xf]
    %v2458 = vld [vmem:[#allocation5 + $0x1804] sm:$0xf]
    %v2459 = vld [vmem:[#allocation5 + $0x1808] sm:$0xf]
    %v2460 = vld [vmem:[#allocation5 + $0x180c] sm:$0xf]
    %v2461 = vld [vmem:[#allocation5 + $0x1810] sm:$0xf]
    %v2462 = vld [vmem:[#allocation5 + $0x1814] sm:$0xf]
    %v2463 = vld [vmem:[#allocation5 + $0x1818] sm:$0xf]
    %v2464 = vld [vmem:[#allocation5 + $0x181c] sm:$0xf]
    %v2465 = vld [vmem:[#allocation5 + $0x1820] sm:$0xf]
    %v2466 = vld [vmem:[#allocation5 + $0x1824] sm:$0xf]
    %v2467 = vld [vmem:[#allocation5 + $0x1828] sm:$0xf]
    %v2468 = vld [vmem:[#allocation5 + $0x182c] sm:$0xf]
    %v2469 = vld [vmem:[#allocation5 + $0x1830] sm:$0xf]
    %v2470 = vld [vmem:[#allocation5 + $0x1834] sm:$0xf]
    %v2471 = vld [vmem:[#allocation5 + $0x1838] sm:$0xf]
    %v2472 = vld [vmem:[#allocation5 + $0x183c] sm:$0xf]
    %v2473 = vld [vmem:[#allocation5 + $0x1840] sm:$0xf]
    %v2474 = vld [vmem:[#allocation5 + $0x1844] sm:$0xf]
    %v2475 = vld [vmem:[#allocation5 + $0x1848] sm:$0xf]
    %v2476 = vld [vmem:[#allocation5 + $0x184c] sm:$0xf]
    %v2477 = vld [vmem:[#allocation5 + $0x1850] sm:$0xf]
    %v2478 = vld [vmem:[#allocation5 + $0x1854] sm:$0xf]
    %v2479 = vld [vmem:[#allocation5 + $0x1858] sm:$0xf]
    %v2480 = vld [vmem:[#allocation5 + $0x185c] sm:$0xf]
    %v2481 = vld [vmem:[#allocation5 + $0x1860] sm:$0xf]
    %v2482 = vld [vmem:[#allocation5 + $0x1864] sm:$0xf]
    %v2483 = vld [vmem:[#allocation5 + $0x1868] sm:$0xf]
    %v2484 = vld [vmem:[#allocation5 + $0x186c] sm:$0xf]
    %v2485 = vld [vmem:[#allocation5 + $0x1870] sm:$0xf]
    %v2486 = vld [vmem:[#allocation5 + $0x1874] sm:$0xf]
    %v2487 = vld [vmem:[#allocation5 + $0x1878] sm:$0xf]
    %v2488 = vld [vmem:[#allocation5 + $0x187c] sm:$0xf]
    %v2489 = vld [vmem:[#allocation5 + $0x1880] sm:$0xf]
    %v2490 = vld [vmem:[#allocation5 + $0x1884] sm:$0xf]
    %v2491 = vld [vmem:[#allocation5 + $0x1888] sm:$0xf]
    %v2492 = vld [vmem:[#allocation5 + $0x188c] sm:$0xf]
    %v2493 = vld [vmem:[#allocation5 + $0x1890] sm:$0xf]
    %v2494 = vld [vmem:[#allocation5 + $0x1894] sm:$0xf]
    %v2495 = vld [vmem:[#allocation5 + $0x1898] sm:$0xf]
    %v2496 = vld [vmem:[#allocation5 + $0x189c] sm:$0xf]
    %v2497 = vld [vmem:[#allocation5 + $0x18a0] sm:$0xf]
    %v2498 = vld [vmem:[#allocation5 + $0x18a4] sm:$0xf]
    %v2499 = vld [vmem:[#allocation5 + $0x18a8] sm:$0xf]
    %v2500 = vld [vmem:[#allocation5 + $0x18ac] sm:$0xf]
    %v2501 = vld [vmem:[#allocation5 + $0x18b0] sm:$0xf]
    %v2502 = vld [vmem:[#allocation5 + $0x18b4] sm:$0xf]
    %v2503 = vld [vmem:[#allocation5 + $0x18b8] sm:$0xf]
    %v2504 = vld [vmem:[#allocation5 + $0x18bc] sm:$0xf]
    %v2505 = vld [vmem:[#allocation5 + $0x18c0] sm:$0xf]
    %v2506 = vld [vmem:[#allocation5 + $0x18c4] sm:$0xf]
    %v2507 = vld [vmem:[#allocation5 + $0x18c8] sm:$0xf]
    %v2508 = vld [vmem:[#allocation5 + $0x18cc] sm:$0xf]
    %v2509 = vld [vmem:[#allocation5 + $0x18d0] sm:$0xf]
    %v2510 = vld [vmem:[#allocation5 + $0x18d4] sm:$0xf]
    %v2511 = vld [vmem:[#allocation5 + $0x18d8] sm:$0xf]
    %v2512 = vld [vmem:[#allocation5 + $0x18dc] sm:$0xf]
    %v2513 = vld [vmem:[#allocation5 + $0x18e0] sm:$0xf]
    %v2514 = vld [vmem:[#allocation5 + $0x18e4] sm:$0xf]
    %v2515 = vld [vmem:[#allocation5 + $0x18e8] sm:$0xf]
    %v2516 = vld [vmem:[#allocation5 + $0x18ec] sm:$0xf]
    %v2517 = vld [vmem:[#allocation5 + $0x18f0] sm:$0xf]
    %v2518 = vld [vmem:[#allocation5 + $0x18f4] sm:$0xf]
    %v2519 = vld [vmem:[#allocation5 + $0x18f8] sm:$0xf]
    %v2520 = vld [vmem:[#allocation5 + $0x18fc] sm:$0xf]
    %v2521 = vld [vmem:[#allocation5 + $0x1900] sm:$0xf]
    %v2522 = vld [vmem:[#allocation5 + $0x1904] sm:$0xf]
    %v2523 = vld [vmem:[#allocation5 + $0x1908] sm:$0xf]
    %v2524 = vld [vmem:[#allocation5 + $0x190c] sm:$0xf]
    %v2525 = vld [vmem:[#allocation5 + $0x1910] sm:$0xf]
    %v2526 = vld [vmem:[#allocation5 + $0x1914] sm:$0xf]
    %v2527 = vld [vmem:[#allocation5 + $0x1918] sm:$0xf]
    %v2528 = vld [vmem:[#allocation5 + $0x191c] sm:$0xf]
    %v2529 = vld [vmem:[#allocation5 + $0x1920] sm:$0xf]
    %v2530 = vld [vmem:[#allocation5 + $0x1924] sm:$0xf]
    %v2531 = vld [vmem:[#allocation5 + $0x1928] sm:$0xf]
    %v2532 = vld [vmem:[#allocation5 + $0x192c] sm:$0xf]
    %v2533 = vld [vmem:[#allocation5 + $0x1930] sm:$0xf]
    %v2534 = vld [vmem:[#allocation5 + $0x1934] sm:$0xf]
    %v2535 = vld [vmem:[#allocation5 + $0x1938] sm:$0xf]
    %v2536 = vld [vmem:[#allocation5 + $0x193c] sm:$0xf]
    %v2537 = vld [vmem:[#allocation5 + $0x1940] sm:$0xf]
    %v2538 = vld [vmem:[#allocation5 + $0x1944] sm:$0xf]
    %v2539 = vld [vmem:[#allocation5 + $0x1948] sm:$0xf]
    %v2540 = vld [vmem:[#allocation5 + $0x194c] sm:$0xf]
    %v2541 = vld [vmem:[#allocation5 + $0x1950] sm:$0xf]
    %v2542 = vld [vmem:[#allocation5 + $0x1954] sm:$0xf]
    %v2543 = vld [vmem:[#allocation5 + $0x1958] sm:$0xf]
    %v2544 = vld [vmem:[#allocation5 + $0x195c] sm:$0xf]
    %v2545 = vld [vmem:[#allocation5 + $0x1960] sm:$0xf]
    %v2546 = vld [vmem:[#allocation5 + $0x1964] sm:$0xf]
    %v2547 = vld [vmem:[#allocation5 + $0x1968] sm:$0xf]
    %v2548 = vld [vmem:[#allocation5 + $0x196c] sm:$0xf]
    %v2549 = vld [vmem:[#allocation5 + $0x1970] sm:$0xf]
    %v2550 = vld [vmem:[#allocation5 + $0x1974] sm:$0xf]
    %v2551 = vld [vmem:[#allocation5 + $0x1978] sm:$0xf]
    %v2552 = vld [vmem:[#allocation5 + $0x197c] sm:$0xf]
    %v2553 = vld [vmem:[#allocation5 + $0x1980] sm:$0xf]
    %v2554 = vld [vmem:[#allocation5 + $0x1984] sm:$0xf]
    %v2555 = vld [vmem:[#allocation5 + $0x1988] sm:$0xf]
    %v2556 = vld [vmem:[#allocation5 + $0x198c] sm:$0xf]
    %v2557 = vld [vmem:[#allocation5 + $0x1990] sm:$0xf]
    %v2558 = vld [vmem:[#allocation5 + $0x1994] sm:$0xf]
    %v2559 = vld [vmem:[#allocation5 + $0x1998] sm:$0xf]
    %v2560 = vld [vmem:[#allocation5 + $0x199c] sm:$0xf]
    %v2561 = vld [vmem:[#allocation5 + $0x19a0] sm:$0xf]
    %v2562 = vld [vmem:[#allocation5 + $0x19a4] sm:$0xf]
    %v2563 = vld [vmem:[#allocation5 + $0x19a8] sm:$0xf]
    %v2564 = vld [vmem:[#allocation5 + $0x19ac] sm:$0xf]
    %v2565 = vld [vmem:[#allocation5 + $0x19b0] sm:$0xf]
    %v2566 = vld [vmem:[#allocation5 + $0x19b4] sm:$0xf]
    %v2567 = vld [vmem:[#allocation5 + $0x19b8] sm:$0xf]
    %v2568 = vld [vmem:[#allocation5 + $0x19bc] sm:$0xf]
    %v2569 = vld [vmem:[#allocation5 + $0x19c0] sm:$0xf]
    %v2570 = vld [vmem:[#allocation5 + $0x19c4] sm:$0xf]
    %v2571 = vld [vmem:[#allocation5 + $0x19c8] sm:$0xf]
    %v2572 = vld [vmem:[#allocation5 + $0x19cc] sm:$0xf]
    %v2573 = vld [vmem:[#allocation5 + $0x19d0] sm:$0xf]
    %v2574 = vld [vmem:[#allocation5 + $0x19d4] sm:$0xf]
    %v2575 = vld [vmem:[#allocation5 + $0x19d8] sm:$0xf]
    %v2576 = vld [vmem:[#allocation5 + $0x19dc] sm:$0xf]
    %v2577 = vld [vmem:[#allocation5 + $0x19e0] sm:$0xf]
    %v2578 = vld [vmem:[#allocation5 + $0x19e4] sm:$0xf]
    %v2579 = vld [vmem:[#allocation5 + $0x19e8] sm:$0xf]
    %v2580 = vld [vmem:[#allocation5 + $0x19ec] sm:$0xf]
    %v2581 = vld [vmem:[#allocation5 + $0x19f0] sm:$0xf]
    %v2582 = vld [vmem:[#allocation5 + $0x19f4] sm:$0xf]
    %v2583 = vld [vmem:[#allocation5 + $0x19f8] sm:$0xf]
    %v2584 = vld [vmem:[#allocation5 + $0x19fc] sm:$0xf]
    %v2585 = vld [vmem:[#allocation5 + $0x1a00] sm:$0xf]
    %v2586 = vld [vmem:[#allocation5 + $0x1a04] sm:$0xf]
    %v2587 = vld [vmem:[#allocation5 + $0x1a08] sm:$0xf]
    %v2588 = vld [vmem:[#allocation5 + $0x1a0c] sm:$0xf]
    %v2589 = vld [vmem:[#allocation5 + $0x1a10] sm:$0xf]
    %v2590 = vld [vmem:[#allocation5 + $0x1a14] sm:$0xf]
    %v2591 = vld [vmem:[#allocation5 + $0x1a18] sm:$0xf]
    %v2592 = vld [vmem:[#allocation5 + $0x1a1c] sm:$0xf]
    %v2593 = vld [vmem:[#allocation5 + $0x1a20] sm:$0xf]
    %v2594 = vld [vmem:[#allocation5 + $0x1a24] sm:$0xf]
    %v2595 = vld [vmem:[#allocation5 + $0x1a28] sm:$0xf]
    %v2596 = vld [vmem:[#allocation5 + $0x1a2c] sm:$0xf]
    %v2597 = vld [vmem:[#allocation5 + $0x1a30] sm:$0xf]
    %v2598 = vld [vmem:[#allocation5 + $0x1a34] sm:$0xf]
    %v2599 = vld [vmem:[#allocation5 + $0x1a38] sm:$0xf]
    %v2600 = vld [vmem:[#allocation5 + $0x1a3c] sm:$0xf]
    %v2601 = vld [vmem:[#allocation5 + $0x1a40] sm:$0xf]
    %v2602 = vld [vmem:[#allocation5 + $0x1a44] sm:$0xf]
    %v2603 = vld [vmem:[#allocation5 + $0x1a48] sm:$0xf]
    %v2604 = vld [vmem:[#allocation5 + $0x1a4c] sm:$0xf]
    %v2605 = vld [vmem:[#allocation5 + $0x1a50] sm:$0xf]
    %v2606 = vld [vmem:[#allocation5 + $0x1a54] sm:$0xf]
    %v2607 = vld [vmem:[#allocation5 + $0x1a58] sm:$0xf]
    %v2608 = vld [vmem:[#allocation5 + $0x1a5c] sm:$0xf]
    %v2609 = vld [vmem:[#allocation5 + $0x1a60] sm:$0xf]
    %v2610 = vld [vmem:[#allocation5 + $0x1a64] sm:$0xf]
    %v2611 = vld [vmem:[#allocation5 + $0x1a68] sm:$0xf]
    %v2612 = vld [vmem:[#allocation5 + $0x1a6c] sm:$0xf]
    %v2613 = vld [vmem:[#allocation5 + $0x1a70] sm:$0xf]
    %v2614 = vld [vmem:[#allocation5 + $0x1a74] sm:$0xf]
    %v2615 = vld [vmem:[#allocation5 + $0x1a78] sm:$0xf]
    %v2616 = vld [vmem:[#allocation5 + $0x1a7c] sm:$0xf]
    %v2617 = vld [vmem:[#allocation5 + $0x1a80] sm:$0xf]
    %v2618 = vld [vmem:[#allocation5 + $0x1a84] sm:$0xf]
    %v2619 = vld [vmem:[#allocation5 + $0x1a88] sm:$0xf]
    %v2620 = vld [vmem:[#allocation5 + $0x1a8c] sm:$0xf]
    %v2621 = vld [vmem:[#allocation5 + $0x1a90] sm:$0xf]
    %v2622 = vld [vmem:[#allocation5 + $0x1a94] sm:$0xf]
    %v2623 = vld [vmem:[#allocation5 + $0x1a98] sm:$0xf]
    %v2624 = vld [vmem:[#allocation5 + $0x1a9c] sm:$0xf]
    %v2625 = vld [vmem:[#allocation5 + $0x1aa0] sm:$0xf]
    %v2626 = vld [vmem:[#allocation5 + $0x1aa4] sm:$0xf]
    %v2627 = vld [vmem:[#allocation5 + $0x1aa8] sm:$0xf]
    %v2628 = vld [vmem:[#allocation5 + $0x1aac] sm:$0xf]
    %v2629 = vld [vmem:[#allocation5 + $0x1ab0] sm:$0xf]
    %v2630 = vld [vmem:[#allocation5 + $0x1ab4] sm:$0xf]
    %v2631 = vld [vmem:[#allocation5 + $0x1ab8] sm:$0xf]
    %v2632 = vld [vmem:[#allocation5 + $0x1abc] sm:$0xf]
    %v2633 = vld [vmem:[#allocation5 + $0x1ac0] sm:$0xf]
    %v2634 = vld [vmem:[#allocation5 + $0x1ac4] sm:$0xf]
    %v2635 = vld [vmem:[#allocation5 + $0x1ac8] sm:$0xf]
    %v2636 = vld [vmem:[#allocation5 + $0x1acc] sm:$0xf]
    %v2637 = vld [vmem:[#allocation5 + $0x1ad0] sm:$0xf]
    %v2638 = vld [vmem:[#allocation5 + $0x1ad4] sm:$0xf]
    %v2639 = vld [vmem:[#allocation5 + $0x1ad8] sm:$0xf]
    %v2640 = vld [vmem:[#allocation5 + $0x1adc] sm:$0xf]
    %v2641 = vld [vmem:[#allocation5 + $0x1ae0] sm:$0xf]
    %v2642 = vld [vmem:[#allocation5 + $0x1ae4] sm:$0xf]
    %v2643 = vld [vmem:[#allocation5 + $0x1ae8] sm:$0xf]
    %v2644 = vld [vmem:[#allocation5 + $0x1aec] sm:$0xf]
    %v2645 = vld [vmem:[#allocation5 + $0x1af0] sm:$0xf]
    %v2646 = vld [vmem:[#allocation5 + $0x1af4] sm:$0xf]
    %v2647 = vld [vmem:[#allocation5 + $0x1af8] sm:$0xf]
    %v2648 = vld [vmem:[#allocation5 + $0x1afc] sm:$0xf]
    %v2649 = vld [vmem:[#allocation5 + $0x1b00] sm:$0xf]
    %v2650 = vld [vmem:[#allocation5 + $0x1b04] sm:$0xf]
    %v2651 = vld [vmem:[#allocation5 + $0x1b08] sm:$0xf]
    %v2652 = vld [vmem:[#allocation5 + $0x1b0c] sm:$0xf]
    %v2653 = vld [vmem:[#allocation5 + $0x1b10] sm:$0xf]
    %v2654 = vld [vmem:[#allocation5 + $0x1b14] sm:$0xf]
    %v2655 = vld [vmem:[#allocation5 + $0x1b18] sm:$0xf]
    %v2656 = vld [vmem:[#allocation5 + $0x1b1c] sm:$0xf]
    %v2657 = vld [vmem:[#allocation5 + $0x1b20] sm:$0xf]
    %v2658 = vld [vmem:[#allocation5 + $0x1b24] sm:$0xf]
    %v2659 = vld [vmem:[#allocation5 + $0x1b28] sm:$0xf]
    %v2660 = vld [vmem:[#allocation5 + $0x1b2c] sm:$0xf]
    %v2661 = vld [vmem:[#allocation5 + $0x1b30] sm:$0xf]
    %v2662 = vld [vmem:[#allocation5 + $0x1b34] sm:$0xf]
    %v2663 = vld [vmem:[#allocation5 + $0x1b38] sm:$0xf]
    %v2664 = vld [vmem:[#allocation5 + $0x1b3c] sm:$0xf]
    %v2665 = vld [vmem:[#allocation5 + $0x1b40] sm:$0xf]
    %v2666 = vld [vmem:[#allocation5 + $0x1b44] sm:$0xf]
    %v2667 = vld [vmem:[#allocation5 + $0x1b48] sm:$0xf]
    %v2668 = vld [vmem:[#allocation5 + $0x1b4c] sm:$0xf]
    %v2669 = vld [vmem:[#allocation5 + $0x1b50] sm:$0xf]
    %v2670 = vld [vmem:[#allocation5 + $0x1b54] sm:$0xf]
    %v2671 = vld [vmem:[#allocation5 + $0x1b58] sm:$0xf]
    %v2672 = vld [vmem:[#allocation5 + $0x1b5c] sm:$0xf]
    %v2673 = vld [vmem:[#allocation5 + $0x1b60] sm:$0xf]
    %v2674 = vld [vmem:[#allocation5 + $0x1b64] sm:$0xf]
    %v2675 = vld [vmem:[#allocation5 + $0x1b68] sm:$0xf]
    %v2676 = vld [vmem:[#allocation5 + $0x1b6c] sm:$0xf]
    %v2677 = vld [vmem:[#allocation5 + $0x1b70] sm:$0xf]
    %v2678 = vld [vmem:[#allocation5 + $0x1b74] sm:$0xf]
    %v2679 = vld [vmem:[#allocation5 + $0x1b78] sm:$0xf]
    %v2680 = vld [vmem:[#allocation5 + $0x1b7c] sm:$0xf]
    %v2681 = vld [vmem:[#allocation5 + $0x1b80] sm:$0xf]
    %v2682 = vld [vmem:[#allocation5 + $0x1b84] sm:$0xf]
    %v2683 = vld [vmem:[#allocation5 + $0x1b88] sm:$0xf]
    %v2684 = vld [vmem:[#allocation5 + $0x1b8c] sm:$0xf]
    %v2685 = vld [vmem:[#allocation5 + $0x1b90] sm:$0xf]
    %v2686 = vld [vmem:[#allocation5 + $0x1b94] sm:$0xf]
    %v2687 = vld [vmem:[#allocation5 + $0x1b98] sm:$0xf]
    %v2688 = vld [vmem:[#allocation5 + $0x1b9c] sm:$0xf]
    %v2689 = vld [vmem:[#allocation5 + $0x1ba0] sm:$0xf]
    %v2690 = vld [vmem:[#allocation5 + $0x1ba4] sm:$0xf]
    %v2691 = vld [vmem:[#allocation5 + $0x1ba8] sm:$0xf]
    %v2692 = vld [vmem:[#allocation5 + $0x1bac] sm:$0xf]
    %v2693 = vld [vmem:[#allocation5 + $0x1bb0] sm:$0xf]
    %v2694 = vld [vmem:[#allocation5 + $0x1bb4] sm:$0xf]
    %v2695 = vld [vmem:[#allocation5 + $0x1bb8] sm:$0xf]
    %v2696 = vld [vmem:[#allocation5 + $0x1bbc] sm:$0xf]
    %v2697 = vld [vmem:[#allocation5 + $0x1bc0] sm:$0xf]
    %v2698 = vld [vmem:[#allocation5 + $0x1bc4] sm:$0xf]
    %v2699 = vld [vmem:[#allocation5 + $0x1bc8] sm:$0xf]
    %v2700 = vld [vmem:[#allocation5 + $0x1bcc] sm:$0xf]
    %v2701 = vld [vmem:[#allocation5 + $0x1bd0] sm:$0xf]
    %v2702 = vld [vmem:[#allocation5 + $0x1bd4] sm:$0xf]
    %v2703 = vld [vmem:[#allocation5 + $0x1bd8] sm:$0xf]
    %v2704 = vld [vmem:[#allocation5 + $0x1bdc] sm:$0xf]
    %v2705 = vld [vmem:[#allocation5 + $0x1be0] sm:$0xf]
    %v2706 = vld [vmem:[#allocation5 + $0x1be4] sm:$0xf]
    %v2707 = vld [vmem:[#allocation5 + $0x1be8] sm:$0xf]
    %v2708 = vld [vmem:[#allocation5 + $0x1bec] sm:$0xf]
    %v2709 = vld [vmem:[#allocation5 + $0x1bf0] sm:$0xf]
    %v2710 = vld [vmem:[#allocation5 + $0x1bf4] sm:$0xf]
    %v2711 = vld [vmem:[#allocation5 + $0x1bf8] sm:$0xf]
    %v2712 = vld [vmem:[#allocation5 + $0x1bfc] sm:$0xf]
    %v2713 = vld [vmem:[#allocation5 + $0x1c00] sm:$0xf]
    %v2714 = vld [vmem:[#allocation5 + $0x1c04] sm:$0xf]
    %v2715 = vld [vmem:[#allocation5 + $0x1c08] sm:$0xf]
    %v2716 = vld [vmem:[#allocation5 + $0x1c0c] sm:$0xf]
    %v2717 = vld [vmem:[#allocation5 + $0x1c10] sm:$0xf]
    %v2718 = vld [vmem:[#allocation5 + $0x1c14] sm:$0xf]
    %v2719 = vld [vmem:[#allocation5 + $0x1c18] sm:$0xf]
    %v2720 = vld [vmem:[#allocation5 + $0x1c1c] sm:$0xf]
    %v4521 = vunpack.c.l.b16 %v921
    %v4522 = vunpack.c.l.b16 %v922
    %v4523 = vunpack.c.l.b16 %v923
    %v4524 = vunpack.c.l.b16 %v924
    %v4525 = vunpack.c.l.b16 %v925
    %v4526 = vunpack.c.l.b16 %v926
    %v4527 = vunpack.c.l.b16 %v927
    %v4528 = vunpack.c.l.b16 %v928
    %v4529 = vunpack.c.l.b16 %v929
    %v4530 = vunpack.c.l.b16 %v930
    %v4531 = vunpack.c.l.b16 %v931
    %v4532 = vunpack.c.l.b16 %v932
    %v4533 = vunpack.c.l.b16 %v933
    %v4534 = vunpack.c.l.b16 %v934
    %v4535 = vunpack.c.l.b16 %v935
    %v4536 = vunpack.c.l.b16 %v936
    %v4537 = vunpack.c.l.b16 %v937
    %v4538 = vunpack.c.l.b16 %v938
    %v4539 = vunpack.c.l.b16 %v939
    %v4540 = vunpack.c.l.b16 %v940
    %v4541 = vunpack.c.l.b16 %v941
    %v4542 = vunpack.c.l.b16 %v942
    %v4543 = vunpack.c.l.b16 %v943
    %v4544 = vunpack.c.l.b16 %v944
    %v4545 = vunpack.c.l.b16 %v945
    %v4546 = vunpack.c.l.b16 %v946
    %v4547 = vunpack.c.l.b16 %v947
    %v4548 = vunpack.c.l.b16 %v948
    %v4549 = vunpack.c.l.b16 %v949
    %v4550 = vunpack.c.l.b16 %v950
    %v4551 = vunpack.c.l.b16 %v951
    %v4552 = vunpack.c.l.b16 %v952
    %v4553 = vunpack.c.l.b16 %v953
    %v4554 = vunpack.c.l.b16 %v954
    %v4555 = vunpack.c.l.b16 %v955
    %v4556 = vunpack.c.l.b16 %v956
    %v4557 = vunpack.c.l.b16 %v957
    %v4558 = vunpack.c.l.b16 %v958
    %v4559 = vunpack.c.l.b16 %v959
    %v4560 = vunpack.c.l.b16 %v960
    %v4561 = vunpack.c.l.b16 %v961
    %v4562 = vunpack.c.l.b16 %v962
    %v4563 = vunpack.c.l.b16 %v963
    %v4564 = vunpack.c.l.b16 %v964
    %v4565 = vunpack.c.l.b16 %v965
    %v4566 = vunpack.c.l.b16 %v966
    %v4567 = vunpack.c.l.b16 %v967
    %v4568 = vunpack.c.l.b16 %v968
    %v4569 = vunpack.c.l.b16 %v969
    %v4570 = vunpack.c.l.b16 %v970
    %v4571 = vunpack.c.l.b16 %v971
    %v4572 = vunpack.c.l.b16 %v972
    %v4573 = vunpack.c.l.b16 %v973
    %v4574 = vunpack.c.l.b16 %v974
    %v4575 = vunpack.c.l.b16 %v975
    %v4576 = vunpack.c.l.b16 %v976
    %v4577 = vunpack.c.l.b16 %v977
    %v4578 = vunpack.c.l.b16 %v978
    %v4579 = vunpack.c.l.b16 %v979
    %v4580 = vunpack.c.l.b16 %v980
    %v4581 = vunpack.c.l.b16 %v981
    %v4582 = vunpack.c.l.b16 %v982
    %v4583 = vunpack.c.l.b16 %v983
    %v4584 = vunpack.c.l.b16 %v984
    %v4585 = vunpack.c.l.b16 %v985
    %v4586 = vunpack.c.l.b16 %v986
    %v4587 = vunpack.c.l.b16 %v987
    %v4588 = vunpack.c.l.b16 %v988
    %v4589 = vunpack.c.l.b16 %v989
    %v4590 = vunpack.c.l.b16 %v990
    %v4591 = vunpack.c.l.b16 %v991
    %v4592 = vunpack.c.l.b16 %v992
    %v4593 = vunpack.c.l.b16 %v993
    %v4594 = vunpack.c.l.b16 %v994
    %v4595 = vunpack.c.l.b16 %v995
    %v4596 = vunpack.c.l.b16 %v996
    %v4597 = vunpack.c.l.b16 %v997
    %v4598 = vunpack.c.l.b16 %v998
    %v4599 = vunpack.c.l.b16 %v999
    %v4600 = vunpack.c.l.b16 %v1000
    %v4601 = vunpack.c.l.b16 %v1001
    %v4602 = vunpack.c.l.b16 %v1002
    %v4603 = vunpack.c.l.b16 %v1003
    %v4604 = vunpack.c.l.b16 %v1004
    %v4605 = vunpack.c.l.b16 %v1005
    %v4606 = vunpack.c.l.b16 %v1006
    %v4607 = vunpack.c.l.b16 %v1007
    %v4608 = vunpack.c.l.b16 %v1008
    %v4609 = vunpack.c.l.b16 %v1009
    %v4610 = vunpack.c.l.b16 %v1010
    %v4611 = vunpack.c.l.b16 %v1011
    %v4612 = vunpack.c.l.b16 %v1012
    %v4613 = vunpack.c.l.b16 %v1013
    %v4614 = vunpack.c.l.b16 %v1014
    %v4615 = vunpack.c.l.b16 %v1015
    %v4616 = vunpack.c.l.b16 %v1016
    %v4617 = vunpack.c.l.b16 %v1017
    %v4618 = vunpack.c.l.b16 %v1018
    %v4619 = vunpack.c.l.b16 %v1019
    %v4620 = vunpack.c.l.b16 %v1020
    %v4621 = vunpack.c.l.b16 %v1021
    %v4622 = vunpack.c.l.b16 %v1022
    %v4623 = vunpack.c.l.b16 %v1023
    %v4624 = vunpack.c.l.b16 %v1024
    %v4625 = vunpack.c.l.b16 %v1025
    %v4626 = vunpack.c.l.b16 %v1026
    %v4627 = vunpack.c.l.b16 %v1027
    %v4628 = vunpack.c.l.b16 %v1028
    %v4629 = vunpack.c.l.b16 %v1029
    %v4630 = vunpack.c.l.b16 %v1030
    %v4631 = vunpack.c.l.b16 %v1031
    %v4632 = vunpack.c.l.b16 %v1032
    %v4633 = vunpack.c.l.b16 %v1033
    %v4634 = vunpack.c.l.b16 %v1034
    %v4635 = vunpack.c.l.b16 %v1035
    %v4636 = vunpack.c.l.b16 %v1036
    %v4637 = vunpack.c.l.b16 %v1037
    %v4638 = vunpack.c.l.b16 %v1038
    %v4639 = vunpack.c.l.b16 %v1039
    %v4640 = vunpack.c.l.b16 %v1040
    %v4641 = vunpack.c.l.b16 %v1041
    %v4642 = vunpack.c.l.b16 %v1042
    %v4643 = vunpack.c.l.b16 %v1043
    %v4644 = vunpack.c.l.b16 %v1044
    %v4645 = vunpack.c.l.b16 %v1045
    %v4646 = vunpack.c.l.b16 %v1046
    %v4647 = vunpack.c.l.b16 %v1047
    %v4648 = vunpack.c.l.b16 %v1048
    %v4649 = vunpack.c.l.b16 %v1049
    %v4650 = vunpack.c.l.b16 %v1050
    %v4651 = vunpack.c.l.b16 %v1051
    %v4652 = vunpack.c.l.b16 %v1052
    %v4653 = vunpack.c.l.b16 %v1053
    %v4654 = vunpack.c.l.b16 %v1054
    %v4655 = vunpack.c.l.b16 %v1055
    %v4656 = vunpack.c.l.b16 %v1056
    %v4657 = vunpack.c.l.b16 %v1057
    %v4658 = vunpack.c.l.b16 %v1058
    %v4659 = vunpack.c.l.b16 %v1059
    %v4660 = vunpack.c.l.b16 %v1060
    %v4661 = vunpack.c.l.b16 %v1061
    %v4662 = vunpack.c.l.b16 %v1062
    %v4663 = vunpack.c.l.b16 %v1063
    %v4664 = vunpack.c.l.b16 %v1064
    %v4665 = vunpack.c.l.b16 %v1065
    %v4666 = vunpack.c.l.b16 %v1066
    %v4667 = vunpack.c.l.b16 %v1067
    %v4668 = vunpack.c.l.b16 %v1068
    %v4669 = vunpack.c.l.b16 %v1069
    %v4670 = vunpack.c.l.b16 %v1070
    %v4671 = vunpack.c.l.b16 %v1071
    %v4672 = vunpack.c.l.b16 %v1072
    %v4673 = vunpack.c.l.b16 %v1073
    %v4674 = vunpack.c.l.b16 %v1074
    %v4675 = vunpack.c.l.b16 %v1075
    %v4676 = vunpack.c.l.b16 %v1076
    %v4677 = vunpack.c.l.b16 %v1077
    %v4678 = vunpack.c.l.b16 %v1078
    %v4679 = vunpack.c.l.b16 %v1079
    %v4680 = vunpack.c.l.b16 %v1080
    %v4681 = vunpack.c.l.b16 %v1081
    %v4682 = vunpack.c.l.b16 %v1082
    %v4683 = vunpack.c.l.b16 %v1083
    %v4684 = vunpack.c.l.b16 %v1084
    %v4685 = vunpack.c.l.b16 %v1085
    %v4686 = vunpack.c.l.b16 %v1086
    %v4687 = vunpack.c.l.b16 %v1087
    %v4688 = vunpack.c.l.b16 %v1088
    %v4689 = vunpack.c.l.b16 %v1089
    %v4690 = vunpack.c.l.b16 %v1090
    %v4691 = vunpack.c.l.b16 %v1091
    %v4692 = vunpack.c.l.b16 %v1092
    %v4693 = vunpack.c.l.b16 %v1093
    %v4694 = vunpack.c.l.b16 %v1094
    %v4695 = vunpack.c.l.b16 %v1095
    %v4696 = vunpack.c.l.b16 %v1096
    %v4697 = vunpack.c.l.b16 %v1097
    %v4698 = vunpack.c.l.b16 %v1098
    %v4699 = vunpack.c.l.b16 %v1099
    %v4700 = vunpack.c.l.b16 %v1100
    %v4701 = vunpack.c.l.b16 %v1101
    %v4702 = vunpack.c.l.b16 %v1102
    %v4703 = vunpack.c.l.b16 %v1103
    %v4704 = vunpack.c.l.b16 %v1104
    %v4705 = vunpack.c.l.b16 %v1105
    %v4706 = vunpack.c.l.b16 %v1106
    %v4707 = vunpack.c.l.b16 %v1107
    %v4708 = vunpack.c.l.b16 %v1108
    %v4709 = vunpack.c.l.b16 %v1109
    %v4710 = vunpack.c.l.b16 %v1110
    %v4711 = vunpack.c.l.b16 %v1111
    %v4712 = vunpack.c.l.b16 %v1112
    %v4713 = vunpack.c.l.b16 %v1113
    %v4714 = vunpack.c.l.b16 %v1114
    %v4715 = vunpack.c.l.b16 %v1115
    %v4716 = vunpack.c.l.b16 %v1116
    %v4717 = vunpack.c.l.b16 %v1117
    %v4718 = vunpack.c.l.b16 %v1118
    %v4719 = vunpack.c.l.b16 %v1119
    %v4720 = vunpack.c.l.b16 %v1120
    %v4721 = vunpack.c.l.b16 %v1121
    %v4722 = vunpack.c.l.b16 %v1122
    %v4723 = vunpack.c.l.b16 %v1123
    %v4724 = vunpack.c.l.b16 %v1124
    %v4725 = vunpack.c.l.b16 %v1125
    %v4726 = vunpack.c.l.b16 %v1126
    %v4727 = vunpack.c.l.b16 %v1127
    %v4728 = vunpack.c.l.b16 %v1128
    %v4729 = vunpack.c.l.b16 %v1129
    %v4730 = vunpack.c.l.b16 %v1130
    %v4731 = vunpack.c.l.b16 %v1131
    %v4732 = vunpack.c.l.b16 %v1132
    %v4733 = vunpack.c.l.b16 %v1133
    %v4734 = vunpack.c.l.b16 %v1134
    %v4735 = vunpack.c.l.b16 %v1135
    %v4736 = vunpack.c.l.b16 %v1136
    %v4737 = vunpack.c.l.b16 %v1137
    %v4738 = vunpack.c.l.b16 %v1138
    %v4739 = vunpack.c.l.b16 %v1139
    %v4740 = vunpack.c.l.b16 %v1140
    %v4741 = vunpack.c.l.b16 %v1141
    %v4742 = vunpack.c.l.b16 %v1142
    %v4743 = vunpack.c.l.b16 %v1143
    %v4744 = vunpack.c.l.b16 %v1144
    %v4745 = vunpack.c.l.b16 %v1145
    %v4746 = vunpack.c.l.b16 %v1146
    %v4747 = vunpack.c.l.b16 %v1147
    %v4748 = vunpack.c.l.b16 %v1148
    %v4749 = vunpack.c.l.b16 %v1149
    %v4750 = vunpack.c.l.b16 %v1150
    %v4751 = vunpack.c.l.b16 %v1151
    %v4752 = vunpack.c.l.b16 %v1152
    %v4753 = vunpack.c.l.b16 %v1153
    %v4754 = vunpack.c.l.b16 %v1154
    %v4755 = vunpack.c.l.b16 %v1155
    %v4756 = vunpack.c.l.b16 %v1156
    %v4757 = vunpack.c.l.b16 %v1157
    %v4758 = vunpack.c.l.b16 %v1158
    %v4759 = vunpack.c.l.b16 %v1159
    %v4760 = vunpack.c.l.b16 %v1160
    %v4761 = vunpack.c.l.b16 %v1161
    %v4762 = vunpack.c.l.b16 %v1162
    %v4763 = vunpack.c.l.b16 %v1163
    %v4764 = vunpack.c.l.b16 %v1164
    %v4765 = vunpack.c.l.b16 %v1165
    %v4766 = vunpack.c.l.b16 %v1166
    %v4767 = vunpack.c.l.b16 %v1167
    %v4768 = vunpack.c.l.b16 %v1168
    %v4769 = vunpack.c.l.b16 %v1169
    %v4770 = vunpack.c.l.b16 %v1170
    %v4771 = vunpack.c.l.b16 %v1171
    %v4772 = vunpack.c.l.b16 %v1172
    %v4773 = vunpack.c.l.b16 %v1173
    %v4774 = vunpack.c.l.b16 %v1174
    %v4775 = vunpack.c.l.b16 %v1175
    %v4776 = vunpack.c.l.b16 %v1176
    %v4777 = vunpack.c.l.b16 %v1177
    %v4778 = vunpack.c.l.b16 %v1178
    %v4779 = vunpack.c.l.b16 %v1179
    %v4780 = vunpack.c.l.b16 %v1180
    %v4781 = vunpack.c.l.b16 %v1181
    %v4782 = vunpack.c.l.b16 %v1182
    %v4783 = vunpack.c.l.b16 %v1183
    %v4784 = vunpack.c.l.b16 %v1184
    %v4785 = vunpack.c.l.b16 %v1185
    %v4786 = vunpack.c.l.b16 %v1186
    %v4787 = vunpack.c.l.b16 %v1187
    %v4788 = vunpack.c.l.b16 %v1188
    %v4789 = vunpack.c.l.b16 %v1189
    %v4790 = vunpack.c.l.b16 %v1190
    %v4791 = vunpack.c.l.b16 %v1191
    %v4792 = vunpack.c.l.b16 %v1192
    %v4793 = vunpack.c.l.b16 %v1193
    %v4794 = vunpack.c.l.b16 %v1194
    %v4795 = vunpack.c.l.b16 %v1195
    %v4796 = vunpack.c.l.b16 %v1196
    %v4797 = vunpack.c.l.b16 %v1197
    %v4798 = vunpack.c.l.b16 %v1198
    %v4799 = vunpack.c.l.b16 %v1199
    %v4800 = vunpack.c.l.b16 %v1200
    %v4801 = vunpack.c.l.b16 %v1201
    %v4802 = vunpack.c.l.b16 %v1202
    %v4803 = vunpack.c.l.b16 %v1203
    %v4804 = vunpack.c.l.b16 %v1204
    %v4805 = vunpack.c.l.b16 %v1205
    %v4806 = vunpack.c.l.b16 %v1206
    %v4807 = vunpack.c.l.b16 %v1207
    %v4808 = vunpack.c.l.b16 %v1208
    %v4809 = vunpack.c.l.b16 %v1209
    %v4810 = vunpack.c.l.b16 %v1210
    %v4811 = vunpack.c.l.b16 %v1211
    %v4812 = vunpack.c.l.b16 %v1212
    %v4813 = vunpack.c.l.b16 %v1213
    %v4814 = vunpack.c.l.b16 %v1214
    %v4815 = vunpack.c.l.b16 %v1215
    %v4816 = vunpack.c.l.b16 %v1216
    %v4817 = vunpack.c.l.b16 %v1217
    %v4818 = vunpack.c.l.b16 %v1218
    %v4819 = vunpack.c.l.b16 %v1219
    %v4820 = vunpack.c.l.b16 %v1220
    %v4821 = vunpack.c.l.b16 %v1221
    %v4822 = vunpack.c.l.b16 %v1222
    %v4823 = vunpack.c.l.b16 %v1223
    %v4824 = vunpack.c.l.b16 %v1224
    %v4825 = vunpack.c.l.b16 %v1225
    %v4826 = vunpack.c.l.b16 %v1226
    %v4827 = vunpack.c.l.b16 %v1227
    %v4828 = vunpack.c.l.b16 %v1228
    %v4829 = vunpack.c.l.b16 %v1229
    %v4830 = vunpack.c.l.b16 %v1230
    %v4831 = vunpack.c.l.b16 %v1231
    %v4832 = vunpack.c.l.b16 %v1232
    %v4833 = vunpack.c.l.b16 %v1233
    %v4834 = vunpack.c.l.b16 %v1234
    %v4835 = vunpack.c.l.b16 %v1235
    %v4836 = vunpack.c.l.b16 %v1236
    %v4837 = vunpack.c.l.b16 %v1237
    %v4838 = vunpack.c.l.b16 %v1238
    %v4839 = vunpack.c.l.b16 %v1239
    %v4840 = vunpack.c.l.b16 %v1240
    %v4841 = vunpack.c.l.b16 %v1241
    %v4842 = vunpack.c.l.b16 %v1242
    %v4843 = vunpack.c.l.b16 %v1243
    %v4844 = vunpack.c.l.b16 %v1244
    %v4845 = vunpack.c.l.b16 %v1245
    %v4846 = vunpack.c.l.b16 %v1246
    %v4847 = vunpack.c.l.b16 %v1247
    %v4848 = vunpack.c.l.b16 %v1248
    %v4849 = vunpack.c.l.b16 %v1249
    %v4850 = vunpack.c.l.b16 %v1250
    %v4851 = vunpack.c.l.b16 %v1251
    %v4852 = vunpack.c.l.b16 %v1252
    %v4853 = vunpack.c.l.b16 %v1253
    %v4854 = vunpack.c.l.b16 %v1254
    %v4855 = vunpack.c.l.b16 %v1255
    %v4856 = vunpack.c.l.b16 %v1256
    %v4857 = vunpack.c.l.b16 %v1257
    %v4858 = vunpack.c.l.b16 %v1258
    %v4859 = vunpack.c.l.b16 %v1259
    %v4860 = vunpack.c.l.b16 %v1260
    %v4861 = vunpack.c.l.b16 %v1261
    %v4862 = vunpack.c.l.b16 %v1262
    %v4863 = vunpack.c.l.b16 %v1263
    %v4864 = vunpack.c.l.b16 %v1264
    %v4865 = vunpack.c.l.b16 %v1265
    %v4866 = vunpack.c.l.b16 %v1266
    %v4867 = vunpack.c.l.b16 %v1267
    %v4868 = vunpack.c.l.b16 %v1268
    %v4869 = vunpack.c.l.b16 %v1269
    %v4870 = vunpack.c.l.b16 %v1270
    %v4871 = vunpack.c.l.b16 %v1271
    %v4872 = vunpack.c.l.b16 %v1272
    %v4873 = vunpack.c.l.b16 %v1273
    %v4874 = vunpack.c.l.b16 %v1274
    %v4875 = vunpack.c.l.b16 %v1275
    %v4876 = vunpack.c.l.b16 %v1276
    %v4877 = vunpack.c.l.b16 %v1277
    %v4878 = vunpack.c.l.b16 %v1278
    %v4879 = vunpack.c.l.b16 %v1279
    %v4880 = vunpack.c.l.b16 %v1280
    %v4881 = vunpack.c.l.b16 %v1281
    %v4882 = vunpack.c.l.b16 %v1282
    %v4883 = vunpack.c.l.b16 %v1283
    %v4884 = vunpack.c.l.b16 %v1284
    %v4885 = vunpack.c.l.b16 %v1285
    %v4886 = vunpack.c.l.b16 %v1286
    %v4887 = vunpack.c.l.b16 %v1287
    %v4888 = vunpack.c.l.b16 %v1288
    %v4889 = vunpack.c.l.b16 %v1289
    %v4890 = vunpack.c.l.b16 %v1290
    %v4891 = vunpack.c.l.b16 %v1291
    %v4892 = vunpack.c.l.b16 %v1292
    %v4893 = vunpack.c.l.b16 %v1293
    %v4894 = vunpack.c.l.b16 %v1294
    %v4895 = vunpack.c.l.b16 %v1295
    %v4896 = vunpack.c.l.b16 %v1296
    %v4897 = vunpack.c.l.b16 %v1297
    %v4898 = vunpack.c.l.b16 %v1298
    %v4899 = vunpack.c.l.b16 %v1299
    %v4900 = vunpack.c.l.b16 %v1300
    %v4901 = vunpack.c.l.b16 %v1301
    %v4902 = vunpack.c.l.b16 %v1302
    %v4903 = vunpack.c.l.b16 %v1303
    %v4904 = vunpack.c.l.b16 %v1304
    %v4905 = vunpack.c.l.b16 %v1305
    %v4906 = vunpack.c.l.b16 %v1306
    %v4907 = vunpack.c.l.b16 %v1307
    %v4908 = vunpack.c.l.b16 %v1308
    %v4909 = vunpack.c.l.b16 %v1309
    %v4910 = vunpack.c.l.b16 %v1310
    %v4911 = vunpack.c.l.b16 %v1311
    %v4912 = vunpack.c.l.b16 %v1312
    %v4913 = vunpack.c.l.b16 %v1313
    %v4914 = vunpack.c.l.b16 %v1314
    %v4915 = vunpack.c.l.b16 %v1315
    %v4916 = vunpack.c.l.b16 %v1316
    %v4917 = vunpack.c.l.b16 %v1317
    %v4918 = vunpack.c.l.b16 %v1318
    %v4919 = vunpack.c.l.b16 %v1319
    %v4920 = vunpack.c.l.b16 %v1320
    %v4921 = vunpack.c.l.b16 %v1321
    %v4922 = vunpack.c.l.b16 %v1322
    %v4923 = vunpack.c.l.b16 %v1323
    %v4924 = vunpack.c.l.b16 %v1324
    %v4925 = vunpack.c.l.b16 %v1325
    %v4926 = vunpack.c.l.b16 %v1326
    %v4927 = vunpack.c.l.b16 %v1327
    %v4928 = vunpack.c.l.b16 %v1328
    %v4929 = vunpack.c.l.b16 %v1329
    %v4930 = vunpack.c.l.b16 %v1330
    %v4931 = vunpack.c.l.b16 %v1331
    %v4932 = vunpack.c.l.b16 %v1332
    %v4933 = vunpack.c.l.b16 %v1333
    %v4934 = vunpack.c.l.b16 %v1334
    %v4935 = vunpack.c.l.b16 %v1335
    %v4936 = vunpack.c.l.b16 %v1336
    %v4937 = vunpack.c.l.b16 %v1337
    %v4938 = vunpack.c.l.b16 %v1338
    %v4939 = vunpack.c.l.b16 %v1339
    %v4940 = vunpack.c.l.b16 %v1340
    %v4941 = vunpack.c.l.b16 %v1341
    %v4942 = vunpack.c.l.b16 %v1342
    %v4943 = vunpack.c.l.b16 %v1343
    %v4944 = vunpack.c.l.b16 %v1344
    %v4945 = vunpack.c.l.b16 %v1345
    %v4946 = vunpack.c.l.b16 %v1346
    %v4947 = vunpack.c.l.b16 %v1347
    %v4948 = vunpack.c.l.b16 %v1348
    %v4949 = vunpack.c.l.b16 %v1349
    %v4950 = vunpack.c.l.b16 %v1350
    %v4951 = vunpack.c.l.b16 %v1351
    %v4952 = vunpack.c.l.b16 %v1352
    %v4953 = vunpack.c.l.b16 %v1353
    %v4954 = vunpack.c.l.b16 %v1354
    %v4955 = vunpack.c.l.b16 %v1355
    %v4956 = vunpack.c.l.b16 %v1356
    %v4957 = vunpack.c.l.b16 %v1357
    %v4958 = vunpack.c.l.b16 %v1358
    %v4959 = vunpack.c.l.b16 %v1359
    %v4960 = vunpack.c.l.b16 %v1360
    %v4961 = vunpack.c.l.b16 %v1361
    %v4962 = vunpack.c.l.b16 %v1362
    %v4963 = vunpack.c.l.b16 %v1363
    %v4964 = vunpack.c.l.b16 %v1364
    %v4965 = vunpack.c.l.b16 %v1365
    %v4966 = vunpack.c.l.b16 %v1366
    %v4967 = vunpack.c.l.b16 %v1367
    %v4968 = vunpack.c.l.b16 %v1368
    %v4969 = vunpack.c.l.b16 %v1369
    %v4970 = vunpack.c.l.b16 %v1370
    %v4971 = vunpack.c.l.b16 %v1371
    %v4972 = vunpack.c.l.b16 %v1372
    %v4973 = vunpack.c.l.b16 %v1373
    %v4974 = vunpack.c.l.b16 %v1374
    %v4975 = vunpack.c.l.b16 %v1375
    %v4976 = vunpack.c.l.b16 %v1376
    %v4977 = vunpack.c.l.b16 %v1377
    %v4978 = vunpack.c.l.b16 %v1378
    %v4979 = vunpack.c.l.b16 %v1379
    %v4980 = vunpack.c.l.b16 %v1380
    %v4981 = vunpack.c.l.b16 %v1381
    %v4982 = vunpack.c.l.b16 %v1382
    %v4983 = vunpack.c.l.b16 %v1383
    %v4984 = vunpack.c.l.b16 %v1384
    %v4985 = vunpack.c.l.b16 %v1385
    %v4986 = vunpack.c.l.b16 %v1386
    %v4987 = vunpack.c.l.b16 %v1387
    %v4988 = vunpack.c.l.b16 %v1388
    %v4989 = vunpack.c.l.b16 %v1389
    %v4990 = vunpack.c.l.b16 %v1390
    %v4991 = vunpack.c.l.b16 %v1391
    %v4992 = vunpack.c.l.b16 %v1392
    %v4993 = vunpack.c.l.b16 %v1393
    %v4994 = vunpack.c.l.b16 %v1394
    %v4995 = vunpack.c.l.b16 %v1395
    %v4996 = vunpack.c.l.b16 %v1396
    %v4997 = vunpack.c.l.b16 %v1397
    %v4998 = vunpack.c.l.b16 %v1398
    %v4999 = vunpack.c.l.b16 %v1399
    %v5000 = vunpack.c.l.b16 %v1400
    %v5001 = vunpack.c.l.b16 %v1401
    %v5002 = vunpack.c.l.b16 %v1402
    %v5003 = vunpack.c.l.b16 %v1403
    %v5004 = vunpack.c.l.b16 %v1404
    %v5005 = vunpack.c.l.b16 %v1405
    %v5006 = vunpack.c.l.b16 %v1406
    %v5007 = vunpack.c.l.b16 %v1407
    %v5008 = vunpack.c.l.b16 %v1408
    %v5009 = vunpack.c.l.b16 %v1409
    %v5010 = vunpack.c.l.b16 %v1410
    %v5011 = vunpack.c.l.b16 %v1411
    %v5012 = vunpack.c.l.b16 %v1412
    %v5013 = vunpack.c.l.b16 %v1413
    %v5014 = vunpack.c.l.b16 %v1414
    %v5015 = vunpack.c.l.b16 %v1415
    %v5016 = vunpack.c.l.b16 %v1416
    %v5017 = vunpack.c.l.b16 %v1417
    %v5018 = vunpack.c.l.b16 %v1418
    %v5019 = vunpack.c.l.b16 %v1419
    %v5020 = vunpack.c.l.b16 %v1420
    %v5021 = vunpack.c.l.b16 %v1421
    %v5022 = vunpack.c.l.b16 %v1422
    %v5023 = vunpack.c.l.b16 %v1423
    %v5024 = vunpack.c.l.b16 %v1424
    %v5025 = vunpack.c.l.b16 %v1425
    %v5026 = vunpack.c.l.b16 %v1426
    %v5027 = vunpack.c.l.b16 %v1427
    %v5028 = vunpack.c.l.b16 %v1428
    %v5029 = vunpack.c.l.b16 %v1429
    %v5030 = vunpack.c.l.b16 %v1430
    %v5031 = vunpack.c.l.b16 %v1431
    %v5032 = vunpack.c.l.b16 %v1432
    %v5033 = vunpack.c.l.b16 %v1433
    %v5034 = vunpack.c.l.b16 %v1434
    %v5035 = vunpack.c.l.b16 %v1435
    %v5036 = vunpack.c.l.b16 %v1436
    %v5037 = vunpack.c.l.b16 %v1437
    %v5038 = vunpack.c.l.b16 %v1438
    %v5039 = vunpack.c.l.b16 %v1439
    %v5040 = vunpack.c.l.b16 %v1440
    %v5041 = vunpack.c.l.b16 %v1441
    %v5042 = vunpack.c.l.b16 %v1442
    %v5043 = vunpack.c.l.b16 %v1443
    %v5044 = vunpack.c.l.b16 %v1444
    %v5045 = vunpack.c.l.b16 %v1445
    %v5046 = vunpack.c.l.b16 %v1446
    %v5047 = vunpack.c.l.b16 %v1447
    %v5048 = vunpack.c.l.b16 %v1448
    %v5049 = vunpack.c.l.b16 %v1449
    %v5050 = vunpack.c.l.b16 %v1450
    %v5051 = vunpack.c.l.b16 %v1451
    %v5052 = vunpack.c.l.b16 %v1452
    %v5053 = vunpack.c.l.b16 %v1453
    %v5054 = vunpack.c.l.b16 %v1454
    %v5055 = vunpack.c.l.b16 %v1455
    %v5056 = vunpack.c.l.b16 %v1456
    %v5057 = vunpack.c.l.b16 %v1457
    %v5058 = vunpack.c.l.b16 %v1458
    %v5059 = vunpack.c.l.b16 %v1459
    %v5060 = vunpack.c.l.b16 %v1460
    %v5061 = vunpack.c.l.b16 %v1461
    %v5062 = vunpack.c.l.b16 %v1462
    %v5063 = vunpack.c.l.b16 %v1463
    %v5064 = vunpack.c.l.b16 %v1464
    %v5065 = vunpack.c.l.b16 %v1465
    %v5066 = vunpack.c.l.b16 %v1466
    %v5067 = vunpack.c.l.b16 %v1467
    %v5068 = vunpack.c.l.b16 %v1468
    %v5069 = vunpack.c.l.b16 %v1469
    %v5070 = vunpack.c.l.b16 %v1470
    %v5071 = vunpack.c.l.b16 %v1471
    %v5072 = vunpack.c.l.b16 %v1472
    %v5073 = vunpack.c.l.b16 %v1473
    %v5074 = vunpack.c.l.b16 %v1474
    %v5075 = vunpack.c.l.b16 %v1475
    %v5076 = vunpack.c.l.b16 %v1476
    %v5077 = vunpack.c.l.b16 %v1477
    %v5078 = vunpack.c.l.b16 %v1478
    %v5079 = vunpack.c.l.b16 %v1479
    %v5080 = vunpack.c.l.b16 %v1480
    %v5081 = vunpack.c.l.b16 %v1481
    %v5082 = vunpack.c.l.b16 %v1482
    %v5083 = vunpack.c.l.b16 %v1483
    %v5084 = vunpack.c.l.b16 %v1484
    %v5085 = vunpack.c.l.b16 %v1485
    %v5086 = vunpack.c.l.b16 %v1486
    %v5087 = vunpack.c.l.b16 %v1487
    %v5088 = vunpack.c.l.b16 %v1488
    %v5089 = vunpack.c.l.b16 %v1489
    %v5090 = vunpack.c.l.b16 %v1490
    %v5091 = vunpack.c.l.b16 %v1491
    %v5092 = vunpack.c.l.b16 %v1492
    %v5093 = vunpack.c.l.b16 %v1493
    %v5094 = vunpack.c.l.b16 %v1494
    %v5095 = vunpack.c.l.b16 %v1495
    %v5096 = vunpack.c.l.b16 %v1496
    %v5097 = vunpack.c.l.b16 %v1497
    %v5098 = vunpack.c.l.b16 %v1498
    %v5099 = vunpack.c.l.b16 %v1499
    %v5100 = vunpack.c.l.b16 %v1500
    %v5101 = vunpack.c.l.b16 %v1501
    %v5102 = vunpack.c.l.b16 %v1502
    %v5103 = vunpack.c.l.b16 %v1503
    %v5104 = vunpack.c.l.b16 %v1504
    %v5105 = vunpack.c.l.b16 %v1505
    %v5106 = vunpack.c.l.b16 %v1506
    %v5107 = vunpack.c.l.b16 %v1507
    %v5108 = vunpack.c.l.b16 %v1508
    %v5109 = vunpack.c.l.b16 %v1509
    %v5110 = vunpack.c.l.b16 %v1510
    %v5111 = vunpack.c.l.b16 %v1511
    %v5112 = vunpack.c.l.b16 %v1512
    %v5113 = vunpack.c.l.b16 %v1513
    %v5114 = vunpack.c.l.b16 %v1514
    %v5115 = vunpack.c.l.b16 %v1515
    %v5116 = vunpack.c.l.b16 %v1516
    %v5117 = vunpack.c.l.b16 %v1517
    %v5118 = vunpack.c.l.b16 %v1518
    %v5119 = vunpack.c.l.b16 %v1519
    %v5120 = vunpack.c.l.b16 %v1520
    %v5121 = vunpack.c.l.b16 %v1521
    %v5122 = vunpack.c.l.b16 %v1522
    %v5123 = vunpack.c.l.b16 %v1523
    %v5124 = vunpack.c.l.b16 %v1524
    %v5125 = vunpack.c.l.b16 %v1525
    %v5126 = vunpack.c.l.b16 %v1526
    %v5127 = vunpack.c.l.b16 %v1527
    %v5128 = vunpack.c.l.b16 %v1528
    %v5129 = vunpack.c.l.b16 %v1529
    %v5130 = vunpack.c.l.b16 %v1530
    %v5131 = vunpack.c.l.b16 %v1531
    %v5132 = vunpack.c.l.b16 %v1532
    %v5133 = vunpack.c.l.b16 %v1533
    %v5134 = vunpack.c.l.b16 %v1534
    %v5135 = vunpack.c.l.b16 %v1535
    %v5136 = vunpack.c.l.b16 %v1536
    %v5137 = vunpack.c.l.b16 %v1537
    %v5138 = vunpack.c.l.b16 %v1538
    %v5139 = vunpack.c.l.b16 %v1539
    %v5140 = vunpack.c.l.b16 %v1540
    %v5141 = vunpack.c.l.b16 %v1541
    %v5142 = vunpack.c.l.b16 %v1542
    %v5143 = vunpack.c.l.b16 %v1543
    %v5144 = vunpack.c.l.b16 %v1544
    %v5145 = vunpack.c.l.b16 %v1545
    %v5146 = vunpack.c.l.b16 %v1546
    %v5147 = vunpack.c.l.b16 %v1547
    %v5148 = vunpack.c.l.b16 %v1548
    %v5149 = vunpack.c.l.b16 %v1549
    %v5150 = vunpack.c.l.b16 %v1550
    %v5151 = vunpack.c.l.b16 %v1551
    %v5152 = vunpack.c.l.b16 %v1552
    %v5153 = vunpack.c.l.b16 %v1553
    %v5154 = vunpack.c.l.b16 %v1554
    %v5155 = vunpack.c.l.b16 %v1555
    %v5156 = vunpack.c.l.b16 %v1556
    %v5157 = vunpack.c.l.b16 %v1557
    %v5158 = vunpack.c.l.b16 %v1558
    %v5159 = vunpack.c.l.b16 %v1559
    %v5160 = vunpack.c.l.b16 %v1560
    %v5161 = vunpack.c.l.b16 %v1561
    %v5162 = vunpack.c.l.b16 %v1562
    %v5163 = vunpack.c.l.b16 %v1563
    %v5164 = vunpack.c.l.b16 %v1564
    %v5165 = vunpack.c.l.b16 %v1565
    %v5166 = vunpack.c.l.b16 %v1566
    %v5167 = vunpack.c.l.b16 %v1567
    %v5168 = vunpack.c.l.b16 %v1568
    %v5169 = vunpack.c.l.b16 %v1569
    %v5170 = vunpack.c.l.b16 %v1570
    %v5171 = vunpack.c.l.b16 %v1571
    %v5172 = vunpack.c.l.b16 %v1572
    %v5173 = vunpack.c.l.b16 %v1573
    %v5174 = vunpack.c.l.b16 %v1574
    %v5175 = vunpack.c.l.b16 %v1575
    %v5176 = vunpack.c.l.b16 %v1576
    %v5177 = vunpack.c.l.b16 %v1577
    %v5178 = vunpack.c.l.b16 %v1578
    %v5179 = vunpack.c.l.b16 %v1579
    %v5180 = vunpack.c.l.b16 %v1580
    %v5181 = vunpack.c.l.b16 %v1581
    %v5182 = vunpack.c.l.b16 %v1582
    %v5183 = vunpack.c.l.b16 %v1583
    %v5184 = vunpack.c.l.b16 %v1584
    %v5185 = vunpack.c.l.b16 %v1585
    %v5186 = vunpack.c.l.b16 %v1586
    %v5187 = vunpack.c.l.b16 %v1587
    %v5188 = vunpack.c.l.b16 %v1588
    %v5189 = vunpack.c.l.b16 %v1589
    %v5190 = vunpack.c.l.b16 %v1590
    %v5191 = vunpack.c.l.b16 %v1591
    %v5192 = vunpack.c.l.b16 %v1592
    %v5193 = vunpack.c.l.b16 %v1593
    %v5194 = vunpack.c.l.b16 %v1594
    %v5195 = vunpack.c.l.b16 %v1595
    %v5196 = vunpack.c.l.b16 %v1596
    %v5197 = vunpack.c.l.b16 %v1597
    %v5198 = vunpack.c.l.b16 %v1598
    %v5199 = vunpack.c.l.b16 %v1599
    %v5200 = vunpack.c.l.b16 %v1600
    %v5201 = vunpack.c.l.b16 %v1601
    %v5202 = vunpack.c.l.b16 %v1602
    %v5203 = vunpack.c.l.b16 %v1603
    %v5204 = vunpack.c.l.b16 %v1604
    %v5205 = vunpack.c.l.b16 %v1605
    %v5206 = vunpack.c.l.b16 %v1606
    %v5207 = vunpack.c.l.b16 %v1607
    %v5208 = vunpack.c.l.b16 %v1608
    %v5209 = vunpack.c.l.b16 %v1609
    %v5210 = vunpack.c.l.b16 %v1610
    %v5211 = vunpack.c.l.b16 %v1611
    %v5212 = vunpack.c.l.b16 %v1612
    %v5213 = vunpack.c.l.b16 %v1613
    %v5214 = vunpack.c.l.b16 %v1614
    %v5215 = vunpack.c.l.b16 %v1615
    %v5216 = vunpack.c.l.b16 %v1616
    %v5217 = vunpack.c.l.b16 %v1617
    %v5218 = vunpack.c.l.b16 %v1618
    %v5219 = vunpack.c.l.b16 %v1619
    %v5220 = vunpack.c.l.b16 %v1620
    %v5221 = vunpack.c.l.b16 %v1621
    %v5222 = vunpack.c.l.b16 %v1622
    %v5223 = vunpack.c.l.b16 %v1623
    %v5224 = vunpack.c.l.b16 %v1624
    %v5225 = vunpack.c.l.b16 %v1625
    %v5226 = vunpack.c.l.b16 %v1626
    %v5227 = vunpack.c.l.b16 %v1627
    %v5228 = vunpack.c.l.b16 %v1628
    %v5229 = vunpack.c.l.b16 %v1629
    %v5230 = vunpack.c.l.b16 %v1630
    %v5231 = vunpack.c.l.b16 %v1631
    %v5232 = vunpack.c.l.b16 %v1632
    %v5233 = vunpack.c.l.b16 %v1633
    %v5234 = vunpack.c.l.b16 %v1634
    %v5235 = vunpack.c.l.b16 %v1635
    %v5236 = vunpack.c.l.b16 %v1636
    %v5237 = vunpack.c.l.b16 %v1637
    %v5238 = vunpack.c.l.b16 %v1638
    %v5239 = vunpack.c.l.b16 %v1639
    %v5240 = vunpack.c.l.b16 %v1640
    %v5241 = vunpack.c.l.b16 %v1641
    %v5242 = vunpack.c.l.b16 %v1642
    %v5243 = vunpack.c.l.b16 %v1643
    %v5244 = vunpack.c.l.b16 %v1644
    %v5245 = vunpack.c.l.b16 %v1645
    %v5246 = vunpack.c.l.b16 %v1646
    %v5247 = vunpack.c.l.b16 %v1647
    %v5248 = vunpack.c.l.b16 %v1648
    %v5249 = vunpack.c.l.b16 %v1649
    %v5250 = vunpack.c.l.b16 %v1650
    %v5251 = vunpack.c.l.b16 %v1651
    %v5252 = vunpack.c.l.b16 %v1652
    %v5253 = vunpack.c.l.b16 %v1653
    %v5254 = vunpack.c.l.b16 %v1654
    %v5255 = vunpack.c.l.b16 %v1655
    %v5256 = vunpack.c.l.b16 %v1656
    %v5257 = vunpack.c.l.b16 %v1657
    %v5258 = vunpack.c.l.b16 %v1658
    %v5259 = vunpack.c.l.b16 %v1659
    %v5260 = vunpack.c.l.b16 %v1660
    %v5261 = vunpack.c.l.b16 %v1661
    %v5262 = vunpack.c.l.b16 %v1662
    %v5263 = vunpack.c.l.b16 %v1663
    %v5264 = vunpack.c.l.b16 %v1664
    %v5265 = vunpack.c.l.b16 %v1665
    %v5266 = vunpack.c.l.b16 %v1666
    %v5267 = vunpack.c.l.b16 %v1667
    %v5268 = vunpack.c.l.b16 %v1668
    %v5269 = vunpack.c.l.b16 %v1669
    %v5270 = vunpack.c.l.b16 %v1670
    %v5271 = vunpack.c.l.b16 %v1671
    %v5272 = vunpack.c.l.b16 %v1672
    %v5273 = vunpack.c.l.b16 %v1673
    %v5274 = vunpack.c.l.b16 %v1674
    %v5275 = vunpack.c.l.b16 %v1675
    %v5276 = vunpack.c.l.b16 %v1676
    %v5277 = vunpack.c.l.b16 %v1677
    %v5278 = vunpack.c.l.b16 %v1678
    %v5279 = vunpack.c.l.b16 %v1679
    %v5280 = vunpack.c.l.b16 %v1680
    %v5281 = vunpack.c.l.b16 %v1681
    %v5282 = vunpack.c.l.b16 %v1682
    %v5283 = vunpack.c.l.b16 %v1683
    %v5284 = vunpack.c.l.b16 %v1684
    %v5285 = vunpack.c.l.b16 %v1685
    %v5286 = vunpack.c.l.b16 %v1686
    %v5287 = vunpack.c.l.b16 %v1687
    %v5288 = vunpack.c.l.b16 %v1688
    %v5289 = vunpack.c.l.b16 %v1689
    %v5290 = vunpack.c.l.b16 %v1690
    %v5291 = vunpack.c.l.b16 %v1691
    %v5292 = vunpack.c.l.b16 %v1692
    %v5293 = vunpack.c.l.b16 %v1693
    %v5294 = vunpack.c.l.b16 %v1694
    %v5295 = vunpack.c.l.b16 %v1695
    %v5296 = vunpack.c.l.b16 %v1696
    %v5297 = vunpack.c.l.b16 %v1697
    %v5298 = vunpack.c.l.b16 %v1698
    %v5299 = vunpack.c.l.b16 %v1699
    %v5300 = vunpack.c.l.b16 %v1700
    %v5301 = vunpack.c.l.b16 %v1701
    %v5302 = vunpack.c.l.b16 %v1702
    %v5303 = vunpack.c.l.b16 %v1703
    %v5304 = vunpack.c.l.b16 %v1704
    %v5305 = vunpack.c.l.b16 %v1705
    %v5306 = vunpack.c.l.b16 %v1706
    %v5307 = vunpack.c.l.b16 %v1707
    %v5308 = vunpack.c.l.b16 %v1708
    %v5309 = vunpack.c.l.b16 %v1709
    %v5310 = vunpack.c.l.b16 %v1710
    %v5311 = vunpack.c.l.b16 %v1711
    %v5312 = vunpack.c.l.b16 %v1712
    %v5313 = vunpack.c.l.b16 %v1713
    %v5314 = vunpack.c.l.b16 %v1714
    %v5315 = vunpack.c.l.b16 %v1715
    %v5316 = vunpack.c.l.b16 %v1716
    %v5317 = vunpack.c.l.b16 %v1717
    %v5318 = vunpack.c.l.b16 %v1718
    %v5319 = vunpack.c.l.b16 %v1719
    %v5320 = vunpack.c.l.b16 %v1720
    %v5321 = vunpack.c.l.b16 %v1721
    %v5322 = vunpack.c.l.b16 %v1722
    %v5323 = vunpack.c.l.b16 %v1723
    %v5324 = vunpack.c.l.b16 %v1724
    %v5325 = vunpack.c.l.b16 %v1725
    %v5326 = vunpack.c.l.b16 %v1726
    %v5327 = vunpack.c.l.b16 %v1727
    %v5328 = vunpack.c.l.b16 %v1728
    %v5329 = vunpack.c.l.b16 %v1729
    %v5330 = vunpack.c.l.b16 %v1730
    %v5331 = vunpack.c.l.b16 %v1731
    %v5332 = vunpack.c.l.b16 %v1732
    %v5333 = vunpack.c.l.b16 %v1733
    %v5334 = vunpack.c.l.b16 %v1734
    %v5335 = vunpack.c.l.b16 %v1735
    %v5336 = vunpack.c.l.b16 %v1736
    %v5337 = vunpack.c.l.b16 %v1737
    %v5338 = vunpack.c.l.b16 %v1738
    %v5339 = vunpack.c.l.b16 %v1739
    %v5340 = vunpack.c.l.b16 %v1740
    %v5341 = vunpack.c.l.b16 %v1741
    %v5342 = vunpack.c.l.b16 %v1742
    %v5343 = vunpack.c.l.b16 %v1743
    %v5344 = vunpack.c.l.b16 %v1744
    %v5345 = vunpack.c.l.b16 %v1745
    %v5346 = vunpack.c.l.b16 %v1746
    %v5347 = vunpack.c.l.b16 %v1747
    %v5348 = vunpack.c.l.b16 %v1748
    %v5349 = vunpack.c.l.b16 %v1749
    %v5350 = vunpack.c.l.b16 %v1750
    %v5351 = vunpack.c.l.b16 %v1751
    %v5352 = vunpack.c.l.b16 %v1752
    %v5353 = vunpack.c.l.b16 %v1753
    %v5354 = vunpack.c.l.b16 %v1754
    %v5355 = vunpack.c.l.b16 %v1755
    %v5356 = vunpack.c.l.b16 %v1756
    %v5357 = vunpack.c.l.b16 %v1757
    %v5358 = vunpack.c.l.b16 %v1758
    %v5359 = vunpack.c.l.b16 %v1759
    %v5360 = vunpack.c.l.b16 %v1760
    %v5361 = vunpack.c.l.b16 %v1761
    %v5362 = vunpack.c.l.b16 %v1762
    %v5363 = vunpack.c.l.b16 %v1763
    %v5364 = vunpack.c.l.b16 %v1764
    %v5365 = vunpack.c.l.b16 %v1765
    %v5366 = vunpack.c.l.b16 %v1766
    %v5367 = vunpack.c.l.b16 %v1767
    %v5368 = vunpack.c.l.b16 %v1768
    %v5369 = vunpack.c.l.b16 %v1769
    %v5370 = vunpack.c.l.b16 %v1770
    %v5371 = vunpack.c.l.b16 %v1771
    %v5372 = vunpack.c.l.b16 %v1772
    %v5373 = vunpack.c.l.b16 %v1773
    %v5374 = vunpack.c.l.b16 %v1774
    %v5375 = vunpack.c.l.b16 %v1775
    %v5376 = vunpack.c.l.b16 %v1776
    %v5377 = vunpack.c.l.b16 %v1777
    %v5378 = vunpack.c.l.b16 %v1778
    %v5379 = vunpack.c.l.b16 %v1779
    %v5380 = vunpack.c.l.b16 %v1780
    %v5381 = vunpack.c.l.b16 %v1781
    %v5382 = vunpack.c.l.b16 %v1782
    %v5383 = vunpack.c.l.b16 %v1783
    %v5384 = vunpack.c.l.b16 %v1784
    %v5385 = vunpack.c.l.b16 %v1785
    %v5386 = vunpack.c.l.b16 %v1786
    %v5387 = vunpack.c.l.b16 %v1787
    %v5388 = vunpack.c.l.b16 %v1788
    %v5389 = vunpack.c.l.b16 %v1789
    %v5390 = vunpack.c.l.b16 %v1790
    %v5391 = vunpack.c.l.b16 %v1791
    %v5392 = vunpack.c.l.b16 %v1792
    %v5393 = vunpack.c.l.b16 %v1793
    %v5394 = vunpack.c.l.b16 %v1794
    %v5395 = vunpack.c.l.b16 %v1795
    %v5396 = vunpack.c.l.b16 %v1796
    %v5397 = vunpack.c.l.b16 %v1797
    %v5398 = vunpack.c.l.b16 %v1798
    %v5399 = vunpack.c.l.b16 %v1799
    %v5400 = vunpack.c.l.b16 %v1800
    %v5401 = vunpack.c.l.b16 %v1801
    %v5402 = vunpack.c.l.b16 %v1802
    %v5403 = vunpack.c.l.b16 %v1803
    %v5404 = vunpack.c.l.b16 %v1804
    %v5405 = vunpack.c.l.b16 %v1805
    %v5406 = vunpack.c.l.b16 %v1806
    %v5407 = vunpack.c.l.b16 %v1807
    %v5408 = vunpack.c.l.b16 %v1808
    %v5409 = vunpack.c.l.b16 %v1809
    %v5410 = vunpack.c.l.b16 %v1810
    %v5411 = vunpack.c.l.b16 %v1811
    %v5412 = vunpack.c.l.b16 %v1812
    %v5413 = vunpack.c.l.b16 %v1813
    %v5414 = vunpack.c.l.b16 %v1814
    %v5415 = vunpack.c.l.b16 %v1815
    %v5416 = vunpack.c.l.b16 %v1816
    %v5417 = vunpack.c.l.b16 %v1817
    %v5418 = vunpack.c.l.b16 %v1818
    %v5419 = vunpack.c.l.b16 %v1819
    %v5420 = vunpack.c.l.b16 %v1820
    %v5421 = vunpack.c.l.b16 %v1821
    %v5422 = vunpack.c.l.b16 %v1822
    %v5423 = vunpack.c.l.b16 %v1823
    %v5424 = vunpack.c.l.b16 %v1824
    %v5425 = vunpack.c.l.b16 %v1825
    %v5426 = vunpack.c.l.b16 %v1826
    %v5427 = vunpack.c.l.b16 %v1827
    %v5428 = vunpack.c.l.b16 %v1828
    %v5429 = vunpack.c.l.b16 %v1829
    %v5430 = vunpack.c.l.b16 %v1830
    %v5431 = vunpack.c.l.b16 %v1831
    %v5432 = vunpack.c.l.b16 %v1832
    %v5433 = vunpack.c.l.b16 %v1833
    %v5434 = vunpack.c.l.b16 %v1834
    %v5435 = vunpack.c.l.b16 %v1835
    %v5436 = vunpack.c.l.b16 %v1836
    %v5437 = vunpack.c.l.b16 %v1837
    %v5438 = vunpack.c.l.b16 %v1838
    %v5439 = vunpack.c.l.b16 %v1839
    %v5440 = vunpack.c.l.b16 %v1840
    %v5441 = vunpack.c.l.b16 %v1841
    %v5442 = vunpack.c.l.b16 %v1842
    %v5443 = vunpack.c.l.b16 %v1843
    %v5444 = vunpack.c.l.b16 %v1844
    %v5445 = vunpack.c.l.b16 %v1845
    %v5446 = vunpack.c.l.b16 %v1846
    %v5447 = vunpack.c.l.b16 %v1847
    %v5448 = vunpack.c.l.b16 %v1848
    %v5449 = vunpack.c.l.b16 %v1849
    %v5450 = vunpack.c.l.b16 %v1850
    %v5451 = vunpack.c.l.b16 %v1851
    %v5452 = vunpack.c.l.b16 %v1852
    %v5453 = vunpack.c.l.b16 %v1853
    %v5454 = vunpack.c.l.b16 %v1854
    %v5455 = vunpack.c.l.b16 %v1855
    %v5456 = vunpack.c.l.b16 %v1856
    %v5457 = vunpack.c.l.b16 %v1857
    %v5458 = vunpack.c.l.b16 %v1858
    %v5459 = vunpack.c.l.b16 %v1859
    %v5460 = vunpack.c.l.b16 %v1860
    %v5461 = vunpack.c.l.b16 %v1861
    %v5462 = vunpack.c.l.b16 %v1862
    %v5463 = vunpack.c.l.b16 %v1863
    %v5464 = vunpack.c.l.b16 %v1864
    %v5465 = vunpack.c.l.b16 %v1865
    %v5466 = vunpack.c.l.b16 %v1866
    %v5467 = vunpack.c.l.b16 %v1867
    %v5468 = vunpack.c.l.b16 %v1868
    %v5469 = vunpack.c.l.b16 %v1869
    %v5470 = vunpack.c.l.b16 %v1870
    %v5471 = vunpack.c.l.b16 %v1871
    %v5472 = vunpack.c.l.b16 %v1872
    %v5473 = vunpack.c.l.b16 %v1873
    %v5474 = vunpack.c.l.b16 %v1874
    %v5475 = vunpack.c.l.b16 %v1875
    %v5476 = vunpack.c.l.b16 %v1876
    %v5477 = vunpack.c.l.b16 %v1877
    %v5478 = vunpack.c.l.b16 %v1878
    %v5479 = vunpack.c.l.b16 %v1879
    %v5480 = vunpack.c.l.b16 %v1880
    %v5481 = vunpack.c.l.b16 %v1881
    %v5482 = vunpack.c.l.b16 %v1882
    %v5483 = vunpack.c.l.b16 %v1883
    %v5484 = vunpack.c.l.b16 %v1884
    %v5485 = vunpack.c.l.b16 %v1885
    %v5486 = vunpack.c.l.b16 %v1886
    %v5487 = vunpack.c.l.b16 %v1887
    %v5488 = vunpack.c.l.b16 %v1888
    %v5489 = vunpack.c.l.b16 %v1889
    %v5490 = vunpack.c.l.b16 %v1890
    %v5491 = vunpack.c.l.b16 %v1891
    %v5492 = vunpack.c.l.b16 %v1892
    %v5493 = vunpack.c.l.b16 %v1893
    %v5494 = vunpack.c.l.b16 %v1894
    %v5495 = vunpack.c.l.b16 %v1895
    %v5496 = vunpack.c.l.b16 %v1896
    %v5497 = vunpack.c.l.b16 %v1897
    %v5498 = vunpack.c.l.b16 %v1898
    %v5499 = vunpack.c.l.b16 %v1899
    %v5500 = vunpack.c.l.b16 %v1900
    %v5501 = vunpack.c.l.b16 %v1901
    %v5502 = vunpack.c.l.b16 %v1902
    %v5503 = vunpack.c.l.b16 %v1903
    %v5504 = vunpack.c.l.b16 %v1904
    %v5505 = vunpack.c.l.b16 %v1905
    %v5506 = vunpack.c.l.b16 %v1906
    %v5507 = vunpack.c.l.b16 %v1907
    %v5508 = vunpack.c.l.b16 %v1908
    %v5509 = vunpack.c.l.b16 %v1909
    %v5510 = vunpack.c.l.b16 %v1910
    %v5511 = vunpack.c.l.b16 %v1911
    %v5512 = vunpack.c.l.b16 %v1912
    %v5513 = vunpack.c.l.b16 %v1913
    %v5514 = vunpack.c.l.b16 %v1914
    %v5515 = vunpack.c.l.b16 %v1915
    %v5516 = vunpack.c.l.b16 %v1916
    %v5517 = vunpack.c.l.b16 %v1917
    %v5518 = vunpack.c.l.b16 %v1918
    %v5519 = vunpack.c.l.b16 %v1919
    %v5520 = vunpack.c.l.b16 %v1920
    %v5521 = vunpack.c.l.b16 %v1921
    %v5522 = vunpack.c.l.b16 %v1922
    %v5523 = vunpack.c.l.b16 %v1923
    %v5524 = vunpack.c.l.b16 %v1924
    %v5525 = vunpack.c.l.b16 %v1925
    %v5526 = vunpack.c.l.b16 %v1926
    %v5527 = vunpack.c.l.b16 %v1927
    %v5528 = vunpack.c.l.b16 %v1928
    %v5529 = vunpack.c.l.b16 %v1929
    %v5530 = vunpack.c.l.b16 %v1930
    %v5531 = vunpack.c.l.b16 %v1931
    %v5532 = vunpack.c.l.b16 %v1932
    %v5533 = vunpack.c.l.b16 %v1933
    %v5534 = vunpack.c.l.b16 %v1934
    %v5535 = vunpack.c.l.b16 %v1935
    %v5536 = vunpack.c.l.b16 %v1936
    %v5537 = vunpack.c.l.b16 %v1937
    %v5538 = vunpack.c.l.b16 %v1938
    %v5539 = vunpack.c.l.b16 %v1939
    %v5540 = vunpack.c.l.b16 %v1940
    %v5541 = vunpack.c.l.b16 %v1941
    %v5542 = vunpack.c.l.b16 %v1942
    %v5543 = vunpack.c.l.b16 %v1943
    %v5544 = vunpack.c.l.b16 %v1944
    %v5545 = vunpack.c.l.b16 %v1945
    %v5546 = vunpack.c.l.b16 %v1946
    %v5547 = vunpack.c.l.b16 %v1947
    %v5548 = vunpack.c.l.b16 %v1948
    %v5549 = vunpack.c.l.b16 %v1949
    %v5550 = vunpack.c.l.b16 %v1950
    %v5551 = vunpack.c.l.b16 %v1951
    %v5552 = vunpack.c.l.b16 %v1952
    %v5553 = vunpack.c.l.b16 %v1953
    %v5554 = vunpack.c.l.b16 %v1954
    %v5555 = vunpack.c.l.b16 %v1955
    %v5556 = vunpack.c.l.b16 %v1956
    %v5557 = vunpack.c.l.b16 %v1957
    %v5558 = vunpack.c.l.b16 %v1958
    %v5559 = vunpack.c.l.b16 %v1959
    %v5560 = vunpack.c.l.b16 %v1960
    %v5561 = vunpack.c.l.b16 %v1961
    %v5562 = vunpack.c.l.b16 %v1962
    %v5563 = vunpack.c.l.b16 %v1963
    %v5564 = vunpack.c.l.b16 %v1964
    %v5565 = vunpack.c.l.b16 %v1965
    %v5566 = vunpack.c.l.b16 %v1966
    %v5567 = vunpack.c.l.b16 %v1967
    %v5568 = vunpack.c.l.b16 %v1968
    %v5569 = vunpack.c.l.b16 %v1969
    %v5570 = vunpack.c.l.b16 %v1970
    %v5571 = vunpack.c.l.b16 %v1971
    %v5572 = vunpack.c.l.b16 %v1972
    %v5573 = vunpack.c.l.b16 %v1973
    %v5574 = vunpack.c.l.b16 %v1974
    %v5575 = vunpack.c.l.b16 %v1975
    %v5576 = vunpack.c.l.b16 %v1976
    %v5577 = vunpack.c.l.b16 %v1977
    %v5578 = vunpack.c.l.b16 %v1978
    %v5579 = vunpack.c.l.b16 %v1979
    %v5580 = vunpack.c.l.b16 %v1980
    %v5581 = vunpack.c.l.b16 %v1981
    %v5582 = vunpack.c.l.b16 %v1982
    %v5583 = vunpack.c.l.b16 %v1983
    %v5584 = vunpack.c.l.b16 %v1984
    %v5585 = vunpack.c.l.b16 %v1985
    %v5586 = vunpack.c.l.b16 %v1986
    %v5587 = vunpack.c.l.b16 %v1987
    %v5588 = vunpack.c.l.b16 %v1988
    %v5589 = vunpack.c.l.b16 %v1989
    %v5590 = vunpack.c.l.b16 %v1990
    %v5591 = vunpack.c.l.b16 %v1991
    %v5592 = vunpack.c.l.b16 %v1992
    %v5593 = vunpack.c.l.b16 %v1993
    %v5594 = vunpack.c.l.b16 %v1994
    %v5595 = vunpack.c.l.b16 %v1995
    %v5596 = vunpack.c.l.b16 %v1996
    %v5597 = vunpack.c.l.b16 %v1997
    %v5598 = vunpack.c.l.b16 %v1998
    %v5599 = vunpack.c.l.b16 %v1999
    %v5600 = vunpack.c.l.b16 %v2000
    %v5601 = vunpack.c.l.b16 %v2001
    %v5602 = vunpack.c.l.b16 %v2002
    %v5603 = vunpack.c.l.b16 %v2003
    %v5604 = vunpack.c.l.b16 %v2004
    %v5605 = vunpack.c.l.b16 %v2005
    %v5606 = vunpack.c.l.b16 %v2006
    %v5607 = vunpack.c.l.b16 %v2007
    %v5608 = vunpack.c.l.b16 %v2008
    %v5609 = vunpack.c.l.b16 %v2009
    %v5610 = vunpack.c.l.b16 %v2010
    %v5611 = vunpack.c.l.b16 %v2011
    %v5612 = vunpack.c.l.b16 %v2012
    %v5613 = vunpack.c.l.b16 %v2013
    %v5614 = vunpack.c.l.b16 %v2014
    %v5615 = vunpack.c.l.b16 %v2015
    %v5616 = vunpack.c.l.b16 %v2016
    %v5617 = vunpack.c.l.b16 %v2017
    %v5618 = vunpack.c.l.b16 %v2018
    %v5619 = vunpack.c.l.b16 %v2019
    %v5620 = vunpack.c.l.b16 %v2020
    %v5621 = vunpack.c.l.b16 %v2021
    %v5622 = vunpack.c.l.b16 %v2022
    %v5623 = vunpack.c.l.b16 %v2023
    %v5624 = vunpack.c.l.b16 %v2024
    %v5625 = vunpack.c.l.b16 %v2025
    %v5626 = vunpack.c.l.b16 %v2026
    %v5627 = vunpack.c.l.b16 %v2027
    %v5628 = vunpack.c.l.b16 %v2028
    %v5629 = vunpack.c.l.b16 %v2029
    %v5630 = vunpack.c.l.b16 %v2030
    %v5631 = vunpack.c.l.b16 %v2031
    %v5632 = vunpack.c.l.b16 %v2032
    %v5633 = vunpack.c.l.b16 %v2033
    %v5634 = vunpack.c.l.b16 %v2034
    %v5635 = vunpack.c.l.b16 %v2035
    %v5636 = vunpack.c.l.b16 %v2036
    %v5637 = vunpack.c.l.b16 %v2037
    %v5638 = vunpack.c.l.b16 %v2038
    %v5639 = vunpack.c.l.b16 %v2039
    %v5640 = vunpack.c.l.b16 %v2040
    %v5641 = vunpack.c.l.b16 %v2041
    %v5642 = vunpack.c.l.b16 %v2042
    %v5643 = vunpack.c.l.b16 %v2043
    %v5644 = vunpack.c.l.b16 %v2044
    %v5645 = vunpack.c.l.b16 %v2045
    %v5646 = vunpack.c.l.b16 %v2046
    %v5647 = vunpack.c.l.b16 %v2047
    %v5648 = vunpack.c.l.b16 %v2048
    %v5649 = vunpack.c.l.b16 %v2049
    %v5650 = vunpack.c.l.b16 %v2050
    %v5651 = vunpack.c.l.b16 %v2051
    %v5652 = vunpack.c.l.b16 %v2052
    %v5653 = vunpack.c.l.b16 %v2053
    %v5654 = vunpack.c.l.b16 %v2054
    %v5655 = vunpack.c.l.b16 %v2055
    %v5656 = vunpack.c.l.b16 %v2056
    %v5657 = vunpack.c.l.b16 %v2057
    %v5658 = vunpack.c.l.b16 %v2058
    %v5659 = vunpack.c.l.b16 %v2059
    %v5660 = vunpack.c.l.b16 %v2060
    %v5661 = vunpack.c.l.b16 %v2061
    %v5662 = vunpack.c.l.b16 %v2062
    %v5663 = vunpack.c.l.b16 %v2063
    %v5664 = vunpack.c.l.b16 %v2064
    %v5665 = vunpack.c.l.b16 %v2065
    %v5666 = vunpack.c.l.b16 %v2066
    %v5667 = vunpack.c.l.b16 %v2067
    %v5668 = vunpack.c.l.b16 %v2068
    %v5669 = vunpack.c.l.b16 %v2069
    %v5670 = vunpack.c.l.b16 %v2070
    %v5671 = vunpack.c.l.b16 %v2071
    %v5672 = vunpack.c.l.b16 %v2072
    %v5673 = vunpack.c.l.b16 %v2073
    %v5674 = vunpack.c.l.b16 %v2074
    %v5675 = vunpack.c.l.b16 %v2075
    %v5676 = vunpack.c.l.b16 %v2076
    %v5677 = vunpack.c.l.b16 %v2077
    %v5678 = vunpack.c.l.b16 %v2078
    %v5679 = vunpack.c.l.b16 %v2079
    %v5680 = vunpack.c.l.b16 %v2080
    %v5681 = vunpack.c.l.b16 %v2081
    %v5682 = vunpack.c.l.b16 %v2082
    %v5683 = vunpack.c.l.b16 %v2083
    %v5684 = vunpack.c.l.b16 %v2084
    %v5685 = vunpack.c.l.b16 %v2085
    %v5686 = vunpack.c.l.b16 %v2086
    %v5687 = vunpack.c.l.b16 %v2087
    %v5688 = vunpack.c.l.b16 %v2088
    %v5689 = vunpack.c.l.b16 %v2089
    %v5690 = vunpack.c.l.b16 %v2090
    %v5691 = vunpack.c.l.b16 %v2091
    %v5692 = vunpack.c.l.b16 %v2092
    %v5693 = vunpack.c.l.b16 %v2093
    %v5694 = vunpack.c.l.b16 %v2094
    %v5695 = vunpack.c.l.b16 %v2095
    %v5696 = vunpack.c.l.b16 %v2096
    %v5697 = vunpack.c.l.b16 %v2097
    %v5698 = vunpack.c.l.b16 %v2098
    %v5699 = vunpack.c.l.b16 %v2099
    %v5700 = vunpack.c.l.b16 %v2100
    %v5701 = vunpack.c.l.b16 %v2101
    %v5702 = vunpack.c.l.b16 %v2102
    %v5703 = vunpack.c.l.b16 %v2103
    %v5704 = vunpack.c.l.b16 %v2104
    %v5705 = vunpack.c.l.b16 %v2105
    %v5706 = vunpack.c.l.b16 %v2106
    %v5707 = vunpack.c.l.b16 %v2107
    %v5708 = vunpack.c.l.b16 %v2108
    %v5709 = vunpack.c.l.b16 %v2109
    %v5710 = vunpack.c.l.b16 %v2110
    %v5711 = vunpack.c.l.b16 %v2111
    %v5712 = vunpack.c.l.b16 %v2112
    %v5713 = vunpack.c.l.b16 %v2113
    %v5714 = vunpack.c.l.b16 %v2114
    %v5715 = vunpack.c.l.b16 %v2115
    %v5716 = vunpack.c.l.b16 %v2116
    %v5717 = vunpack.c.l.b16 %v2117
    %v5718 = vunpack.c.l.b16 %v2118
    %v5719 = vunpack.c.l.b16 %v2119
    %v5720 = vunpack.c.l.b16 %v2120
    %v5721 = vunpack.c.l.b16 %v2121
    %v5722 = vunpack.c.l.b16 %v2122
    %v5723 = vunpack.c.l.b16 %v2123
    %v5724 = vunpack.c.l.b16 %v2124
    %v5725 = vunpack.c.l.b16 %v2125
    %v5726 = vunpack.c.l.b16 %v2126
    %v5727 = vunpack.c.l.b16 %v2127
    %v5728 = vunpack.c.l.b16 %v2128
    %v5729 = vunpack.c.l.b16 %v2129
    %v5730 = vunpack.c.l.b16 %v2130
    %v5731 = vunpack.c.l.b16 %v2131
    %v5732 = vunpack.c.l.b16 %v2132
    %v5733 = vunpack.c.l.b16 %v2133
    %v5734 = vunpack.c.l.b16 %v2134
    %v5735 = vunpack.c.l.b16 %v2135
    %v5736 = vunpack.c.l.b16 %v2136
    %v5737 = vunpack.c.l.b16 %v2137
    %v5738 = vunpack.c.l.b16 %v2138
    %v5739 = vunpack.c.l.b16 %v2139
    %v5740 = vunpack.c.l.b16 %v2140
    %v5741 = vunpack.c.l.b16 %v2141
    %v5742 = vunpack.c.l.b16 %v2142
    %v5743 = vunpack.c.l.b16 %v2143
    %v5744 = vunpack.c.l.b16 %v2144
    %v5745 = vunpack.c.l.b16 %v2145
    %v5746 = vunpack.c.l.b16 %v2146
    %v5747 = vunpack.c.l.b16 %v2147
    %v5748 = vunpack.c.l.b16 %v2148
    %v5749 = vunpack.c.l.b16 %v2149
    %v5750 = vunpack.c.l.b16 %v2150
    %v5751 = vunpack.c.l.b16 %v2151
    %v5752 = vunpack.c.l.b16 %v2152
    %v5753 = vunpack.c.l.b16 %v2153
    %v5754 = vunpack.c.l.b16 %v2154
    %v5755 = vunpack.c.l.b16 %v2155
    %v5756 = vunpack.c.l.b16 %v2156
    %v5757 = vunpack.c.l.b16 %v2157
    %v5758 = vunpack.c.l.b16 %v2158
    %v5759 = vunpack.c.l.b16 %v2159
    %v5760 = vunpack.c.l.b16 %v2160
    %v5761 = vunpack.c.l.b16 %v2161
    %v5762 = vunpack.c.l.b16 %v2162
    %v5763 = vunpack.c.l.b16 %v2163
    %v5764 = vunpack.c.l.b16 %v2164
    %v5765 = vunpack.c.l.b16 %v2165
    %v5766 = vunpack.c.l.b16 %v2166
    %v5767 = vunpack.c.l.b16 %v2167
    %v5768 = vunpack.c.l.b16 %v2168
    %v5769 = vunpack.c.l.b16 %v2169
    %v5770 = vunpack.c.l.b16 %v2170
    %v5771 = vunpack.c.l.b16 %v2171
    %v5772 = vunpack.c.l.b16 %v2172
    %v5773 = vunpack.c.l.b16 %v2173
    %v5774 = vunpack.c.l.b16 %v2174
    %v5775 = vunpack.c.l.b16 %v2175
    %v5776 = vunpack.c.l.b16 %v2176
    %v5777 = vunpack.c.l.b16 %v2177
    %v5778 = vunpack.c.l.b16 %v2178
    %v5779 = vunpack.c.l.b16 %v2179
    %v5780 = vunpack.c.l.b16 %v2180
    %v5781 = vunpack.c.l.b16 %v2181
    %v5782 = vunpack.c.l.b16 %v2182
    %v5783 = vunpack.c.l.b16 %v2183
    %v5784 = vunpack.c.l.b16 %v2184
    %v5785 = vunpack.c.l.b16 %v2185
    %v5786 = vunpack.c.l.b16 %v2186
    %v5787 = vunpack.c.l.b16 %v2187
    %v5788 = vunpack.c.l.b16 %v2188
    %v5789 = vunpack.c.l.b16 %v2189
    %v5790 = vunpack.c.l.b16 %v2190
    %v5791 = vunpack.c.l.b16 %v2191
    %v5792 = vunpack.c.l.b16 %v2192
    %v5793 = vunpack.c.l.b16 %v2193
    %v5794 = vunpack.c.l.b16 %v2194
    %v5795 = vunpack.c.l.b16 %v2195
    %v5796 = vunpack.c.l.b16 %v2196
    %v5797 = vunpack.c.l.b16 %v2197
    %v5798 = vunpack.c.l.b16 %v2198
    %v5799 = vunpack.c.l.b16 %v2199
    %v5800 = vunpack.c.l.b16 %v2200
    %v5801 = vunpack.c.l.b16 %v2201
    %v5802 = vunpack.c.l.b16 %v2202
    %v5803 = vunpack.c.l.b16 %v2203
    %v5804 = vunpack.c.l.b16 %v2204
    %v5805 = vunpack.c.l.b16 %v2205
    %v5806 = vunpack.c.l.b16 %v2206
    %v5807 = vunpack.c.l.b16 %v2207
    %v5808 = vunpack.c.l.b16 %v2208
    %v5809 = vunpack.c.l.b16 %v2209
    %v5810 = vunpack.c.l.b16 %v2210
    %v5811 = vunpack.c.l.b16 %v2211
    %v5812 = vunpack.c.l.b16 %v2212
    %v5813 = vunpack.c.l.b16 %v2213
    %v5814 = vunpack.c.l.b16 %v2214
    %v5815 = vunpack.c.l.b16 %v2215
    %v5816 = vunpack.c.l.b16 %v2216
    %v5817 = vunpack.c.l.b16 %v2217
    %v5818 = vunpack.c.l.b16 %v2218
    %v5819 = vunpack.c.l.b16 %v2219
    %v5820 = vunpack.c.l.b16 %v2220
    %v5821 = vunpack.c.l.b16 %v2221
    %v5822 = vunpack.c.l.b16 %v2222
    %v5823 = vunpack.c.l.b16 %v2223
    %v5824 = vunpack.c.l.b16 %v2224
    %v5825 = vunpack.c.l.b16 %v2225
    %v5826 = vunpack.c.l.b16 %v2226
    %v5827 = vunpack.c.l.b16 %v2227
    %v5828 = vunpack.c.l.b16 %v2228
    %v5829 = vunpack.c.l.b16 %v2229
    %v5830 = vunpack.c.l.b16 %v2230
    %v5831 = vunpack.c.l.b16 %v2231
    %v5832 = vunpack.c.l.b16 %v2232
    %v5833 = vunpack.c.l.b16 %v2233
    %v5834 = vunpack.c.l.b16 %v2234
    %v5835 = vunpack.c.l.b16 %v2235
    %v5836 = vunpack.c.l.b16 %v2236
    %v5837 = vunpack.c.l.b16 %v2237
    %v5838 = vunpack.c.l.b16 %v2238
    %v5839 = vunpack.c.l.b16 %v2239
    %v5840 = vunpack.c.l.b16 %v2240
    %v5841 = vunpack.c.l.b16 %v2241
    %v5842 = vunpack.c.l.b16 %v2242
    %v5843 = vunpack.c.l.b16 %v2243
    %v5844 = vunpack.c.l.b16 %v2244
    %v5845 = vunpack.c.l.b16 %v2245
    %v5846 = vunpack.c.l.b16 %v2246
    %v5847 = vunpack.c.l.b16 %v2247
    %v5848 = vunpack.c.l.b16 %v2248
    %v5849 = vunpack.c.l.b16 %v2249
    %v5850 = vunpack.c.l.b16 %v2250
    %v5851 = vunpack.c.l.b16 %v2251
    %v5852 = vunpack.c.l.b16 %v2252
    %v5853 = vunpack.c.l.b16 %v2253
    %v5854 = vunpack.c.l.b16 %v2254
    %v5855 = vunpack.c.l.b16 %v2255
    %v5856 = vunpack.c.l.b16 %v2256
    %v5857 = vunpack.c.l.b16 %v2257
    %v5858 = vunpack.c.l.b16 %v2258
    %v5859 = vunpack.c.l.b16 %v2259
    %v5860 = vunpack.c.l.b16 %v2260
    %v5861 = vunpack.c.l.b16 %v2261
    %v5862 = vunpack.c.l.b16 %v2262
    %v5863 = vunpack.c.l.b16 %v2263
    %v5864 = vunpack.c.l.b16 %v2264
    %v5865 = vunpack.c.l.b16 %v2265
    %v5866 = vunpack.c.l.b16 %v2266
    %v5867 = vunpack.c.l.b16 %v2267
    %v5868 = vunpack.c.l.b16 %v2268
    %v5869 = vunpack.c.l.b16 %v2269
    %v5870 = vunpack.c.l.b16 %v2270
    %v5871 = vunpack.c.l.b16 %v2271
    %v5872 = vunpack.c.l.b16 %v2272
    %v5873 = vunpack.c.l.b16 %v2273
    %v5874 = vunpack.c.l.b16 %v2274
    %v5875 = vunpack.c.l.b16 %v2275
    %v5876 = vunpack.c.l.b16 %v2276
    %v5877 = vunpack.c.l.b16 %v2277
    %v5878 = vunpack.c.l.b16 %v2278
    %v5879 = vunpack.c.l.b16 %v2279
    %v5880 = vunpack.c.l.b16 %v2280
    %v5881 = vunpack.c.l.b16 %v2281
    %v5882 = vunpack.c.l.b16 %v2282
    %v5883 = vunpack.c.l.b16 %v2283
    %v5884 = vunpack.c.l.b16 %v2284
    %v5885 = vunpack.c.l.b16 %v2285
    %v5886 = vunpack.c.l.b16 %v2286
    %v5887 = vunpack.c.l.b16 %v2287
    %v5888 = vunpack.c.l.b16 %v2288
    %v5889 = vunpack.c.l.b16 %v2289
    %v5890 = vunpack.c.l.b16 %v2290
    %v5891 = vunpack.c.l.b16 %v2291
    %v5892 = vunpack.c.l.b16 %v2292
    %v5893 = vunpack.c.l.b16 %v2293
    %v5894 = vunpack.c.l.b16 %v2294
    %v5895 = vunpack.c.l.b16 %v2295
    %v5896 = vunpack.c.l.b16 %v2296
    %v5897 = vunpack.c.l.b16 %v2297
    %v5898 = vunpack.c.l.b16 %v2298
    %v5899 = vunpack.c.l.b16 %v2299
    %v5900 = vunpack.c.l.b16 %v2300
    %v5901 = vunpack.c.l.b16 %v2301
    %v5902 = vunpack.c.l.b16 %v2302
    %v5903 = vunpack.c.l.b16 %v2303
    %v5904 = vunpack.c.l.b16 %v2304
    %v5905 = vunpack.c.l.b16 %v2305
    %v5906 = vunpack.c.l.b16 %v2306
    %v5907 = vunpack.c.l.b16 %v2307
    %v5908 = vunpack.c.l.b16 %v2308
    %v5909 = vunpack.c.l.b16 %v2309
    %v5910 = vunpack.c.l.b16 %v2310
    %v5911 = vunpack.c.l.b16 %v2311
    %v5912 = vunpack.c.l.b16 %v2312
    %v5913 = vunpack.c.l.b16 %v2313
    %v5914 = vunpack.c.l.b16 %v2314
    %v5915 = vunpack.c.l.b16 %v2315
    %v5916 = vunpack.c.l.b16 %v2316
    %v5917 = vunpack.c.l.b16 %v2317
    %v5918 = vunpack.c.l.b16 %v2318
    %v5919 = vunpack.c.l.b16 %v2319
    %v5920 = vunpack.c.l.b16 %v2320
    %v5921 = vunpack.c.l.b16 %v2321
    %v5922 = vunpack.c.l.b16 %v2322
    %v5923 = vunpack.c.l.b16 %v2323
    %v5924 = vunpack.c.l.b16 %v2324
    %v5925 = vunpack.c.l.b16 %v2325
    %v5926 = vunpack.c.l.b16 %v2326
    %v5927 = vunpack.c.l.b16 %v2327
    %v5928 = vunpack.c.l.b16 %v2328
    %v5929 = vunpack.c.l.b16 %v2329
    %v5930 = vunpack.c.l.b16 %v2330
    %v5931 = vunpack.c.l.b16 %v2331
    %v5932 = vunpack.c.l.b16 %v2332
    %v5933 = vunpack.c.l.b16 %v2333
    %v5934 = vunpack.c.l.b16 %v2334
    %v5935 = vunpack.c.l.b16 %v2335
    %v5936 = vunpack.c.l.b16 %v2336
    %v5937 = vunpack.c.l.b16 %v2337
    %v5938 = vunpack.c.l.b16 %v2338
    %v5939 = vunpack.c.l.b16 %v2339
    %v5940 = vunpack.c.l.b16 %v2340
    %v5941 = vunpack.c.l.b16 %v2341
    %v5942 = vunpack.c.l.b16 %v2342
    %v5943 = vunpack.c.l.b16 %v2343
    %v5944 = vunpack.c.l.b16 %v2344
    %v5945 = vunpack.c.l.b16 %v2345
    %v5946 = vunpack.c.l.b16 %v2346
    %v5947 = vunpack.c.l.b16 %v2347
    %v5948 = vunpack.c.l.b16 %v2348
    %v5949 = vunpack.c.l.b16 %v2349
    %v5950 = vunpack.c.l.b16 %v2350
    %v5951 = vunpack.c.l.b16 %v2351
    %v5952 = vunpack.c.l.b16 %v2352
    %v5953 = vunpack.c.l.b16 %v2353
    %v5954 = vunpack.c.l.b16 %v2354
    %v5955 = vunpack.c.l.b16 %v2355
    %v5956 = vunpack.c.l.b16 %v2356
    %v5957 = vunpack.c.l.b16 %v2357
    %v5958 = vunpack.c.l.b16 %v2358
    %v5959 = vunpack.c.l.b16 %v2359
    %v5960 = vunpack.c.l.b16 %v2360
    %v5961 = vunpack.c.l.b16 %v2361
    %v5962 = vunpack.c.l.b16 %v2362
    %v5963 = vunpack.c.l.b16 %v2363
    %v5964 = vunpack.c.l.b16 %v2364
    %v5965 = vunpack.c.l.b16 %v2365
    %v5966 = vunpack.c.l.b16 %v2366
    %v5967 = vunpack.c.l.b16 %v2367
    %v5968 = vunpack.c.l.b16 %v2368
    %v5969 = vunpack.c.l.b16 %v2369
    %v5970 = vunpack.c.l.b16 %v2370
    %v5971 = vunpack.c.l.b16 %v2371
    %v5972 = vunpack.c.l.b16 %v2372
    %v5973 = vunpack.c.l.b16 %v2373
    %v5974 = vunpack.c.l.b16 %v2374
    %v5975 = vunpack.c.l.b16 %v2375
    %v5976 = vunpack.c.l.b16 %v2376
    %v5977 = vunpack.c.l.b16 %v2377
    %v5978 = vunpack.c.l.b16 %v2378
    %v5979 = vunpack.c.l.b16 %v2379
    %v5980 = vunpack.c.l.b16 %v2380
    %v5981 = vunpack.c.l.b16 %v2381
    %v5982 = vunpack.c.l.b16 %v2382
    %v5983 = vunpack.c.l.b16 %v2383
    %v5984 = vunpack.c.l.b16 %v2384
    %v5985 = vunpack.c.l.b16 %v2385
    %v5986 = vunpack.c.l.b16 %v2386
    %v5987 = vunpack.c.l.b16 %v2387
    %v5988 = vunpack.c.l.b16 %v2388
    %v5989 = vunpack.c.l.b16 %v2389
    %v5990 = vunpack.c.l.b16 %v2390
    %v5991 = vunpack.c.l.b16 %v2391
    %v5992 = vunpack.c.l.b16 %v2392
    %v5993 = vunpack.c.l.b16 %v2393
    %v5994 = vunpack.c.l.b16 %v2394
    %v5995 = vunpack.c.l.b16 %v2395
    %v5996 = vunpack.c.l.b16 %v2396
    %v5997 = vunpack.c.l.b16 %v2397
    %v5998 = vunpack.c.l.b16 %v2398
    %v5999 = vunpack.c.l.b16 %v2399
    %v6000 = vunpack.c.l.b16 %v2400
    %v6001 = vunpack.c.l.b16 %v2401
    %v6002 = vunpack.c.l.b16 %v2402
    %v6003 = vunpack.c.l.b16 %v2403
    %v6004 = vunpack.c.l.b16 %v2404
    %v6005 = vunpack.c.l.b16 %v2405
    %v6006 = vunpack.c.l.b16 %v2406
    %v6007 = vunpack.c.l.b16 %v2407
    %v6008 = vunpack.c.l.b16 %v2408
    %v6009 = vunpack.c.l.b16 %v2409
    %v6010 = vunpack.c.l.b16 %v2410
    %v6011 = vunpack.c.l.b16 %v2411
    %v6012 = vunpack.c.l.b16 %v2412
    %v6013 = vunpack.c.l.b16 %v2413
    %v6014 = vunpack.c.l.b16 %v2414
    %v6015 = vunpack.c.l.b16 %v2415
    %v6016 = vunpack.c.l.b16 %v2416
    %v6017 = vunpack.c.l.b16 %v2417
    %v6018 = vunpack.c.l.b16 %v2418
    %v6019 = vunpack.c.l.b16 %v2419
    %v6020 = vunpack.c.l.b16 %v2420
    %v6021 = vunpack.c.l.b16 %v2421
    %v6022 = vunpack.c.l.b16 %v2422
    %v6023 = vunpack.c.l.b16 %v2423
    %v6024 = vunpack.c.l.b16 %v2424
    %v6025 = vunpack.c.l.b16 %v2425
    %v6026 = vunpack.c.l.b16 %v2426
    %v6027 = vunpack.c.l.b16 %v2427
    %v6028 = vunpack.c.l.b16 %v2428
    %v6029 = vunpack.c.l.b16 %v2429
    %v6030 = vunpack.c.l.b16 %v2430
    %v6031 = vunpack.c.l.b16 %v2431
    %v6032 = vunpack.c.l.b16 %v2432
    %v6033 = vunpack.c.l.b16 %v2433
    %v6034 = vunpack.c.l.b16 %v2434
    %v6035 = vunpack.c.l.b16 %v2435
    %v6036 = vunpack.c.l.b16 %v2436
    %v6037 = vunpack.c.l.b16 %v2437
    %v6038 = vunpack.c.l.b16 %v2438
    %v6039 = vunpack.c.l.b16 %v2439
    %v6040 = vunpack.c.l.b16 %v2440
    %v6041 = vunpack.c.l.b16 %v2441
    %v6042 = vunpack.c.l.b16 %v2442
    %v6043 = vunpack.c.l.b16 %v2443
    %v6044 = vunpack.c.l.b16 %v2444
    %v6045 = vunpack.c.l.b16 %v2445
    %v6046 = vunpack.c.l.b16 %v2446
    %v6047 = vunpack.c.l.b16 %v2447
    %v6048 = vunpack.c.l.b16 %v2448
    %v6049 = vunpack.c.l.b16 %v2449
    %v6050 = vunpack.c.l.b16 %v2450
    %v6051 = vunpack.c.l.b16 %v2451
    %v6052 = vunpack.c.l.b16 %v2452
    %v6053 = vunpack.c.l.b16 %v2453
    %v6054 = vunpack.c.l.b16 %v2454
    %v6055 = vunpack.c.l.b16 %v2455
    %v6056 = vunpack.c.l.b16 %v2456
    %v6057 = vunpack.c.l.b16 %v2457
    %v6058 = vunpack.c.l.b16 %v2458
    %v6059 = vunpack.c.l.b16 %v2459
    %v6060 = vunpack.c.l.b16 %v2460
    %v6061 = vunpack.c.l.b16 %v2461
    %v6062 = vunpack.c.l.b16 %v2462
    %v6063 = vunpack.c.l.b16 %v2463
    %v6064 = vunpack.c.l.b16 %v2464
    %v6065 = vunpack.c.l.b16 %v2465
    %v6066 = vunpack.c.l.b16 %v2466
    %v6067 = vunpack.c.l.b16 %v2467
    %v6068 = vunpack.c.l.b16 %v2468
    %v6069 = vunpack.c.l.b16 %v2469
    %v6070 = vunpack.c.l.b16 %v2470
    %v6071 = vunpack.c.l.b16 %v2471
    %v6072 = vunpack.c.l.b16 %v2472
    %v6073 = vunpack.c.l.b16 %v2473
    %v6074 = vunpack.c.l.b16 %v2474
    %v6075 = vunpack.c.l.b16 %v2475
    %v6076 = vunpack.c.l.b16 %v2476
    %v6077 = vunpack.c.l.b16 %v2477
    %v6078 = vunpack.c.l.b16 %v2478
    %v6079 = vunpack.c.l.b16 %v2479
    %v6080 = vunpack.c.l.b16 %v2480
    %v6081 = vunpack.c.l.b16 %v2481
    %v6082 = vunpack.c.l.b16 %v2482
    %v6083 = vunpack.c.l.b16 %v2483
    %v6084 = vunpack.c.l.b16 %v2484
    %v6085 = vunpack.c.l.b16 %v2485
    %v6086 = vunpack.c.l.b16 %v2486
    %v6087 = vunpack.c.l.b16 %v2487
    %v6088 = vunpack.c.l.b16 %v2488
    %v6089 = vunpack.c.l.b16 %v2489
    %v6090 = vunpack.c.l.b16 %v2490
    %v6091 = vunpack.c.l.b16 %v2491
    %v6092 = vunpack.c.l.b16 %v2492
    %v6093 = vunpack.c.l.b16 %v2493
    %v6094 = vunpack.c.l.b16 %v2494
    %v6095 = vunpack.c.l.b16 %v2495
    %v6096 = vunpack.c.l.b16 %v2496
    %v6097 = vunpack.c.l.b16 %v2497
    %v6098 = vunpack.c.l.b16 %v2498
    %v6099 = vunpack.c.l.b16 %v2499
    %v6100 = vunpack.c.l.b16 %v2500
    %v6101 = vunpack.c.l.b16 %v2501
    %v6102 = vunpack.c.l.b16 %v2502
    %v6103 = vunpack.c.l.b16 %v2503
    %v6104 = vunpack.c.l.b16 %v2504
    %v6105 = vunpack.c.l.b16 %v2505
    %v6106 = vunpack.c.l.b16 %v2506
    %v6107 = vunpack.c.l.b16 %v2507
    %v6108 = vunpack.c.l.b16 %v2508
    %v6109 = vunpack.c.l.b16 %v2509
    %v6110 = vunpack.c.l.b16 %v2510
    %v6111 = vunpack.c.l.b16 %v2511
    %v6112 = vunpack.c.l.b16 %v2512
    %v6113 = vunpack.c.l.b16 %v2513
    %v6114 = vunpack.c.l.b16 %v2514
    %v6115 = vunpack.c.l.b16 %v2515
    %v6116 = vunpack.c.l.b16 %v2516
    %v6117 = vunpack.c.l.b16 %v2517
    %v6118 = vunpack.c.l.b16 %v2518
    %v6119 = vunpack.c.l.b16 %v2519
    %v6120 = vunpack.c.l.b16 %v2520
    %v6121 = vunpack.c.l.b16 %v2521
    %v6122 = vunpack.c.l.b16 %v2522
    %v6123 = vunpack.c.l.b16 %v2523
    %v6124 = vunpack.c.l.b16 %v2524
    %v6125 = vunpack.c.l.b16 %v2525
    %v6126 = vunpack.c.l.b16 %v2526
    %v6127 = vunpack.c.l.b16 %v2527
    %v6128 = vunpack.c.l.b16 %v2528
    %v6129 = vunpack.c.l.b16 %v2529
    %v6130 = vunpack.c.l.b16 %v2530
    %v6131 = vunpack.c.l.b16 %v2531
    %v6132 = vunpack.c.l.b16 %v2532
    %v6133 = vunpack.c.l.b16 %v2533
    %v6134 = vunpack.c.l.b16 %v2534
    %v6135 = vunpack.c.l.b16 %v2535
    %v6136 = vunpack.c.l.b16 %v2536
    %v6137 = vunpack.c.l.b16 %v2537
    %v6138 = vunpack.c.l.b16 %v2538
    %v6139 = vunpack.c.l.b16 %v2539
    %v6140 = vunpack.c.l.b16 %v2540
    %v6141 = vunpack.c.l.b16 %v2541
    %v6142 = vunpack.c.l.b16 %v2542
    %v6143 = vunpack.c.l.b16 %v2543
    %v6144 = vunpack.c.l.b16 %v2544
    %v6145 = vunpack.c.l.b16 %v2545
    %v6146 = vunpack.c.l.b16 %v2546
    %v6147 = vunpack.c.l.b16 %v2547
    %v6148 = vunpack.c.l.b16 %v2548
    %v6149 = vunpack.c.l.b16 %v2549
    %v6150 = vunpack.c.l.b16 %v2550
    %v6151 = vunpack.c.l.b16 %v2551
    %v6152 = vunpack.c.l.b16 %v2552
    %v6153 = vunpack.c.l.b16 %v2553
    %v6154 = vunpack.c.l.b16 %v2554
    %v6155 = vunpack.c.l.b16 %v2555
    %v6156 = vunpack.c.l.b16 %v2556
    %v6157 = vunpack.c.l.b16 %v2557
    %v6158 = vunpack.c.l.b16 %v2558
    %v6159 = vunpack.c.l.b16 %v2559
    %v6160 = vunpack.c.l.b16 %v2560
    %v6161 = vunpack.c.l.b16 %v2561
    %v6162 = vunpack.c.l.b16 %v2562
    %v6163 = vunpack.c.l.b16 %v2563
    %v6164 = vunpack.c.l.b16 %v2564
    %v6165 = vunpack.c.l.b16 %v2565
    %v6166 = vunpack.c.l.b16 %v2566
    %v6167 = vunpack.c.l.b16 %v2567
    %v6168 = vunpack.c.l.b16 %v2568
    %v6169 = vunpack.c.l.b16 %v2569
    %v6170 = vunpack.c.l.b16 %v2570
    %v6171 = vunpack.c.l.b16 %v2571
    %v6172 = vunpack.c.l.b16 %v2572
    %v6173 = vunpack.c.l.b16 %v2573
    %v6174 = vunpack.c.l.b16 %v2574
    %v6175 = vunpack.c.l.b16 %v2575
    %v6176 = vunpack.c.l.b16 %v2576
    %v6177 = vunpack.c.l.b16 %v2577
    %v6178 = vunpack.c.l.b16 %v2578
    %v6179 = vunpack.c.l.b16 %v2579
    %v6180 = vunpack.c.l.b16 %v2580
    %v6181 = vunpack.c.l.b16 %v2581
    %v6182 = vunpack.c.l.b16 %v2582
    %v6183 = vunpack.c.l.b16 %v2583
    %v6184 = vunpack.c.l.b16 %v2584
    %v6185 = vunpack.c.l.b16 %v2585
    %v6186 = vunpack.c.l.b16 %v2586
    %v6187 = vunpack.c.l.b16 %v2587
    %v6188 = vunpack.c.l.b16 %v2588
    %v6189 = vunpack.c.l.b16 %v2589
    %v6190 = vunpack.c.l.b16 %v2590
    %v6191 = vunpack.c.l.b16 %v2591
    %v6192 = vunpack.c.l.b16 %v2592
    %v6193 = vunpack.c.l.b16 %v2593
    %v6194 = vunpack.c.l.b16 %v2594
    %v6195 = vunpack.c.l.b16 %v2595
    %v6196 = vunpack.c.l.b16 %v2596
    %v6197 = vunpack.c.l.b16 %v2597
    %v6198 = vunpack.c.l.b16 %v2598
    %v6199 = vunpack.c.l.b16 %v2599
    %v6200 = vunpack.c.l.b16 %v2600
    %v6201 = vunpack.c.l.b16 %v2601
    %v6202 = vunpack.c.l.b16 %v2602
    %v6203 = vunpack.c.l.b16 %v2603
    %v6204 = vunpack.c.l.b16 %v2604
    %v6205 = vunpack.c.l.b16 %v2605
    %v6206 = vunpack.c.l.b16 %v2606
    %v6207 = vunpack.c.l.b16 %v2607
    %v6208 = vunpack.c.l.b16 %v2608
    %v6209 = vunpack.c.l.b16 %v2609
    %v6210 = vunpack.c.l.b16 %v2610
    %v6211 = vunpack.c.l.b16 %v2611
    %v6212 = vunpack.c.l.b16 %v2612
    %v6213 = vunpack.c.l.b16 %v2613
    %v6214 = vunpack.c.l.b16 %v2614
    %v6215 = vunpack.c.l.b16 %v2615
    %v6216 = vunpack.c.l.b16 %v2616
    %v6217 = vunpack.c.l.b16 %v2617
    %v6218 = vunpack.c.l.b16 %v2618
    %v6219 = vunpack.c.l.b16 %v2619
    %v6220 = vunpack.c.l.b16 %v2620
    %v6221 = vunpack.c.l.b16 %v2621
    %v6222 = vunpack.c.l.b16 %v2622
    %v6223 = vunpack.c.l.b16 %v2623
    %v6224 = vunpack.c.l.b16 %v2624
    %v6225 = vunpack.c.l.b16 %v2625
    %v6226 = vunpack.c.l.b16 %v2626
    %v6227 = vunpack.c.l.b16 %v2627
    %v6228 = vunpack.c.l.b16 %v2628
    %v6229 = vunpack.c.l.b16 %v2629
    %v6230 = vunpack.c.l.b16 %v2630
    %v6231 = vunpack.c.l.b16 %v2631
    %v6232 = vunpack.c.l.b16 %v2632
    %v6233 = vunpack.c.l.b16 %v2633
    %v6234 = vunpack.c.l.b16 %v2634
    %v6235 = vunpack.c.l.b16 %v2635
    %v6236 = vunpack.c.l.b16 %v2636
    %v6237 = vunpack.c.l.b16 %v2637
    %v6238 = vunpack.c.l.b16 %v2638
    %v6239 = vunpack.c.l.b16 %v2639
    %v6240 = vunpack.c.l.b16 %v2640
    %v6241 = vunpack.c.l.b16 %v2641
    %v6242 = vunpack.c.l.b16 %v2642
    %v6243 = vunpack.c.l.b16 %v2643
    %v6244 = vunpack.c.l.b16 %v2644
    %v6245 = vunpack.c.l.b16 %v2645
    %v6246 = vunpack.c.l.b16 %v2646
    %v6247 = vunpack.c.l.b16 %v2647
    %v6248 = vunpack.c.l.b16 %v2648
    %v6249 = vunpack.c.l.b16 %v2649
    %v6250 = vunpack.c.l.b16 %v2650
    %v6251 = vunpack.c.l.b16 %v2651
    %v6252 = vunpack.c.l.b16 %v2652
    %v6253 = vunpack.c.l.b16 %v2653
    %v6254 = vunpack.c.l.b16 %v2654
    %v6255 = vunpack.c.l.b16 %v2655
    %v6256 = vunpack.c.l.b16 %v2656
    %v6257 = vunpack.c.l.b16 %v2657
    %v6258 = vunpack.c.l.b16 %v2658
    %v6259 = vunpack.c.l.b16 %v2659
    %v6260 = vunpack.c.l.b16 %v2660
    %v6261 = vunpack.c.l.b16 %v2661
    %v6262 = vunpack.c.l.b16 %v2662
    %v6263 = vunpack.c.l.b16 %v2663
    %v6264 = vunpack.c.l.b16 %v2664
    %v6265 = vunpack.c.l.b16 %v2665
    %v6266 = vunpack.c.l.b16 %v2666
    %v6267 = vunpack.c.l.b16 %v2667
    %v6268 = vunpack.c.l.b16 %v2668
    %v6269 = vunpack.c.l.b16 %v2669
    %v6270 = vunpack.c.l.b16 %v2670
    %v6271 = vunpack.c.l.b16 %v2671
    %v6272 = vunpack.c.l.b16 %v2672
    %v6273 = vunpack.c.l.b16 %v2673
    %v6274 = vunpack.c.l.b16 %v2674
    %v6275 = vunpack.c.l.b16 %v2675
    %v6276 = vunpack.c.l.b16 %v2676
    %v6277 = vunpack.c.l.b16 %v2677
    %v6278 = vunpack.c.l.b16 %v2678
    %v6279 = vunpack.c.l.b16 %v2679
    %v6280 = vunpack.c.l.b16 %v2680
    %v6281 = vunpack.c.l.b16 %v2681
    %v6282 = vunpack.c.l.b16 %v2682
    %v6283 = vunpack.c.l.b16 %v2683
    %v6284 = vunpack.c.l.b16 %v2684
    %v6285 = vunpack.c.l.b16 %v2685
    %v6286 = vunpack.c.l.b16 %v2686
    %v6287 = vunpack.c.l.b16 %v2687
    %v6288 = vunpack.c.l.b16 %v2688
    %v6289 = vunpack.c.l.b16 %v2689
    %v6290 = vunpack.c.l.b16 %v2690
    %v6291 = vunpack.c.l.b16 %v2691
    %v6292 = vunpack.c.l.b16 %v2692
    %v6293 = vunpack.c.l.b16 %v2693
    %v6294 = vunpack.c.l.b16 %v2694
    %v6295 = vunpack.c.l.b16 %v2695
    %v6296 = vunpack.c.l.b16 %v2696
    %v6297 = vunpack.c.l.b16 %v2697
    %v6298 = vunpack.c.l.b16 %v2698
    %v6299 = vunpack.c.l.b16 %v2699
    %v6300 = vunpack.c.l.b16 %v2700
    %v6301 = vunpack.c.l.b16 %v2701
    %v6302 = vunpack.c.l.b16 %v2702
    %v6303 = vunpack.c.l.b16 %v2703
    %v6304 = vunpack.c.l.b16 %v2704
    %v6305 = vunpack.c.l.b16 %v2705
    %v6306 = vunpack.c.l.b16 %v2706
    %v6307 = vunpack.c.l.b16 %v2707
    %v6308 = vunpack.c.l.b16 %v2708
    %v6309 = vunpack.c.l.b16 %v2709
    %v6310 = vunpack.c.l.b16 %v2710
    %v6311 = vunpack.c.l.b16 %v2711
    %v6312 = vunpack.c.l.b16 %v2712
    %v6313 = vunpack.c.l.b16 %v2713
    %v6314 = vunpack.c.l.b16 %v2714
    %v6315 = vunpack.c.l.b16 %v2715
    %v6316 = vunpack.c.l.b16 %v2716
    %v6317 = vunpack.c.l.b16 %v2717
    %v6318 = vunpack.c.l.b16 %v2718
    %v6319 = vunpack.c.l.b16 %v2719
    %v6320 = vunpack.c.l.b16 %v2720
    %v6321 = vpack.c.b16 %v4522, %v4521
    %v6322 = vpack.c.b16 %v4524, %v4523
    %v6323 = vpack.c.b16 %v4526, %v4525
    %v6324 = vpack.c.b16 %v4528, %v4527
    %v6325 = vpack.c.b16 %v4530, %v4529
    %v6326 = vpack.c.b16 %v4532, %v4531
    %v6327 = vpack.c.b16 %v4534, %v4533
    %v6328 = vpack.c.b16 %v4536, %v4535
    %v6329 = vpack.c.b16 %v4538, %v4537
    %v6330 = vpack.c.b16 %v4540, %v4539
    %v6331 = vpack.c.b16 %v4542, %v4541
    %v6332 = vpack.c.b16 %v4544, %v4543
    %v6333 = vpack.c.b16 %v4546, %v4545
    %v6334 = vpack.c.b16 %v4548, %v4547
    %v6335 = vpack.c.b16 %v4550, %v4549
    %v6336 = vpack.c.b16 %v4552, %v4551
    %v6337 = vpack.c.b16 %v4554, %v4553
    %v6338 = vpack.c.b16 %v4556, %v4555
    %v6339 = vpack.c.b16 %v4558, %v4557
    %v6340 = vpack.c.b16 %v4560, %v4559
    %v6341 = vpack.c.b16 %v4562, %v4561
    %v6342 = vpack.c.b16 %v4564, %v4563
    %v6343 = vpack.c.b16 %v4566, %v4565
    %v6344 = vpack.c.b16 %v4568, %v4567
    %v6345 = vpack.c.b16 %v4570, %v4569
    %v6346 = vpack.c.b16 %v4572, %v4571
    %v6347 = vpack.c.b16 %v4574, %v4573
    %v6348 = vpack.c.b16 %v4576, %v4575
    %v6349 = vpack.c.b16 %v4578, %v4577
    %v6350 = vpack.c.b16 %v4580, %v4579
    %v6351 = vpack.c.b16 %v4582, %v4581
    %v6352 = vpack.c.b16 %v4584, %v4583
    %v6353 = vpack.c.b16 %v4586, %v4585
    %v6354 = vpack.c.b16 %v4588, %v4587
    %v6355 = vpack.c.b16 %v4590, %v4589
    %v6356 = vpack.c.b16 %v4592, %v4591
    %v6357 = vpack.c.b16 %v4594, %v4593
    %v6358 = vpack.c.b16 %v4596, %v4595
    %v6359 = vpack.c.b16 %v4598, %v4597
    %v6360 = vpack.c.b16 %v4600, %v4599
    %v6361 = vpack.c.b16 %v4602, %v4601
    %v6362 = vpack.c.b16 %v4604, %v4603
    %v6363 = vpack.c.b16 %v4606, %v4605
    %v6364 = vpack.c.b16 %v4608, %v4607
    %v6365 = vpack.c.b16 %v4610, %v4609
    %v6366 = vpack.c.b16 %v4612, %v4611
    %v6367 = vpack.c.b16 %v4614, %v4613
    %v6368 = vpack.c.b16 %v4616, %v4615
    %v6369 = vpack.c.b16 %v4618, %v4617
    %v6370 = vpack.c.b16 %v4620, %v4619
    %v6371 = vpack.c.b16 %v4622, %v4621
    %v6372 = vpack.c.b16 %v4624, %v4623
    %v6373 = vpack.c.b16 %v4626, %v4625
    %v6374 = vpack.c.b16 %v4628, %v4627
    %v6375 = vpack.c.b16 %v4630, %v4629
    %v6376 = vpack.c.b16 %v4632, %v4631
    %v6377 = vpack.c.b16 %v4634, %v4633
    %v6378 = vpack.c.b16 %v4636, %v4635
    %v6379 = vpack.c.b16 %v4638, %v4637
    %v6380 = vpack.c.b16 %v4640, %v4639
    %v6381 = vpack.c.b16 %v4642, %v4641
    %v6382 = vpack.c.b16 %v4644, %v4643
    %v6383 = vpack.c.b16 %v4646, %v4645
    %v6384 = vpack.c.b16 %v4648, %v4647
    %v6385 = vpack.c.b16 %v4650, %v4649
    %v6386 = vpack.c.b16 %v4652, %v4651
    %v6387 = vpack.c.b16 %v4654, %v4653
    %v6388 = vpack.c.b16 %v4656, %v4655
    %v6389 = vpack.c.b16 %v4658, %v4657
    %v6390 = vpack.c.b16 %v4660, %v4659
    %v6391 = vpack.c.b16 %v4662, %v4661
    %v6392 = vpack.c.b16 %v4664, %v4663
    %v6393 = vpack.c.b16 %v4666, %v4665
    %v6394 = vpack.c.b16 %v4668, %v4667
    %v6395 = vpack.c.b16 %v4670, %v4669
    %v6396 = vpack.c.b16 %v4672, %v4671
    %v6397 = vpack.c.b16 %v4674, %v4673
    %v6398 = vpack.c.b16 %v4676, %v4675
    %v6399 = vpack.c.b16 %v4678, %v4677
    %v6400 = vpack.c.b16 %v4680, %v4679
    %v6401 = vpack.c.b16 %v4682, %v4681
    %v6402 = vpack.c.b16 %v4684, %v4683
    %v6403 = vpack.c.b16 %v4686, %v4685
    %v6404 = vpack.c.b16 %v4688, %v4687
    %v6405 = vpack.c.b16 %v4690, %v4689
    %v6406 = vpack.c.b16 %v4692, %v4691
    %v6407 = vpack.c.b16 %v4694, %v4693
    %v6408 = vpack.c.b16 %v4696, %v4695
    %v6409 = vpack.c.b16 %v4698, %v4697
    %v6410 = vpack.c.b16 %v4700, %v4699
    %v6411 = vpack.c.b16 %v4702, %v4701
    %v6412 = vpack.c.b16 %v4704, %v4703
    %v6413 = vpack.c.b16 %v4706, %v4705
    %v6414 = vpack.c.b16 %v4708, %v4707
    %v6415 = vpack.c.b16 %v4710, %v4709
    %v6416 = vpack.c.b16 %v4712, %v4711
    %v6417 = vpack.c.b16 %v4714, %v4713
    %v6418 = vpack.c.b16 %v4716, %v4715
    %v6419 = vpack.c.b16 %v4718, %v4717
    %v6420 = vpack.c.b16 %v4720, %v4719
    %v6421 = vpack.c.b16 %v4722, %v4721
    %v6422 = vpack.c.b16 %v4724, %v4723
    %v6423 = vpack.c.b16 %v4726, %v4725
    %v6424 = vpack.c.b16 %v4728, %v4727
    %v6425 = vpack.c.b16 %v4730, %v4729
    %v6426 = vpack.c.b16 %v4732, %v4731
    %v6427 = vpack.c.b16 %v4734, %v4733
    %v6428 = vpack.c.b16 %v4736, %v4735
    %v6429 = vpack.c.b16 %v4738, %v4737
    %v6430 = vpack.c.b16 %v4740, %v4739
    %v6431 = vpack.c.b16 %v4742, %v4741
    %v6432 = vpack.c.b16 %v4744, %v4743
    %v6433 = vpack.c.b16 %v4746, %v4745
    %v6434 = vpack.c.b16 %v4748, %v4747
    %v6435 = vpack.c.b16 %v4750, %v4749
    %v6436 = vpack.c.b16 %v4752, %v4751
    %v6437 = vpack.c.b16 %v4754, %v4753
    %v6438 = vpack.c.b16 %v4756, %v4755
    %v6439 = vpack.c.b16 %v4758, %v4757
    %v6440 = vpack.c.b16 %v4760, %v4759
    %v6441 = vpack.c.b16 %v4762, %v4761
    %v6442 = vpack.c.b16 %v4764, %v4763
    %v6443 = vpack.c.b16 %v4766, %v4765
    %v6444 = vpack.c.b16 %v4768, %v4767
    %v6445 = vpack.c.b16 %v4770, %v4769
    %v6446 = vpack.c.b16 %v4772, %v4771
    %v6447 = vpack.c.b16 %v4774, %v4773
    %v6448 = vpack.c.b16 %v4776, %v4775
    %v6449 = vpack.c.b16 %v4778, %v4777
    %v6450 = vpack.c.b16 %v4780, %v4779
    %v6451 = vpack.c.b16 %v4782, %v4781
    %v6452 = vpack.c.b16 %v4784, %v4783
    %v6453 = vpack.c.b16 %v4786, %v4785
    %v6454 = vpack.c.b16 %v4788, %v4787
    %v6455 = vpack.c.b16 %v4790, %v4789
    %v6456 = vpack.c.b16 %v4792, %v4791
    %v6457 = vpack.c.b16 %v4794, %v4793
    %v6458 = vpack.c.b16 %v4796, %v4795
    %v6459 = vpack.c.b16 %v4798, %v4797
    %v6460 = vpack.c.b16 %v4800, %v4799
    %v6461 = vpack.c.b16 %v4802, %v4801
    %v6462 = vpack.c.b16 %v4804, %v4803
    %v6463 = vpack.c.b16 %v4806, %v4805
    %v6464 = vpack.c.b16 %v4808, %v4807
    %v6465 = vpack.c.b16 %v4810, %v4809
    %v6466 = vpack.c.b16 %v4812, %v4811
    %v6467 = vpack.c.b16 %v4814, %v4813
    %v6468 = vpack.c.b16 %v4816, %v4815
    %v6469 = vpack.c.b16 %v4818, %v4817
    %v6470 = vpack.c.b16 %v4820, %v4819
    %v6471 = vpack.c.b16 %v4822, %v4821
    %v6472 = vpack.c.b16 %v4824, %v4823
    %v6473 = vpack.c.b16 %v4826, %v4825
    %v6474 = vpack.c.b16 %v4828, %v4827
    %v6475 = vpack.c.b16 %v4830, %v4829
    %v6476 = vpack.c.b16 %v4832, %v4831
    %v6477 = vpack.c.b16 %v4834, %v4833
    %v6478 = vpack.c.b16 %v4836, %v4835
    %v6479 = vpack.c.b16 %v4838, %v4837
    %v6480 = vpack.c.b16 %v4840, %v4839
    %v6481 = vpack.c.b16 %v4842, %v4841
    %v6482 = vpack.c.b16 %v4844, %v4843
    %v6483 = vpack.c.b16 %v4846, %v4845
    %v6484 = vpack.c.b16 %v4848, %v4847
    %v6485 = vpack.c.b16 %v4850, %v4849
    %v6486 = vpack.c.b16 %v4852, %v4851
    %v6487 = vpack.c.b16 %v4854, %v4853
    %v6488 = vpack.c.b16 %v4856, %v4855
    %v6489 = vpack.c.b16 %v4858, %v4857
    %v6490 = vpack.c.b16 %v4860, %v4859
    %v6491 = vpack.c.b16 %v4862, %v4861
    %v6492 = vpack.c.b16 %v4864, %v4863
    %v6493 = vpack.c.b16 %v4866, %v4865
    %v6494 = vpack.c.b16 %v4868, %v4867
    %v6495 = vpack.c.b16 %v4870, %v4869
    %v6496 = vpack.c.b16 %v4872, %v4871
    %v6497 = vpack.c.b16 %v4874, %v4873
    %v6498 = vpack.c.b16 %v4876, %v4875
    %v6499 = vpack.c.b16 %v4878, %v4877
    %v6500 = vpack.c.b16 %v4880, %v4879
    %v6501 = vpack.c.b16 %v4882, %v4881
    %v6502 = vpack.c.b16 %v4884, %v4883
    %v6503 = vpack.c.b16 %v4886, %v4885
    %v6504 = vpack.c.b16 %v4888, %v4887
    %v6505 = vpack.c.b16 %v4890, %v4889
    %v6506 = vpack.c.b16 %v4892, %v4891
    %v6507 = vpack.c.b16 %v4894, %v4893
    %v6508 = vpack.c.b16 %v4896, %v4895
    %v6509 = vpack.c.b16 %v4898, %v4897
    %v6510 = vpack.c.b16 %v4900, %v4899
    %v6511 = vpack.c.b16 %v4902, %v4901
    %v6512 = vpack.c.b16 %v4904, %v4903
    %v6513 = vpack.c.b16 %v4906, %v4905
    %v6514 = vpack.c.b16 %v4908, %v4907
    %v6515 = vpack.c.b16 %v4910, %v4909
    %v6516 = vpack.c.b16 %v4912, %v4911
    %v6517 = vpack.c.b16 %v4914, %v4913
    %v6518 = vpack.c.b16 %v4916, %v4915
    %v6519 = vpack.c.b16 %v4918, %v4917
    %v6520 = vpack.c.b16 %v4920, %v4919
    %v6521 = vpack.c.b16 %v4922, %v4921
    %v6522 = vpack.c.b16 %v4924, %v4923
    %v6523 = vpack.c.b16 %v4926, %v4925
    %v6524 = vpack.c.b16 %v4928, %v4927
    %v6525 = vpack.c.b16 %v4930, %v4929
    %v6526 = vpack.c.b16 %v4932, %v4931
    %v6527 = vpack.c.b16 %v4934, %v4933
    %v6528 = vpack.c.b16 %v4936, %v4935
    %v6529 = vpack.c.b16 %v4938, %v4937
    %v6530 = vpack.c.b16 %v4940, %v4939
    %v6531 = vpack.c.b16 %v4942, %v4941
    %v6532 = vpack.c.b16 %v4944, %v4943
    %v6533 = vpack.c.b16 %v4946, %v4945
    %v6534 = vpack.c.b16 %v4948, %v4947
    %v6535 = vpack.c.b16 %v4950, %v4949
    %v6536 = vpack.c.b16 %v4952, %v4951
    %v6537 = vpack.c.b16 %v4954, %v4953
    %v6538 = vpack.c.b16 %v4956, %v4955
    %v6539 = vpack.c.b16 %v4958, %v4957
    %v6540 = vpack.c.b16 %v4960, %v4959
    %v6541 = vpack.c.b16 %v4962, %v4961
    %v6542 = vpack.c.b16 %v4964, %v4963
    %v6543 = vpack.c.b16 %v4966, %v4965
    %v6544 = vpack.c.b16 %v4968, %v4967
    %v6545 = vpack.c.b16 %v4970, %v4969
    %v6546 = vpack.c.b16 %v4972, %v4971
    %v6547 = vpack.c.b16 %v4974, %v4973
    %v6548 = vpack.c.b16 %v4976, %v4975
    %v6549 = vpack.c.b16 %v4978, %v4977
    %v6550 = vpack.c.b16 %v4980, %v4979
    %v6551 = vpack.c.b16 %v4982, %v4981
    %v6552 = vpack.c.b16 %v4984, %v4983
    %v6553 = vpack.c.b16 %v4986, %v4985
    %v6554 = vpack.c.b16 %v4988, %v4987
    %v6555 = vpack.c.b16 %v4990, %v4989
    %v6556 = vpack.c.b16 %v4992, %v4991
    %v6557 = vpack.c.b16 %v4994, %v4993
    %v6558 = vpack.c.b16 %v4996, %v4995
    %v6559 = vpack.c.b16 %v4998, %v4997
    %v6560 = vpack.c.b16 %v5000, %v4999
    %v6561 = vpack.c.b16 %v5002, %v5001
    %v6562 = vpack.c.b16 %v5004, %v5003
    %v6563 = vpack.c.b16 %v5006, %v5005
    %v6564 = vpack.c.b16 %v5008, %v5007
    %v6565 = vpack.c.b16 %v5010, %v5009
    %v6566 = vpack.c.b16 %v5012, %v5011
    %v6567 = vpack.c.b16 %v5014, %v5013
    %v6568 = vpack.c.b16 %v5016, %v5015
    %v6569 = vpack.c.b16 %v5018, %v5017
    %v6570 = vpack.c.b16 %v5020, %v5019
    %v6571 = vpack.c.b16 %v5022, %v5021
    %v6572 = vpack.c.b16 %v5024, %v5023
    %v6573 = vpack.c.b16 %v5026, %v5025
    %v6574 = vpack.c.b16 %v5028, %v5027
    %v6575 = vpack.c.b16 %v5030, %v5029
    %v6576 = vpack.c.b16 %v5032, %v5031
    %v6577 = vpack.c.b16 %v5034, %v5033
    %v6578 = vpack.c.b16 %v5036, %v5035
    %v6579 = vpack.c.b16 %v5038, %v5037
    %v6580 = vpack.c.b16 %v5040, %v5039
    %v6581 = vpack.c.b16 %v5042, %v5041
    %v6582 = vpack.c.b16 %v5044, %v5043
    %v6583 = vpack.c.b16 %v5046, %v5045
    %v6584 = vpack.c.b16 %v5048, %v5047
    %v6585 = vpack.c.b16 %v5050, %v5049
    %v6586 = vpack.c.b16 %v5052, %v5051
    %v6587 = vpack.c.b16 %v5054, %v5053
    %v6588 = vpack.c.b16 %v5056, %v5055
    %v6589 = vpack.c.b16 %v5058, %v5057
    %v6590 = vpack.c.b16 %v5060, %v5059
    %v6591 = vpack.c.b16 %v5062, %v5061
    %v6592 = vpack.c.b16 %v5064, %v5063
    %v6593 = vpack.c.b16 %v5066, %v5065
    %v6594 = vpack.c.b16 %v5068, %v5067
    %v6595 = vpack.c.b16 %v5070, %v5069
    %v6596 = vpack.c.b16 %v5072, %v5071
    %v6597 = vpack.c.b16 %v5074, %v5073
    %v6598 = vpack.c.b16 %v5076, %v5075
    %v6599 = vpack.c.b16 %v5078, %v5077
    %v6600 = vpack.c.b16 %v5080, %v5079
    %v6601 = vpack.c.b16 %v5082, %v5081
    %v6602 = vpack.c.b16 %v5084, %v5083
    %v6603 = vpack.c.b16 %v5086, %v5085
    %v6604 = vpack.c.b16 %v5088, %v5087
    %v6605 = vpack.c.b16 %v5090, %v5089
    %v6606 = vpack.c.b16 %v5092, %v5091
    %v6607 = vpack.c.b16 %v5094, %v5093
    %v6608 = vpack.c.b16 %v5096, %v5095
    %v6609 = vpack.c.b16 %v5098, %v5097
    %v6610 = vpack.c.b16 %v5100, %v5099
    %v6611 = vpack.c.b16 %v5102, %v5101
    %v6612 = vpack.c.b16 %v5104, %v5103
    %v6613 = vpack.c.b16 %v5106, %v5105
    %v6614 = vpack.c.b16 %v5108, %v5107
    %v6615 = vpack.c.b16 %v5110, %v5109
    %v6616 = vpack.c.b16 %v5112, %v5111
    %v6617 = vpack.c.b16 %v5114, %v5113
    %v6618 = vpack.c.b16 %v5116, %v5115
    %v6619 = vpack.c.b16 %v5118, %v5117
    %v6620 = vpack.c.b16 %v5120, %v5119
    %v6621 = vpack.c.b16 %v5122, %v5121
    %v6622 = vpack.c.b16 %v5124, %v5123
    %v6623 = vpack.c.b16 %v5126, %v5125
    %v6624 = vpack.c.b16 %v5128, %v5127
    %v6625 = vpack.c.b16 %v5130, %v5129
    %v6626 = vpack.c.b16 %v5132, %v5131
    %v6627 = vpack.c.b16 %v5134, %v5133
    %v6628 = vpack.c.b16 %v5136, %v5135
    %v6629 = vpack.c.b16 %v5138, %v5137
    %v6630 = vpack.c.b16 %v5140, %v5139
    %v6631 = vpack.c.b16 %v5142, %v5141
    %v6632 = vpack.c.b16 %v5144, %v5143
    %v6633 = vpack.c.b16 %v5146, %v5145
    %v6634 = vpack.c.b16 %v5148, %v5147
    %v6635 = vpack.c.b16 %v5150, %v5149
    %v6636 = vpack.c.b16 %v5152, %v5151
    %v6637 = vpack.c.b16 %v5154, %v5153
    %v6638 = vpack.c.b16 %v5156, %v5155
    %v6639 = vpack.c.b16 %v5158, %v5157
    %v6640 = vpack.c.b16 %v5160, %v5159
    %v6641 = vpack.c.b16 %v5162, %v5161
    %v6642 = vpack.c.b16 %v5164, %v5163
    %v6643 = vpack.c.b16 %v5166, %v5165
    %v6644 = vpack.c.b16 %v5168, %v5167
    %v6645 = vpack.c.b16 %v5170, %v5169
    %v6646 = vpack.c.b16 %v5172, %v5171
    %v6647 = vpack.c.b16 %v5174, %v5173
    %v6648 = vpack.c.b16 %v5176, %v5175
    %v6649 = vpack.c.b16 %v5178, %v5177
    %v6650 = vpack.c.b16 %v5180, %v5179
    %v6651 = vpack.c.b16 %v5182, %v5181
    %v6652 = vpack.c.b16 %v5184, %v5183
    %v6653 = vpack.c.b16 %v5186, %v5185
    %v6654 = vpack.c.b16 %v5188, %v5187
    %v6655 = vpack.c.b16 %v5190, %v5189
    %v6656 = vpack.c.b16 %v5192, %v5191
    %v6657 = vpack.c.b16 %v5194, %v5193
    %v6658 = vpack.c.b16 %v5196, %v5195
    %v6659 = vpack.c.b16 %v5198, %v5197
    %v6660 = vpack.c.b16 %v5200, %v5199
    %v6661 = vpack.c.b16 %v5202, %v5201
    %v6662 = vpack.c.b16 %v5204, %v5203
    %v6663 = vpack.c.b16 %v5206, %v5205
    %v6664 = vpack.c.b16 %v5208, %v5207
    %v6665 = vpack.c.b16 %v5210, %v5209
    %v6666 = vpack.c.b16 %v5212, %v5211
    %v6667 = vpack.c.b16 %v5214, %v5213
    %v6668 = vpack.c.b16 %v5216, %v5215
    %v6669 = vpack.c.b16 %v5218, %v5217
    %v6670 = vpack.c.b16 %v5220, %v5219
    %v6671 = vpack.c.b16 %v5222, %v5221
    %v6672 = vpack.c.b16 %v5224, %v5223
    %v6673 = vpack.c.b16 %v5226, %v5225
    %v6674 = vpack.c.b16 %v5228, %v5227
    %v6675 = vpack.c.b16 %v5230, %v5229
    %v6676 = vpack.c.b16 %v5232, %v5231
    %v6677 = vpack.c.b16 %v5234, %v5233
    %v6678 = vpack.c.b16 %v5236, %v5235
    %v6679 = vpack.c.b16 %v5238, %v5237
    %v6680 = vpack.c.b16 %v5240, %v5239
    %v6681 = vpack.c.b16 %v5242, %v5241
    %v6682 = vpack.c.b16 %v5244, %v5243
    %v6683 = vpack.c.b16 %v5246, %v5245
    %v6684 = vpack.c.b16 %v5248, %v5247
    %v6685 = vpack.c.b16 %v5250, %v5249
    %v6686 = vpack.c.b16 %v5252, %v5251
    %v6687 = vpack.c.b16 %v5254, %v5253
    %v6688 = vpack.c.b16 %v5256, %v5255
    %v6689 = vpack.c.b16 %v5258, %v5257
    %v6690 = vpack.c.b16 %v5260, %v5259
    %v6691 = vpack.c.b16 %v5262, %v5261
    %v6692 = vpack.c.b16 %v5264, %v5263
    %v6693 = vpack.c.b16 %v5266, %v5265
    %v6694 = vpack.c.b16 %v5268, %v5267
    %v6695 = vpack.c.b16 %v5270, %v5269
    %v6696 = vpack.c.b16 %v5272, %v5271
    %v6697 = vpack.c.b16 %v5274, %v5273
    %v6698 = vpack.c.b16 %v5276, %v5275
    %v6699 = vpack.c.b16 %v5278, %v5277
    %v6700 = vpack.c.b16 %v5280, %v5279
    %v6701 = vpack.c.b16 %v5282, %v5281
    %v6702 = vpack.c.b16 %v5284, %v5283
    %v6703 = vpack.c.b16 %v5286, %v5285
    %v6704 = vpack.c.b16 %v5288, %v5287
    %v6705 = vpack.c.b16 %v5290, %v5289
    %v6706 = vpack.c.b16 %v5292, %v5291
    %v6707 = vpack.c.b16 %v5294, %v5293
    %v6708 = vpack.c.b16 %v5296, %v5295
    %v6709 = vpack.c.b16 %v5298, %v5297
    %v6710 = vpack.c.b16 %v5300, %v5299
    %v6711 = vpack.c.b16 %v5302, %v5301
    %v6712 = vpack.c.b16 %v5304, %v5303
    %v6713 = vpack.c.b16 %v5306, %v5305
    %v6714 = vpack.c.b16 %v5308, %v5307
    %v6715 = vpack.c.b16 %v5310, %v5309
    %v6716 = vpack.c.b16 %v5312, %v5311
    %v6717 = vpack.c.b16 %v5314, %v5313
    %v6718 = vpack.c.b16 %v5316, %v5315
    %v6719 = vpack.c.b16 %v5318, %v5317
    %v6720 = vpack.c.b16 %v5320, %v5319
    %v6721 = vpack.c.b16 %v5322, %v5321
    %v6722 = vpack.c.b16 %v5324, %v5323
    %v6723 = vpack.c.b16 %v5326, %v5325
    %v6724 = vpack.c.b16 %v5328, %v5327
    %v6725 = vpack.c.b16 %v5330, %v5329
    %v6726 = vpack.c.b16 %v5332, %v5331
    %v6727 = vpack.c.b16 %v5334, %v5333
    %v6728 = vpack.c.b16 %v5336, %v5335
    %v6729 = vpack.c.b16 %v5338, %v5337
    %v6730 = vpack.c.b16 %v5340, %v5339
    %v6731 = vpack.c.b16 %v5342, %v5341
    %v6732 = vpack.c.b16 %v5344, %v5343
    %v6733 = vpack.c.b16 %v5346, %v5345
    %v6734 = vpack.c.b16 %v5348, %v5347
    %v6735 = vpack.c.b16 %v5350, %v5349
    %v6736 = vpack.c.b16 %v5352, %v5351
    %v6737 = vpack.c.b16 %v5354, %v5353
    %v6738 = vpack.c.b16 %v5356, %v5355
    %v6739 = vpack.c.b16 %v5358, %v5357
    %v6740 = vpack.c.b16 %v5360, %v5359
    %v6741 = vpack.c.b16 %v5362, %v5361
    %v6742 = vpack.c.b16 %v5364, %v5363
    %v6743 = vpack.c.b16 %v5366, %v5365
    %v6744 = vpack.c.b16 %v5368, %v5367
    %v6745 = vpack.c.b16 %v5370, %v5369
    %v6746 = vpack.c.b16 %v5372, %v5371
    %v6747 = vpack.c.b16 %v5374, %v5373
    %v6748 = vpack.c.b16 %v5376, %v5375
    %v6749 = vpack.c.b16 %v5378, %v5377
    %v6750 = vpack.c.b16 %v5380, %v5379
    %v6751 = vpack.c.b16 %v5382, %v5381
    %v6752 = vpack.c.b16 %v5384, %v5383
    %v6753 = vpack.c.b16 %v5386, %v5385
    %v6754 = vpack.c.b16 %v5388, %v5387
    %v6755 = vpack.c.b16 %v5390, %v5389
    %v6756 = vpack.c.b16 %v5392, %v5391
    %v6757 = vpack.c.b16 %v5394, %v5393
    %v6758 = vpack.c.b16 %v5396, %v5395
    %v6759 = vpack.c.b16 %v5398, %v5397
    %v6760 = vpack.c.b16 %v5400, %v5399
    %v6761 = vpack.c.b16 %v5402, %v5401
    %v6762 = vpack.c.b16 %v5404, %v5403
    %v6763 = vpack.c.b16 %v5406, %v5405
    %v6764 = vpack.c.b16 %v5408, %v5407
    %v6765 = vpack.c.b16 %v5410, %v5409
    %v6766 = vpack.c.b16 %v5412, %v5411
    %v6767 = vpack.c.b16 %v5414, %v5413
    %v6768 = vpack.c.b16 %v5416, %v5415
    %v6769 = vpack.c.b16 %v5418, %v5417
    %v6770 = vpack.c.b16 %v5420, %v5419
    %v6771 = vpack.c.b16 %v5422, %v5421
    %v6772 = vpack.c.b16 %v5424, %v5423
    %v6773 = vpack.c.b16 %v5426, %v5425
    %v6774 = vpack.c.b16 %v5428, %v5427
    %v6775 = vpack.c.b16 %v5430, %v5429
    %v6776 = vpack.c.b16 %v5432, %v5431
    %v6777 = vpack.c.b16 %v5434, %v5433
    %v6778 = vpack.c.b16 %v5436, %v5435
    %v6779 = vpack.c.b16 %v5438, %v5437
    %v6780 = vpack.c.b16 %v5440, %v5439
    %v6781 = vpack.c.b16 %v5442, %v5441
    %v6782 = vpack.c.b16 %v5444, %v5443
    %v6783 = vpack.c.b16 %v5446, %v5445
    %v6784 = vpack.c.b16 %v5448, %v5447
    %v6785 = vpack.c.b16 %v5450, %v5449
    %v6786 = vpack.c.b16 %v5452, %v5451
    %v6787 = vpack.c.b16 %v5454, %v5453
    %v6788 = vpack.c.b16 %v5456, %v5455
    %v6789 = vpack.c.b16 %v5458, %v5457
    %v6790 = vpack.c.b16 %v5460, %v5459
    %v6791 = vpack.c.b16 %v5462, %v5461
    %v6792 = vpack.c.b16 %v5464, %v5463
    %v6793 = vpack.c.b16 %v5466, %v5465
    %v6794 = vpack.c.b16 %v5468, %v5467
    %v6795 = vpack.c.b16 %v5470, %v5469
    %v6796 = vpack.c.b16 %v5472, %v5471
    %v6797 = vpack.c.b16 %v5474, %v5473
    %v6798 = vpack.c.b16 %v5476, %v5475
    %v6799 = vpack.c.b16 %v5478, %v5477
    %v6800 = vpack.c.b16 %v5480, %v5479
    %v6801 = vpack.c.b16 %v5482, %v5481
    %v6802 = vpack.c.b16 %v5484, %v5483
    %v6803 = vpack.c.b16 %v5486, %v5485
    %v6804 = vpack.c.b16 %v5488, %v5487
    %v6805 = vpack.c.b16 %v5490, %v5489
    %v6806 = vpack.c.b16 %v5492, %v5491
    %v6807 = vpack.c.b16 %v5494, %v5493
    %v6808 = vpack.c.b16 %v5496, %v5495
    %v6809 = vpack.c.b16 %v5498, %v5497
    %v6810 = vpack.c.b16 %v5500, %v5499
    %v6811 = vpack.c.b16 %v5502, %v5501
    %v6812 = vpack.c.b16 %v5504, %v5503
    %v6813 = vpack.c.b16 %v5506, %v5505
    %v6814 = vpack.c.b16 %v5508, %v5507
    %v6815 = vpack.c.b16 %v5510, %v5509
    %v6816 = vpack.c.b16 %v5512, %v5511
    %v6817 = vpack.c.b16 %v5514, %v5513
    %v6818 = vpack.c.b16 %v5516, %v5515
    %v6819 = vpack.c.b16 %v5518, %v5517
    %v6820 = vpack.c.b16 %v5520, %v5519
    %v6821 = vpack.c.b16 %v5522, %v5521
    %v6822 = vpack.c.b16 %v5524, %v5523
    %v6823 = vpack.c.b16 %v5526, %v5525
    %v6824 = vpack.c.b16 %v5528, %v5527
    %v6825 = vpack.c.b16 %v5530, %v5529
    %v6826 = vpack.c.b16 %v5532, %v5531
    %v6827 = vpack.c.b16 %v5534, %v5533
    %v6828 = vpack.c.b16 %v5536, %v5535
    %v6829 = vpack.c.b16 %v5538, %v5537
    %v6830 = vpack.c.b16 %v5540, %v5539
    %v6831 = vpack.c.b16 %v5542, %v5541
    %v6832 = vpack.c.b16 %v5544, %v5543
    %v6833 = vpack.c.b16 %v5546, %v5545
    %v6834 = vpack.c.b16 %v5548, %v5547
    %v6835 = vpack.c.b16 %v5550, %v5549
    %v6836 = vpack.c.b16 %v5552, %v5551
    %v6837 = vpack.c.b16 %v5554, %v5553
    %v6838 = vpack.c.b16 %v5556, %v5555
    %v6839 = vpack.c.b16 %v5558, %v5557
    %v6840 = vpack.c.b16 %v5560, %v5559
    %v6841 = vpack.c.b16 %v5562, %v5561
    %v6842 = vpack.c.b16 %v5564, %v5563
    %v6843 = vpack.c.b16 %v5566, %v5565
    %v6844 = vpack.c.b16 %v5568, %v5567
    %v6845 = vpack.c.b16 %v5570, %v5569
    %v6846 = vpack.c.b16 %v5572, %v5571
    %v6847 = vpack.c.b16 %v5574, %v5573
    %v6848 = vpack.c.b16 %v5576, %v5575
    %v6849 = vpack.c.b16 %v5578, %v5577
    %v6850 = vpack.c.b16 %v5580, %v5579
    %v6851 = vpack.c.b16 %v5582, %v5581
    %v6852 = vpack.c.b16 %v5584, %v5583
    %v6853 = vpack.c.b16 %v5586, %v5585
    %v6854 = vpack.c.b16 %v5588, %v5587
    %v6855 = vpack.c.b16 %v5590, %v5589
    %v6856 = vpack.c.b16 %v5592, %v5591
    %v6857 = vpack.c.b16 %v5594, %v5593
    %v6858 = vpack.c.b16 %v5596, %v5595
    %v6859 = vpack.c.b16 %v5598, %v5597
    %v6860 = vpack.c.b16 %v5600, %v5599
    %v6861 = vpack.c.b16 %v5602, %v5601
    %v6862 = vpack.c.b16 %v5604, %v5603
    %v6863 = vpack.c.b16 %v5606, %v5605
    %v6864 = vpack.c.b16 %v5608, %v5607
    %v6865 = vpack.c.b16 %v5610, %v5609
    %v6866 = vpack.c.b16 %v5612, %v5611
    %v6867 = vpack.c.b16 %v5614, %v5613
    %v6868 = vpack.c.b16 %v5616, %v5615
    %v6869 = vpack.c.b16 %v5618, %v5617
    %v6870 = vpack.c.b16 %v5620, %v5619
    %v6871 = vpack.c.b16 %v5622, %v5621
    %v6872 = vpack.c.b16 %v5624, %v5623
    %v6873 = vpack.c.b16 %v5626, %v5625
    %v6874 = vpack.c.b16 %v5628, %v5627
    %v6875 = vpack.c.b16 %v5630, %v5629
    %v6876 = vpack.c.b16 %v5632, %v5631
    %v6877 = vpack.c.b16 %v5634, %v5633
    %v6878 = vpack.c.b16 %v5636, %v5635
    %v6879 = vpack.c.b16 %v5638, %v5637
    %v6880 = vpack.c.b16 %v5640, %v5639
    %v6881 = vpack.c.b16 %v5642, %v5641
    %v6882 = vpack.c.b16 %v5644, %v5643
    %v6883 = vpack.c.b16 %v5646, %v5645
    %v6884 = vpack.c.b16 %v5648, %v5647
    %v6885 = vpack.c.b16 %v5650, %v5649
    %v6886 = vpack.c.b16 %v5652, %v5651
    %v6887 = vpack.c.b16 %v5654, %v5653
    %v6888 = vpack.c.b16 %v5656, %v5655
    %v6889 = vpack.c.b16 %v5658, %v5657
    %v6890 = vpack.c.b16 %v5660, %v5659
    %v6891 = vpack.c.b16 %v5662, %v5661
    %v6892 = vpack.c.b16 %v5664, %v5663
    %v6893 = vpack.c.b16 %v5666, %v5665
    %v6894 = vpack.c.b16 %v5668, %v5667
    %v6895 = vpack.c.b16 %v5670, %v5669
    %v6896 = vpack.c.b16 %v5672, %v5671
    %v6897 = vpack.c.b16 %v5674, %v5673
    %v6898 = vpack.c.b16 %v5676, %v5675
    %v6899 = vpack.c.b16 %v5678, %v5677
    %v6900 = vpack.c.b16 %v5680, %v5679
    %v6901 = vpack.c.b16 %v5682, %v5681
    %v6902 = vpack.c.b16 %v5684, %v5683
    %v6903 = vpack.c.b16 %v5686, %v5685
    %v6904 = vpack.c.b16 %v5688, %v5687
    %v6905 = vpack.c.b16 %v5690, %v5689
    %v6906 = vpack.c.b16 %v5692, %v5691
    %v6907 = vpack.c.b16 %v5694, %v5693
    %v6908 = vpack.c.b16 %v5696, %v5695
    %v6909 = vpack.c.b16 %v5698, %v5697
    %v6910 = vpack.c.b16 %v5700, %v5699
    %v6911 = vpack.c.b16 %v5702, %v5701
    %v6912 = vpack.c.b16 %v5704, %v5703
    %v6913 = vpack.c.b16 %v5706, %v5705
    %v6914 = vpack.c.b16 %v5708, %v5707
    %v6915 = vpack.c.b16 %v5710, %v5709
    %v6916 = vpack.c.b16 %v5712, %v5711
    %v6917 = vpack.c.b16 %v5714, %v5713
    %v6918 = vpack.c.b16 %v5716, %v5715
    %v6919 = vpack.c.b16 %v5718, %v5717
    %v6920 = vpack.c.b16 %v5720, %v5719
    %v6921 = vpack.c.b16 %v5722, %v5721
    %v6922 = vpack.c.b16 %v5724, %v5723
    %v6923 = vpack.c.b16 %v5726, %v5725
    %v6924 = vpack.c.b16 %v5728, %v5727
    %v6925 = vpack.c.b16 %v5730, %v5729
    %v6926 = vpack.c.b16 %v5732, %v5731
    %v6927 = vpack.c.b16 %v5734, %v5733
    %v6928 = vpack.c.b16 %v5736, %v5735
    %v6929 = vpack.c.b16 %v5738, %v5737
    %v6930 = vpack.c.b16 %v5740, %v5739
    %v6931 = vpack.c.b16 %v5742, %v5741
    %v6932 = vpack.c.b16 %v5744, %v5743
    %v6933 = vpack.c.b16 %v5746, %v5745
    %v6934 = vpack.c.b16 %v5748, %v5747
    %v6935 = vpack.c.b16 %v5750, %v5749
    %v6936 = vpack.c.b16 %v5752, %v5751
    %v6937 = vpack.c.b16 %v5754, %v5753
    %v6938 = vpack.c.b16 %v5756, %v5755
    %v6939 = vpack.c.b16 %v5758, %v5757
    %v6940 = vpack.c.b16 %v5760, %v5759
    %v6941 = vpack.c.b16 %v5762, %v5761
    %v6942 = vpack.c.b16 %v5764, %v5763
    %v6943 = vpack.c.b16 %v5766, %v5765
    %v6944 = vpack.c.b16 %v5768, %v5767
    %v6945 = vpack.c.b16 %v5770, %v5769
    %v6946 = vpack.c.b16 %v5772, %v5771
    %v6947 = vpack.c.b16 %v5774, %v5773
    %v6948 = vpack.c.b16 %v5776, %v5775
    %v6949 = vpack.c.b16 %v5778, %v5777
    %v6950 = vpack.c.b16 %v5780, %v5779
    %v6951 = vpack.c.b16 %v5782, %v5781
    %v6952 = vpack.c.b16 %v5784, %v5783
    %v6953 = vpack.c.b16 %v5786, %v5785
    %v6954 = vpack.c.b16 %v5788, %v5787
    %v6955 = vpack.c.b16 %v5790, %v5789
    %v6956 = vpack.c.b16 %v5792, %v5791
    %v6957 = vpack.c.b16 %v5794, %v5793
    %v6958 = vpack.c.b16 %v5796, %v5795
    %v6959 = vpack.c.b16 %v5798, %v5797
    %v6960 = vpack.c.b16 %v5800, %v5799
    %v6961 = vpack.c.b16 %v5802, %v5801
    %v6962 = vpack.c.b16 %v5804, %v5803
    %v6963 = vpack.c.b16 %v5806, %v5805
    %v6964 = vpack.c.b16 %v5808, %v5807
    %v6965 = vpack.c.b16 %v5810, %v5809
    %v6966 = vpack.c.b16 %v5812, %v5811
    %v6967 = vpack.c.b16 %v5814, %v5813
    %v6968 = vpack.c.b16 %v5816, %v5815
    %v6969 = vpack.c.b16 %v5818, %v5817
    %v6970 = vpack.c.b16 %v5820, %v5819
    %v6971 = vpack.c.b16 %v5822, %v5821
    %v6972 = vpack.c.b16 %v5824, %v5823
    %v6973 = vpack.c.b16 %v5826, %v5825
    %v6974 = vpack.c.b16 %v5828, %v5827
    %v6975 = vpack.c.b16 %v5830, %v5829
    %v6976 = vpack.c.b16 %v5832, %v5831
    %v6977 = vpack.c.b16 %v5834, %v5833
    %v6978 = vpack.c.b16 %v5836, %v5835
    %v6979 = vpack.c.b16 %v5838, %v5837
    %v6980 = vpack.c.b16 %v5840, %v5839
    %v6981 = vpack.c.b16 %v5842, %v5841
    %v6982 = vpack.c.b16 %v5844, %v5843
    %v6983 = vpack.c.b16 %v5846, %v5845
    %v6984 = vpack.c.b16 %v5848, %v5847
    %v6985 = vpack.c.b16 %v5850, %v5849
    %v6986 = vpack.c.b16 %v5852, %v5851
    %v6987 = vpack.c.b16 %v5854, %v5853
    %v6988 = vpack.c.b16 %v5856, %v5855
    %v6989 = vpack.c.b16 %v5858, %v5857
    %v6990 = vpack.c.b16 %v5860, %v5859
    %v6991 = vpack.c.b16 %v5862, %v5861
    %v6992 = vpack.c.b16 %v5864, %v5863
    %v6993 = vpack.c.b16 %v5866, %v5865
    %v6994 = vpack.c.b16 %v5868, %v5867
    %v6995 = vpack.c.b16 %v5870, %v5869
    %v6996 = vpack.c.b16 %v5872, %v5871
    %v6997 = vpack.c.b16 %v5874, %v5873
    %v6998 = vpack.c.b16 %v5876, %v5875
    %v6999 = vpack.c.b16 %v5878, %v5877
    %v7000 = vpack.c.b16 %v5880, %v5879
    %v7001 = vpack.c.b16 %v5882, %v5881
    %v7002 = vpack.c.b16 %v5884, %v5883
    %v7003 = vpack.c.b16 %v5886, %v5885
    %v7004 = vpack.c.b16 %v5888, %v5887
    %v7005 = vpack.c.b16 %v5890, %v5889
    %v7006 = vpack.c.b16 %v5892, %v5891
    %v7007 = vpack.c.b16 %v5894, %v5893
    %v7008 = vpack.c.b16 %v5896, %v5895
    %v7009 = vpack.c.b16 %v5898, %v5897
    %v7010 = vpack.c.b16 %v5900, %v5899
    %v7011 = vpack.c.b16 %v5902, %v5901
    %v7012 = vpack.c.b16 %v5904, %v5903
    %v7013 = vpack.c.b16 %v5906, %v5905
    %v7014 = vpack.c.b16 %v5908, %v5907
    %v7015 = vpack.c.b16 %v5910, %v5909
    %v7016 = vpack.c.b16 %v5912, %v5911
    %v7017 = vpack.c.b16 %v5914, %v5913
    %v7018 = vpack.c.b16 %v5916, %v5915
    %v7019 = vpack.c.b16 %v5918, %v5917
    %v7020 = vpack.c.b16 %v5920, %v5919
    %v7021 = vpack.c.b16 %v5922, %v5921
    %v7022 = vpack.c.b16 %v5924, %v5923
    %v7023 = vpack.c.b16 %v5926, %v5925
    %v7024 = vpack.c.b16 %v5928, %v5927
    %v7025 = vpack.c.b16 %v5930, %v5929
    %v7026 = vpack.c.b16 %v5932, %v5931
    %v7027 = vpack.c.b16 %v5934, %v5933
    %v7028 = vpack.c.b16 %v5936, %v5935
    %v7029 = vpack.c.b16 %v5938, %v5937
    %v7030 = vpack.c.b16 %v5940, %v5939
    %v7031 = vpack.c.b16 %v5942, %v5941
    %v7032 = vpack.c.b16 %v5944, %v5943
    %v7033 = vpack.c.b16 %v5946, %v5945
    %v7034 = vpack.c.b16 %v5948, %v5947
    %v7035 = vpack.c.b16 %v5950, %v5949
    %v7036 = vpack.c.b16 %v5952, %v5951
    %v7037 = vpack.c.b16 %v5954, %v5953
    %v7038 = vpack.c.b16 %v5956, %v5955
    %v7039 = vpack.c.b16 %v5958, %v5957
    %v7040 = vpack.c.b16 %v5960, %v5959
    %v7041 = vpack.c.b16 %v5962, %v5961
    %v7042 = vpack.c.b16 %v5964, %v5963
    %v7043 = vpack.c.b16 %v5966, %v5965
    %v7044 = vpack.c.b16 %v5968, %v5967
    %v7045 = vpack.c.b16 %v5970, %v5969
    %v7046 = vpack.c.b16 %v5972, %v5971
    %v7047 = vpack.c.b16 %v5974, %v5973
    %v7048 = vpack.c.b16 %v5976, %v5975
    %v7049 = vpack.c.b16 %v5978, %v5977
    %v7050 = vpack.c.b16 %v5980, %v5979
    %v7051 = vpack.c.b16 %v5982, %v5981
    %v7052 = vpack.c.b16 %v5984, %v5983
    %v7053 = vpack.c.b16 %v5986, %v5985
    %v7054 = vpack.c.b16 %v5988, %v5987
    %v7055 = vpack.c.b16 %v5990, %v5989
    %v7056 = vpack.c.b16 %v5992, %v5991
    %v7057 = vpack.c.b16 %v5994, %v5993
    %v7058 = vpack.c.b16 %v5996, %v5995
    %v7059 = vpack.c.b16 %v5998, %v5997
    %v7060 = vpack.c.b16 %v6000, %v5999
    %v7061 = vpack.c.b16 %v6002, %v6001
    %v7062 = vpack.c.b16 %v6004, %v6003
    %v7063 = vpack.c.b16 %v6006, %v6005
    %v7064 = vpack.c.b16 %v6008, %v6007
    %v7065 = vpack.c.b16 %v6010, %v6009
    %v7066 = vpack.c.b16 %v6012, %v6011
    %v7067 = vpack.c.b16 %v6014, %v6013
    %v7068 = vpack.c.b16 %v6016, %v6015
    %v7069 = vpack.c.b16 %v6018, %v6017
    %v7070 = vpack.c.b16 %v6020, %v6019
    %v7071 = vpack.c.b16 %v6022, %v6021
    %v7072 = vpack.c.b16 %v6024, %v6023
    %v7073 = vpack.c.b16 %v6026, %v6025
    %v7074 = vpack.c.b16 %v6028, %v6027
    %v7075 = vpack.c.b16 %v6030, %v6029
    %v7076 = vpack.c.b16 %v6032, %v6031
    %v7077 = vpack.c.b16 %v6034, %v6033
    %v7078 = vpack.c.b16 %v6036, %v6035
    %v7079 = vpack.c.b16 %v6038, %v6037
    %v7080 = vpack.c.b16 %v6040, %v6039
    %v7081 = vpack.c.b16 %v6042, %v6041
    %v7082 = vpack.c.b16 %v6044, %v6043
    %v7083 = vpack.c.b16 %v6046, %v6045
    %v7084 = vpack.c.b16 %v6048, %v6047
    %v7085 = vpack.c.b16 %v6050, %v6049
    %v7086 = vpack.c.b16 %v6052, %v6051
    %v7087 = vpack.c.b16 %v6054, %v6053
    %v7088 = vpack.c.b16 %v6056, %v6055
    %v7089 = vpack.c.b16 %v6058, %v6057
    %v7090 = vpack.c.b16 %v6060, %v6059
    %v7091 = vpack.c.b16 %v6062, %v6061
    %v7092 = vpack.c.b16 %v6064, %v6063
    %v7093 = vpack.c.b16 %v6066, %v6065
    %v7094 = vpack.c.b16 %v6068, %v6067
    %v7095 = vpack.c.b16 %v6070, %v6069
    %v7096 = vpack.c.b16 %v6072, %v6071
    %v7097 = vpack.c.b16 %v6074, %v6073
    %v7098 = vpack.c.b16 %v6076, %v6075
    %v7099 = vpack.c.b16 %v6078, %v6077
    %v7100 = vpack.c.b16 %v6080, %v6079
    %v7101 = vpack.c.b16 %v6082, %v6081
    %v7102 = vpack.c.b16 %v6084, %v6083
    %v7103 = vpack.c.b16 %v6086, %v6085
    %v7104 = vpack.c.b16 %v6088, %v6087
    %v7105 = vpack.c.b16 %v6090, %v6089
    %v7106 = vpack.c.b16 %v6092, %v6091
    %v7107 = vpack.c.b16 %v6094, %v6093
    %v7108 = vpack.c.b16 %v6096, %v6095
    %v7109 = vpack.c.b16 %v6098, %v6097
    %v7110 = vpack.c.b16 %v6100, %v6099
    %v7111 = vpack.c.b16 %v6102, %v6101
    %v7112 = vpack.c.b16 %v6104, %v6103
    %v7113 = vpack.c.b16 %v6106, %v6105
    %v7114 = vpack.c.b16 %v6108, %v6107
    %v7115 = vpack.c.b16 %v6110, %v6109
    %v7116 = vpack.c.b16 %v6112, %v6111
    %v7117 = vpack.c.b16 %v6114, %v6113
    %v7118 = vpack.c.b16 %v6116, %v6115
    %v7119 = vpack.c.b16 %v6118, %v6117
    %v7120 = vpack.c.b16 %v6120, %v6119
    %v7121 = vpack.c.b16 %v6122, %v6121
    %v7122 = vpack.c.b16 %v6124, %v6123
    %v7123 = vpack.c.b16 %v6126, %v6125
    %v7124 = vpack.c.b16 %v6128, %v6127
    %v7125 = vpack.c.b16 %v6130, %v6129
    %v7126 = vpack.c.b16 %v6132, %v6131
    %v7127 = vpack.c.b16 %v6134, %v6133
    %v7128 = vpack.c.b16 %v6136, %v6135
    %v7129 = vpack.c.b16 %v6138, %v6137
    %v7130 = vpack.c.b16 %v6140, %v6139
    %v7131 = vpack.c.b16 %v6142, %v6141
    %v7132 = vpack.c.b16 %v6144, %v6143
    %v7133 = vpack.c.b16 %v6146, %v6145
    %v7134 = vpack.c.b16 %v6148, %v6147
    %v7135 = vpack.c.b16 %v6150, %v6149
    %v7136 = vpack.c.b16 %v6152, %v6151
    %v7137 = vpack.c.b16 %v6154, %v6153
    %v7138 = vpack.c.b16 %v6156, %v6155
    %v7139 = vpack.c.b16 %v6158, %v6157
    %v7140 = vpack.c.b16 %v6160, %v6159
    %v7141 = vpack.c.b16 %v6162, %v6161
    %v7142 = vpack.c.b16 %v6164, %v6163
    %v7143 = vpack.c.b16 %v6166, %v6165
    %v7144 = vpack.c.b16 %v6168, %v6167
    %v7145 = vpack.c.b16 %v6170, %v6169
    %v7146 = vpack.c.b16 %v6172, %v6171
    %v7147 = vpack.c.b16 %v6174, %v6173
    %v7148 = vpack.c.b16 %v6176, %v6175
    %v7149 = vpack.c.b16 %v6178, %v6177
    %v7150 = vpack.c.b16 %v6180, %v6179
    %v7151 = vpack.c.b16 %v6182, %v6181
    %v7152 = vpack.c.b16 %v6184, %v6183
    %v7153 = vpack.c.b16 %v6186, %v6185
    %v7154 = vpack.c.b16 %v6188, %v6187
    %v7155 = vpack.c.b16 %v6190, %v6189
    %v7156 = vpack.c.b16 %v6192, %v6191
    %v7157 = vpack.c.b16 %v6194, %v6193
    %v7158 = vpack.c.b16 %v6196, %v6195
    %v7159 = vpack.c.b16 %v6198, %v6197
    %v7160 = vpack.c.b16 %v6200, %v6199
    %v7161 = vpack.c.b16 %v6202, %v6201
    %v7162 = vpack.c.b16 %v6204, %v6203
    %v7163 = vpack.c.b16 %v6206, %v6205
    %v7164 = vpack.c.b16 %v6208, %v6207
    %v7165 = vpack.c.b16 %v6210, %v6209
    %v7166 = vpack.c.b16 %v6212, %v6211
    %v7167 = vpack.c.b16 %v6214, %v6213
    %v7168 = vpack.c.b16 %v6216, %v6215
    %v7169 = vpack.c.b16 %v6218, %v6217
    %v7170 = vpack.c.b16 %v6220, %v6219
    %v7171 = vpack.c.b16 %v6222, %v6221
    %v7172 = vpack.c.b16 %v6224, %v6223
    %v7173 = vpack.c.b16 %v6226, %v6225
    %v7174 = vpack.c.b16 %v6228, %v6227
    %v7175 = vpack.c.b16 %v6230, %v6229
    %v7176 = vpack.c.b16 %v6232, %v6231
    %v7177 = vpack.c.b16 %v6234, %v6233
    %v7178 = vpack.c.b16 %v6236, %v6235
    %v7179 = vpack.c.b16 %v6238, %v6237
    %v7180 = vpack.c.b16 %v6240, %v6239
    %v7181 = vpack.c.b16 %v6242, %v6241
    %v7182 = vpack.c.b16 %v6244, %v6243
    %v7183 = vpack.c.b16 %v6246, %v6245
    %v7184 = vpack.c.b16 %v6248, %v6247
    %v7185 = vpack.c.b16 %v6250, %v6249
    %v7186 = vpack.c.b16 %v6252, %v6251
    %v7187 = vpack.c.b16 %v6254, %v6253
    %v7188 = vpack.c.b16 %v6256, %v6255
    %v7189 = vpack.c.b16 %v6258, %v6257
    %v7190 = vpack.c.b16 %v6260, %v6259
    %v7191 = vpack.c.b16 %v6262, %v6261
    %v7192 = vpack.c.b16 %v6264, %v6263
    %v7193 = vpack.c.b16 %v6266, %v6265
    %v7194 = vpack.c.b16 %v6268, %v6267
    %v7195 = vpack.c.b16 %v6270, %v6269
    %v7196 = vpack.c.b16 %v6272, %v6271
    %v7197 = vpack.c.b16 %v6274, %v6273
    %v7198 = vpack.c.b16 %v6276, %v6275
    %v7199 = vpack.c.b16 %v6278, %v6277
    %v7200 = vpack.c.b16 %v6280, %v6279
    %v7201 = vpack.c.b16 %v6282, %v6281
    %v7202 = vpack.c.b16 %v6284, %v6283
    %v7203 = vpack.c.b16 %v6286, %v6285
    %v7204 = vpack.c.b16 %v6288, %v6287
    %v7205 = vpack.c.b16 %v6290, %v6289
    %v7206 = vpack.c.b16 %v6292, %v6291
    %v7207 = vpack.c.b16 %v6294, %v6293
    %v7208 = vpack.c.b16 %v6296, %v6295
    %v7209 = vpack.c.b16 %v6298, %v6297
    %v7210 = vpack.c.b16 %v6300, %v6299
    %v7211 = vpack.c.b16 %v6302, %v6301
    %v7212 = vpack.c.b16 %v6304, %v6303
    %v7213 = vpack.c.b16 %v6306, %v6305
    %v7214 = vpack.c.b16 %v6308, %v6307
    %v7215 = vpack.c.b16 %v6310, %v6309
    %v7216 = vpack.c.b16 %v6312, %v6311
    %v7217 = vpack.c.b16 %v6314, %v6313
    %v7218 = vpack.c.b16 %v6316, %v6315
    %v7219 = vpack.c.b16 %v6318, %v6317
    %v7220 = vpack.c.b16 %v6320, %v6319
    %vm8121 = vcmask 523264
    %v8123 = vsel %vm8121, %v920, 0
    %8125 = vmatprep.subr.bf16.mxu0 0
    %8126 = vmatpush1.bf16.msra.mxu0 %v6328
    %8127 = vmatprep.subr.bf16.mxu0 0
    %8128 = vmatpush1.bf16.msra.mxu0 %v6327
    %8129 = vmatprep.subr.bf16.mxu0 0
    %8130 = vmatpush1.bf16.msra.mxu0 %v6326
    %8131 = vmatprep.subr.bf16.mxu0 0
    %8132 = vmatpush1.bf16.msra.mxu0 %v6325
    %8133 = vmatprep.subr.bf16.mxu0 0
    %8134 = vmatpush1.bf16.msra.mxu0 %v6324
    %8135 = vmatprep.subr.bf16.mxu0 0
    %8136 = vmatpush1.bf16.msra.mxu0 %v6323
    %8137 = vmatprep.subr.bf16.mxu0 0
    %8138 = vmatpush1.bf16.msra.mxu0 %v6322
    %8139 = vmatprep.subr.bf16.mxu0 0
    %8140 = vmatpush1.bf16.msra.mxu0 %v6321
    %8141 = vmatprep.subr.bf16.mxu0 0
    %8142 = vmatpush2.bf16.msra.mxu0 %v6336
    %8143 = vmatprep.subr.bf16.mxu0 0
    %8144 = vmatpush2.bf16.msra.mxu0 %v6335
    %8145 = vmatprep.subr.bf16.mxu0 0
    %8146 = vmatpush2.bf16.msra.mxu0 %v6334
    %8147 = vmatprep.subr.bf16.mxu0 0
    %8148 = vmatpush2.bf16.msra.mxu0 %v6333
    %8149 = vmatprep.subr.bf16.mxu0 0
    %8150 = vmatpush2.bf16.msra.mxu0 %v6332
    %8151 = vmatprep.subr.bf16.mxu0 0
    %8152 = vmatpush2.bf16.msra.mxu0 %v6331
    %8153 = vmatprep.subr.bf16.mxu0 0
    %8154 = vmatpush2.bf16.msra.mxu0 %v6330
    %8155 = vmatprep.subr.bf16.mxu0 0
    %8156 = vmatpush2.bf16.msra.mxu0 %v6329
    %8157 = vmatprep.mubr.bf16.mxu0 %v809
    %8158 = vmatmul.mubr.bf16.gmra.mxu0 %v808
    %v8159 = vpop.f32.mrf.mxu0
    %v8160 = vadd.f32 0.0, %v8159
    %v8161 = vpop.f32.mrf.mxu0
    %v8162 = vpop.f32.mrf.mxu0
    %v8163 = vpop.f32.mrf.mxu0
    %8164 = vdwg.mxu0
    %8165 = vmatprep.subr.bf16.mxu0 0
    %8166 = vmatpush1.bf16.msra.mxu0 %v6344
    %8167 = vmatprep.subr.bf16.mxu0 0
    %8168 = vmatpush1.bf16.msra.mxu0 %v6343
    %8169 = vmatprep.subr.bf16.mxu0 0
    %8170 = vmatpush1.bf16.msra.mxu0 %v6342
    %8171 = vmatprep.subr.bf16.mxu0 0
    %8172 = vmatpush1.bf16.msra.mxu0 %v6341
    %8173 = vmatprep.subr.bf16.mxu0 0
    %8174 = vmatpush1.bf16.msra.mxu0 %v6340
    %8175 = vmatprep.subr.bf16.mxu0 0
    %8176 = vmatpush1.bf16.msra.mxu0 %v6339
    %8177 = vmatprep.subr.bf16.mxu0 0
    %8178 = vmatpush1.bf16.msra.mxu0 %v6338
    %8179 = vmatprep.subr.bf16.mxu0 0
    %8180 = vmatpush1.bf16.msra.mxu0 %v6337
    %8181 = vmatprep.subr.bf16.mxu0 0
    %8182 = vmatpush2.bf16.msra.mxu0 %v6352
    %8183 = vmatprep.subr.bf16.mxu0 0
    %8184 = vmatpush2.bf16.msra.mxu0 %v6351
    %8185 = vmatprep.subr.bf16.mxu0 0
    %8186 = vmatpush2.bf16.msra.mxu0 %v6350
    %8187 = vmatprep.subr.bf16.mxu0 0
    %8188 = vmatpush2.bf16.msra.mxu0 %v6349
    %8189 = vmatprep.subr.bf16.mxu0 0
    %8190 = vmatpush2.bf16.msra.mxu0 %v6348
    %8191 = vmatprep.subr.bf16.mxu0 0
    %8192 = vmatpush2.bf16.msra.mxu0 %v6347
    %8193 = vmatprep.subr.bf16.mxu0 0
    %8194 = vmatpush2.bf16.msra.mxu0 %v6346
    %8195 = vmatprep.subr.bf16.mxu0 0
    %8196 = vmatpush2.bf16.msra.mxu0 %v6345
    %8197 = vmatprep.mubr.bf16.mxu0 %v811
    %8198 = vmatmul.mubr.bf16.gmra.mxu0 %v810
    %v8199 = vpop.f32.mrf.mxu0
    %v8200 = vadd.f32 %v8160, %v8199
    %v8201 = vpop.f32.mrf.mxu0
    %v8202 = vpop.f32.mrf.mxu0
    %v8203 = vpop.f32.mrf.mxu0
    %8204 = vdwg.mxu0
    %8205 = vmatprep.subr.bf16.mxu0 0
    %8206 = vmatpush1.bf16.msra.mxu0 %v6360
    %8207 = vmatprep.subr.bf16.mxu0 0
    %8208 = vmatpush1.bf16.msra.mxu0 %v6359
    %8209 = vmatprep.subr.bf16.mxu0 0
    %8210 = vmatpush1.bf16.msra.mxu0 %v6358
    %8211 = vmatprep.subr.bf16.mxu0 0
    %8212 = vmatpush1.bf16.msra.mxu0 %v6357
    %8213 = vmatprep.subr.bf16.mxu0 0
    %8214 = vmatpush1.bf16.msra.mxu0 %v6356
    %8215 = vmatprep.subr.bf16.mxu0 0
    %8216 = vmatpush1.bf16.msra.mxu0 %v6355
    %8217 = vmatprep.subr.bf16.mxu0 0
    %8218 = vmatpush1.bf16.msra.mxu0 %v6354
    %8219 = vmatprep.subr.bf16.mxu0 0
    %8220 = vmatpush1.bf16.msra.mxu0 %v6353
    %8221 = vmatprep.subr.bf16.mxu0 0
    %8222 = vmatpush2.bf16.msra.mxu0 %v6368
    %8223 = vmatprep.subr.bf16.mxu0 0
    %8224 = vmatpush2.bf16.msra.mxu0 %v6367
    %8225 = vmatprep.subr.bf16.mxu0 0
    %8226 = vmatpush2.bf16.msra.mxu0 %v6366
    %8227 = vmatprep.subr.bf16.mxu0 0
    %8228 = vmatpush2.bf16.msra.mxu0 %v6365
    %8229 = vmatprep.subr.bf16.mxu0 0
    %8230 = vmatpush2.bf16.msra.mxu0 %v6364
    %8231 = vmatprep.subr.bf16.mxu0 0
    %8232 = vmatpush2.bf16.msra.mxu0 %v6363
    %8233 = vmatprep.subr.bf16.mxu0 0
    %8234 = vmatpush2.bf16.msra.mxu0 %v6362
    %8235 = vmatprep.subr.bf16.mxu0 0
    %8236 = vmatpush2.bf16.msra.mxu0 %v6361
    %8237 = vmatprep.mubr.bf16.mxu0 %v813
    %8238 = vmatmul.mubr.bf16.gmra.mxu0 %v812
    %v8239 = vpop.f32.mrf.mxu0
    %v8240 = vadd.f32 %v8200, %v8239
    %v8241 = vpop.f32.mrf.mxu0
    %v8242 = vpop.f32.mrf.mxu0
    %v8243 = vpop.f32.mrf.mxu0
    %8244 = vdwg.mxu0
    %8245 = vmatprep.subr.bf16.mxu0 0
    %8246 = vmatpush1.bf16.msra.mxu0 %v6376
    %8247 = vmatprep.subr.bf16.mxu0 0
    %8248 = vmatpush1.bf16.msra.mxu0 %v6375
    %8249 = vmatprep.subr.bf16.mxu0 0
    %8250 = vmatpush1.bf16.msra.mxu0 %v6374
    %8251 = vmatprep.subr.bf16.mxu0 0
    %8252 = vmatpush1.bf16.msra.mxu0 %v6373
    %8253 = vmatprep.subr.bf16.mxu0 0
    %8254 = vmatpush1.bf16.msra.mxu0 %v6372
    %8255 = vmatprep.subr.bf16.mxu0 0
    %8256 = vmatpush1.bf16.msra.mxu0 %v6371
    %8257 = vmatprep.subr.bf16.mxu0 0
    %8258 = vmatpush1.bf16.msra.mxu0 %v6370
    %8259 = vmatprep.subr.bf16.mxu0 0
    %8260 = vmatpush1.bf16.msra.mxu0 %v6369
    %8261 = vmatprep.subr.bf16.mxu0 0
    %8262 = vmatpush2.bf16.msra.mxu0 %v6384
    %8263 = vmatprep.subr.bf16.mxu0 0
    %8264 = vmatpush2.bf16.msra.mxu0 %v6383
    %8265 = vmatprep.subr.bf16.mxu0 0
    %8266 = vmatpush2.bf16.msra.mxu0 %v6382
    %8267 = vmatprep.subr.bf16.mxu0 0
    %8268 = vmatpush2.bf16.msra.mxu0 %v6381
    %8269 = vmatprep.subr.bf16.mxu0 0
    %8270 = vmatpush2.bf16.msra.mxu0 %v6380
    %8271 = vmatprep.subr.bf16.mxu0 0
    %8272 = vmatpush2.bf16.msra.mxu0 %v6379
    %8273 = vmatprep.subr.bf16.mxu0 0
    %8274 = vmatpush2.bf16.msra.mxu0 %v6378
    %8275 = vmatprep.subr.bf16.mxu0 0
    %8276 = vmatpush2.bf16.msra.mxu0 %v6377
    %8277 = vmatprep.mubr.bf16.mxu0 %v815
    %8278 = vmatmul.mubr.bf16.gmra.mxu0 %v814
    %v8279 = vpop.f32.mrf.mxu0
    %v8280 = vadd.f32 %v8240, %v8279
    %v8281 = vpop.f32.mrf.mxu0
    %v8282 = vpop.f32.mrf.mxu0
    %v8283 = vpop.f32.mrf.mxu0
    %8284 = vdwg.mxu0
    %8285 = vmatprep.subr.bf16.mxu0 0
    %8286 = vmatpush1.bf16.msra.mxu0 %v6392
    %8287 = vmatprep.subr.bf16.mxu0 0
    %8288 = vmatpush1.bf16.msra.mxu0 %v6391
    %8289 = vmatprep.subr.bf16.mxu0 0
    %8290 = vmatpush1.bf16.msra.mxu0 %v6390
    %8291 = vmatprep.subr.bf16.mxu0 0
    %8292 = vmatpush1.bf16.msra.mxu0 %v6389
    %8293 = vmatprep.subr.bf16.mxu0 0
    %8294 = vmatpush1.bf16.msra.mxu0 %v6388
    %8295 = vmatprep.subr.bf16.mxu0 0
    %8296 = vmatpush1.bf16.msra.mxu0 %v6387
    %8297 = vmatprep.subr.bf16.mxu0 0
    %8298 = vmatpush1.bf16.msra.mxu0 %v6386
    %8299 = vmatprep.subr.bf16.mxu0 0
    %8300 = vmatpush1.bf16.msra.mxu0 %v6385
    %8301 = vmatprep.subr.bf16.mxu0 0
    %8302 = vmatpush2.bf16.msra.mxu0 %v6400
    %8303 = vmatprep.subr.bf16.mxu0 0
    %8304 = vmatpush2.bf16.msra.mxu0 %v6399
    %8305 = vmatprep.subr.bf16.mxu0 0
    %8306 = vmatpush2.bf16.msra.mxu0 %v6398
    %8307 = vmatprep.subr.bf16.mxu0 0
    %8308 = vmatpush2.bf16.msra.mxu0 %v6397
    %8309 = vmatprep.subr.bf16.mxu0 0
    %8310 = vmatpush2.bf16.msra.mxu0 %v6396
    %8311 = vmatprep.subr.bf16.mxu0 0
    %8312 = vmatpush2.bf16.msra.mxu0 %v6395
    %8313 = vmatprep.subr.bf16.mxu0 0
    %8314 = vmatpush2.bf16.msra.mxu0 %v6394
    %8315 = vmatprep.subr.bf16.mxu0 0
    %8316 = vmatpush2.bf16.msra.mxu0 %v6393
    %8317 = vmatprep.mubr.bf16.mxu0 %v817
    %8318 = vmatmul.mubr.bf16.gmra.mxu0 %v816
    %v8319 = vpop.f32.mrf.mxu0
    %v8320 = vadd.f32 %v8280, %v8319
    %v8321 = vpop.f32.mrf.mxu0
    %v8322 = vpop.f32.mrf.mxu0
    %v8323 = vpop.f32.mrf.mxu0
    %8324 = vdwg.mxu0
    %8325 = vmatprep.subr.bf16.mxu0 0
    %8326 = vmatpush1.bf16.msra.mxu0 %v6408
    %8327 = vmatprep.subr.bf16.mxu0 0
    %8328 = vmatpush1.bf16.msra.mxu0 %v6407
    %8329 = vmatprep.subr.bf16.mxu0 0
    %8330 = vmatpush1.bf16.msra.mxu0 %v6406
    %8331 = vmatprep.subr.bf16.mxu0 0
    %8332 = vmatpush1.bf16.msra.mxu0 %v6405
    %8333 = vmatprep.subr.bf16.mxu0 0
    %8334 = vmatpush1.bf16.msra.mxu0 %v6404
    %8335 = vmatprep.subr.bf16.mxu0 0
    %8336 = vmatpush1.bf16.msra.mxu0 %v6403
    %8337 = vmatprep.subr.bf16.mxu0 0
    %8338 = vmatpush1.bf16.msra.mxu0 %v6402
    %8339 = vmatprep.subr.bf16.mxu0 0
    %8340 = vmatpush1.bf16.msra.mxu0 %v6401
    %8341 = vmatprep.subr.bf16.mxu0 0
    %8342 = vmatpush2.bf16.msra.mxu0 %v6416
    %8343 = vmatprep.subr.bf16.mxu0 0
    %8344 = vmatpush2.bf16.msra.mxu0 %v6415
    %8345 = vmatprep.subr.bf16.mxu0 0
    %8346 = vmatpush2.bf16.msra.mxu0 %v6414
    %8347 = vmatprep.subr.bf16.mxu0 0
    %8348 = vmatpush2.bf16.msra.mxu0 %v6413
    %8349 = vmatprep.subr.bf16.mxu0 0
    %8350 = vmatpush2.bf16.msra.mxu0 %v6412
    %8351 = vmatprep.subr.bf16.mxu0 0
    %8352 = vmatpush2.bf16.msra.mxu0 %v6411
    %8353 = vmatprep.subr.bf16.mxu0 0
    %8354 = vmatpush2.bf16.msra.mxu0 %v6410
    %8355 = vmatprep.subr.bf16.mxu0 0
    %8356 = vmatpush2.bf16.msra.mxu0 %v6409
    %8357 = vmatprep.mubr.bf16.mxu0 %v819
    %8358 = vmatmul.mubr.bf16.gmra.mxu0 %v818
    %v8359 = vpop.f32.mrf.mxu0
    %v8360 = vadd.f32 %v8320, %v8359
    %v8361 = vpop.f32.mrf.mxu0
    %v8362 = vpop.f32.mrf.mxu0
    %v8363 = vpop.f32.mrf.mxu0
    %8364 = vdwg.mxu0
    %8365 = vmatprep.subr.bf16.mxu0 0
    %8366 = vmatpush1.bf16.msra.mxu0 %v6424
    %8367 = vmatprep.subr.bf16.mxu0 0
    %8368 = vmatpush1.bf16.msra.mxu0 %v6423
    %8369 = vmatprep.subr.bf16.mxu0 0
    %8370 = vmatpush1.bf16.msra.mxu0 %v6422
    %8371 = vmatprep.subr.bf16.mxu0 0
    %8372 = vmatpush1.bf16.msra.mxu0 %v6421
    %8373 = vmatprep.subr.bf16.mxu0 0
    %8374 = vmatpush1.bf16.msra.mxu0 %v6420
    %8375 = vmatprep.subr.bf16.mxu0 0
    %8376 = vmatpush1.bf16.msra.mxu0 %v6419
    %8377 = vmatprep.subr.bf16.mxu0 0
    %8378 = vmatpush1.bf16.msra.mxu0 %v6418
    %8379 = vmatprep.subr.bf16.mxu0 0
    %8380 = vmatpush1.bf16.msra.mxu0 %v6417
    %8381 = vmatprep.subr.bf16.mxu0 0
    %8382 = vmatpush2.bf16.msra.mxu0 %v6432
    %8383 = vmatprep.subr.bf16.mxu0 0
    %8384 = vmatpush2.bf16.msra.mxu0 %v6431
    %8385 = vmatprep.subr.bf16.mxu0 0
    %8386 = vmatpush2.bf16.msra.mxu0 %v6430
    %8387 = vmatprep.subr.bf16.mxu0 0
    %8388 = vmatpush2.bf16.msra.mxu0 %v6429
    %8389 = vmatprep.subr.bf16.mxu0 0
    %8390 = vmatpush2.bf16.msra.mxu0 %v6428
    %8391 = vmatprep.subr.bf16.mxu0 0
    %8392 = vmatpush2.bf16.msra.mxu0 %v6427
    %8393 = vmatprep.subr.bf16.mxu0 0
    %8394 = vmatpush2.bf16.msra.mxu0 %v6426
    %8395 = vmatprep.subr.bf16.mxu0 0
    %8396 = vmatpush2.bf16.msra.mxu0 %v6425
    %8397 = vmatprep.mubr.bf16.mxu0 %v821
    %8398 = vmatmul.mubr.bf16.gmra.mxu0 %v820
    %v8399 = vpop.f32.mrf.mxu0
    %v8400 = vadd.f32 %v8360, %v8399
    %v8401 = vpop.f32.mrf.mxu0
    %v8402 = vpop.f32.mrf.mxu0
    %v8403 = vpop.f32.mrf.mxu0
    %8404 = vdwg.mxu0
    %8405 = vmatprep.subr.bf16.mxu0 0
    %8406 = vmatpush1.bf16.msra.mxu0 %v6440
    %8407 = vmatprep.subr.bf16.mxu0 0
    %8408 = vmatpush1.bf16.msra.mxu0 %v6439
    %8409 = vmatprep.subr.bf16.mxu0 0
    %8410 = vmatpush1.bf16.msra.mxu0 %v6438
    %8411 = vmatprep.subr.bf16.mxu0 0
    %8412 = vmatpush1.bf16.msra.mxu0 %v6437
    %8413 = vmatprep.subr.bf16.mxu0 0
    %8414 = vmatpush1.bf16.msra.mxu0 %v6436
    %8415 = vmatprep.subr.bf16.mxu0 0
    %8416 = vmatpush1.bf16.msra.mxu0 %v6435
    %8417 = vmatprep.subr.bf16.mxu0 0
    %8418 = vmatpush1.bf16.msra.mxu0 %v6434
    %8419 = vmatprep.subr.bf16.mxu0 0
    %8420 = vmatpush1.bf16.msra.mxu0 %v6433
    %8421 = vmatprep.subr.bf16.mxu0 0
    %8422 = vmatpush2.bf16.msra.mxu0 %v6448
    %8423 = vmatprep.subr.bf16.mxu0 0
    %8424 = vmatpush2.bf16.msra.mxu0 %v6447
    %8425 = vmatprep.subr.bf16.mxu0 0
    %8426 = vmatpush2.bf16.msra.mxu0 %v6446
    %8427 = vmatprep.subr.bf16.mxu0 0
    %8428 = vmatpush2.bf16.msra.mxu0 %v6445
    %8429 = vmatprep.subr.bf16.mxu0 0
    %8430 = vmatpush2.bf16.msra.mxu0 %v6444
    %8431 = vmatprep.subr.bf16.mxu0 0
    %8432 = vmatpush2.bf16.msra.mxu0 %v6443
    %8433 = vmatprep.subr.bf16.mxu0 0
    %8434 = vmatpush2.bf16.msra.mxu0 %v6442
    %8435 = vmatprep.subr.bf16.mxu0 0
    %8436 = vmatpush2.bf16.msra.mxu0 %v6441
    %8437 = vmatprep.mubr.bf16.mxu0 %v823
    %8438 = vmatmul.mubr.bf16.gmra.mxu0 %v822
    %v8439 = vpop.f32.mrf.mxu0
    %v8440 = vadd.f32 %v8400, %v8439
    %v8441 = vpop.f32.mrf.mxu0
    %v8442 = vpop.f32.mrf.mxu0
    %v8443 = vpop.f32.mrf.mxu0
    %8444 = vdwg.mxu0
    %8445 = vmatprep.subr.bf16.mxu0 0
    %8446 = vmatpush1.bf16.msra.mxu0 %v6456
    %8447 = vmatprep.subr.bf16.mxu0 0
    %8448 = vmatpush1.bf16.msra.mxu0 %v6455
    %8449 = vmatprep.subr.bf16.mxu0 0
    %8450 = vmatpush1.bf16.msra.mxu0 %v6454
    %8451 = vmatprep.subr.bf16.mxu0 0
    %8452 = vmatpush1.bf16.msra.mxu0 %v6453
    %8453 = vmatprep.subr.bf16.mxu0 0
    %8454 = vmatpush1.bf16.msra.mxu0 %v6452
    %8455 = vmatprep.subr.bf16.mxu0 0
    %8456 = vmatpush1.bf16.msra.mxu0 %v6451
    %8457 = vmatprep.subr.bf16.mxu0 0
    %8458 = vmatpush1.bf16.msra.mxu0 %v6450
    %8459 = vmatprep.subr.bf16.mxu0 0
    %8460 = vmatpush1.bf16.msra.mxu0 %v6449
    %8461 = vmatprep.subr.bf16.mxu0 0
    %8462 = vmatpush2.bf16.msra.mxu0 %v6464
    %8463 = vmatprep.subr.bf16.mxu0 0
    %8464 = vmatpush2.bf16.msra.mxu0 %v6463
    %8465 = vmatprep.subr.bf16.mxu0 0
    %8466 = vmatpush2.bf16.msra.mxu0 %v6462
    %8467 = vmatprep.subr.bf16.mxu0 0
    %8468 = vmatpush2.bf16.msra.mxu0 %v6461
    %8469 = vmatprep.subr.bf16.mxu0 0
    %8470 = vmatpush2.bf16.msra.mxu0 %v6460
    %8471 = vmatprep.subr.bf16.mxu0 0
    %8472 = vmatpush2.bf16.msra.mxu0 %v6459
    %8473 = vmatprep.subr.bf16.mxu0 0
    %8474 = vmatpush2.bf16.msra.mxu0 %v6458
    %8475 = vmatprep.subr.bf16.mxu0 0
    %8476 = vmatpush2.bf16.msra.mxu0 %v6457
    %8477 = vmatprep.mubr.bf16.mxu0 %v825
    %8478 = vmatmul.mubr.bf16.gmra.mxu0 %v824
    %v8479 = vpop.f32.mrf.mxu0
    %v8480 = vadd.f32 %v8440, %v8479
    %v8481 = vpop.f32.mrf.mxu0
    %v8482 = vpop.f32.mrf.mxu0
    %v8483 = vpop.f32.mrf.mxu0
    %8484 = vdwg.mxu0
    %8485 = vmatprep.subr.bf16.mxu0 0
    %8486 = vmatpush1.bf16.msra.mxu0 %v6472
    %8487 = vmatprep.subr.bf16.mxu0 0
    %8488 = vmatpush1.bf16.msra.mxu0 %v6471
    %8489 = vmatprep.subr.bf16.mxu0 0
    %8490 = vmatpush1.bf16.msra.mxu0 %v6470
    %8491 = vmatprep.subr.bf16.mxu0 0
    %8492 = vmatpush1.bf16.msra.mxu0 %v6469
    %8493 = vmatprep.subr.bf16.mxu0 0
    %8494 = vmatpush1.bf16.msra.mxu0 %v6468
    %8495 = vmatprep.subr.bf16.mxu0 0
    %8496 = vmatpush1.bf16.msra.mxu0 %v6467
    %8497 = vmatprep.subr.bf16.mxu0 0
    %8498 = vmatpush1.bf16.msra.mxu0 %v6466
    %8499 = vmatprep.subr.bf16.mxu0 0
    %8500 = vmatpush1.bf16.msra.mxu0 %v6465
    %8501 = vmatprep.subr.bf16.mxu0 0
    %8502 = vmatpush2.bf16.msra.mxu0 %v6480
    %8503 = vmatprep.subr.bf16.mxu0 0
    %8504 = vmatpush2.bf16.msra.mxu0 %v6479
    %8505 = vmatprep.subr.bf16.mxu0 0
    %8506 = vmatpush2.bf16.msra.mxu0 %v6478
    %8507 = vmatprep.subr.bf16.mxu0 0
    %8508 = vmatpush2.bf16.msra.mxu0 %v6477
    %8509 = vmatprep.subr.bf16.mxu0 0
    %8510 = vmatpush2.bf16.msra.mxu0 %v6476
    %8511 = vmatprep.subr.bf16.mxu0 0
    %8512 = vmatpush2.bf16.msra.mxu0 %v6475
    %8513 = vmatprep.subr.bf16.mxu0 0
    %8514 = vmatpush2.bf16.msra.mxu0 %v6474
    %8515 = vmatprep.subr.bf16.mxu0 0
    %8516 = vmatpush2.bf16.msra.mxu0 %v6473
    %8517 = vmatprep.mubr.bf16.mxu0 %v827
    %8518 = vmatmul.mubr.bf16.gmra.mxu0 %v826
    %v8519 = vpop.f32.mrf.mxu0
    %v8520 = vadd.f32 %v8480, %v8519
    %v8521 = vpop.f32.mrf.mxu0
    %v8522 = vpop.f32.mrf.mxu0
    %v8523 = vpop.f32.mrf.mxu0
    %8524 = vdwg.mxu0
    %8525 = vmatprep.subr.bf16.mxu0 0
    %8526 = vmatpush1.bf16.msra.mxu0 %v6488
    %8527 = vmatprep.subr.bf16.mxu0 0
    %8528 = vmatpush1.bf16.msra.mxu0 %v6487
    %8529 = vmatprep.subr.bf16.mxu0 0
    %8530 = vmatpush1.bf16.msra.mxu0 %v6486
    %8531 = vmatprep.subr.bf16.mxu0 0
    %8532 = vmatpush1.bf16.msra.mxu0 %v6485
    %8533 = vmatprep.subr.bf16.mxu0 0
    %8534 = vmatpush1.bf16.msra.mxu0 %v6484
    %8535 = vmatprep.subr.bf16.mxu0 0
    %8536 = vmatpush1.bf16.msra.mxu0 %v6483
    %8537 = vmatprep.subr.bf16.mxu0 0
    %8538 = vmatpush1.bf16.msra.mxu0 %v6482
    %8539 = vmatprep.subr.bf16.mxu0 0
    %8540 = vmatpush1.bf16.msra.mxu0 %v6481
    %8541 = vmatprep.subr.bf16.mxu0 0
    %8542 = vmatpush2.bf16.msra.mxu0 %v6496
    %8543 = vmatprep.subr.bf16.mxu0 0
    %8544 = vmatpush2.bf16.msra.mxu0 %v6495
    %8545 = vmatprep.subr.bf16.mxu0 0
    %8546 = vmatpush2.bf16.msra.mxu0 %v6494
    %8547 = vmatprep.subr.bf16.mxu0 0
    %8548 = vmatpush2.bf16.msra.mxu0 %v6493
    %8549 = vmatprep.subr.bf16.mxu0 0
    %8550 = vmatpush2.bf16.msra.mxu0 %v6492
    %8551 = vmatprep.subr.bf16.mxu0 0
    %8552 = vmatpush2.bf16.msra.mxu0 %v6491
    %8553 = vmatprep.subr.bf16.mxu0 0
    %8554 = vmatpush2.bf16.msra.mxu0 %v6490
    %8555 = vmatprep.subr.bf16.mxu0 0
    %8556 = vmatpush2.bf16.msra.mxu0 %v6489
    %8557 = vmatprep.mubr.bf16.mxu0 %v829
    %8558 = vmatmul.mubr.bf16.gmra.mxu0 %v828
    %v8559 = vpop.f32.mrf.mxu0
    %v8560 = vadd.f32 %v8520, %v8559
    %v8561 = vpop.f32.mrf.mxu0
    %v8562 = vpop.f32.mrf.mxu0
    %v8563 = vpop.f32.mrf.mxu0
    %8564 = vdwg.mxu0
    %8565 = vmatprep.subr.bf16.mxu0 0
    %8566 = vmatpush1.bf16.msra.mxu0 %v6504
    %8567 = vmatprep.subr.bf16.mxu0 0
    %8568 = vmatpush1.bf16.msra.mxu0 %v6503
    %8569 = vmatprep.subr.bf16.mxu0 0
    %8570 = vmatpush1.bf16.msra.mxu0 %v6502
    %8571 = vmatprep.subr.bf16.mxu0 0
    %8572 = vmatpush1.bf16.msra.mxu0 %v6501
    %8573 = vmatprep.subr.bf16.mxu0 0
    %8574 = vmatpush1.bf16.msra.mxu0 %v6500
    %8575 = vmatprep.subr.bf16.mxu0 0
    %8576 = vmatpush1.bf16.msra.mxu0 %v6499
    %8577 = vmatprep.subr.bf16.mxu0 0
    %8578 = vmatpush1.bf16.msra.mxu0 %v6498
    %8579 = vmatprep.subr.bf16.mxu0 0
    %8580 = vmatpush1.bf16.msra.mxu0 %v6497
    %8581 = vmatprep.subr.bf16.mxu0 0
    %8582 = vmatpush2.bf16.msra.mxu0 %v6512
    %8583 = vmatprep.subr.bf16.mxu0 0
    %8584 = vmatpush2.bf16.msra.mxu0 %v6511
    %8585 = vmatprep.subr.bf16.mxu0 0
    %8586 = vmatpush2.bf16.msra.mxu0 %v6510
    %8587 = vmatprep.subr.bf16.mxu0 0
    %8588 = vmatpush2.bf16.msra.mxu0 %v6509
    %8589 = vmatprep.subr.bf16.mxu0 0
    %8590 = vmatpush2.bf16.msra.mxu0 %v6508
    %8591 = vmatprep.subr.bf16.mxu0 0
    %8592 = vmatpush2.bf16.msra.mxu0 %v6507
    %8593 = vmatprep.subr.bf16.mxu0 0
    %8594 = vmatpush2.bf16.msra.mxu0 %v6506
    %8595 = vmatprep.subr.bf16.mxu0 0
    %8596 = vmatpush2.bf16.msra.mxu0 %v6505
    %8597 = vmatprep.mubr.bf16.mxu0 %v831
    %8598 = vmatmul.mubr.bf16.gmra.mxu0 %v830
    %v8599 = vpop.f32.mrf.mxu0
    %v8600 = vadd.f32 %v8560, %v8599
    %v8601 = vpop.f32.mrf.mxu0
    %v8602 = vpop.f32.mrf.mxu0
    %v8603 = vpop.f32.mrf.mxu0
    %8604 = vdwg.mxu0
    %8605 = vmatprep.subr.bf16.mxu0 0
    %8606 = vmatpush1.bf16.msra.mxu0 %v6520
    %8607 = vmatprep.subr.bf16.mxu0 0
    %8608 = vmatpush1.bf16.msra.mxu0 %v6519
    %8609 = vmatprep.subr.bf16.mxu0 0
    %8610 = vmatpush1.bf16.msra.mxu0 %v6518
    %8611 = vmatprep.subr.bf16.mxu0 0
    %8612 = vmatpush1.bf16.msra.mxu0 %v6517
    %8613 = vmatprep.subr.bf16.mxu0 0
    %8614 = vmatpush1.bf16.msra.mxu0 %v6516
    %8615 = vmatprep.subr.bf16.mxu0 0
    %8616 = vmatpush1.bf16.msra.mxu0 %v6515
    %8617 = vmatprep.subr.bf16.mxu0 0
    %8618 = vmatpush1.bf16.msra.mxu0 %v6514
    %8619 = vmatprep.subr.bf16.mxu0 0
    %8620 = vmatpush1.bf16.msra.mxu0 %v6513
    %8621 = vmatprep.subr.bf16.mxu0 0
    %8622 = vmatpush2.bf16.msra.mxu0 %v6528
    %8623 = vmatprep.subr.bf16.mxu0 0
    %8624 = vmatpush2.bf16.msra.mxu0 %v6527
    %8625 = vmatprep.subr.bf16.mxu0 0
    %8626 = vmatpush2.bf16.msra.mxu0 %v6526
    %8627 = vmatprep.subr.bf16.mxu0 0
    %8628 = vmatpush2.bf16.msra.mxu0 %v6525
    %8629 = vmatprep.subr.bf16.mxu0 0
    %8630 = vmatpush2.bf16.msra.mxu0 %v6524
    %8631 = vmatprep.subr.bf16.mxu0 0
    %8632 = vmatpush2.bf16.msra.mxu0 %v6523
    %8633 = vmatprep.subr.bf16.mxu0 0
    %8634 = vmatpush2.bf16.msra.mxu0 %v6522
    %8635 = vmatprep.subr.bf16.mxu0 0
    %8636 = vmatpush2.bf16.msra.mxu0 %v6521
    %8637 = vmatprep.mubr.bf16.mxu0 %v833
    %8638 = vmatmul.mubr.bf16.gmra.mxu0 %v832
    %v8639 = vpop.f32.mrf.mxu0
    %v8640 = vadd.f32 %v8600, %v8639
    %v8641 = vpop.f32.mrf.mxu0
    %v8642 = vpop.f32.mrf.mxu0
    %v8643 = vpop.f32.mrf.mxu0
    %8644 = vdwg.mxu0
    %8645 = vmatprep.subr.bf16.mxu0 0
    %8646 = vmatpush1.bf16.msra.mxu0 %v6536
    %8647 = vmatprep.subr.bf16.mxu0 0
    %8648 = vmatpush1.bf16.msra.mxu0 %v6535
    %8649 = vmatprep.subr.bf16.mxu0 0
    %8650 = vmatpush1.bf16.msra.mxu0 %v6534
    %8651 = vmatprep.subr.bf16.mxu0 0
    %8652 = vmatpush1.bf16.msra.mxu0 %v6533
    %8653 = vmatprep.subr.bf16.mxu0 0
    %8654 = vmatpush1.bf16.msra.mxu0 %v6532
    %8655 = vmatprep.subr.bf16.mxu0 0
    %8656 = vmatpush1.bf16.msra.mxu0 %v6531
    %8657 = vmatprep.subr.bf16.mxu0 0
    %8658 = vmatpush1.bf16.msra.mxu0 %v6530
    %8659 = vmatprep.subr.bf16.mxu0 0
    %8660 = vmatpush1.bf16.msra.mxu0 %v6529
    %8661 = vmatprep.subr.bf16.mxu0 0
    %8662 = vmatpush2.bf16.msra.mxu0 %v6544
    %8663 = vmatprep.subr.bf16.mxu0 0
    %8664 = vmatpush2.bf16.msra.mxu0 %v6543
    %8665 = vmatprep.subr.bf16.mxu0 0
    %8666 = vmatpush2.bf16.msra.mxu0 %v6542
    %8667 = vmatprep.subr.bf16.mxu0 0
    %8668 = vmatpush2.bf16.msra.mxu0 %v6541
    %8669 = vmatprep.subr.bf16.mxu0 0
    %8670 = vmatpush2.bf16.msra.mxu0 %v6540
    %8671 = vmatprep.subr.bf16.mxu0 0
    %8672 = vmatpush2.bf16.msra.mxu0 %v6539
    %8673 = vmatprep.subr.bf16.mxu0 0
    %8674 = vmatpush2.bf16.msra.mxu0 %v6538
    %8675 = vmatprep.subr.bf16.mxu0 0
    %8676 = vmatpush2.bf16.msra.mxu0 %v6537
    %8677 = vmatprep.mubr.bf16.mxu0 %v835
    %8678 = vmatmul.mubr.bf16.gmra.mxu0 %v834
    %v8679 = vpop.f32.mrf.mxu0
    %v8680 = vadd.f32 %v8640, %v8679
    %v8681 = vpop.f32.mrf.mxu0
    %v8682 = vpop.f32.mrf.mxu0
    %v8683 = vpop.f32.mrf.mxu0
    %8684 = vdwg.mxu0
    %8685 = vmatprep.subr.bf16.mxu0 0
    %8686 = vmatpush1.bf16.msra.mxu0 %v6552
    %8687 = vmatprep.subr.bf16.mxu0 0
    %8688 = vmatpush1.bf16.msra.mxu0 %v6551
    %8689 = vmatprep.subr.bf16.mxu0 0
    %8690 = vmatpush1.bf16.msra.mxu0 %v6550
    %8691 = vmatprep.subr.bf16.mxu0 0
    %8692 = vmatpush1.bf16.msra.mxu0 %v6549
    %8693 = vmatprep.subr.bf16.mxu0 0
    %8694 = vmatpush1.bf16.msra.mxu0 %v6548
    %8695 = vmatprep.subr.bf16.mxu0 0
    %8696 = vmatpush1.bf16.msra.mxu0 %v6547
    %8697 = vmatprep.subr.bf16.mxu0 0
    %8698 = vmatpush1.bf16.msra.mxu0 %v6546
    %8699 = vmatprep.subr.bf16.mxu0 0
    %8700 = vmatpush1.bf16.msra.mxu0 %v6545
    %8701 = vmatprep.subr.bf16.mxu0 0
    %8702 = vmatpush2.bf16.msra.mxu0 %v6560
    %8703 = vmatprep.subr.bf16.mxu0 0
    %8704 = vmatpush2.bf16.msra.mxu0 %v6559
    %8705 = vmatprep.subr.bf16.mxu0 0
    %8706 = vmatpush2.bf16.msra.mxu0 %v6558
    %8707 = vmatprep.subr.bf16.mxu0 0
    %8708 = vmatpush2.bf16.msra.mxu0 %v6557
    %8709 = vmatprep.subr.bf16.mxu0 0
    %8710 = vmatpush2.bf16.msra.mxu0 %v6556
    %8711 = vmatprep.subr.bf16.mxu0 0
    %8712 = vmatpush2.bf16.msra.mxu0 %v6555
    %8713 = vmatprep.subr.bf16.mxu0 0
    %8714 = vmatpush2.bf16.msra.mxu0 %v6554
    %8715 = vmatprep.subr.bf16.mxu0 0
    %8716 = vmatpush2.bf16.msra.mxu0 %v6553
    %8717 = vmatprep.mubr.bf16.mxu0 %v837
    %8718 = vmatmul.mubr.bf16.gmra.mxu0 %v836
    %v8719 = vpop.f32.mrf.mxu0
    %v8720 = vadd.f32 %v8680, %v8719
    %v8721 = vpop.f32.mrf.mxu0
    %v8722 = vpop.f32.mrf.mxu0
    %v8723 = vpop.f32.mrf.mxu0
    %8724 = vdwg.mxu0
    %8725 = vmatprep.subr.bf16.mxu0 0
    %8726 = vmatpush1.bf16.msra.mxu0 %v6568
    %8727 = vmatprep.subr.bf16.mxu0 0
    %8728 = vmatpush1.bf16.msra.mxu0 %v6567
    %8729 = vmatprep.subr.bf16.mxu0 0
    %8730 = vmatpush1.bf16.msra.mxu0 %v6566
    %8731 = vmatprep.subr.bf16.mxu0 0
    %8732 = vmatpush1.bf16.msra.mxu0 %v6565
    %8733 = vmatprep.subr.bf16.mxu0 0
    %8734 = vmatpush1.bf16.msra.mxu0 %v6564
    %8735 = vmatprep.subr.bf16.mxu0 0
    %8736 = vmatpush1.bf16.msra.mxu0 %v6563
    %8737 = vmatprep.subr.bf16.mxu0 0
    %8738 = vmatpush1.bf16.msra.mxu0 %v6562
    %8739 = vmatprep.subr.bf16.mxu0 0
    %8740 = vmatpush1.bf16.msra.mxu0 %v6561
    %8741 = vmatprep.subr.bf16.mxu0 0
    %8742 = vmatpush2.bf16.msra.mxu0 %v6576
    %8743 = vmatprep.subr.bf16.mxu0 0
    %8744 = vmatpush2.bf16.msra.mxu0 %v6575
    %8745 = vmatprep.subr.bf16.mxu0 0
    %8746 = vmatpush2.bf16.msra.mxu0 %v6574
    %8747 = vmatprep.subr.bf16.mxu0 0
    %8748 = vmatpush2.bf16.msra.mxu0 %v6573
    %8749 = vmatprep.subr.bf16.mxu0 0
    %8750 = vmatpush2.bf16.msra.mxu0 %v6572
    %8751 = vmatprep.subr.bf16.mxu0 0
    %8752 = vmatpush2.bf16.msra.mxu0 %v6571
    %8753 = vmatprep.subr.bf16.mxu0 0
    %8754 = vmatpush2.bf16.msra.mxu0 %v6570
    %8755 = vmatprep.subr.bf16.mxu0 0
    %8756 = vmatpush2.bf16.msra.mxu0 %v6569
    %8757 = vmatprep.mubr.bf16.mxu0 %v839
    %8758 = vmatmul.mubr.bf16.gmra.mxu0 %v838
    %v8759 = vpop.f32.mrf.mxu0
    %v8760 = vadd.f32 %v8720, %v8759
    %v8761 = vpop.f32.mrf.mxu0
    %v8762 = vpop.f32.mrf.mxu0
    %v8763 = vpop.f32.mrf.mxu0
    %8764 = vdwg.mxu0
    %8765 = vmatprep.subr.bf16.mxu0 0
    %8766 = vmatpush1.bf16.msra.mxu0 %v6584
    %8767 = vmatprep.subr.bf16.mxu0 0
    %8768 = vmatpush1.bf16.msra.mxu0 %v6583
    %8769 = vmatprep.subr.bf16.mxu0 0
    %8770 = vmatpush1.bf16.msra.mxu0 %v6582
    %8771 = vmatprep.subr.bf16.mxu0 0
    %8772 = vmatpush1.bf16.msra.mxu0 %v6581
    %8773 = vmatprep.subr.bf16.mxu0 0
    %8774 = vmatpush1.bf16.msra.mxu0 %v6580
    %8775 = vmatprep.subr.bf16.mxu0 0
    %8776 = vmatpush1.bf16.msra.mxu0 %v6579
    %8777 = vmatprep.subr.bf16.mxu0 0
    %8778 = vmatpush1.bf16.msra.mxu0 %v6578
    %8779 = vmatprep.subr.bf16.mxu0 0
    %8780 = vmatpush1.bf16.msra.mxu0 %v6577
    %8781 = vmatprep.subr.bf16.mxu0 0
    %8782 = vmatpush2.bf16.msra.mxu0 %v6592
    %8783 = vmatprep.subr.bf16.mxu0 0
    %8784 = vmatpush2.bf16.msra.mxu0 %v6591
    %8785 = vmatprep.subr.bf16.mxu0 0
    %8786 = vmatpush2.bf16.msra.mxu0 %v6590
    %8787 = vmatprep.subr.bf16.mxu0 0
    %8788 = vmatpush2.bf16.msra.mxu0 %v6589
    %8789 = vmatprep.subr.bf16.mxu0 0
    %8790 = vmatpush2.bf16.msra.mxu0 %v6588
    %8791 = vmatprep.subr.bf16.mxu0 0
    %8792 = vmatpush2.bf16.msra.mxu0 %v6587
    %8793 = vmatprep.subr.bf16.mxu0 0
    %8794 = vmatpush2.bf16.msra.mxu0 %v6586
    %8795 = vmatprep.subr.bf16.mxu0 0
    %8796 = vmatpush2.bf16.msra.mxu0 %v6585
    %8797 = vmatprep.mubr.bf16.mxu0 %v841
    %8798 = vmatmul.mubr.bf16.gmra.mxu0 %v840
    %v8799 = vpop.f32.mrf.mxu0
    %v8800 = vadd.f32 %v8760, %v8799
    %v8801 = vpop.f32.mrf.mxu0
    %v8802 = vpop.f32.mrf.mxu0
    %v8803 = vpop.f32.mrf.mxu0
    %8804 = vdwg.mxu0
    %8805 = vmatprep.subr.bf16.mxu0 0
    %8806 = vmatpush1.bf16.msra.mxu0 %v6600
    %8807 = vmatprep.subr.bf16.mxu0 0
    %8808 = vmatpush1.bf16.msra.mxu0 %v6599
    %8809 = vmatprep.subr.bf16.mxu0 0
    %8810 = vmatpush1.bf16.msra.mxu0 %v6598
    %8811 = vmatprep.subr.bf16.mxu0 0
    %8812 = vmatpush1.bf16.msra.mxu0 %v6597
    %8813 = vmatprep.subr.bf16.mxu0 0
    %8814 = vmatpush1.bf16.msra.mxu0 %v6596
    %8815 = vmatprep.subr.bf16.mxu0 0
    %8816 = vmatpush1.bf16.msra.mxu0 %v6595
    %8817 = vmatprep.subr.bf16.mxu0 0
    %8818 = vmatpush1.bf16.msra.mxu0 %v6594
    %8819 = vmatprep.subr.bf16.mxu0 0
    %8820 = vmatpush1.bf16.msra.mxu0 %v6593
    %8821 = vmatprep.subr.bf16.mxu0 0
    %8822 = vmatpush2.bf16.msra.mxu0 %v6608
    %8823 = vmatprep.subr.bf16.mxu0 0
    %8824 = vmatpush2.bf16.msra.mxu0 %v6607
    %8825 = vmatprep.subr.bf16.mxu0 0
    %8826 = vmatpush2.bf16.msra.mxu0 %v6606
    %8827 = vmatprep.subr.bf16.mxu0 0
    %8828 = vmatpush2.bf16.msra.mxu0 %v6605
    %8829 = vmatprep.subr.bf16.mxu0 0
    %8830 = vmatpush2.bf16.msra.mxu0 %v6604
    %8831 = vmatprep.subr.bf16.mxu0 0
    %8832 = vmatpush2.bf16.msra.mxu0 %v6603
    %8833 = vmatprep.subr.bf16.mxu0 0
    %8834 = vmatpush2.bf16.msra.mxu0 %v6602
    %8835 = vmatprep.subr.bf16.mxu0 0
    %8836 = vmatpush2.bf16.msra.mxu0 %v6601
    %8837 = vmatprep.mubr.bf16.mxu0 %v843
    %8838 = vmatmul.mubr.bf16.gmra.mxu0 %v842
    %v8839 = vpop.f32.mrf.mxu0
    %v8840 = vadd.f32 %v8800, %v8839
    %v8841 = vpop.f32.mrf.mxu0
    %v8842 = vpop.f32.mrf.mxu0
    %v8843 = vpop.f32.mrf.mxu0
    %8844 = vdwg.mxu0
    %8845 = vmatprep.subr.bf16.mxu0 0
    %8846 = vmatpush1.bf16.msra.mxu0 %v6616
    %8847 = vmatprep.subr.bf16.mxu0 0
    %8848 = vmatpush1.bf16.msra.mxu0 %v6615
    %8849 = vmatprep.subr.bf16.mxu0 0
    %8850 = vmatpush1.bf16.msra.mxu0 %v6614
    %8851 = vmatprep.subr.bf16.mxu0 0
    %8852 = vmatpush1.bf16.msra.mxu0 %v6613
    %8853 = vmatprep.subr.bf16.mxu0 0
    %8854 = vmatpush1.bf16.msra.mxu0 %v6612
    %8855 = vmatprep.subr.bf16.mxu0 0
    %8856 = vmatpush1.bf16.msra.mxu0 %v6611
    %8857 = vmatprep.subr.bf16.mxu0 0
    %8858 = vmatpush1.bf16.msra.mxu0 %v6610
    %8859 = vmatprep.subr.bf16.mxu0 0
    %8860 = vmatpush1.bf16.msra.mxu0 %v6609
    %8861 = vmatprep.subr.bf16.mxu0 0
    %8862 = vmatpush2.bf16.msra.mxu0 %v6624
    %8863 = vmatprep.subr.bf16.mxu0 0
    %8864 = vmatpush2.bf16.msra.mxu0 %v6623
    %8865 = vmatprep.subr.bf16.mxu0 0
    %8866 = vmatpush2.bf16.msra.mxu0 %v6622
    %8867 = vmatprep.subr.bf16.mxu0 0
    %8868 = vmatpush2.bf16.msra.mxu0 %v6621
    %8869 = vmatprep.subr.bf16.mxu0 0
    %8870 = vmatpush2.bf16.msra.mxu0 %v6620
    %8871 = vmatprep.subr.bf16.mxu0 0
    %8872 = vmatpush2.bf16.msra.mxu0 %v6619
    %8873 = vmatprep.subr.bf16.mxu0 0
    %8874 = vmatpush2.bf16.msra.mxu0 %v6618
    %8875 = vmatprep.subr.bf16.mxu0 0
    %8876 = vmatpush2.bf16.msra.mxu0 %v6617
    %8877 = vmatprep.mubr.bf16.mxu0 %v845
    %8878 = vmatmul.mubr.bf16.gmra.mxu0 %v844
    %v8879 = vpop.f32.mrf.mxu0
    %v8880 = vadd.f32 %v8840, %v8879
    %v8881 = vpop.f32.mrf.mxu0
    %v8882 = vpop.f32.mrf.mxu0
    %v8883 = vpop.f32.mrf.mxu0
    %8884 = vdwg.mxu0
    %8885 = vmatprep.subr.bf16.mxu0 0
    %8886 = vmatpush1.bf16.msra.mxu0 %v6632
    %8887 = vmatprep.subr.bf16.mxu0 0
    %8888 = vmatpush1.bf16.msra.mxu0 %v6631
    %8889 = vmatprep.subr.bf16.mxu0 0
    %8890 = vmatpush1.bf16.msra.mxu0 %v6630
    %8891 = vmatprep.subr.bf16.mxu0 0
    %8892 = vmatpush1.bf16.msra.mxu0 %v6629
    %8893 = vmatprep.subr.bf16.mxu0 0
    %8894 = vmatpush1.bf16.msra.mxu0 %v6628
    %8895 = vmatprep.subr.bf16.mxu0 0
    %8896 = vmatpush1.bf16.msra.mxu0 %v6627
    %8897 = vmatprep.subr.bf16.mxu0 0
    %8898 = vmatpush1.bf16.msra.mxu0 %v6626
    %8899 = vmatprep.subr.bf16.mxu0 0
    %8900 = vmatpush1.bf16.msra.mxu0 %v6625
    %8901 = vmatprep.subr.bf16.mxu0 0
    %8902 = vmatpush2.bf16.msra.mxu0 %v6640
    %8903 = vmatprep.subr.bf16.mxu0 0
    %8904 = vmatpush2.bf16.msra.mxu0 %v6639
    %8905 = vmatprep.subr.bf16.mxu0 0
    %8906 = vmatpush2.bf16.msra.mxu0 %v6638
    %8907 = vmatprep.subr.bf16.mxu0 0
    %8908 = vmatpush2.bf16.msra.mxu0 %v6637
    %8909 = vmatprep.subr.bf16.mxu0 0
    %8910 = vmatpush2.bf16.msra.mxu0 %v6636
    %8911 = vmatprep.subr.bf16.mxu0 0
    %8912 = vmatpush2.bf16.msra.mxu0 %v6635
    %8913 = vmatprep.subr.bf16.mxu0 0
    %8914 = vmatpush2.bf16.msra.mxu0 %v6634
    %8915 = vmatprep.subr.bf16.mxu0 0
    %8916 = vmatpush2.bf16.msra.mxu0 %v6633
    %8917 = vmatprep.mubr.bf16.mxu0 %v847
    %8918 = vmatmul.mubr.bf16.gmra.mxu0 %v846
    %v8919 = vpop.f32.mrf.mxu0
    %v8920 = vadd.f32 %v8880, %v8919
    %v8921 = vpop.f32.mrf.mxu0
    %v8922 = vpop.f32.mrf.mxu0
    %v8923 = vpop.f32.mrf.mxu0
    %8924 = vdwg.mxu0
    %8925 = vmatprep.subr.bf16.mxu0 0
    %8926 = vmatpush1.bf16.msra.mxu0 %v6648
    %8927 = vmatprep.subr.bf16.mxu0 0
    %8928 = vmatpush1.bf16.msra.mxu0 %v6647
    %8929 = vmatprep.subr.bf16.mxu0 0
    %8930 = vmatpush1.bf16.msra.mxu0 %v6646
    %8931 = vmatprep.subr.bf16.mxu0 0
    %8932 = vmatpush1.bf16.msra.mxu0 %v6645
    %8933 = vmatprep.subr.bf16.mxu0 0
    %8934 = vmatpush1.bf16.msra.mxu0 %v6644
    %8935 = vmatprep.subr.bf16.mxu0 0
    %8936 = vmatpush1.bf16.msra.mxu0 %v6643
    %8937 = vmatprep.subr.bf16.mxu0 0
    %8938 = vmatpush1.bf16.msra.mxu0 %v6642
    %8939 = vmatprep.subr.bf16.mxu0 0
    %8940 = vmatpush1.bf16.msra.mxu0 %v6641
    %8941 = vmatprep.subr.bf16.mxu0 0
    %8942 = vmatpush2.bf16.msra.mxu0 %v6656
    %8943 = vmatprep.subr.bf16.mxu0 0
    %8944 = vmatpush2.bf16.msra.mxu0 %v6655
    %8945 = vmatprep.subr.bf16.mxu0 0
    %8946 = vmatpush2.bf16.msra.mxu0 %v6654
    %8947 = vmatprep.subr.bf16.mxu0 0
    %8948 = vmatpush2.bf16.msra.mxu0 %v6653
    %8949 = vmatprep.subr.bf16.mxu0 0
    %8950 = vmatpush2.bf16.msra.mxu0 %v6652
    %8951 = vmatprep.subr.bf16.mxu0 0
    %8952 = vmatpush2.bf16.msra.mxu0 %v6651
    %8953 = vmatprep.subr.bf16.mxu0 0
    %8954 = vmatpush2.bf16.msra.mxu0 %v6650
    %8955 = vmatprep.subr.bf16.mxu0 0
    %8956 = vmatpush2.bf16.msra.mxu0 %v6649
    %8957 = vmatprep.mubr.bf16.mxu0 %v849
    %8958 = vmatmul.mubr.bf16.gmra.mxu0 %v848
    %v8959 = vpop.f32.mrf.mxu0
    %v8960 = vadd.f32 %v8920, %v8959
    %v8961 = vpop.f32.mrf.mxu0
    %v8962 = vpop.f32.mrf.mxu0
    %v8963 = vpop.f32.mrf.mxu0
    %8964 = vdwg.mxu0
    %8965 = vmatprep.subr.bf16.mxu0 0
    %8966 = vmatpush1.bf16.msra.mxu0 %v6664
    %8967 = vmatprep.subr.bf16.mxu0 0
    %8968 = vmatpush1.bf16.msra.mxu0 %v6663
    %8969 = vmatprep.subr.bf16.mxu0 0
    %8970 = vmatpush1.bf16.msra.mxu0 %v6662
    %8971 = vmatprep.subr.bf16.mxu0 0
    %8972 = vmatpush1.bf16.msra.mxu0 %v6661
    %8973 = vmatprep.subr.bf16.mxu0 0
    %8974 = vmatpush1.bf16.msra.mxu0 %v6660
    %8975 = vmatprep.subr.bf16.mxu0 0
    %8976 = vmatpush1.bf16.msra.mxu0 %v6659
    %8977 = vmatprep.subr.bf16.mxu0 0
    %8978 = vmatpush1.bf16.msra.mxu0 %v6658
    %8979 = vmatprep.subr.bf16.mxu0 0
    %8980 = vmatpush1.bf16.msra.mxu0 %v6657
    %8981 = vmatprep.subr.bf16.mxu0 0
    %8982 = vmatpush2.bf16.msra.mxu0 %v6672
    %8983 = vmatprep.subr.bf16.mxu0 0
    %8984 = vmatpush2.bf16.msra.mxu0 %v6671
    %8985 = vmatprep.subr.bf16.mxu0 0
    %8986 = vmatpush2.bf16.msra.mxu0 %v6670
    %8987 = vmatprep.subr.bf16.mxu0 0
    %8988 = vmatpush2.bf16.msra.mxu0 %v6669
    %8989 = vmatprep.subr.bf16.mxu0 0
    %8990 = vmatpush2.bf16.msra.mxu0 %v6668
    %8991 = vmatprep.subr.bf16.mxu0 0
    %8992 = vmatpush2.bf16.msra.mxu0 %v6667
    %8993 = vmatprep.subr.bf16.mxu0 0
    %8994 = vmatpush2.bf16.msra.mxu0 %v6666
    %8995 = vmatprep.subr.bf16.mxu0 0
    %8996 = vmatpush2.bf16.msra.mxu0 %v6665
    %8997 = vmatprep.mubr.bf16.mxu0 %v851
    %8998 = vmatmul.mubr.bf16.gmra.mxu0 %v850
    %v8999 = vpop.f32.mrf.mxu0
    %v9000 = vadd.f32 %v8960, %v8999
    %v9001 = vpop.f32.mrf.mxu0
    %v9002 = vpop.f32.mrf.mxu0
    %v9003 = vpop.f32.mrf.mxu0
    %9004 = vdwg.mxu0
    %9005 = vmatprep.subr.bf16.mxu0 0
    %9006 = vmatpush1.bf16.msra.mxu0 %v6680
    %9007 = vmatprep.subr.bf16.mxu0 0
    %9008 = vmatpush1.bf16.msra.mxu0 %v6679
    %9009 = vmatprep.subr.bf16.mxu0 0
    %9010 = vmatpush1.bf16.msra.mxu0 %v6678
    %9011 = vmatprep.subr.bf16.mxu0 0
    %9012 = vmatpush1.bf16.msra.mxu0 %v6677
    %9013 = vmatprep.subr.bf16.mxu0 0
    %9014 = vmatpush1.bf16.msra.mxu0 %v6676
    %9015 = vmatprep.subr.bf16.mxu0 0
    %9016 = vmatpush1.bf16.msra.mxu0 %v6675
    %9017 = vmatprep.subr.bf16.mxu0 0
    %9018 = vmatpush1.bf16.msra.mxu0 %v6674
    %9019 = vmatprep.subr.bf16.mxu0 0
    %9020 = vmatpush1.bf16.msra.mxu0 %v6673
    %9021 = vmatprep.subr.bf16.mxu0 0
    %9022 = vmatpush2.bf16.msra.mxu0 %v6688
    %9023 = vmatprep.subr.bf16.mxu0 0
    %9024 = vmatpush2.bf16.msra.mxu0 %v6687
    %9025 = vmatprep.subr.bf16.mxu0 0
    %9026 = vmatpush2.bf16.msra.mxu0 %v6686
    %9027 = vmatprep.subr.bf16.mxu0 0
    %9028 = vmatpush2.bf16.msra.mxu0 %v6685
    %9029 = vmatprep.subr.bf16.mxu0 0
    %9030 = vmatpush2.bf16.msra.mxu0 %v6684
    %9031 = vmatprep.subr.bf16.mxu0 0
    %9032 = vmatpush2.bf16.msra.mxu0 %v6683
    %9033 = vmatprep.subr.bf16.mxu0 0
    %9034 = vmatpush2.bf16.msra.mxu0 %v6682
    %9035 = vmatprep.subr.bf16.mxu0 0
    %9036 = vmatpush2.bf16.msra.mxu0 %v6681
    %9037 = vmatprep.mubr.bf16.mxu0 %v853
    %9038 = vmatmul.mubr.bf16.gmra.mxu0 %v852
    %v9039 = vpop.f32.mrf.mxu0
    %v9040 = vadd.f32 %v9000, %v9039
    %v9041 = vpop.f32.mrf.mxu0
    %v9042 = vpop.f32.mrf.mxu0
    %v9043 = vpop.f32.mrf.mxu0
    %9044 = vdwg.mxu0
    %9045 = vmatprep.subr.bf16.mxu0 0
    %9046 = vmatpush1.bf16.msra.mxu0 %v6696
    %9047 = vmatprep.subr.bf16.mxu0 0
    %9048 = vmatpush1.bf16.msra.mxu0 %v6695
    %9049 = vmatprep.subr.bf16.mxu0 0
    %9050 = vmatpush1.bf16.msra.mxu0 %v6694
    %9051 = vmatprep.subr.bf16.mxu0 0
    %9052 = vmatpush1.bf16.msra.mxu0 %v6693
    %9053 = vmatprep.subr.bf16.mxu0 0
    %9054 = vmatpush1.bf16.msra.mxu0 %v6692
    %9055 = vmatprep.subr.bf16.mxu0 0
    %9056 = vmatpush1.bf16.msra.mxu0 %v6691
    %9057 = vmatprep.subr.bf16.mxu0 0
    %9058 = vmatpush1.bf16.msra.mxu0 %v6690
    %9059 = vmatprep.subr.bf16.mxu0 0
    %9060 = vmatpush1.bf16.msra.mxu0 %v6689
    %9061 = vmatprep.subr.bf16.mxu0 0
    %9062 = vmatpush2.bf16.msra.mxu0 %v6704
    %9063 = vmatprep.subr.bf16.mxu0 0
    %9064 = vmatpush2.bf16.msra.mxu0 %v6703
    %9065 = vmatprep.subr.bf16.mxu0 0
    %9066 = vmatpush2.bf16.msra.mxu0 %v6702
    %9067 = vmatprep.subr.bf16.mxu0 0
    %9068 = vmatpush2.bf16.msra.mxu0 %v6701
    %9069 = vmatprep.subr.bf16.mxu0 0
    %9070 = vmatpush2.bf16.msra.mxu0 %v6700
    %9071 = vmatprep.subr.bf16.mxu0 0
    %9072 = vmatpush2.bf16.msra.mxu0 %v6699
    %9073 = vmatprep.subr.bf16.mxu0 0
    %9074 = vmatpush2.bf16.msra.mxu0 %v6698
    %9075 = vmatprep.subr.bf16.mxu0 0
    %9076 = vmatpush2.bf16.msra.mxu0 %v6697
    %9077 = vmatprep.mubr.bf16.mxu0 %v855
    %9078 = vmatmul.mubr.bf16.gmra.mxu0 %v854
    %v9079 = vpop.f32.mrf.mxu0
    %v9080 = vadd.f32 %v9040, %v9079
    %v9081 = vpop.f32.mrf.mxu0
    %v9082 = vpop.f32.mrf.mxu0
    %v9083 = vpop.f32.mrf.mxu0
    %9084 = vdwg.mxu0
    %9085 = vmatprep.subr.bf16.mxu0 0
    %9086 = vmatpush1.bf16.msra.mxu0 %v6712
    %9087 = vmatprep.subr.bf16.mxu0 0
    %9088 = vmatpush1.bf16.msra.mxu0 %v6711
    %9089 = vmatprep.subr.bf16.mxu0 0
    %9090 = vmatpush1.bf16.msra.mxu0 %v6710
    %9091 = vmatprep.subr.bf16.mxu0 0
    %9092 = vmatpush1.bf16.msra.mxu0 %v6709
    %9093 = vmatprep.subr.bf16.mxu0 0
    %9094 = vmatpush1.bf16.msra.mxu0 %v6708
    %9095 = vmatprep.subr.bf16.mxu0 0
    %9096 = vmatpush1.bf16.msra.mxu0 %v6707
    %9097 = vmatprep.subr.bf16.mxu0 0
    %9098 = vmatpush1.bf16.msra.mxu0 %v6706
    %9099 = vmatprep.subr.bf16.mxu0 0
    %9100 = vmatpush1.bf16.msra.mxu0 %v6705
    %9101 = vmatprep.subr.bf16.mxu0 0
    %9102 = vmatpush2.bf16.msra.mxu0 %v6720
    %9103 = vmatprep.subr.bf16.mxu0 0
    %9104 = vmatpush2.bf16.msra.mxu0 %v6719
    %9105 = vmatprep.subr.bf16.mxu0 0
    %9106 = vmatpush2.bf16.msra.mxu0 %v6718
    %9107 = vmatprep.subr.bf16.mxu0 0
    %9108 = vmatpush2.bf16.msra.mxu0 %v6717
    %9109 = vmatprep.subr.bf16.mxu0 0
    %9110 = vmatpush2.bf16.msra.mxu0 %v6716
    %9111 = vmatprep.subr.bf16.mxu0 0
    %9112 = vmatpush2.bf16.msra.mxu0 %v6715
    %9113 = vmatprep.subr.bf16.mxu0 0
    %9114 = vmatpush2.bf16.msra.mxu0 %v6714
    %9115 = vmatprep.subr.bf16.mxu0 0
    %9116 = vmatpush2.bf16.msra.mxu0 %v6713
    %9117 = vmatprep.mubr.bf16.mxu0 %v857
    %9118 = vmatmul.mubr.bf16.gmra.mxu0 %v856
    %v9119 = vpop.f32.mrf.mxu0
    %v9120 = vadd.f32 %v9080, %v9119
    %v9121 = vpop.f32.mrf.mxu0
    %v9122 = vpop.f32.mrf.mxu0
    %v9123 = vpop.f32.mrf.mxu0
    %9124 = vdwg.mxu0
    %9125 = vmatprep.subr.bf16.mxu0 0
    %9126 = vmatpush1.bf16.msra.mxu0 %v6728
    %9127 = vmatprep.subr.bf16.mxu0 0
    %9128 = vmatpush1.bf16.msra.mxu0 %v6727
    %9129 = vmatprep.subr.bf16.mxu0 0
    %9130 = vmatpush1.bf16.msra.mxu0 %v6726
    %9131 = vmatprep.subr.bf16.mxu0 0
    %9132 = vmatpush1.bf16.msra.mxu0 %v6725
    %9133 = vmatprep.subr.bf16.mxu0 0
    %9134 = vmatpush1.bf16.msra.mxu0 %v6724
    %9135 = vmatprep.subr.bf16.mxu0 0
    %9136 = vmatpush1.bf16.msra.mxu0 %v6723
    %9137 = vmatprep.subr.bf16.mxu0 0
    %9138 = vmatpush1.bf16.msra.mxu0 %v6722
    %9139 = vmatprep.subr.bf16.mxu0 0
    %9140 = vmatpush1.bf16.msra.mxu0 %v6721
    %9141 = vmatprep.subr.bf16.mxu0 0
    %9142 = vmatpush2.bf16.msra.mxu0 %v6736
    %9143 = vmatprep.subr.bf16.mxu0 0
    %9144 = vmatpush2.bf16.msra.mxu0 %v6735
    %9145 = vmatprep.subr.bf16.mxu0 0
    %9146 = vmatpush2.bf16.msra.mxu0 %v6734
    %9147 = vmatprep.subr.bf16.mxu0 0
    %9148 = vmatpush2.bf16.msra.mxu0 %v6733
    %9149 = vmatprep.subr.bf16.mxu0 0
    %9150 = vmatpush2.bf16.msra.mxu0 %v6732
    %9151 = vmatprep.subr.bf16.mxu0 0
    %9152 = vmatpush2.bf16.msra.mxu0 %v6731
    %9153 = vmatprep.subr.bf16.mxu0 0
    %9154 = vmatpush2.bf16.msra.mxu0 %v6730
    %9155 = vmatprep.subr.bf16.mxu0 0
    %9156 = vmatpush2.bf16.msra.mxu0 %v6729
    %9157 = vmatprep.mubr.bf16.mxu0 %v859
    %9158 = vmatmul.mubr.bf16.gmra.mxu0 %v858
    %v9159 = vpop.f32.mrf.mxu0
    %v9160 = vadd.f32 %v9120, %v9159
    %v9161 = vpop.f32.mrf.mxu0
    %v9162 = vpop.f32.mrf.mxu0
    %v9163 = vpop.f32.mrf.mxu0
    %9164 = vdwg.mxu0
    %9165 = vmatprep.subr.bf16.mxu0 0
    %9166 = vmatpush1.bf16.msra.mxu0 %v6744
    %9167 = vmatprep.subr.bf16.mxu0 0
    %9168 = vmatpush1.bf16.msra.mxu0 %v6743
    %9169 = vmatprep.subr.bf16.mxu0 0
    %9170 = vmatpush1.bf16.msra.mxu0 %v6742
    %9171 = vmatprep.subr.bf16.mxu0 0
    %9172 = vmatpush1.bf16.msra.mxu0 %v6741
    %9173 = vmatprep.subr.bf16.mxu0 0
    %9174 = vmatpush1.bf16.msra.mxu0 %v6740
    %9175 = vmatprep.subr.bf16.mxu0 0
    %9176 = vmatpush1.bf16.msra.mxu0 %v6739
    %9177 = vmatprep.subr.bf16.mxu0 0
    %9178 = vmatpush1.bf16.msra.mxu0 %v6738
    %9179 = vmatprep.subr.bf16.mxu0 0
    %9180 = vmatpush1.bf16.msra.mxu0 %v6737
    %9181 = vmatprep.subr.bf16.mxu0 0
    %9182 = vmatpush2.bf16.msra.mxu0 %v6752
    %9183 = vmatprep.subr.bf16.mxu0 0
    %9184 = vmatpush2.bf16.msra.mxu0 %v6751
    %9185 = vmatprep.subr.bf16.mxu0 0
    %9186 = vmatpush2.bf16.msra.mxu0 %v6750
    %9187 = vmatprep.subr.bf16.mxu0 0
    %9188 = vmatpush2.bf16.msra.mxu0 %v6749
    %9189 = vmatprep.subr.bf16.mxu0 0
    %9190 = vmatpush2.bf16.msra.mxu0 %v6748
    %9191 = vmatprep.subr.bf16.mxu0 0
    %9192 = vmatpush2.bf16.msra.mxu0 %v6747
    %9193 = vmatprep.subr.bf16.mxu0 0
    %9194 = vmatpush2.bf16.msra.mxu0 %v6746
    %9195 = vmatprep.subr.bf16.mxu0 0
    %9196 = vmatpush2.bf16.msra.mxu0 %v6745
    %9197 = vmatprep.mubr.bf16.mxu0 %v861
    %9198 = vmatmul.mubr.bf16.gmra.mxu0 %v860
    %v9199 = vpop.f32.mrf.mxu0
    %v9200 = vadd.f32 %v9160, %v9199
    %v9201 = vpop.f32.mrf.mxu0
    %v9202 = vpop.f32.mrf.mxu0
    %v9203 = vpop.f32.mrf.mxu0
    %9204 = vdwg.mxu0
    %9205 = vmatprep.subr.bf16.mxu0 0
    %9206 = vmatpush1.bf16.msra.mxu0 %v6760
    %9207 = vmatprep.subr.bf16.mxu0 0
    %9208 = vmatpush1.bf16.msra.mxu0 %v6759
    %9209 = vmatprep.subr.bf16.mxu0 0
    %9210 = vmatpush1.bf16.msra.mxu0 %v6758
    %9211 = vmatprep.subr.bf16.mxu0 0
    %9212 = vmatpush1.bf16.msra.mxu0 %v6757
    %9213 = vmatprep.subr.bf16.mxu0 0
    %9214 = vmatpush1.bf16.msra.mxu0 %v6756
    %9215 = vmatprep.subr.bf16.mxu0 0
    %9216 = vmatpush1.bf16.msra.mxu0 %v6755
    %9217 = vmatprep.subr.bf16.mxu0 0
    %9218 = vmatpush1.bf16.msra.mxu0 %v6754
    %9219 = vmatprep.subr.bf16.mxu0 0
    %9220 = vmatpush1.bf16.msra.mxu0 %v6753
    %9221 = vmatprep.subr.bf16.mxu0 0
    %9222 = vmatpush2.bf16.msra.mxu0 %v6768
    %9223 = vmatprep.subr.bf16.mxu0 0
    %9224 = vmatpush2.bf16.msra.mxu0 %v6767
    %9225 = vmatprep.subr.bf16.mxu0 0
    %9226 = vmatpush2.bf16.msra.mxu0 %v6766
    %9227 = vmatprep.subr.bf16.mxu0 0
    %9228 = vmatpush2.bf16.msra.mxu0 %v6765
    %9229 = vmatprep.subr.bf16.mxu0 0
    %9230 = vmatpush2.bf16.msra.mxu0 %v6764
    %9231 = vmatprep.subr.bf16.mxu0 0
    %9232 = vmatpush2.bf16.msra.mxu0 %v6763
    %9233 = vmatprep.subr.bf16.mxu0 0
    %9234 = vmatpush2.bf16.msra.mxu0 %v6762
    %9235 = vmatprep.subr.bf16.mxu0 0
    %9236 = vmatpush2.bf16.msra.mxu0 %v6761
    %9237 = vmatprep.mubr.bf16.mxu0 %v863
    %9238 = vmatmul.mubr.bf16.gmra.mxu0 %v862
    %v9239 = vpop.f32.mrf.mxu0
    %v9240 = vadd.f32 %v9200, %v9239
    %v9241 = vpop.f32.mrf.mxu0
    %v9242 = vpop.f32.mrf.mxu0
    %v9243 = vpop.f32.mrf.mxu0
    %9244 = vdwg.mxu0
    %9245 = vmatprep.subr.bf16.mxu0 0
    %9246 = vmatpush1.bf16.msra.mxu0 %v6776
    %9247 = vmatprep.subr.bf16.mxu0 0
    %9248 = vmatpush1.bf16.msra.mxu0 %v6775
    %9249 = vmatprep.subr.bf16.mxu0 0
    %9250 = vmatpush1.bf16.msra.mxu0 %v6774
    %9251 = vmatprep.subr.bf16.mxu0 0
    %9252 = vmatpush1.bf16.msra.mxu0 %v6773
    %9253 = vmatprep.subr.bf16.mxu0 0
    %9254 = vmatpush1.bf16.msra.mxu0 %v6772
    %9255 = vmatprep.subr.bf16.mxu0 0
    %9256 = vmatpush1.bf16.msra.mxu0 %v6771
    %9257 = vmatprep.subr.bf16.mxu0 0
    %9258 = vmatpush1.bf16.msra.mxu0 %v6770
    %9259 = vmatprep.subr.bf16.mxu0 0
    %9260 = vmatpush1.bf16.msra.mxu0 %v6769
    %9261 = vmatprep.subr.bf16.mxu0 0
    %9262 = vmatpush2.bf16.msra.mxu0 %v6784
    %9263 = vmatprep.subr.bf16.mxu0 0
    %9264 = vmatpush2.bf16.msra.mxu0 %v6783
    %9265 = vmatprep.subr.bf16.mxu0 0
    %9266 = vmatpush2.bf16.msra.mxu0 %v6782
    %9267 = vmatprep.subr.bf16.mxu0 0
    %9268 = vmatpush2.bf16.msra.mxu0 %v6781
    %9269 = vmatprep.subr.bf16.mxu0 0
    %9270 = vmatpush2.bf16.msra.mxu0 %v6780
    %9271 = vmatprep.subr.bf16.mxu0 0
    %9272 = vmatpush2.bf16.msra.mxu0 %v6779
    %9273 = vmatprep.subr.bf16.mxu0 0
    %9274 = vmatpush2.bf16.msra.mxu0 %v6778
    %9275 = vmatprep.subr.bf16.mxu0 0
    %9276 = vmatpush2.bf16.msra.mxu0 %v6777
    %9277 = vmatprep.mubr.bf16.mxu0 %v865
    %9278 = vmatmul.mubr.bf16.gmra.mxu0 %v864
    %v9279 = vpop.f32.mrf.mxu0
    %v9280 = vadd.f32 %v9240, %v9279
    %v9281 = vpop.f32.mrf.mxu0
    %v9282 = vpop.f32.mrf.mxu0
    %v9283 = vpop.f32.mrf.mxu0
    %9284 = vdwg.mxu0
    %9285 = vmatprep.subr.bf16.mxu0 0
    %9286 = vmatpush1.bf16.msra.mxu0 %v6792
    %9287 = vmatprep.subr.bf16.mxu0 0
    %9288 = vmatpush1.bf16.msra.mxu0 %v6791
    %9289 = vmatprep.subr.bf16.mxu0 0
    %9290 = vmatpush1.bf16.msra.mxu0 %v6790
    %9291 = vmatprep.subr.bf16.mxu0 0
    %9292 = vmatpush1.bf16.msra.mxu0 %v6789
    %9293 = vmatprep.subr.bf16.mxu0 0
    %9294 = vmatpush1.bf16.msra.mxu0 %v6788
    %9295 = vmatprep.subr.bf16.mxu0 0
    %9296 = vmatpush1.bf16.msra.mxu0 %v6787
    %9297 = vmatprep.subr.bf16.mxu0 0
    %9298 = vmatpush1.bf16.msra.mxu0 %v6786
    %9299 = vmatprep.subr.bf16.mxu0 0
    %9300 = vmatpush1.bf16.msra.mxu0 %v6785
    %9301 = vmatprep.subr.bf16.mxu0 0
    %9302 = vmatpush2.bf16.msra.mxu0 %v6800
    %9303 = vmatprep.subr.bf16.mxu0 0
    %9304 = vmatpush2.bf16.msra.mxu0 %v6799
    %9305 = vmatprep.subr.bf16.mxu0 0
    %9306 = vmatpush2.bf16.msra.mxu0 %v6798
    %9307 = vmatprep.subr.bf16.mxu0 0
    %9308 = vmatpush2.bf16.msra.mxu0 %v6797
    %9309 = vmatprep.subr.bf16.mxu0 0
    %9310 = vmatpush2.bf16.msra.mxu0 %v6796
    %9311 = vmatprep.subr.bf16.mxu0 0
    %9312 = vmatpush2.bf16.msra.mxu0 %v6795
    %9313 = vmatprep.subr.bf16.mxu0 0
    %9314 = vmatpush2.bf16.msra.mxu0 %v6794
    %9315 = vmatprep.subr.bf16.mxu0 0
    %9316 = vmatpush2.bf16.msra.mxu0 %v6793
    %9317 = vmatprep.mubr.bf16.mxu0 %v867
    %9318 = vmatmul.mubr.bf16.gmra.mxu0 %v866
    %v9319 = vpop.f32.mrf.mxu0
    %v9320 = vadd.f32 %v9280, %v9319
    %v9321 = vpop.f32.mrf.mxu0
    %v9322 = vpop.f32.mrf.mxu0
    %v9323 = vpop.f32.mrf.mxu0
    %9324 = vdwg.mxu0
    %9325 = vmatprep.subr.bf16.mxu0 0
    %9326 = vmatpush1.bf16.msra.mxu0 %v6808
    %9327 = vmatprep.subr.bf16.mxu0 0
    %9328 = vmatpush1.bf16.msra.mxu0 %v6807
    %9329 = vmatprep.subr.bf16.mxu0 0
    %9330 = vmatpush1.bf16.msra.mxu0 %v6806
    %9331 = vmatprep.subr.bf16.mxu0 0
    %9332 = vmatpush1.bf16.msra.mxu0 %v6805
    %9333 = vmatprep.subr.bf16.mxu0 0
    %9334 = vmatpush1.bf16.msra.mxu0 %v6804
    %9335 = vmatprep.subr.bf16.mxu0 0
    %9336 = vmatpush1.bf16.msra.mxu0 %v6803
    %9337 = vmatprep.subr.bf16.mxu0 0
    %9338 = vmatpush1.bf16.msra.mxu0 %v6802
    %9339 = vmatprep.subr.bf16.mxu0 0
    %9340 = vmatpush1.bf16.msra.mxu0 %v6801
    %9341 = vmatprep.subr.bf16.mxu0 0
    %9342 = vmatpush2.bf16.msra.mxu0 %v6816
    %9343 = vmatprep.subr.bf16.mxu0 0
    %9344 = vmatpush2.bf16.msra.mxu0 %v6815
    %9345 = vmatprep.subr.bf16.mxu0 0
    %9346 = vmatpush2.bf16.msra.mxu0 %v6814
    %9347 = vmatprep.subr.bf16.mxu0 0
    %9348 = vmatpush2.bf16.msra.mxu0 %v6813
    %9349 = vmatprep.subr.bf16.mxu0 0
    %9350 = vmatpush2.bf16.msra.mxu0 %v6812
    %9351 = vmatprep.subr.bf16.mxu0 0
    %9352 = vmatpush2.bf16.msra.mxu0 %v6811
    %9353 = vmatprep.subr.bf16.mxu0 0
    %9354 = vmatpush2.bf16.msra.mxu0 %v6810
    %9355 = vmatprep.subr.bf16.mxu0 0
    %9356 = vmatpush2.bf16.msra.mxu0 %v6809
    %9357 = vmatprep.mubr.bf16.mxu0 %v869
    %9358 = vmatmul.mubr.bf16.gmra.mxu0 %v868
    %v9359 = vpop.f32.mrf.mxu0
    %v9360 = vadd.f32 %v9320, %v9359
    %v9361 = vpop.f32.mrf.mxu0
    %v9362 = vpop.f32.mrf.mxu0
    %v9363 = vpop.f32.mrf.mxu0
    %9364 = vdwg.mxu0
    %9365 = vmatprep.subr.bf16.mxu0 0
    %9366 = vmatpush1.bf16.msra.mxu0 %v6824
    %9367 = vmatprep.subr.bf16.mxu0 0
    %9368 = vmatpush1.bf16.msra.mxu0 %v6823
    %9369 = vmatprep.subr.bf16.mxu0 0
    %9370 = vmatpush1.bf16.msra.mxu0 %v6822
    %9371 = vmatprep.subr.bf16.mxu0 0
    %9372 = vmatpush1.bf16.msra.mxu0 %v6821
    %9373 = vmatprep.subr.bf16.mxu0 0
    %9374 = vmatpush1.bf16.msra.mxu0 %v6820
    %9375 = vmatprep.subr.bf16.mxu0 0
    %9376 = vmatpush1.bf16.msra.mxu0 %v6819
    %9377 = vmatprep.subr.bf16.mxu0 0
    %9378 = vmatpush1.bf16.msra.mxu0 %v6818
    %9379 = vmatprep.subr.bf16.mxu0 0
    %9380 = vmatpush1.bf16.msra.mxu0 %v6817
    %9381 = vmatprep.subr.bf16.mxu0 0
    %9382 = vmatpush2.bf16.msra.mxu0 %v6832
    %9383 = vmatprep.subr.bf16.mxu0 0
    %9384 = vmatpush2.bf16.msra.mxu0 %v6831
    %9385 = vmatprep.subr.bf16.mxu0 0
    %9386 = vmatpush2.bf16.msra.mxu0 %v6830
    %9387 = vmatprep.subr.bf16.mxu0 0
    %9388 = vmatpush2.bf16.msra.mxu0 %v6829
    %9389 = vmatprep.subr.bf16.mxu0 0
    %9390 = vmatpush2.bf16.msra.mxu0 %v6828
    %9391 = vmatprep.subr.bf16.mxu0 0
    %9392 = vmatpush2.bf16.msra.mxu0 %v6827
    %9393 = vmatprep.subr.bf16.mxu0 0
    %9394 = vmatpush2.bf16.msra.mxu0 %v6826
    %9395 = vmatprep.subr.bf16.mxu0 0
    %9396 = vmatpush2.bf16.msra.mxu0 %v6825
    %9397 = vmatprep.mubr.bf16.mxu0 %v871
    %9398 = vmatmul.mubr.bf16.gmra.mxu0 %v870
    %v9399 = vpop.f32.mrf.mxu0
    %v9400 = vadd.f32 %v9360, %v9399
    %v9401 = vpop.f32.mrf.mxu0
    %v9402 = vpop.f32.mrf.mxu0
    %v9403 = vpop.f32.mrf.mxu0
    %9404 = vdwg.mxu0
    %9405 = vmatprep.subr.bf16.mxu0 0
    %9406 = vmatpush1.bf16.msra.mxu0 %v6840
    %9407 = vmatprep.subr.bf16.mxu0 0
    %9408 = vmatpush1.bf16.msra.mxu0 %v6839
    %9409 = vmatprep.subr.bf16.mxu0 0
    %9410 = vmatpush1.bf16.msra.mxu0 %v6838
    %9411 = vmatprep.subr.bf16.mxu0 0
    %9412 = vmatpush1.bf16.msra.mxu0 %v6837
    %9413 = vmatprep.subr.bf16.mxu0 0
    %9414 = vmatpush1.bf16.msra.mxu0 %v6836
    %9415 = vmatprep.subr.bf16.mxu0 0
    %9416 = vmatpush1.bf16.msra.mxu0 %v6835
    %9417 = vmatprep.subr.bf16.mxu0 0
    %9418 = vmatpush1.bf16.msra.mxu0 %v6834
    %9419 = vmatprep.subr.bf16.mxu0 0
    %9420 = vmatpush1.bf16.msra.mxu0 %v6833
    %9421 = vmatprep.subr.bf16.mxu0 0
    %9422 = vmatpush2.bf16.msra.mxu0 %v6848
    %9423 = vmatprep.subr.bf16.mxu0 0
    %9424 = vmatpush2.bf16.msra.mxu0 %v6847
    %9425 = vmatprep.subr.bf16.mxu0 0
    %9426 = vmatpush2.bf16.msra.mxu0 %v6846
    %9427 = vmatprep.subr.bf16.mxu0 0
    %9428 = vmatpush2.bf16.msra.mxu0 %v6845
    %9429 = vmatprep.subr.bf16.mxu0 0
    %9430 = vmatpush2.bf16.msra.mxu0 %v6844
    %9431 = vmatprep.subr.bf16.mxu0 0
    %9432 = vmatpush2.bf16.msra.mxu0 %v6843
    %9433 = vmatprep.subr.bf16.mxu0 0
    %9434 = vmatpush2.bf16.msra.mxu0 %v6842
    %9435 = vmatprep.subr.bf16.mxu0 0
    %9436 = vmatpush2.bf16.msra.mxu0 %v6841
    %9437 = vmatprep.mubr.bf16.mxu0 %v873
    %9438 = vmatmul.mubr.bf16.gmra.mxu0 %v872
    %v9439 = vpop.f32.mrf.mxu0
    %v9440 = vadd.f32 %v9400, %v9439
    %v9441 = vpop.f32.mrf.mxu0
    %v9442 = vpop.f32.mrf.mxu0
    %v9443 = vpop.f32.mrf.mxu0
    %9444 = vdwg.mxu0
    %9445 = vmatprep.subr.bf16.mxu0 0
    %9446 = vmatpush1.bf16.msra.mxu0 %v6856
    %9447 = vmatprep.subr.bf16.mxu0 0
    %9448 = vmatpush1.bf16.msra.mxu0 %v6855
    %9449 = vmatprep.subr.bf16.mxu0 0
    %9450 = vmatpush1.bf16.msra.mxu0 %v6854
    %9451 = vmatprep.subr.bf16.mxu0 0
    %9452 = vmatpush1.bf16.msra.mxu0 %v6853
    %9453 = vmatprep.subr.bf16.mxu0 0
    %9454 = vmatpush1.bf16.msra.mxu0 %v6852
    %9455 = vmatprep.subr.bf16.mxu0 0
    %9456 = vmatpush1.bf16.msra.mxu0 %v6851
    %9457 = vmatprep.subr.bf16.mxu0 0
    %9458 = vmatpush1.bf16.msra.mxu0 %v6850
    %9459 = vmatprep.subr.bf16.mxu0 0
    %9460 = vmatpush1.bf16.msra.mxu0 %v6849
    %9461 = vmatprep.subr.bf16.mxu0 0
    %9462 = vmatpush2.bf16.msra.mxu0 %v6864
    %9463 = vmatprep.subr.bf16.mxu0 0
    %9464 = vmatpush2.bf16.msra.mxu0 %v6863
    %9465 = vmatprep.subr.bf16.mxu0 0
    %9466 = vmatpush2.bf16.msra.mxu0 %v6862
    %9467 = vmatprep.subr.bf16.mxu0 0
    %9468 = vmatpush2.bf16.msra.mxu0 %v6861
    %9469 = vmatprep.subr.bf16.mxu0 0
    %9470 = vmatpush2.bf16.msra.mxu0 %v6860
    %9471 = vmatprep.subr.bf16.mxu0 0
    %9472 = vmatpush2.bf16.msra.mxu0 %v6859
    %9473 = vmatprep.subr.bf16.mxu0 0
    %9474 = vmatpush2.bf16.msra.mxu0 %v6858
    %9475 = vmatprep.subr.bf16.mxu0 0
    %9476 = vmatpush2.bf16.msra.mxu0 %v6857
    %9477 = vmatprep.mubr.bf16.mxu0 %v875
    %9478 = vmatmul.mubr.bf16.gmra.mxu0 %v874
    %v9479 = vpop.f32.mrf.mxu0
    %v9480 = vadd.f32 %v9440, %v9479
    %v9481 = vpop.f32.mrf.mxu0
    %v9482 = vpop.f32.mrf.mxu0
    %v9483 = vpop.f32.mrf.mxu0
    %9484 = vdwg.mxu0
    %9485 = vmatprep.subr.bf16.mxu0 0
    %9486 = vmatpush1.bf16.msra.mxu0 %v6872
    %9487 = vmatprep.subr.bf16.mxu0 0
    %9488 = vmatpush1.bf16.msra.mxu0 %v6871
    %9489 = vmatprep.subr.bf16.mxu0 0
    %9490 = vmatpush1.bf16.msra.mxu0 %v6870
    %9491 = vmatprep.subr.bf16.mxu0 0
    %9492 = vmatpush1.bf16.msra.mxu0 %v6869
    %9493 = vmatprep.subr.bf16.mxu0 0
    %9494 = vmatpush1.bf16.msra.mxu0 %v6868
    %9495 = vmatprep.subr.bf16.mxu0 0
    %9496 = vmatpush1.bf16.msra.mxu0 %v6867
    %9497 = vmatprep.subr.bf16.mxu0 0
    %9498 = vmatpush1.bf16.msra.mxu0 %v6866
    %9499 = vmatprep.subr.bf16.mxu0 0
    %9500 = vmatpush1.bf16.msra.mxu0 %v6865
    %9501 = vmatprep.subr.bf16.mxu0 0
    %9502 = vmatpush2.bf16.msra.mxu0 %v6880
    %9503 = vmatprep.subr.bf16.mxu0 0
    %9504 = vmatpush2.bf16.msra.mxu0 %v6879
    %9505 = vmatprep.subr.bf16.mxu0 0
    %9506 = vmatpush2.bf16.msra.mxu0 %v6878
    %9507 = vmatprep.subr.bf16.mxu0 0
    %9508 = vmatpush2.bf16.msra.mxu0 %v6877
    %9509 = vmatprep.subr.bf16.mxu0 0
    %9510 = vmatpush2.bf16.msra.mxu0 %v6876
    %9511 = vmatprep.subr.bf16.mxu0 0
    %9512 = vmatpush2.bf16.msra.mxu0 %v6875
    %9513 = vmatprep.subr.bf16.mxu0 0
    %9514 = vmatpush2.bf16.msra.mxu0 %v6874
    %9515 = vmatprep.subr.bf16.mxu0 0
    %9516 = vmatpush2.bf16.msra.mxu0 %v6873
    %9517 = vmatprep.mubr.bf16.mxu0 %v877
    %9518 = vmatmul.mubr.bf16.gmra.mxu0 %v876
    %v9519 = vpop.f32.mrf.mxu0
    %v9520 = vadd.f32 %v9480, %v9519
    %v9521 = vpop.f32.mrf.mxu0
    %v9522 = vpop.f32.mrf.mxu0
    %v9523 = vpop.f32.mrf.mxu0
    %9524 = vdwg.mxu0
    %9525 = vmatprep.subr.bf16.mxu0 0
    %9526 = vmatpush1.bf16.msra.mxu0 %v6888
    %9527 = vmatprep.subr.bf16.mxu0 0
    %9528 = vmatpush1.bf16.msra.mxu0 %v6887
    %9529 = vmatprep.subr.bf16.mxu0 0
    %9530 = vmatpush1.bf16.msra.mxu0 %v6886
    %9531 = vmatprep.subr.bf16.mxu0 0
    %9532 = vmatpush1.bf16.msra.mxu0 %v6885
    %9533 = vmatprep.subr.bf16.mxu0 0
    %9534 = vmatpush1.bf16.msra.mxu0 %v6884
    %9535 = vmatprep.subr.bf16.mxu0 0
    %9536 = vmatpush1.bf16.msra.mxu0 %v6883
    %9537 = vmatprep.subr.bf16.mxu0 0
    %9538 = vmatpush1.bf16.msra.mxu0 %v6882
    %9539 = vmatprep.subr.bf16.mxu0 0
    %9540 = vmatpush1.bf16.msra.mxu0 %v6881
    %9541 = vmatprep.subr.bf16.mxu0 0
    %9542 = vmatpush2.bf16.msra.mxu0 %v6896
    %9543 = vmatprep.subr.bf16.mxu0 0
    %9544 = vmatpush2.bf16.msra.mxu0 %v6895
    %9545 = vmatprep.subr.bf16.mxu0 0
    %9546 = vmatpush2.bf16.msra.mxu0 %v6894
    %9547 = vmatprep.subr.bf16.mxu0 0
    %9548 = vmatpush2.bf16.msra.mxu0 %v6893
    %9549 = vmatprep.subr.bf16.mxu0 0
    %9550 = vmatpush2.bf16.msra.mxu0 %v6892
    %9551 = vmatprep.subr.bf16.mxu0 0
    %9552 = vmatpush2.bf16.msra.mxu0 %v6891
    %9553 = vmatprep.subr.bf16.mxu0 0
    %9554 = vmatpush2.bf16.msra.mxu0 %v6890
    %9555 = vmatprep.subr.bf16.mxu0 0
    %9556 = vmatpush2.bf16.msra.mxu0 %v6889
    %9557 = vmatprep.mubr.bf16.mxu0 %v879
    %9558 = vmatmul.mubr.bf16.gmra.mxu0 %v878
    %v9559 = vpop.f32.mrf.mxu0
    %v9560 = vadd.f32 %v9520, %v9559
    %v9561 = vpop.f32.mrf.mxu0
    %v9562 = vpop.f32.mrf.mxu0
    %v9563 = vpop.f32.mrf.mxu0
    %9564 = vdwg.mxu0
    %9565 = vmatprep.subr.bf16.mxu0 0
    %9566 = vmatpush1.bf16.msra.mxu0 %v6904
    %9567 = vmatprep.subr.bf16.mxu0 0
    %9568 = vmatpush1.bf16.msra.mxu0 %v6903
    %9569 = vmatprep.subr.bf16.mxu0 0
    %9570 = vmatpush1.bf16.msra.mxu0 %v6902
    %9571 = vmatprep.subr.bf16.mxu0 0
    %9572 = vmatpush1.bf16.msra.mxu0 %v6901
    %9573 = vmatprep.subr.bf16.mxu0 0
    %9574 = vmatpush1.bf16.msra.mxu0 %v6900
    %9575 = vmatprep.subr.bf16.mxu0 0
    %9576 = vmatpush1.bf16.msra.mxu0 %v6899
    %9577 = vmatprep.subr.bf16.mxu0 0
    %9578 = vmatpush1.bf16.msra.mxu0 %v6898
    %9579 = vmatprep.subr.bf16.mxu0 0
    %9580 = vmatpush1.bf16.msra.mxu0 %v6897
    %9581 = vmatprep.subr.bf16.mxu0 0
    %9582 = vmatpush2.bf16.msra.mxu0 %v6912
    %9583 = vmatprep.subr.bf16.mxu0 0
    %9584 = vmatpush2.bf16.msra.mxu0 %v6911
    %9585 = vmatprep.subr.bf16.mxu0 0
    %9586 = vmatpush2.bf16.msra.mxu0 %v6910
    %9587 = vmatprep.subr.bf16.mxu0 0
    %9588 = vmatpush2.bf16.msra.mxu0 %v6909
    %9589 = vmatprep.subr.bf16.mxu0 0
    %9590 = vmatpush2.bf16.msra.mxu0 %v6908
    %9591 = vmatprep.subr.bf16.mxu0 0
    %9592 = vmatpush2.bf16.msra.mxu0 %v6907
    %9593 = vmatprep.subr.bf16.mxu0 0
    %9594 = vmatpush2.bf16.msra.mxu0 %v6906
    %9595 = vmatprep.subr.bf16.mxu0 0
    %9596 = vmatpush2.bf16.msra.mxu0 %v6905
    %9597 = vmatprep.mubr.bf16.mxu0 %v881
    %9598 = vmatmul.mubr.bf16.gmra.mxu0 %v880
    %v9599 = vpop.f32.mrf.mxu0
    %v9600 = vadd.f32 %v9560, %v9599
    %v9601 = vpop.f32.mrf.mxu0
    %v9602 = vpop.f32.mrf.mxu0
    %v9603 = vpop.f32.mrf.mxu0
    %9604 = vdwg.mxu0
    %9605 = vmatprep.subr.bf16.mxu0 0
    %9606 = vmatpush1.bf16.msra.mxu0 %v6920
    %9607 = vmatprep.subr.bf16.mxu0 0
    %9608 = vmatpush1.bf16.msra.mxu0 %v6919
    %9609 = vmatprep.subr.bf16.mxu0 0
    %9610 = vmatpush1.bf16.msra.mxu0 %v6918
    %9611 = vmatprep.subr.bf16.mxu0 0
    %9612 = vmatpush1.bf16.msra.mxu0 %v6917
    %9613 = vmatprep.subr.bf16.mxu0 0
    %9614 = vmatpush1.bf16.msra.mxu0 %v6916
    %9615 = vmatprep.subr.bf16.mxu0 0
    %9616 = vmatpush1.bf16.msra.mxu0 %v6915
    %9617 = vmatprep.subr.bf16.mxu0 0
    %9618 = vmatpush1.bf16.msra.mxu0 %v6914
    %9619 = vmatprep.subr.bf16.mxu0 0
    %9620 = vmatpush1.bf16.msra.mxu0 %v6913
    %9621 = vmatprep.subr.bf16.mxu0 0
    %9622 = vmatpush2.bf16.msra.mxu0 %v6928
    %9623 = vmatprep.subr.bf16.mxu0 0
    %9624 = vmatpush2.bf16.msra.mxu0 %v6927
    %9625 = vmatprep.subr.bf16.mxu0 0
    %9626 = vmatpush2.bf16.msra.mxu0 %v6926
    %9627 = vmatprep.subr.bf16.mxu0 0
    %9628 = vmatpush2.bf16.msra.mxu0 %v6925
    %9629 = vmatprep.subr.bf16.mxu0 0
    %9630 = vmatpush2.bf16.msra.mxu0 %v6924
    %9631 = vmatprep.subr.bf16.mxu0 0
    %9632 = vmatpush2.bf16.msra.mxu0 %v6923
    %9633 = vmatprep.subr.bf16.mxu0 0
    %9634 = vmatpush2.bf16.msra.mxu0 %v6922
    %9635 = vmatprep.subr.bf16.mxu0 0
    %9636 = vmatpush2.bf16.msra.mxu0 %v6921
    %9637 = vmatprep.mubr.bf16.mxu0 %v883
    %9638 = vmatmul.mubr.bf16.gmra.mxu0 %v882
    %v9639 = vpop.f32.mrf.mxu0
    %v9640 = vadd.f32 %v9600, %v9639
    %v9641 = vpop.f32.mrf.mxu0
    %v9642 = vpop.f32.mrf.mxu0
    %v9643 = vpop.f32.mrf.mxu0
    %9644 = vdwg.mxu0
    %9645 = vmatprep.subr.bf16.mxu0 0
    %9646 = vmatpush1.bf16.msra.mxu0 %v6936
    %9647 = vmatprep.subr.bf16.mxu0 0
    %9648 = vmatpush1.bf16.msra.mxu0 %v6935
    %9649 = vmatprep.subr.bf16.mxu0 0
    %9650 = vmatpush1.bf16.msra.mxu0 %v6934
    %9651 = vmatprep.subr.bf16.mxu0 0
    %9652 = vmatpush1.bf16.msra.mxu0 %v6933
    %9653 = vmatprep.subr.bf16.mxu0 0
    %9654 = vmatpush1.bf16.msra.mxu0 %v6932
    %9655 = vmatprep.subr.bf16.mxu0 0
    %9656 = vmatpush1.bf16.msra.mxu0 %v6931
    %9657 = vmatprep.subr.bf16.mxu0 0
    %9658 = vmatpush1.bf16.msra.mxu0 %v6930
    %9659 = vmatprep.subr.bf16.mxu0 0
    %9660 = vmatpush1.bf16.msra.mxu0 %v6929
    %9661 = vmatprep.subr.bf16.mxu0 0
    %9662 = vmatpush2.bf16.msra.mxu0 %v6944
    %9663 = vmatprep.subr.bf16.mxu0 0
    %9664 = vmatpush2.bf16.msra.mxu0 %v6943
    %9665 = vmatprep.subr.bf16.mxu0 0
    %9666 = vmatpush2.bf16.msra.mxu0 %v6942
    %9667 = vmatprep.subr.bf16.mxu0 0
    %9668 = vmatpush2.bf16.msra.mxu0 %v6941
    %9669 = vmatprep.subr.bf16.mxu0 0
    %9670 = vmatpush2.bf16.msra.mxu0 %v6940
    %9671 = vmatprep.subr.bf16.mxu0 0
    %9672 = vmatpush2.bf16.msra.mxu0 %v6939
    %9673 = vmatprep.subr.bf16.mxu0 0
    %9674 = vmatpush2.bf16.msra.mxu0 %v6938
    %9675 = vmatprep.subr.bf16.mxu0 0
    %9676 = vmatpush2.bf16.msra.mxu0 %v6937
    %9677 = vmatprep.mubr.bf16.mxu0 %v885
    %9678 = vmatmul.mubr.bf16.gmra.mxu0 %v884
    %v9679 = vpop.f32.mrf.mxu0
    %v9680 = vadd.f32 %v9640, %v9679
    %v9681 = vpop.f32.mrf.mxu0
    %v9682 = vpop.f32.mrf.mxu0
    %v9683 = vpop.f32.mrf.mxu0
    %9684 = vdwg.mxu0
    %9685 = vmatprep.subr.bf16.mxu0 0
    %9686 = vmatpush1.bf16.msra.mxu0 %v6952
    %9687 = vmatprep.subr.bf16.mxu0 0
    %9688 = vmatpush1.bf16.msra.mxu0 %v6951
    %9689 = vmatprep.subr.bf16.mxu0 0
    %9690 = vmatpush1.bf16.msra.mxu0 %v6950
    %9691 = vmatprep.subr.bf16.mxu0 0
    %9692 = vmatpush1.bf16.msra.mxu0 %v6949
    %9693 = vmatprep.subr.bf16.mxu0 0
    %9694 = vmatpush1.bf16.msra.mxu0 %v6948
    %9695 = vmatprep.subr.bf16.mxu0 0
    %9696 = vmatpush1.bf16.msra.mxu0 %v6947
    %9697 = vmatprep.subr.bf16.mxu0 0
    %9698 = vmatpush1.bf16.msra.mxu0 %v6946
    %9699 = vmatprep.subr.bf16.mxu0 0
    %9700 = vmatpush1.bf16.msra.mxu0 %v6945
    %9701 = vmatprep.subr.bf16.mxu0 0
    %9702 = vmatpush2.bf16.msra.mxu0 %v6960
    %9703 = vmatprep.subr.bf16.mxu0 0
    %9704 = vmatpush2.bf16.msra.mxu0 %v6959
    %9705 = vmatprep.subr.bf16.mxu0 0
    %9706 = vmatpush2.bf16.msra.mxu0 %v6958
    %9707 = vmatprep.subr.bf16.mxu0 0
    %9708 = vmatpush2.bf16.msra.mxu0 %v6957
    %9709 = vmatprep.subr.bf16.mxu0 0
    %9710 = vmatpush2.bf16.msra.mxu0 %v6956
    %9711 = vmatprep.subr.bf16.mxu0 0
    %9712 = vmatpush2.bf16.msra.mxu0 %v6955
    %9713 = vmatprep.subr.bf16.mxu0 0
    %9714 = vmatpush2.bf16.msra.mxu0 %v6954
    %9715 = vmatprep.subr.bf16.mxu0 0
    %9716 = vmatpush2.bf16.msra.mxu0 %v6953
    %9717 = vmatprep.mubr.bf16.mxu0 %v887
    %9718 = vmatmul.mubr.bf16.gmra.mxu0 %v886
    %v9719 = vpop.f32.mrf.mxu0
    %v9720 = vadd.f32 %v9680, %v9719
    %v9721 = vpop.f32.mrf.mxu0
    %v9722 = vpop.f32.mrf.mxu0
    %v9723 = vpop.f32.mrf.mxu0
    %9724 = vdwg.mxu0
    %9725 = vmatprep.subr.bf16.mxu0 0
    %9726 = vmatpush1.bf16.msra.mxu0 %v6968
    %9727 = vmatprep.subr.bf16.mxu0 0
    %9728 = vmatpush1.bf16.msra.mxu0 %v6967
    %9729 = vmatprep.subr.bf16.mxu0 0
    %9730 = vmatpush1.bf16.msra.mxu0 %v6966
    %9731 = vmatprep.subr.bf16.mxu0 0
    %9732 = vmatpush1.bf16.msra.mxu0 %v6965
    %9733 = vmatprep.subr.bf16.mxu0 0
    %9734 = vmatpush1.bf16.msra.mxu0 %v6964
    %9735 = vmatprep.subr.bf16.mxu0 0
    %9736 = vmatpush1.bf16.msra.mxu0 %v6963
    %9737 = vmatprep.subr.bf16.mxu0 0
    %9738 = vmatpush1.bf16.msra.mxu0 %v6962
    %9739 = vmatprep.subr.bf16.mxu0 0
    %9740 = vmatpush1.bf16.msra.mxu0 %v6961
    %9741 = vmatprep.subr.bf16.mxu0 0
    %9742 = vmatpush2.bf16.msra.mxu0 %v6976
    %9743 = vmatprep.subr.bf16.mxu0 0
    %9744 = vmatpush2.bf16.msra.mxu0 %v6975
    %9745 = vmatprep.subr.bf16.mxu0 0
    %9746 = vmatpush2.bf16.msra.mxu0 %v6974
    %9747 = vmatprep.subr.bf16.mxu0 0
    %9748 = vmatpush2.bf16.msra.mxu0 %v6973
    %9749 = vmatprep.subr.bf16.mxu0 0
    %9750 = vmatpush2.bf16.msra.mxu0 %v6972
    %9751 = vmatprep.subr.bf16.mxu0 0
    %9752 = vmatpush2.bf16.msra.mxu0 %v6971
    %9753 = vmatprep.subr.bf16.mxu0 0
    %9754 = vmatpush2.bf16.msra.mxu0 %v6970
    %9755 = vmatprep.subr.bf16.mxu0 0
    %9756 = vmatpush2.bf16.msra.mxu0 %v6969
    %9757 = vmatprep.mubr.bf16.mxu0 %v889
    %9758 = vmatmul.mubr.bf16.gmra.mxu0 %v888
    %v9759 = vpop.f32.mrf.mxu0
    %v9760 = vadd.f32 %v9720, %v9759
    %v9761 = vpop.f32.mrf.mxu0
    %v9762 = vpop.f32.mrf.mxu0
    %v9763 = vpop.f32.mrf.mxu0
    %9764 = vdwg.mxu0
    %9765 = vmatprep.subr.bf16.mxu0 0
    %9766 = vmatpush1.bf16.msra.mxu0 %v6984
    %9767 = vmatprep.subr.bf16.mxu0 0
    %9768 = vmatpush1.bf16.msra.mxu0 %v6983
    %9769 = vmatprep.subr.bf16.mxu0 0
    %9770 = vmatpush1.bf16.msra.mxu0 %v6982
    %9771 = vmatprep.subr.bf16.mxu0 0
    %9772 = vmatpush1.bf16.msra.mxu0 %v6981
    %9773 = vmatprep.subr.bf16.mxu0 0
    %9774 = vmatpush1.bf16.msra.mxu0 %v6980
    %9775 = vmatprep.subr.bf16.mxu0 0
    %9776 = vmatpush1.bf16.msra.mxu0 %v6979
    %9777 = vmatprep.subr.bf16.mxu0 0
    %9778 = vmatpush1.bf16.msra.mxu0 %v6978
    %9779 = vmatprep.subr.bf16.mxu0 0
    %9780 = vmatpush1.bf16.msra.mxu0 %v6977
    %9781 = vmatprep.subr.bf16.mxu0 0
    %9782 = vmatpush2.bf16.msra.mxu0 %v6992
    %9783 = vmatprep.subr.bf16.mxu0 0
    %9784 = vmatpush2.bf16.msra.mxu0 %v6991
    %9785 = vmatprep.subr.bf16.mxu0 0
    %9786 = vmatpush2.bf16.msra.mxu0 %v6990
    %9787 = vmatprep.subr.bf16.mxu0 0
    %9788 = vmatpush2.bf16.msra.mxu0 %v6989
    %9789 = vmatprep.subr.bf16.mxu0 0
    %9790 = vmatpush2.bf16.msra.mxu0 %v6988
    %9791 = vmatprep.subr.bf16.mxu0 0
    %9792 = vmatpush2.bf16.msra.mxu0 %v6987
    %9793 = vmatprep.subr.bf16.mxu0 0
    %9794 = vmatpush2.bf16.msra.mxu0 %v6986
    %9795 = vmatprep.subr.bf16.mxu0 0
    %9796 = vmatpush2.bf16.msra.mxu0 %v6985
    %9797 = vmatprep.mubr.bf16.mxu0 %v891
    %9798 = vmatmul.mubr.bf16.gmra.mxu0 %v890
    %v9799 = vpop.f32.mrf.mxu0
    %v9800 = vadd.f32 %v9760, %v9799
    %v9801 = vpop.f32.mrf.mxu0
    %v9802 = vpop.f32.mrf.mxu0
    %v9803 = vpop.f32.mrf.mxu0
    %9804 = vdwg.mxu0
    %9805 = vmatprep.subr.bf16.mxu0 0
    %9806 = vmatpush1.bf16.msra.mxu0 %v7000
    %9807 = vmatprep.subr.bf16.mxu0 0
    %9808 = vmatpush1.bf16.msra.mxu0 %v6999
    %9809 = vmatprep.subr.bf16.mxu0 0
    %9810 = vmatpush1.bf16.msra.mxu0 %v6998
    %9811 = vmatprep.subr.bf16.mxu0 0
    %9812 = vmatpush1.bf16.msra.mxu0 %v6997
    %9813 = vmatprep.subr.bf16.mxu0 0
    %9814 = vmatpush1.bf16.msra.mxu0 %v6996
    %9815 = vmatprep.subr.bf16.mxu0 0
    %9816 = vmatpush1.bf16.msra.mxu0 %v6995
    %9817 = vmatprep.subr.bf16.mxu0 0
    %9818 = vmatpush1.bf16.msra.mxu0 %v6994
    %9819 = vmatprep.subr.bf16.mxu0 0
    %9820 = vmatpush1.bf16.msra.mxu0 %v6993
    %9821 = vmatprep.subr.bf16.mxu0 0
    %9822 = vmatpush2.bf16.msra.mxu0 %v7008
    %9823 = vmatprep.subr.bf16.mxu0 0
    %9824 = vmatpush2.bf16.msra.mxu0 %v7007
    %9825 = vmatprep.subr.bf16.mxu0 0
    %9826 = vmatpush2.bf16.msra.mxu0 %v7006
    %9827 = vmatprep.subr.bf16.mxu0 0
    %9828 = vmatpush2.bf16.msra.mxu0 %v7005
    %9829 = vmatprep.subr.bf16.mxu0 0
    %9830 = vmatpush2.bf16.msra.mxu0 %v7004
    %9831 = vmatprep.subr.bf16.mxu0 0
    %9832 = vmatpush2.bf16.msra.mxu0 %v7003
    %9833 = vmatprep.subr.bf16.mxu0 0
    %9834 = vmatpush2.bf16.msra.mxu0 %v7002
    %9835 = vmatprep.subr.bf16.mxu0 0
    %9836 = vmatpush2.bf16.msra.mxu0 %v7001
    %9837 = vmatprep.mubr.bf16.mxu0 %v893
    %9838 = vmatmul.mubr.bf16.gmra.mxu0 %v892
    %v9839 = vpop.f32.mrf.mxu0
    %v9840 = vadd.f32 %v9800, %v9839
    %v9841 = vpop.f32.mrf.mxu0
    %v9842 = vpop.f32.mrf.mxu0
    %v9843 = vpop.f32.mrf.mxu0
    %9844 = vdwg.mxu0
    %9845 = vmatprep.subr.bf16.mxu0 0
    %9846 = vmatpush1.bf16.msra.mxu0 %v7016
    %9847 = vmatprep.subr.bf16.mxu0 0
    %9848 = vmatpush1.bf16.msra.mxu0 %v7015
    %9849 = vmatprep.subr.bf16.mxu0 0
    %9850 = vmatpush1.bf16.msra.mxu0 %v7014
    %9851 = vmatprep.subr.bf16.mxu0 0
    %9852 = vmatpush1.bf16.msra.mxu0 %v7013
    %9853 = vmatprep.subr.bf16.mxu0 0
    %9854 = vmatpush1.bf16.msra.mxu0 %v7012
    %9855 = vmatprep.subr.bf16.mxu0 0
    %9856 = vmatpush1.bf16.msra.mxu0 %v7011
    %9857 = vmatprep.subr.bf16.mxu0 0
    %9858 = vmatpush1.bf16.msra.mxu0 %v7010
    %9859 = vmatprep.subr.bf16.mxu0 0
    %9860 = vmatpush1.bf16.msra.mxu0 %v7009
    %9861 = vmatprep.subr.bf16.mxu0 0
    %9862 = vmatpush2.bf16.msra.mxu0 %v7024
    %9863 = vmatprep.subr.bf16.mxu0 0
    %9864 = vmatpush2.bf16.msra.mxu0 %v7023
    %9865 = vmatprep.subr.bf16.mxu0 0
    %9866 = vmatpush2.bf16.msra.mxu0 %v7022
    %9867 = vmatprep.subr.bf16.mxu0 0
    %9868 = vmatpush2.bf16.msra.mxu0 %v7021
    %9869 = vmatprep.subr.bf16.mxu0 0
    %9870 = vmatpush2.bf16.msra.mxu0 %v7020
    %9871 = vmatprep.subr.bf16.mxu0 0
    %9872 = vmatpush2.bf16.msra.mxu0 %v7019
    %9873 = vmatprep.subr.bf16.mxu0 0
    %9874 = vmatpush2.bf16.msra.mxu0 %v7018
    %9875 = vmatprep.subr.bf16.mxu0 0
    %9876 = vmatpush2.bf16.msra.mxu0 %v7017
    %9877 = vmatprep.mubr.bf16.mxu0 %v895
    %9878 = vmatmul.mubr.bf16.gmra.mxu0 %v894
    %v9879 = vpop.f32.mrf.mxu0
    %v9880 = vadd.f32 %v9840, %v9879
    %v9881 = vpop.f32.mrf.mxu0
    %v9882 = vpop.f32.mrf.mxu0
    %v9883 = vpop.f32.mrf.mxu0
    %9884 = vdwg.mxu0
    %9885 = vmatprep.subr.bf16.mxu0 0
    %9886 = vmatpush1.bf16.msra.mxu0 %v7032
    %9887 = vmatprep.subr.bf16.mxu0 0
    %9888 = vmatpush1.bf16.msra.mxu0 %v7031
    %9889 = vmatprep.subr.bf16.mxu0 0
    %9890 = vmatpush1.bf16.msra.mxu0 %v7030
    %9891 = vmatprep.subr.bf16.mxu0 0
    %9892 = vmatpush1.bf16.msra.mxu0 %v7029
    %9893 = vmatprep.subr.bf16.mxu0 0
    %9894 = vmatpush1.bf16.msra.mxu0 %v7028
    %9895 = vmatprep.subr.bf16.mxu0 0
    %9896 = vmatpush1.bf16.msra.mxu0 %v7027
    %9897 = vmatprep.subr.bf16.mxu0 0
    %9898 = vmatpush1.bf16.msra.mxu0 %v7026
    %9899 = vmatprep.subr.bf16.mxu0 0
    %9900 = vmatpush1.bf16.msra.mxu0 %v7025
    %9901 = vmatprep.subr.bf16.mxu0 0
    %9902 = vmatpush2.bf16.msra.mxu0 %v7040
    %9903 = vmatprep.subr.bf16.mxu0 0
    %9904 = vmatpush2.bf16.msra.mxu0 %v7039
    %9905 = vmatprep.subr.bf16.mxu0 0
    %9906 = vmatpush2.bf16.msra.mxu0 %v7038
    %9907 = vmatprep.subr.bf16.mxu0 0
    %9908 = vmatpush2.bf16.msra.mxu0 %v7037
    %9909 = vmatprep.subr.bf16.mxu0 0
    %9910 = vmatpush2.bf16.msra.mxu0 %v7036
    %9911 = vmatprep.subr.bf16.mxu0 0
    %9912 = vmatpush2.bf16.msra.mxu0 %v7035
    %9913 = vmatprep.subr.bf16.mxu0 0
    %9914 = vmatpush2.bf16.msra.mxu0 %v7034
    %9915 = vmatprep.subr.bf16.mxu0 0
    %9916 = vmatpush2.bf16.msra.mxu0 %v7033
    %9917 = vmatprep.mubr.bf16.mxu0 %v897
    %9918 = vmatmul.mubr.bf16.gmra.mxu0 %v896
    %v9919 = vpop.f32.mrf.mxu0
    %v9920 = vadd.f32 %v9880, %v9919
    %v9921 = vpop.f32.mrf.mxu0
    %v9922 = vpop.f32.mrf.mxu0
    %v9923 = vpop.f32.mrf.mxu0
    %9924 = vdwg.mxu0
    %9925 = vmatprep.subr.bf16.mxu0 0
    %9926 = vmatpush1.bf16.msra.mxu0 %v7048
    %9927 = vmatprep.subr.bf16.mxu0 0
    %9928 = vmatpush1.bf16.msra.mxu0 %v7047
    %9929 = vmatprep.subr.bf16.mxu0 0
    %9930 = vmatpush1.bf16.msra.mxu0 %v7046
    %9931 = vmatprep.subr.bf16.mxu0 0
    %9932 = vmatpush1.bf16.msra.mxu0 %v7045
    %9933 = vmatprep.subr.bf16.mxu0 0
    %9934 = vmatpush1.bf16.msra.mxu0 %v7044
    %9935 = vmatprep.subr.bf16.mxu0 0
    %9936 = vmatpush1.bf16.msra.mxu0 %v7043
    %9937 = vmatprep.subr.bf16.mxu0 0
    %9938 = vmatpush1.bf16.msra.mxu0 %v7042
    %9939 = vmatprep.subr.bf16.mxu0 0
    %9940 = vmatpush1.bf16.msra.mxu0 %v7041
    %9941 = vmatprep.subr.bf16.mxu0 0
    %9942 = vmatpush2.bf16.msra.mxu0 %v7056
    %9943 = vmatprep.subr.bf16.mxu0 0
    %9944 = vmatpush2.bf16.msra.mxu0 %v7055
    %9945 = vmatprep.subr.bf16.mxu0 0
    %9946 = vmatpush2.bf16.msra.mxu0 %v7054
    %9947 = vmatprep.subr.bf16.mxu0 0
    %9948 = vmatpush2.bf16.msra.mxu0 %v7053
    %9949 = vmatprep.subr.bf16.mxu0 0
    %9950 = vmatpush2.bf16.msra.mxu0 %v7052
    %9951 = vmatprep.subr.bf16.mxu0 0
    %9952 = vmatpush2.bf16.msra.mxu0 %v7051
    %9953 = vmatprep.subr.bf16.mxu0 0
    %9954 = vmatpush2.bf16.msra.mxu0 %v7050
    %9955 = vmatprep.subr.bf16.mxu0 0
    %9956 = vmatpush2.bf16.msra.mxu0 %v7049
    %9957 = vmatprep.mubr.bf16.mxu0 %v899
    %9958 = vmatmul.mubr.bf16.gmra.mxu0 %v898
    %v9959 = vpop.f32.mrf.mxu0
    %v9960 = vadd.f32 %v9920, %v9959
    %v9961 = vpop.f32.mrf.mxu0
    %v9962 = vpop.f32.mrf.mxu0
    %v9963 = vpop.f32.mrf.mxu0
    %9964 = vdwg.mxu0
    %9965 = vmatprep.subr.bf16.mxu0 0
    %9966 = vmatpush1.bf16.msra.mxu0 %v7064
    %9967 = vmatprep.subr.bf16.mxu0 0
    %9968 = vmatpush1.bf16.msra.mxu0 %v7063
    %9969 = vmatprep.subr.bf16.mxu0 0
    %9970 = vmatpush1.bf16.msra.mxu0 %v7062
    %9971 = vmatprep.subr.bf16.mxu0 0
    %9972 = vmatpush1.bf16.msra.mxu0 %v7061
    %9973 = vmatprep.subr.bf16.mxu0 0
    %9974 = vmatpush1.bf16.msra.mxu0 %v7060
    %9975 = vmatprep.subr.bf16.mxu0 0
    %9976 = vmatpush1.bf16.msra.mxu0 %v7059
    %9977 = vmatprep.subr.bf16.mxu0 0
    %9978 = vmatpush1.bf16.msra.mxu0 %v7058
    %9979 = vmatprep.subr.bf16.mxu0 0
    %9980 = vmatpush1.bf16.msra.mxu0 %v7057
    %9981 = vmatprep.subr.bf16.mxu0 0
    %9982 = vmatpush2.bf16.msra.mxu0 %v7072
    %9983 = vmatprep.subr.bf16.mxu0 0
    %9984 = vmatpush2.bf16.msra.mxu0 %v7071
    %9985 = vmatprep.subr.bf16.mxu0 0
    %9986 = vmatpush2.bf16.msra.mxu0 %v7070
    %9987 = vmatprep.subr.bf16.mxu0 0
    %9988 = vmatpush2.bf16.msra.mxu0 %v7069
    %9989 = vmatprep.subr.bf16.mxu0 0
    %9990 = vmatpush2.bf16.msra.mxu0 %v7068
    %9991 = vmatprep.subr.bf16.mxu0 0
    %9992 = vmatpush2.bf16.msra.mxu0 %v7067
    %9993 = vmatprep.subr.bf16.mxu0 0
    %9994 = vmatpush2.bf16.msra.mxu0 %v7066
    %9995 = vmatprep.subr.bf16.mxu0 0
    %9996 = vmatpush2.bf16.msra.mxu0 %v7065
    %9997 = vmatprep.mubr.bf16.mxu0 %v901
    %9998 = vmatmul.mubr.bf16.gmra.mxu0 %v900
    %v9999 = vpop.f32.mrf.mxu0
    %v10000 = vadd.f32 %v9960, %v9999
    %v10001 = vpop.f32.mrf.mxu0
    %v10002 = vpop.f32.mrf.mxu0
    %v10003 = vpop.f32.mrf.mxu0
    %10004 = vdwg.mxu0
    %10005 = vmatprep.subr.bf16.mxu0 0
    %10006 = vmatpush1.bf16.msra.mxu0 %v7080
    %10007 = vmatprep.subr.bf16.mxu0 0
    %10008 = vmatpush1.bf16.msra.mxu0 %v7079
    %10009 = vmatprep.subr.bf16.mxu0 0
    %10010 = vmatpush1.bf16.msra.mxu0 %v7078
    %10011 = vmatprep.subr.bf16.mxu0 0
    %10012 = vmatpush1.bf16.msra.mxu0 %v7077
    %10013 = vmatprep.subr.bf16.mxu0 0
    %10014 = vmatpush1.bf16.msra.mxu0 %v7076
    %10015 = vmatprep.subr.bf16.mxu0 0
    %10016 = vmatpush1.bf16.msra.mxu0 %v7075
    %10017 = vmatprep.subr.bf16.mxu0 0
    %10018 = vmatpush1.bf16.msra.mxu0 %v7074
    %10019 = vmatprep.subr.bf16.mxu0 0
    %10020 = vmatpush1.bf16.msra.mxu0 %v7073
    %10021 = vmatprep.subr.bf16.mxu0 0
    %10022 = vmatpush2.bf16.msra.mxu0 %v7088
    %10023 = vmatprep.subr.bf16.mxu0 0
    %10024 = vmatpush2.bf16.msra.mxu0 %v7087
    %10025 = vmatprep.subr.bf16.mxu0 0
    %10026 = vmatpush2.bf16.msra.mxu0 %v7086
    %10027 = vmatprep.subr.bf16.mxu0 0
    %10028 = vmatpush2.bf16.msra.mxu0 %v7085
    %10029 = vmatprep.subr.bf16.mxu0 0
    %10030 = vmatpush2.bf16.msra.mxu0 %v7084
    %10031 = vmatprep.subr.bf16.mxu0 0
    %10032 = vmatpush2.bf16.msra.mxu0 %v7083
    %10033 = vmatprep.subr.bf16.mxu0 0
    %10034 = vmatpush2.bf16.msra.mxu0 %v7082
    %10035 = vmatprep.subr.bf16.mxu0 0
    %10036 = vmatpush2.bf16.msra.mxu0 %v7081
    %10037 = vmatprep.mubr.bf16.mxu0 %v903
    %10038 = vmatmul.mubr.bf16.gmra.mxu0 %v902
    %v10039 = vpop.f32.mrf.mxu0
    %v10040 = vadd.f32 %v10000, %v10039
    %v10041 = vpop.f32.mrf.mxu0
    %v10042 = vpop.f32.mrf.mxu0
    %v10043 = vpop.f32.mrf.mxu0
    %10044 = vdwg.mxu0
    %10045 = vmatprep.subr.bf16.mxu0 0
    %10046 = vmatpush1.bf16.msra.mxu0 %v7096
    %10047 = vmatprep.subr.bf16.mxu0 0
    %10048 = vmatpush1.bf16.msra.mxu0 %v7095
    %10049 = vmatprep.subr.bf16.mxu0 0
    %10050 = vmatpush1.bf16.msra.mxu0 %v7094
    %10051 = vmatprep.subr.bf16.mxu0 0
    %10052 = vmatpush1.bf16.msra.mxu0 %v7093
    %10053 = vmatprep.subr.bf16.mxu0 0
    %10054 = vmatpush1.bf16.msra.mxu0 %v7092
    %10055 = vmatprep.subr.bf16.mxu0 0
    %10056 = vmatpush1.bf16.msra.mxu0 %v7091
    %10057 = vmatprep.subr.bf16.mxu0 0
    %10058 = vmatpush1.bf16.msra.mxu0 %v7090
    %10059 = vmatprep.subr.bf16.mxu0 0
    %10060 = vmatpush1.bf16.msra.mxu0 %v7089
    %10061 = vmatprep.subr.bf16.mxu0 0
    %10062 = vmatpush2.bf16.msra.mxu0 %v7104
    %10063 = vmatprep.subr.bf16.mxu0 0
    %10064 = vmatpush2.bf16.msra.mxu0 %v7103
    %10065 = vmatprep.subr.bf16.mxu0 0
    %10066 = vmatpush2.bf16.msra.mxu0 %v7102
    %10067 = vmatprep.subr.bf16.mxu0 0
    %10068 = vmatpush2.bf16.msra.mxu0 %v7101
    %10069 = vmatprep.subr.bf16.mxu0 0
    %10070 = vmatpush2.bf16.msra.mxu0 %v7100
    %10071 = vmatprep.subr.bf16.mxu0 0
    %10072 = vmatpush2.bf16.msra.mxu0 %v7099
    %10073 = vmatprep.subr.bf16.mxu0 0
    %10074 = vmatpush2.bf16.msra.mxu0 %v7098
    %10075 = vmatprep.subr.bf16.mxu0 0
    %10076 = vmatpush2.bf16.msra.mxu0 %v7097
    %10077 = vmatprep.mubr.bf16.mxu0 %v905
    %10078 = vmatmul.mubr.bf16.gmra.mxu0 %v904
    %v10079 = vpop.f32.mrf.mxu0
    %v10080 = vadd.f32 %v10040, %v10079
    %v10081 = vpop.f32.mrf.mxu0
    %v10082 = vpop.f32.mrf.mxu0
    %v10083 = vpop.f32.mrf.mxu0
    %10084 = vdwg.mxu0
    %10085 = vmatprep.subr.bf16.mxu0 0
    %10086 = vmatpush1.bf16.msra.mxu0 %v7112
    %10087 = vmatprep.subr.bf16.mxu0 0
    %10088 = vmatpush1.bf16.msra.mxu0 %v7111
    %10089 = vmatprep.subr.bf16.mxu0 0
    %10090 = vmatpush1.bf16.msra.mxu0 %v7110
    %10091 = vmatprep.subr.bf16.mxu0 0
    %10092 = vmatpush1.bf16.msra.mxu0 %v7109
    %10093 = vmatprep.subr.bf16.mxu0 0
    %10094 = vmatpush1.bf16.msra.mxu0 %v7108
    %10095 = vmatprep.subr.bf16.mxu0 0
    %10096 = vmatpush1.bf16.msra.mxu0 %v7107
    %10097 = vmatprep.subr.bf16.mxu0 0
    %10098 = vmatpush1.bf16.msra.mxu0 %v7106
    %10099 = vmatprep.subr.bf16.mxu0 0
    %10100 = vmatpush1.bf16.msra.mxu0 %v7105
    %10101 = vmatprep.subr.bf16.mxu0 0
    %10102 = vmatpush2.bf16.msra.mxu0 %v7120
    %10103 = vmatprep.subr.bf16.mxu0 0
    %10104 = vmatpush2.bf16.msra.mxu0 %v7119
    %10105 = vmatprep.subr.bf16.mxu0 0
    %10106 = vmatpush2.bf16.msra.mxu0 %v7118
    %10107 = vmatprep.subr.bf16.mxu0 0
    %10108 = vmatpush2.bf16.msra.mxu0 %v7117
    %10109 = vmatprep.subr.bf16.mxu0 0
    %10110 = vmatpush2.bf16.msra.mxu0 %v7116
    %10111 = vmatprep.subr.bf16.mxu0 0
    %10112 = vmatpush2.bf16.msra.mxu0 %v7115
    %10113 = vmatprep.subr.bf16.mxu0 0
    %10114 = vmatpush2.bf16.msra.mxu0 %v7114
    %10115 = vmatprep.subr.bf16.mxu0 0
    %10116 = vmatpush2.bf16.msra.mxu0 %v7113
    %10117 = vmatprep.mubr.bf16.mxu0 %v907
    %10118 = vmatmul.mubr.bf16.gmra.mxu0 %v906
    %v10119 = vpop.f32.mrf.mxu0
    %v10120 = vadd.f32 %v10080, %v10119
    %v10121 = vpop.f32.mrf.mxu0
    %v10122 = vpop.f32.mrf.mxu0
    %v10123 = vpop.f32.mrf.mxu0
    %10124 = vdwg.mxu0
    %10125 = vmatprep.subr.bf16.mxu0 0
    %10126 = vmatpush1.bf16.msra.mxu0 %v7128
    %10127 = vmatprep.subr.bf16.mxu0 0
    %10128 = vmatpush1.bf16.msra.mxu0 %v7127
    %10129 = vmatprep.subr.bf16.mxu0 0
    %10130 = vmatpush1.bf16.msra.mxu0 %v7126
    %10131 = vmatprep.subr.bf16.mxu0 0
    %10132 = vmatpush1.bf16.msra.mxu0 %v7125
    %10133 = vmatprep.subr.bf16.mxu0 0
    %10134 = vmatpush1.bf16.msra.mxu0 %v7124
    %10135 = vmatprep.subr.bf16.mxu0 0
    %10136 = vmatpush1.bf16.msra.mxu0 %v7123
    %10137 = vmatprep.subr.bf16.mxu0 0
    %10138 = vmatpush1.bf16.msra.mxu0 %v7122
    %10139 = vmatprep.subr.bf16.mxu0 0
    %10140 = vmatpush1.bf16.msra.mxu0 %v7121
    %10141 = vmatprep.subr.bf16.mxu0 0
    %10142 = vmatpush2.bf16.msra.mxu0 %v7136
    %10143 = vmatprep.subr.bf16.mxu0 0
    %10144 = vmatpush2.bf16.msra.mxu0 %v7135
    %10145 = vmatprep.subr.bf16.mxu0 0
    %10146 = vmatpush2.bf16.msra.mxu0 %v7134
    %10147 = vmatprep.subr.bf16.mxu0 0
    %10148 = vmatpush2.bf16.msra.mxu0 %v7133
    %10149 = vmatprep.subr.bf16.mxu0 0
    %10150 = vmatpush2.bf16.msra.mxu0 %v7132
    %10151 = vmatprep.subr.bf16.mxu0 0
    %10152 = vmatpush2.bf16.msra.mxu0 %v7131
    %10153 = vmatprep.subr.bf16.mxu0 0
    %10154 = vmatpush2.bf16.msra.mxu0 %v7130
    %10155 = vmatprep.subr.bf16.mxu0 0
    %10156 = vmatpush2.bf16.msra.mxu0 %v7129
    %10157 = vmatprep.mubr.bf16.mxu0 %v909
    %10158 = vmatmul.mubr.bf16.gmra.mxu0 %v908
    %v10159 = vpop.f32.mrf.mxu0
    %v10160 = vadd.f32 %v10120, %v10159
    %v10161 = vpop.f32.mrf.mxu0
    %v10162 = vpop.f32.mrf.mxu0
    %v10163 = vpop.f32.mrf.mxu0
    %10164 = vdwg.mxu0
    %10165 = vmatprep.subr.bf16.mxu0 0
    %10166 = vmatpush1.bf16.msra.mxu0 %v7144
    %10167 = vmatprep.subr.bf16.mxu0 0
    %10168 = vmatpush1.bf16.msra.mxu0 %v7143
    %10169 = vmatprep.subr.bf16.mxu0 0
    %10170 = vmatpush1.bf16.msra.mxu0 %v7142
    %10171 = vmatprep.subr.bf16.mxu0 0
    %10172 = vmatpush1.bf16.msra.mxu0 %v7141
    %10173 = vmatprep.subr.bf16.mxu0 0
    %10174 = vmatpush1.bf16.msra.mxu0 %v7140
    %10175 = vmatprep.subr.bf16.mxu0 0
    %10176 = vmatpush1.bf16.msra.mxu0 %v7139
    %10177 = vmatprep.subr.bf16.mxu0 0
    %10178 = vmatpush1.bf16.msra.mxu0 %v7138
    %10179 = vmatprep.subr.bf16.mxu0 0
    %10180 = vmatpush1.bf16.msra.mxu0 %v7137
    %10181 = vmatprep.subr.bf16.mxu0 0
    %10182 = vmatpush2.bf16.msra.mxu0 %v7152
    %10183 = vmatprep.subr.bf16.mxu0 0
    %10184 = vmatpush2.bf16.msra.mxu0 %v7151
    %10185 = vmatprep.subr.bf16.mxu0 0
    %10186 = vmatpush2.bf16.msra.mxu0 %v7150
    %10187 = vmatprep.subr.bf16.mxu0 0
    %10188 = vmatpush2.bf16.msra.mxu0 %v7149
    %10189 = vmatprep.subr.bf16.mxu0 0
    %10190 = vmatpush2.bf16.msra.mxu0 %v7148
    %10191 = vmatprep.subr.bf16.mxu0 0
    %10192 = vmatpush2.bf16.msra.mxu0 %v7147
    %10193 = vmatprep.subr.bf16.mxu0 0
    %10194 = vmatpush2.bf16.msra.mxu0 %v7146
    %10195 = vmatprep.subr.bf16.mxu0 0
    %10196 = vmatpush2.bf16.msra.mxu0 %v7145
    %10197 = vmatprep.mubr.bf16.mxu0 %v911
    %10198 = vmatmul.mubr.bf16.gmra.mxu0 %v910
    %v10199 = vpop.f32.mrf.mxu0
    %v10200 = vadd.f32 %v10160, %v10199
    %v10201 = vpop.f32.mrf.mxu0
    %v10202 = vpop.f32.mrf.mxu0
    %v10203 = vpop.f32.mrf.mxu0
    %10204 = vdwg.mxu0
    %10205 = vmatprep.subr.bf16.mxu0 0
    %10206 = vmatpush1.bf16.msra.mxu0 %v7160
    %10207 = vmatprep.subr.bf16.mxu0 0
    %10208 = vmatpush1.bf16.msra.mxu0 %v7159
    %10209 = vmatprep.subr.bf16.mxu0 0
    %10210 = vmatpush1.bf16.msra.mxu0 %v7158
    %10211 = vmatprep.subr.bf16.mxu0 0
    %10212 = vmatpush1.bf16.msra.mxu0 %v7157
    %10213 = vmatprep.subr.bf16.mxu0 0
    %10214 = vmatpush1.bf16.msra.mxu0 %v7156
    %10215 = vmatprep.subr.bf16.mxu0 0
    %10216 = vmatpush1.bf16.msra.mxu0 %v7155
    %10217 = vmatprep.subr.bf16.mxu0 0
    %10218 = vmatpush1.bf16.msra.mxu0 %v7154
    %10219 = vmatprep.subr.bf16.mxu0 0
    %10220 = vmatpush1.bf16.msra.mxu0 %v7153
    %10221 = vmatprep.subr.bf16.mxu0 0
    %10222 = vmatpush2.bf16.msra.mxu0 %v7168
    %10223 = vmatprep.subr.bf16.mxu0 0
    %10224 = vmatpush2.bf16.msra.mxu0 %v7167
    %10225 = vmatprep.subr.bf16.mxu0 0
    %10226 = vmatpush2.bf16.msra.mxu0 %v7166
    %10227 = vmatprep.subr.bf16.mxu0 0
    %10228 = vmatpush2.bf16.msra.mxu0 %v7165
    %10229 = vmatprep.subr.bf16.mxu0 0
    %10230 = vmatpush2.bf16.msra.mxu0 %v7164
    %10231 = vmatprep.subr.bf16.mxu0 0
    %10232 = vmatpush2.bf16.msra.mxu0 %v7163
    %10233 = vmatprep.subr.bf16.mxu0 0
    %10234 = vmatpush2.bf16.msra.mxu0 %v7162
    %10235 = vmatprep.subr.bf16.mxu0 0
    %10236 = vmatpush2.bf16.msra.mxu0 %v7161
    %10237 = vmatprep.mubr.bf16.mxu0 %v913
    %10238 = vmatmul.mubr.bf16.gmra.mxu0 %v912
    %v10239 = vpop.f32.mrf.mxu0
    %v10240 = vadd.f32 %v10200, %v10239
    %v10241 = vpop.f32.mrf.mxu0
    %v10242 = vpop.f32.mrf.mxu0
    %v10243 = vpop.f32.mrf.mxu0
    %10244 = vdwg.mxu0
    %10245 = vmatprep.subr.bf16.mxu0 0
    %10246 = vmatpush1.bf16.msra.mxu0 %v7176
    %10247 = vmatprep.subr.bf16.mxu0 0
    %10248 = vmatpush1.bf16.msra.mxu0 %v7175
    %10249 = vmatprep.subr.bf16.mxu0 0
    %10250 = vmatpush1.bf16.msra.mxu0 %v7174
    %10251 = vmatprep.subr.bf16.mxu0 0
    %10252 = vmatpush1.bf16.msra.mxu0 %v7173
    %10253 = vmatprep.subr.bf16.mxu0 0
    %10254 = vmatpush1.bf16.msra.mxu0 %v7172
    %10255 = vmatprep.subr.bf16.mxu0 0
    %10256 = vmatpush1.bf16.msra.mxu0 %v7171
    %10257 = vmatprep.subr.bf16.mxu0 0
    %10258 = vmatpush1.bf16.msra.mxu0 %v7170
    %10259 = vmatprep.subr.bf16.mxu0 0
    %10260 = vmatpush1.bf16.msra.mxu0 %v7169
    %10261 = vmatprep.subr.bf16.mxu0 0
    %10262 = vmatpush2.bf16.msra.mxu0 %v7184
    %10263 = vmatprep.subr.bf16.mxu0 0
    %10264 = vmatpush2.bf16.msra.mxu0 %v7183
    %10265 = vmatprep.subr.bf16.mxu0 0
    %10266 = vmatpush2.bf16.msra.mxu0 %v7182
    %10267 = vmatprep.subr.bf16.mxu0 0
    %10268 = vmatpush2.bf16.msra.mxu0 %v7181
    %10269 = vmatprep.subr.bf16.mxu0 0
    %10270 = vmatpush2.bf16.msra.mxu0 %v7180
    %10271 = vmatprep.subr.bf16.mxu0 0
    %10272 = vmatpush2.bf16.msra.mxu0 %v7179
    %10273 = vmatprep.subr.bf16.mxu0 0
    %10274 = vmatpush2.bf16.msra.mxu0 %v7178
    %10275 = vmatprep.subr.bf16.mxu0 0
    %10276 = vmatpush2.bf16.msra.mxu0 %v7177
    %10277 = vmatprep.mubr.bf16.mxu0 %v915
    %10278 = vmatmul.mubr.bf16.gmra.mxu0 %v914
    %v10279 = vpop.f32.mrf.mxu0
    %v10280 = vadd.f32 %v10240, %v10279
    %v10281 = vpop.f32.mrf.mxu0
    %v10282 = vpop.f32.mrf.mxu0
    %v10283 = vpop.f32.mrf.mxu0
    %10284 = vdwg.mxu0
    %10285 = vmatprep.subr.bf16.mxu0 0
    %10286 = vmatpush1.bf16.msra.mxu0 %v7192
    %10287 = vmatprep.subr.bf16.mxu0 0
    %10288 = vmatpush1.bf16.msra.mxu0 %v7191
    %10289 = vmatprep.subr.bf16.mxu0 0
    %10290 = vmatpush1.bf16.msra.mxu0 %v7190
    %10291 = vmatprep.subr.bf16.mxu0 0
    %10292 = vmatpush1.bf16.msra.mxu0 %v7189
    %10293 = vmatprep.subr.bf16.mxu0 0
    %10294 = vmatpush1.bf16.msra.mxu0 %v7188
    %10295 = vmatprep.subr.bf16.mxu0 0
    %10296 = vmatpush1.bf16.msra.mxu0 %v7187
    %10297 = vmatprep.subr.bf16.mxu0 0
    %10298 = vmatpush1.bf16.msra.mxu0 %v7186
    %10299 = vmatprep.subr.bf16.mxu0 0
    %10300 = vmatpush1.bf16.msra.mxu0 %v7185
    %10301 = vmatprep.subr.bf16.mxu0 0
    %10302 = vmatpush2.bf16.msra.mxu0 %v7200
    %10303 = vmatprep.subr.bf16.mxu0 0
    %10304 = vmatpush2.bf16.msra.mxu0 %v7199
    %10305 = vmatprep.subr.bf16.mxu0 0
    %10306 = vmatpush2.bf16.msra.mxu0 %v7198
    %10307 = vmatprep.subr.bf16.mxu0 0
    %10308 = vmatpush2.bf16.msra.mxu0 %v7197
    %10309 = vmatprep.subr.bf16.mxu0 0
    %10310 = vmatpush2.bf16.msra.mxu0 %v7196
    %10311 = vmatprep.subr.bf16.mxu0 0
    %10312 = vmatpush2.bf16.msra.mxu0 %v7195
    %10313 = vmatprep.subr.bf16.mxu0 0
    %10314 = vmatpush2.bf16.msra.mxu0 %v7194
    %10315 = vmatprep.subr.bf16.mxu0 0
    %10316 = vmatpush2.bf16.msra.mxu0 %v7193
    %10317 = vmatprep.mubr.bf16.mxu0 %v917
    %10318 = vmatmul.mubr.bf16.gmra.mxu0 %v916
    %v10319 = vpop.f32.mrf.mxu0
    %v10320 = vadd.f32 %v10280, %v10319
    %v10321 = vpop.f32.mrf.mxu0
    %v10322 = vpop.f32.mrf.mxu0
    %v10323 = vpop.f32.mrf.mxu0
    %10324 = vdwg.mxu0
    %10325 = vmatprep.subr.bf16.mxu0 0
    %10326 = vmatpush1.bf16.msra.mxu0 %v7208
    %10327 = vmatprep.subr.bf16.mxu0 0
    %10328 = vmatpush1.bf16.msra.mxu0 %v7207
    %10329 = vmatprep.subr.bf16.mxu0 0
    %10330 = vmatpush1.bf16.msra.mxu0 %v7206
    %10331 = vmatprep.subr.bf16.mxu0 0
    %10332 = vmatpush1.bf16.msra.mxu0 %v7205
    %10333 = vmatprep.subr.bf16.mxu0 0
    %10334 = vmatpush1.bf16.msra.mxu0 %v7204
    %10335 = vmatprep.subr.bf16.mxu0 0
    %10336 = vmatpush1.bf16.msra.mxu0 %v7203
    %10337 = vmatprep.subr.bf16.mxu0 0
    %10338 = vmatpush1.bf16.msra.mxu0 %v7202
    %10339 = vmatprep.subr.bf16.mxu0 0
    %10340 = vmatpush1.bf16.msra.mxu0 %v7201
    %10341 = vmatprep.subr.bf16.mxu0 0
    %10342 = vmatpush2.bf16.msra.mxu0 %v7216
    %10343 = vmatprep.subr.bf16.mxu0 0
    %10344 = vmatpush2.bf16.msra.mxu0 %v7215
    %10345 = vmatprep.subr.bf16.mxu0 0
    %10346 = vmatpush2.bf16.msra.mxu0 %v7214
    %10347 = vmatprep.subr.bf16.mxu0 0
    %10348 = vmatpush2.bf16.msra.mxu0 %v7213
    %10349 = vmatprep.subr.bf16.mxu0 0
    %10350 = vmatpush2.bf16.msra.mxu0 %v7212
    %10351 = vmatprep.subr.bf16.mxu0 0
    %10352 = vmatpush2.bf16.msra.mxu0 %v7211
    %10353 = vmatprep.subr.bf16.mxu0 0
    %10354 = vmatpush2.bf16.msra.mxu0 %v7210
    %10355 = vmatprep.subr.bf16.mxu0 0
    %10356 = vmatpush2.bf16.msra.mxu0 %v7209
    %10357 = vmatprep.mubr.bf16.mxu0 %v919
    %10358 = vmatmul.mubr.bf16.gmra.mxu0 %v918
    %v10359 = vpop.f32.mrf.mxu0
    %v10360 = vadd.f32 %v10320, %v10359
    %v10361 = vpop.f32.mrf.mxu0
    %v10362 = vpop.f32.mrf.mxu0
    %v10363 = vpop.f32.mrf.mxu0
    %10364 = vdwg.mxu0
    %10365 = vmatprep.subr.bf16.mxu0 0
    %10366 = vmatpush1.bf16.msra.mxu0 0
    %10367 = vmatprep.subr.bf16.mxu0 0
    %10368 = vmatpush1.bf16.msra.mxu0 0
    %10369 = vmatprep.subr.bf16.mxu0 0
    %10370 = vmatpush1.bf16.msra.mxu0 0
    %10371 = vmatprep.subr.bf16.mxu0 0
    %10372 = vmatpush1.bf16.msra.mxu0 0
    %10373 = vmatprep.subr.bf16.mxu0 0
    %10374 = vmatpush1.bf16.msra.mxu0 %v7220
    %10375 = vmatprep.subr.bf16.mxu0 0
    %10376 = vmatpush1.bf16.msra.mxu0 %v7219
    %10377 = vmatprep.subr.bf16.mxu0 0
    %10378 = vmatpush1.bf16.msra.mxu0 %v7218
    %10379 = vmatprep.subr.bf16.mxu0 0
    %10380 = vmatpush1.bf16.msra.mxu0 %v7217
    %10381 = vmatprep.subr.bf16.mxu0 0
    %10382 = vmatpush2.bf16.msra.mxu0 0
    %10383 = vmatprep.subr.bf16.mxu0 0
    %10384 = vmatpush2.bf16.msra.mxu0 0
    %10385 = vmatprep.subr.bf16.mxu0 0
    %10386 = vmatpush2.bf16.msra.mxu0 0
    %10387 = vmatprep.subr.bf16.mxu0 0
    %10388 = vmatpush2.bf16.msra.mxu0 0
    %10389 = vmatprep.subr.bf16.mxu0 0
    %10390 = vmatpush2.bf16.msra.mxu0 0
    %10391 = vmatprep.subr.bf16.mxu0 0
    %10392 = vmatpush2.bf16.msra.mxu0 0
    %10393 = vmatprep.subr.bf16.mxu0 0
    %10394 = vmatpush2.bf16.msra.mxu0 0
    %10395 = vmatprep.subr.bf16.mxu0 0
    %10396 = vmatpush2.bf16.msra.mxu0 0
    %10397 = vmatprep.mubr.bf16.mxu0 0
    %10398 = vmatmul.mubr.bf16.gmra.mxu0 %v8123
    %v10399 = vpop.f32.mrf.mxu0
    %v10400 = vadd.f32 %v10360, %v10399
    %v10401 = vpop.f32.mrf.mxu0
    %v10402 = vpop.f32.mrf.mxu0
    %v10403 = vpop.f32.mrf.mxu0
    %10404 = vdwg.mxu0
    %v10405 = vadd.f32 %v153, %v10400
    %10406 = vst [vmem:[#allocation17] sm:$0x3] %v10405
    // Predicated region
    $region78: #{tpu_custom_call.1} parent=1 // pred_check
      %p10407 = pneg %p148
    $region79: #{tpu_custom_call.1} parent=1 // pred_check_branch
      %10409 = sbr.rel (%p10407) target = $region81
    $region80: #{tpu_custom_call.1} parent=1 // pred_region
      %v10410 = vld [vmem:[#allocation17] sm:$0x3]
      %v10411 = vld [vmem:[#allocation7] sm:$0x1]
      %v10413 = vlaneseq
      %v10414 = vshrl.u32 %v10413, 7
      %v10415 = vsub.s32 0, %v10414
      %v10416 = vrot.slane %v10411, %v10415
      %v10418 = vadd.f32 %v10410, %v10416
      %v10419 = vmax.f32 %v10418, 0.0
      %v10420 = vld [vmem:[#allocation8] sm:$0x1]
      %v10421 = vld [vmem:[#allocation10] sm:$0x1]
      %vm10422 = vcmask 1041408
      %v10423 = vsel %vm10422, %v10419, 0.0
      %10424 = vadd.xlane.f32.xlu0 %v10423
      %v10425 = vpop.xlane.xlu0 %10424
      %v10426 = vrcp.pop 128.0
      %v10427 = vmul.f32 %v10425, %v10426
      %v10428 = vsub.f32 %v10419, %v10427
      %v10429 = vmul.f32 %v10428, %v10428
      %v10430 = vsel %vm10422, %v10429, 0.0
      %10431 = vadd.xlane.f32.xlu0 %v10430
      %v10432 = vpop.xlane.xlu0 %10431
      %v10433 = vmul.f32 %v10432, %v10426
      %v10434 = vadd.f32 %v10433, 1e-05
      %v10435 = vrsqrt.pop %v10434
      %v10436 = vmul.f32 %v10428, %v10435
      %v10438 = vlaneseq
      %v10439 = vshrl.u32 %v10438, 7
      %v10440 = vsub.s32 0, %v10439
      %v10441 = vrot.slane %v10420, %v10440
      %v10443 = vmul.f32 %v10436, %v10441
      %v10445 = vlaneseq
      %v10446 = vshrl.u32 %v10445, 7
      %v10447 = vsub.s32 0, %v10446
      %v10448 = vrot.slane %v10421, %v10447
      %v10450 = vadd.f32 %v10443, %v10448
      %v10451 = vpack.c.bf16 %v10450, %v10450
      %v10452 = vld [vmem:[#allocation11] sm:$0xf]
      %v10453 = vld [vmem:[#allocation11 + $0x4] sm:$0xf]
      %v10454 = vld [vmem:[#allocation11 + $0x8] sm:$0xf]
      %v10455 = vld [vmem:[#allocation11 + $0xc] sm:$0xf]
      %v10456 = vld [vmem:[#allocation11 + $0x10] sm:$0xf]
      %v10457 = vld [vmem:[#allocation11 + $0x14] sm:$0xf]
      %v10458 = vld [vmem:[#allocation11 + $0x18] sm:$0xf]
      %v10459 = vld [vmem:[#allocation11 + $0x1c] sm:$0xf]
      %v10460 = vld [vmem:[#allocation11 + $0x20] sm:$0xf]
      %v10461 = vld [vmem:[#allocation11 + $0x24] sm:$0xf]
      %v10462 = vld [vmem:[#allocation11 + $0x28] sm:$0xf]
      %v10463 = vld [vmem:[#allocation11 + $0x2c] sm:$0xf]
      %v10464 = vld [vmem:[#allocation11 + $0x30] sm:$0xf]
      %v10465 = vld [vmem:[#allocation11 + $0x34] sm:$0xf]
      %v10466 = vld [vmem:[#allocation11 + $0x38] sm:$0xf]
      %v10467 = vld [vmem:[#allocation11 + $0x3c] sm:$0xf]
      %v10468 = vld [vmem:[#allocation13] sm:$0x1]
      %v10470 = vlaneseq
      %v10471 = vshrl.u32 %v10470, 7
      %v10472 = vsub.s32 0, %v10471
      %v10473 = vrot.slane %v10468, %v10472
      %v10491 = vunpack.c.l.b16 %v10452
      %v10492 = vunpack.c.l.b16 %v10453
      %v10493 = vunpack.c.l.b16 %v10454
      %v10494 = vunpack.c.l.b16 %v10455
      %v10495 = vunpack.c.l.b16 %v10456
      %v10496 = vunpack.c.l.b16 %v10457
      %v10497 = vunpack.c.l.b16 %v10458
      %v10498 = vunpack.c.l.b16 %v10459
      %v10499 = vunpack.c.l.b16 %v10460
      %v10500 = vunpack.c.l.b16 %v10461
      %v10501 = vunpack.c.l.b16 %v10462
      %v10502 = vunpack.c.l.b16 %v10463
      %v10503 = vunpack.c.l.b16 %v10464
      %v10504 = vunpack.c.l.b16 %v10465
      %v10505 = vunpack.c.l.b16 %v10466
      %v10506 = vunpack.c.l.b16 %v10467
      %v10507 = vpack.c.b16 %v10492, %v10491
      %v10508 = vpack.c.b16 %v10494, %v10493
      %v10509 = vpack.c.b16 %v10496, %v10495
      %v10510 = vpack.c.b16 %v10498, %v10497
      %v10511 = vpack.c.b16 %v10500, %v10499
      %v10512 = vpack.c.b16 %v10502, %v10501
      %v10513 = vpack.c.b16 %v10504, %v10503
      %v10514 = vpack.c.b16 %v10506, %v10505
      %10523 = vmatprep.subr.bf16.mxu0 0
      %10524 = vmatpush1.bf16.msra.mxu0 %v10514
      %10525 = vmatprep.subr.bf16.mxu0 0
      %10526 = vmatpush1.bf16.msra.mxu0 %v10513
      %10527 = vmatprep.subr.bf16.mxu0 0
      %10528 = vmatpush1.bf16.msra.mxu0 %v10512
      %10529 = vmatprep.subr.bf16.mxu0 0
      %10530 = vmatpush1.bf16.msra.mxu0 %v10511
      %10531 = vmatprep.subr.bf16.mxu0 0
      %10532 = vmatpush1.bf16.msra.mxu0 %v10510
      %10533 = vmatprep.subr.bf16.mxu0 0
      %10534 = vmatpush1.bf16.msra.mxu0 %v10509
      %10535 = vmatprep.subr.bf16.mxu0 0
      %10536 = vmatpush1.bf16.msra.mxu0 %v10508
      %10537 = vmatprep.subr.bf16.mxu0 0
      %10538 = vmatpush1.bf16.msra.mxu0 %v10507
      %10539 = vmatprep.subr.bf16.mxu0 0
      %10540 = vmatpush2.bf16.msra.mxu0 0
      %10541 = vmatprep.subr.bf16.mxu0 0
      %10542 = vmatpush2.bf16.msra.mxu0 0
      %10543 = vmatprep.subr.bf16.mxu0 0
      %10544 = vmatpush2.bf16.msra.mxu0 0
      %10545 = vmatprep.subr.bf16.mxu0 0
      %10546 = vmatpush2.bf16.msra.mxu0 0
      %10547 = vmatprep.subr.bf16.mxu0 0
      %10548 = vmatpush2.bf16.msra.mxu0 0
      %10549 = vmatprep.subr.bf16.mxu0 0
      %10550 = vmatpush2.bf16.msra.mxu0 0
      %10551 = vmatprep.subr.bf16.mxu0 0
      %10552 = vmatpush2.bf16.msra.mxu0 0
      %10553 = vmatprep.subr.bf16.mxu0 0
      %10554 = vmatpush2.bf16.msra.mxu0 0
      %10555 = vmatprep.mubr.bf16.mxu0 0
      %10556 = vmatmul.mubr.bf16.gmra.mxu0 %v10451
      %v10557 = vpop.f32.mrf.mxu0
      %v10558 = vadd.f32 %v10473, %v10557
      %v10559 = vpop.f32.mrf.mxu0
      %v10560 = vpop.f32.mrf.mxu0
      %v10561 = vpop.f32.mrf.mxu0
      %10562 = vdwg.mxu0
      %v10563 = vmax.f32 %v10558, 0.0
      %v10564 = vld [vmem:[#allocation14] sm:$0x1]
      %v10565 = vld [vmem:[#allocation16] sm:$0x1]
      %v10566 = vsel %vm10422, %v10563, 0.0
      %10567 = vadd.xlane.f32.xlu0 %v10566
      %v10568 = vpop.xlane.xlu0 %10567
      %v10569 = vmul.f32 %v10568, %v10426
      %v10570 = vsub.f32 %v10563, %v10569
      %v10571 = vmul.f32 %v10570, %v10570
      %v10572 = vsel %vm10422, %v10571, 0.0
      %10573 = vadd.xlane.f32.xlu0 %v10572
      %v10574 = vpop.xlane.xlu0 %10573
      %v10575 = vmul.f32 %v10574, %v10426
      %v10576 = vadd.f32 %v10575, 1e-05
      %v10577 = vrsqrt.pop %v10576
      %v10578 = vmul.f32 %v10570, %v10577
      %v10580 = vlaneseq
      %v10581 = vshrl.u32 %v10580, 7
      %v10582 = vsub.s32 0, %v10581
      %v10583 = vrot.slane %v10564, %v10582
      %v10585 = vmul.f32 %v10578, %v10583
      %v10587 = vlaneseq
      %v10588 = vshrl.u32 %v10587, 7
      %v10589 = vsub.s32 0, %v10588
      %v10590 = vrot.slane %v10565, %v10589
      %v10592 = vadd.f32 %v10585, %v10590
      %v10593 = vpack.c.bf16 %v10592, %v10592
      %s10594 = scalar_lea.vmem [#allocation11], 64
      %v10595 = vld [vmem:[%s10594] sm:$0xf]
      %v10596 = vld [vmem:[%s10594 + $0x4] sm:$0xf]
      %v10597 = vld [vmem:[%s10594 + $0x8] sm:$0xf]
      %v10598 = vld [vmem:[%s10594 + $0xc] sm:$0xf]
      %v10599 = vld [vmem:[%s10594 + $0x10] sm:$0xf]
      %v10600 = vld [vmem:[%s10594 + $0x14] sm:$0xf]
      %v10601 = vld [vmem:[%s10594 + $0x18] sm:$0xf]
      %v10602 = vld [vmem:[%s10594 + $0x1c] sm:$0xf]
      %v10603 = vld [vmem:[%s10594 + $0x20] sm:$0xf]
      %v10604 = vld [vmem:[%s10594 + $0x24] sm:$0xf]
      %v10605 = vld [vmem:[%s10594 + $0x28] sm:$0xf]
      %v10606 = vld [vmem:[%s10594 + $0x2c] sm:$0xf]
      %v10607 = vld [vmem:[%s10594 + $0x30] sm:$0xf]
      %v10608 = vld [vmem:[%s10594 + $0x34] sm:$0xf]
      %v10609 = vld [vmem:[%s10594 + $0x38] sm:$0xf]
      %v10610 = vld [vmem:[%s10594 + $0x3c] sm:$0xf]
      %s10611 = scalar_lea.vmem [#allocation13], 1
      %v10612 = vld [vmem:[%s10611] sm:$0x1]
      %v10614 = vlaneseq
      %v10615 = vshrl.u32 %v10614, 7
      %v10616 = vsub.s32 0, %v10615
      %v10617 = vrot.slane %v10612, %v10616
      %v10635 = vunpack.c.l.b16 %v10595
      %v10636 = vunpack.c.l.b16 %v10596
      %v10637 = vunpack.c.l.b16 %v10597
      %v10638 = vunpack.c.l.b16 %v10598
      %v10639 = vunpack.c.l.b16 %v10599
      %v10640 = vunpack.c.l.b16 %v10600
      %v10641 = vunpack.c.l.b16 %v10601
      %v10642 = vunpack.c.l.b16 %v10602
      %v10643 = vunpack.c.l.b16 %v10603
      %v10644 = vunpack.c.l.b16 %v10604
      %v10645 = vunpack.c.l.b16 %v10605
      %v10646 = vunpack.c.l.b16 %v10606
      %v10647 = vunpack.c.l.b16 %v10607
      %v10648 = vunpack.c.l.b16 %v10608
      %v10649 = vunpack.c.l.b16 %v10609
      %v10650 = vunpack.c.l.b16 %v10610
      %v10651 = vpack.c.b16 %v10636, %v10635
      %v10652 = vpack.c.b16 %v10638, %v10637
      %v10653 = vpack.c.b16 %v10640, %v10639
      %v10654 = vpack.c.b16 %v10642, %v10641
      %v10655 = vpack.c.b16 %v10644, %v10643
      %v10656 = vpack.c.b16 %v10646, %v10645
      %v10657 = vpack.c.b16 %v10648, %v10647
      %v10658 = vpack.c.b16 %v10650, %v10649
      %10667 = vmatprep.subr.bf16.mxu0 0
      %10668 = vmatpush1.bf16.msra.mxu0 %v10658
      %10669 = vmatprep.subr.bf16.mxu0 0
      %10670 = vmatpush1.bf16.msra.mxu0 %v10657
      %10671 = vmatprep.subr.bf16.mxu0 0
      %10672 = vmatpush1.bf16.msra.mxu0 %v10656
      %10673 = vmatprep.subr.bf16.mxu0 0
      %10674 = vmatpush1.bf16.msra.mxu0 %v10655
      %10675 = vmatprep.subr.bf16.mxu0 0
      %10676 = vmatpush1.bf16.msra.mxu0 %v10654
      %10677 = vmatprep.subr.bf16.mxu0 0
      %10678 = vmatpush1.bf16.msra.mxu0 %v10653
      %10679 = vmatprep.subr.bf16.mxu0 0
      %10680 = vmatpush1.bf16.msra.mxu0 %v10652
      %10681 = vmatprep.subr.bf16.mxu0 0
      %10682 = vmatpush1.bf16.msra.mxu0 %v10651
      %10683 = vmatprep.subr.bf16.mxu0 0
      %10684 = vmatpush2.bf16.msra.mxu0 0
      %10685 = vmatprep.subr.bf16.mxu0 0
      %10686 = vmatpush2.bf16.msra.mxu0 0
      %10687 = vmatprep.subr.bf16.mxu0 0
      %10688 = vmatpush2.bf16.msra.mxu0 0
      %10689 = vmatprep.subr.bf16.mxu0 0
      %10690 = vmatpush2.bf16.msra.mxu0 0
      %10691 = vmatprep.subr.bf16.mxu0 0
      %10692 = vmatpush2.bf16.msra.mxu0 0
      %10693 = vmatprep.subr.bf16.mxu0 0
      %10694 = vmatpush2.bf16.msra.mxu0 0
      %10695 = vmatprep.subr.bf16.mxu0 0
      %10696 = vmatpush2.bf16.msra.mxu0 0
      %10697 = vmatprep.subr.bf16.mxu0 0
      %10698 = vmatpush2.bf16.msra.mxu0 0
      %10699 = vmatprep.mubr.bf16.mxu0 0
      %10700 = vmatmul.mubr.bf16.gmra.mxu0 %v10593
      %v10701 = vpop.f32.mrf.mxu0
      %v10702 = vadd.f32 %v10617, %v10701
      %v10703 = vpop.f32.mrf.mxu0
      %v10704 = vpop.f32.mrf.mxu0
      %v10705 = vpop.f32.mrf.mxu0
      %10706 = vdwg.mxu0
      %v10707 = vmax.f32 %v10702, 0.0
      %s10708 = scalar_lea.vmem [#allocation14], 1
      %v10709 = vld [vmem:[%s10708] sm:$0x1]
      %s10710 = scalar_lea.vmem [#allocation16], 1
      %v10711 = vld [vmem:[%s10710] sm:$0x1]
      %v10712 = vsel %vm10422, %v10707, 0.0
      %10713 = vadd.xlane.f32.xlu0 %v10712
      %v10714 = vpop.xlane.xlu0 %10713
      %v10715 = vmul.f32 %v10714, %v10426
      %v10716 = vsub.f32 %v10707, %v10715
      %v10717 = vmul.f32 %v10716, %v10716
      %v10718 = vsel %vm10422, %v10717, 0.0
      %10719 = vadd.xlane.f32.xlu0 %v10718
      %v10720 = vpop.xlane.xlu0 %10719
      %v10721 = vmul.f32 %v10720, %v10426
      %v10722 = vadd.f32 %v10721, 1e-05
      %v10723 = vrsqrt.pop %v10722
      %v10724 = vmul.f32 %v10716, %v10723
      %v10726 = vlaneseq
      %v10727 = vshrl.u32 %v10726, 7
      %v10728 = vsub.s32 0, %v10727
      %v10729 = vrot.slane %v10709, %v10728
      %v10731 = vmul.f32 %v10724, %v10729
      %v10733 = vlaneseq
      %v10734 = vshrl.u32 %v10733, 7
      %v10735 = vsub.s32 0, %v10734
      %v10736 = vrot.slane %v10711, %v10735
      %v10738 = vadd.f32 %v10731, %v10736
      %10739 = vst [vmem:[#allocation17] sm:$0x3] %v10738
    $region81: #{tpu_custom_call.1} parent=1 // pred_fallthru
      _
    // Predicated region
    $region82: #{tpu_custom_call.1} parent=1 // pred_check
      _
    $region83: #{tpu_custom_call.1} parent=1 // pred_check_branch
      %10741 = sbr.rel (0) target = $region85
    $region84: #{tpu_custom_call.1} parent=1 // pred_region
      %s10743 = ssub.s32 32, 32
      %10744 = vsyncadd [#allocation4], %s10743
      %s10746 = sshll.u32 [#allocation17], 4
      %s10747 = int_to_ptr.vmem [resolvable:$true] %s10746
      %10749 = dma.vmem_to_hbm [thread:$0]  %s10747, 32, %s9, [#allocation4]
    $region85: #{tpu_custom_call.1} parent=1 // pred_fallthru
      _
    // Predicated region
    $region86: #{tpu_custom_call.1} parent=1 // pred_check
      _
    $region87: #{tpu_custom_call.1} parent=1 // pred_check_branch
      %10751 = sbr.rel (0) target = $region89
    $region88: #{tpu_custom_call.1} parent=1 // pred_region
      %10752 = dma.done [#allocation4], 32
    $region89: #{tpu_custom_call.1} parent=1 // pred_fallthru
      _
    %10753 = vsyncpa [#allocation3], 1
    %10754 = vsyncpa [#allocation6], 1
    %10755 = vsyncpa [#allocation9], 1
    %10756 = vsyncpa [#allocation12], 1
    %10757 = vsyncpa [#allocation15], 1
    %10758 = vsyncpa [#allocation4], 1

</llo_original>
